<compile_context>
chip_gen: v7x
topology: tpu7x:2x2x1
jax: 0.10.0
libtpu: 0.0.40
codegen_flags: <defaults>
</compile_context>

<pallas_src>
import functools

import jax
import jax.numpy as jnp
from jax.experimental import pallas as pl
from jax.experimental.pallas import tpu as pltpu


# --------------------------------------------------------------------------- #
# Kernel 1: ConvTranspose2d(k=2, s=2), NCHW input -> interleaved NHWC output.
# Grid = (N, ki); each step writes the rows of output parity `ki` for batch n.
# --------------------------------------------------------------------------- #
def _up_kernel(x_ref, w_ref, b_ref, o_ref):
    # x_ref: (1, Cin, H1, W1) f32   (NCHW block for one batch item)
    # w_ref: (1, Cin, 2*Cout) f32   (weights for this ki tap; columns = (kj, oc))
    # b_ref: (1, 2*Cout)      f32
    # o_ref: (H1, 1, W1, 2*Cout) bf16  (interleaved-layout slot for this ki)
    cin = x_ref.shape[1]
    h1, w1 = x_ref.shape[2], x_ref.shape[3]
    k2 = w_ref.shape[2]

    acc = jnp.zeros((h1, w1, k2), jnp.float32) + b_ref[...][None, :, :]
    # Cin is tiny (K=4): VPU broadcast-FMAs instead of a near-empty MXU matmul.
    for c in range(cin):
        xc = x_ref[0, c, :, :]              # (H1, W1)
        wc = w_ref[0, c:c + 1, :]           # (1, 2*Cout)
        acc = acc + xc[:, :, None] * wc[None, :, :]

    o_ref[...] = jnp.reshape(acc, (h1, 1, w1, k2)).astype(o_ref.dtype)


# --------------------------------------------------------------------------- #
# Kernel 2: fused (implicit concat) + 3x3 conv (pad=1) + bias + LeakyReLU.
# Grid = (N,). Inputs are halo-padded NHWC bf16 blocks; the 9 taps are shifted
# windows multiplied on the MXU with f32 accumulation.
# --------------------------------------------------------------------------- #
def _conv_kernel(up_ref, x2_ref, wu_ref, wx_ref, b_ref, o_ref, *, H, W, slope):
    # up_ref: (1, H+2, W+2, C1) bf16 ; x2_ref: (1, H+2, W+2, C2) bf16
    # wu_ref: (9, C1, Co) bf16 ; wx_ref: (9, C2, Co) bf16 ; b_ref: (1, Co) f32
    # o_ref : (1, H, W, Co) f32
    c1 = up_ref.shape[3]
    c2 = x2_ref.shape[3]
    co = wu_ref.shape[2]

    acc = jnp.zeros((H * W, co), jnp.float32) + b_ref[...]
    for dy in range(3):
        for dx in range(3):
            t = dy * 3 + dx
            su = up_ref[0, dy:dy + H, dx:dx + W, :].reshape(H * W, c1)
            sx = x2_ref[0, dy:dy + H, dx:dx + W, :].reshape(H * W, c2)
            acc = acc + jnp.dot(su, wu_ref[t], preferred_element_type=jnp.float32)
            acc = acc + jnp.dot(sx, wx_ref[t], preferred_element_type=jnp.float32)

    acc = jnp.where(acc >= 0, acc, slope * acc)          # LeakyReLU in f32
    o_ref[...] = acc.reshape(1, H, W, co).astype(o_ref.dtype)


# --------------------------------------------------------------------------- #
# Decoder forward (external API matches PyTorch NCHW).
# --------------------------------------------------------------------------- #
def decoder_forward(x1, x2, params, *, slope=0.01):
    """x1: [N, Cin, H1, W1], x2: [N, Cmid-Cout, 2*H1, 2*W1] -> [N, Cout, 2*H1, 2*W1]."""
    up_w, up_b, conv_w, conv_b = (params["up_w"], params["up_b"],
                                  params["conv_w"], params["conv_b"])
    N, Cin, H1, W1 = x1.shape
    Cout = up_w.shape[1]
    C2 = x2.shape[1]
    Cmid = Cout + C2
    H, W = 2 * H1, 2 * W1
    assert conv_w.shape == (Cout, Cmid, 3, 3), conv_w.shape

    # ----- kernel 1: transpose-conv, emitted directly in interleaved NHWC -----
    # w_up_k[ki, c, kj*Cout + oc] = up_w[c, oc, ki, kj]
    w_up_k = jnp.transpose(up_w, (2, 0, 3, 1)).reshape(2, Cin, 2 * Cout).astype(jnp.float32)
    b_up2 = jnp.tile(up_b, 2).reshape(1, 2 * Cout).astype(jnp.float32)

    up_cost = pl.CostEstimate(
        flops=2 * N * H1 * W1 * Cin * 4 * Cout,
        transcendentals=0,
        bytes_accessed=x1.size * 4 + w_up_k.size * 4 + b_up2.size * 4
                       + N * H * W * Cout * 2)
    up_out = pl.pallas_call(
        _up_kernel,
        out_shape=jax.ShapeDtypeStruct((N * H1, 2, W1, 2 * Cout), jnp.bfloat16),
        grid=(N, 2),
        in_specs=[
            pl.BlockSpec((1, Cin, H1, W1), lambda n, k: (n, 0, 0, 0)),
            # NOTE: weight / bias blocks are grid-invariant; pl.Buffered(1) could
            # drop their double-buffering (left at the default here).
            pl.BlockSpec((1, Cin, 2 * Cout), lambda n, k: (k, 0, 0)),
            pl.BlockSpec((1, 2 * Cout), lambda n, k: (0, 0)),
        ],
        out_specs=pl.BlockSpec((H1, 1, W1, 2 * Cout), lambda n, k: (n, k, 0, 0)),
        compiler_params=pltpu.CompilerParams(
            dimension_semantics=("parallel", "parallel")),
        cost_estimate=up_cost,
    )(x1.astype(jnp.float32), w_up_k, b_up2)

    # free row-major reshape: (N*H1, 2, W1, 2*Cout) -> (N, H, W, Cout), bf16
    up_nhwc = up_out.reshape(N, H, W, Cout)

    # halo-padded NHWC activations (bf16); concat / im2col tensors never exist.
    up_pad = jnp.pad(up_nhwc, ((0, 0), (1, 1), (1, 1), (0, 0)))
    x2_pad = jnp.pad(jnp.transpose(x2, (0, 2, 3, 1)).astype(jnp.bfloat16),
                     ((0, 0), (1, 1), (1, 1), (0, 0)))

    # conv weights split by channel group (up part vs x2 part), tap-major:
    #   w_taps[dy*3+dx, c, o] = conv_w[o, c, dy, dx]
    w_taps = jnp.transpose(conv_w, (2, 3, 1, 0)).reshape(9, Cmid, Cout)
    wu = w_taps[:, :Cout, :].astype(jnp.bfloat16)
    wx = w_taps[:, Cout:, :].astype(jnp.bfloat16)
    bc = conv_b.reshape(1, Cout).astype(jnp.float32)

    conv_cost = pl.CostEstimate(
        flops=2 * N * H * W * 9 * Cmid * Cout,
        transcendentals=0,
        bytes_accessed=(up_pad.size + x2_pad.size + wu.size + wx.size) * 2
                       + bc.size * 4 + N * H * W * Cout * 4)
    out_nhwc = pl.pallas_call(
        functools.partial(_conv_kernel, H=H, W=W, slope=slope),
        out_shape=jax.ShapeDtypeStruct((N, H, W, Cout), jnp.float32),
        grid=(N,),
        in_specs=[
            pl.BlockSpec((1, H + 2, W + 2, Cout), lambda n: (n, 0, 0, 0)),
            pl.BlockSpec((1, H + 2, W + 2, C2), lambda n: (n, 0, 0, 0)),
            pl.BlockSpec((9, Cout, Cout), lambda n: (0, 0, 0)),
            pl.BlockSpec((9, C2, Cout), lambda n: (0, 0, 0)),
            pl.BlockSpec((1, Cout), lambda n: (0, 0)),
        ],
        out_specs=pl.BlockSpec((1, H, W, Cout), lambda n: (n, 0, 0, 0)),
        compiler_params=pltpu.CompilerParams(dimension_semantics=("parallel",)),
        cost_estimate=conv_cost,
    )(up_pad, x2_pad, wu, wx, bc)

    # single boundary layout op back to the PyTorch NCHW API
    return jnp.transpose(out_nhwc, (0, 3, 1, 2))


# ----------------------------- pure-JAX reference ---------------------------
def reference_forward(x1, x2, params):
    up_w, up_b, conv_w, conv_b = (params["up_w"], params["up_b"],
                                  params["conv_w"], params["conv_b"])
    N, Cin, H1, W1 = x1.shape
    Cout = up_w.shape[1]
    y = jnp.einsum("ncij,cokl->noikjl", x1, up_w)              # [N,Cout,H1,2,W1,2]
    up = y.reshape(N, Cout, 2 * H1, 2 * W1) + up_b[None, :, None, None]
    cat = jnp.concatenate([up, x2], axis=1)
    H, W = cat.shape[2], cat.shape[3]
    pad = jnp.pad(cat, ((0, 0), (0, 0), (1, 1), (1, 1)))
    acc = jnp.zeros((N, Cout, H, W), jnp.float32)
    for dy in range(3):
        for dx in range(3):
            acc = acc + jnp.einsum("nchw,oc->nohw",
                                   pad[:, :, dy:dy + H, dx:dx + W],
                                   conv_w[:, :, dy, dx])
    acc = acc + conv_b[None, :, None, None]
    return jnp.where(acc >= 0, acc, 0.01 * acc)


# ----------------------------------- main ------------------------------------
if __name__ == "__main__":
    # Small shapes: in_channels=4, middle_channels=8, out_channels=4
    N, Cin, Cmid, Cout = 2, 4, 8, 4
    H1 = W1 = 8                       # x1 spatial; output spatial = 16x16
    key = jax.random.PRNGKey(0)
    k1, k2, k3, k4, k5, k6 = jax.random.split(key, 6)

    x1 = jax.random.normal(k1, (N, Cin, H1, W1), jnp.float32)
    x2 = jax.random.normal(k2, (N, Cmid - Cout, 2 * H1, 2 * W1), jnp.float32)

    params = {
        # ConvTranspose2d weight: [in_ch, out_ch, 2, 2]
        "up_w": 0.1 * jax.random.normal(k3, (Cin, Cout, 2, 2), jnp.float32),
        "up_b": 0.1 * jax.random.normal(k4, (Cout,), jnp.float32),
        # Conv2d weight: [out_ch, mid_ch, 3, 3]
        "conv_w": 0.1 * jax.random.normal(k5, (Cout, Cmid, 3, 3), jnp.float32),
        "conv_b": 0.1 * jax.random.normal(k6, (Cout,), jnp.float32),
    }

    fwd = jax.jit(decoder_forward)
    out = jax.block_until_ready(fwd(x1, x2, params))
    ref = jax.block_until_ready(reference_forward(x1, x2, params))

    assert out.shape == (N, Cout, 2 * H1, 2 * W1), out.shape
    max_err = float(jnp.max(jnp.abs(out - ref)))
    # bf16 matmul operands with f32 accumulation vs. an f32 reference -> relaxed tolerance
    assert jnp.allclose(out, ref, atol=5e-2, rtol=5e-2), max_err
    print("KERNEL_OK")
</pallas_src>

<mosaic_0001>
module attributes {stable_mosaic.version = 11 : i64} {
  func.func @_conv_kernel(%arg0: i32, %arg1: memref<1x18x18x4xbf16, #tpu.memory_space<vmem>>, %arg2: memref<1x18x18x4xbf16, #tpu.memory_space<vmem>>, %arg3: memref<9x4x4xbf16, #tpu.memory_space<vmem>>, %arg4: memref<9x4x4xbf16, #tpu.memory_space<vmem>>, %arg5: memref<1x4xf32, #tpu.memory_space<vmem>>, %arg6: memref<1x16x16x4xf32, #tpu.memory_space<vmem>>) attributes {dimension_semantics = [#tpu.dimension_semantics<parallel>], iteration_bounds = array<i64: 2>, scalar_prefetch = 0 : i64, scratch_operands = 0 : i64, tpu.core_type = #tpu.core_type<tc>, window_params = [{transform_indices = @transform_0, window_bounds = array<i64: 1, 18, 18, 4>}, {transform_indices = @transform_1, window_bounds = array<i64: 1, 18, 18, 4>}, {pipeline_mode = #tpu.pipeline_mode<synchronous>, transform_indices = @transform_2, window_bounds = array<i64: 9, 4, 4>}, {pipeline_mode = #tpu.pipeline_mode<synchronous>, transform_indices = @transform_3, window_bounds = array<i64: 9, 4, 4>}, {pipeline_mode = #tpu.pipeline_mode<synchronous>, transform_indices = @transform_4, window_bounds = array<i64: 1, 4>}, {transform_indices = @transform_5, window_bounds = array<i64: 1, 16, 16, 4>}]} {
    %cst = arith.constant 0.000000e+00 : f32
    %0 = vector.broadcast %cst : f32 to vector<256x4xf32>
    %c0 = arith.constant 0 : index
    %c0_0 = arith.constant 0 : index
    %1 = vector.load %arg5[%c0, %c0_0] : memref<1x4xf32, #tpu.memory_space<vmem>>, vector<1x4xf32>
    %2 = vector.broadcast %1 : vector<1x4xf32> to vector<256x4xf32>
    %3 = arith.addf %0, %2 : vector<256x4xf32>
    %c0_1 = arith.constant 0 : index
    %c0_2 = arith.constant 0 : index
    %c0_3 = arith.constant 0 : index
    %c0_4 = arith.constant 0 : index
    %4 = vector.load %arg1[%c0_1, %c0_2, %c0_3, %c0_4] : memref<1x18x18x4xbf16, #tpu.memory_space<vmem>>, vector<1x16x16x4xbf16>
    %5 = vector.shape_cast %4 : vector<1x16x16x4xbf16> to vector<16x16x4xbf16>
    %6 = vector.shape_cast %5 : vector<16x16x4xbf16> to vector<256x4xbf16>
    %c0_5 = arith.constant 0 : index
    %c0_6 = arith.constant 0 : index
    %c0_7 = arith.constant 0 : index
    %c0_8 = arith.constant 0 : index
    %7 = vector.load %arg2[%c0_5, %c0_6, %c0_7, %c0_8] : memref<1x18x18x4xbf16, #tpu.memory_space<vmem>>, vector<1x16x16x4xbf16>
    %8 = vector.shape_cast %7 : vector<1x16x16x4xbf16> to vector<16x16x4xbf16>
    %9 = vector.shape_cast %8 : vector<16x16x4xbf16> to vector<256x4xbf16>
    %c0_9 = arith.constant 0 : index
    %c0_10 = arith.constant 0 : index
    %c0_11 = arith.constant 0 : index
    %10 = vector.load %arg3[%c0_9, %c0_10, %c0_11] : memref<9x4x4xbf16, #tpu.memory_space<vmem>>, vector<1x4x4xbf16>
    %11 = vector.shape_cast %10 : vector<1x4x4xbf16> to vector<4x4xbf16>
    %cst_12 = arith.constant dense<0.000000e+00> : vector<256x4xf32>
    %12 = tpu.matmul %6, %11, %cst_12 {dimension_numbers = #tpu.dot_dimension_numbers<[1], [0], [0], [1], [0, 0, 1, 1], [], []>} : vector<256x4xbf16>, vector<4x4xbf16>, vector<256x4xf32> -> vector<256x4xf32>
    %13 = arith.addf %3, %12 : vector<256x4xf32>
    %c0_13 = arith.constant 0 : index
    %c0_14 = arith.constant 0 : index
    %c0_15 = arith.constant 0 : index
    %14 = vector.load %arg4[%c0_13, %c0_14, %c0_15] : memref<9x4x4xbf16, #tpu.memory_space<vmem>>, vector<1x4x4xbf16>
    %15 = vector.shape_cast %14 : vector<1x4x4xbf16> to vector<4x4xbf16>
    %cst_16 = arith.constant dense<0.000000e+00> : vector<256x4xf32>
    %16 = tpu.matmul %9, %15, %cst_16 {dimension_numbers = #tpu.dot_dimension_numbers<[1], [0], [0], [1], [0, 0, 1, 1], [], []>} : vector<256x4xbf16>, vector<4x4xbf16>, vector<256x4xf32> -> vector<256x4xf32>
    %17 = arith.addf %13, %16 : vector<256x4xf32>
    %c0_17 = arith.constant 0 : index
    %c0_18 = arith.constant 0 : index
    %c1 = arith.constant 1 : index
    %c0_19 = arith.constant 0 : index
    %18 = vector.load %arg1[%c0_17, %c0_18, %c1, %c0_19] : memref<1x18x18x4xbf16, #tpu.memory_space<vmem>>, vector<1x16x16x4xbf16>
    %19 = vector.shape_cast %18 : vector<1x16x16x4xbf16> to vector<16x16x4xbf16>
    %20 = vector.shape_cast %19 : vector<16x16x4xbf16> to vector<256x4xbf16>
    %c0_20 = arith.constant 0 : index
    %c0_21 = arith.constant 0 : index
    %c1_22 = arith.constant 1 : index
    %c0_23 = arith.constant 0 : index
    %21 = vector.load %arg2[%c0_20, %c0_21, %c1_22, %c0_23] : memref<1x18x18x4xbf16, #tpu.memory_space<vmem>>, vector<1x16x16x4xbf16>
    %22 = vector.shape_cast %21 : vector<1x16x16x4xbf16> to vector<16x16x4xbf16>
    %23 = vector.shape_cast %22 : vector<16x16x4xbf16> to vector<256x4xbf16>
    %c1_24 = arith.constant 1 : index
    %c0_25 = arith.constant 0 : index
    %c0_26 = arith.constant 0 : index
    %24 = vector.load %arg3[%c1_24, %c0_25, %c0_26] : memref<9x4x4xbf16, #tpu.memory_space<vmem>>, vector<1x4x4xbf16>
    %25 = vector.shape_cast %24 : vector<1x4x4xbf16> to vector<4x4xbf16>
    %cst_27 = arith.constant dense<0.000000e+00> : vector<256x4xf32>
    %26 = tpu.matmul %20, %25, %cst_27 {dimension_numbers = #tpu.dot_dimension_numbers<[1], [0], [0], [1], [0, 0, 1, 1], [], []>} : vector<256x4xbf16>, vector<4x4xbf16>, vector<256x4xf32> -> vector<256x4xf32>
    %27 = arith.addf %17, %26 : vector<256x4xf32>
    %c1_28 = arith.constant 1 : index
    %c0_29 = arith.constant 0 : index
    %c0_30 = arith.constant 0 : index
    %28 = vector.load %arg4[%c1_28, %c0_29, %c0_30] : memref<9x4x4xbf16, #tpu.memory_space<vmem>>, vector<1x4x4xbf16>
    %29 = vector.shape_cast %28 : vector<1x4x4xbf16> to vector<4x4xbf16>
    %cst_31 = arith.constant dense<0.000000e+00> : vector<256x4xf32>
    %30 = tpu.matmul %23, %29, %cst_31 {dimension_numbers = #tpu.dot_dimension_numbers<[1], [0], [0], [1], [0, 0, 1, 1], [], []>} : vector<256x4xbf16>, vector<4x4xbf16>, vector<256x4xf32> -> vector<256x4xf32>
    %31 = arith.addf %27, %30 : vector<256x4xf32>
    %c0_32 = arith.constant 0 : index
    %c0_33 = arith.constant 0 : index
    %c2 = arith.constant 2 : index
    %c0_34 = arith.constant 0 : index
    %32 = vector.load %arg1[%c0_32, %c0_33, %c2, %c0_34] : memref<1x18x18x4xbf16, #tpu.memory_space<vmem>>, vector<1x16x16x4xbf16>
    %33 = vector.shape_cast %32 : vector<1x16x16x4xbf16> to vector<16x16x4xbf16>
    %34 = vector.shape_cast %33 : vector<16x16x4xbf16> to vector<256x4xbf16>
    %c0_35 = arith.constant 0 : index
    %c0_36 = arith.constant 0 : index
    %c2_37 = arith.constant 2 : index
    %c0_38 = arith.constant 0 : index
    %35 = vector.load %arg2[%c0_35, %c0_36, %c2_37, %c0_38] : memref<1x18x18x4xbf16, #tpu.memory_space<vmem>>, vector<1x16x16x4xbf16>
    %36 = vector.shape_cast %35 : vector<1x16x16x4xbf16> to vector<16x16x4xbf16>
    %37 = vector.shape_cast %36 : vector<16x16x4xbf16> to vector<256x4xbf16>
    %c2_39 = arith.constant 2 : index
    %c0_40 = arith.constant 0 : index
    %c0_41 = arith.constant 0 : index
    %38 = vector.load %arg3[%c2_39, %c0_40, %c0_41] : memref<9x4x4xbf16, #tpu.memory_space<vmem>>, vector<1x4x4xbf16>
    %39 = vector.shape_cast %38 : vector<1x4x4xbf16> to vector<4x4xbf16>
    %cst_42 = arith.constant dense<0.000000e+00> : vector<256x4xf32>
    %40 = tpu.matmul %34, %39, %cst_42 {dimension_numbers = #tpu.dot_dimension_numbers<[1], [0], [0], [1], [0, 0, 1, 1], [], []>} : vector<256x4xbf16>, vector<4x4xbf16>, vector<256x4xf32> -> vector<256x4xf32>
    %41 = arith.addf %31, %40 : vector<256x4xf32>
    %c2_43 = arith.constant 2 : index
    %c0_44 = arith.constant 0 : index
    %c0_45 = arith.constant 0 : index
    %42 = vector.load %arg4[%c2_43, %c0_44, %c0_45] : memref<9x4x4xbf16, #tpu.memory_space<vmem>>, vector<1x4x4xbf16>
    %43 = vector.shape_cast %42 : vector<1x4x4xbf16> to vector<4x4xbf16>
    %cst_46 = arith.constant dense<0.000000e+00> : vector<256x4xf32>
    %44 = tpu.matmul %37, %43, %cst_46 {dimension_numbers = #tpu.dot_dimension_numbers<[1], [0], [0], [1], [0, 0, 1, 1], [], []>} : vector<256x4xbf16>, vector<4x4xbf16>, vector<256x4xf32> -> vector<256x4xf32>
    %45 = arith.addf %41, %44 : vector<256x4xf32>
    %c0_47 = arith.constant 0 : index
    %c1_48 = arith.constant 1 : index
    %c0_49 = arith.constant 0 : index
    %c0_50 = arith.constant 0 : index
    %46 = vector.load %arg1[%c0_47, %c1_48, %c0_49, %c0_50] : memref<1x18x18x4xbf16, #tpu.memory_space<vmem>>, vector<1x16x16x4xbf16>
    %47 = vector.shape_cast %46 : vector<1x16x16x4xbf16> to vector<16x16x4xbf16>
    %48 = vector.shape_cast %47 : vector<16x16x4xbf16> to vector<256x4xbf16>
    %c0_51 = arith.constant 0 : index
    %c1_52 = arith.constant 1 : index
    %c0_53 = arith.constant 0 : index
    %c0_54 = arith.constant 0 : index
    %49 = vector.load %arg2[%c0_51, %c1_52, %c0_53, %c0_54] : memref<1x18x18x4xbf16, #tpu.memory_space<vmem>>, vector<1x16x16x4xbf16>
    %50 = vector.shape_cast %49 : vector<1x16x16x4xbf16> to vector<16x16x4xbf16>
    %51 = vector.shape_cast %50 : vector<16x16x4xbf16> to vector<256x4xbf16>
    %c3 = arith.constant 3 : index
    %c0_55 = arith.constant 0 : index
    %c0_56 = arith.constant 0 : index
    %52 = vector.load %arg3[%c3, %c0_55, %c0_56] : memref<9x4x4xbf16, #tpu.memory_space<vmem>>, vector<1x4x4xbf16>
    %53 = vector.shape_cast %52 : vector<1x4x4xbf16> to vector<4x4xbf16>
    %cst_57 = arith.constant dense<0.000000e+00> : vector<256x4xf32>
    %54 = tpu.matmul %48, %53, %cst_57 {dimension_numbers = #tpu.dot_dimension_numbers<[1], [0], [0], [1], [0, 0, 1, 1], [], []>} : vector<256x4xbf16>, vector<4x4xbf16>, vector<256x4xf32> -> vector<256x4xf32>
    %55 = arith.addf %45, %54 : vector<256x4xf32>
    %c3_58 = arith.constant 3 : index
    %c0_59 = arith.constant 0 : index
    %c0_60 = arith.constant 0 : index
    %56 = vector.load %arg4[%c3_58, %c0_59, %c0_60] : memref<9x4x4xbf16, #tpu.memory_space<vmem>>, vector<1x4x4xbf16>
    %57 = vector.shape_cast %56 : vector<1x4x4xbf16> to vector<4x4xbf16>
    %cst_61 = arith.constant dense<0.000000e+00> : vector<256x4xf32>
    %58 = tpu.matmul %51, %57, %cst_61 {dimension_numbers = #tpu.dot_dimension_numbers<[1], [0], [0], [1], [0, 0, 1, 1], [], []>} : vector<256x4xbf16>, vector<4x4xbf16>, vector<256x4xf32> -> vector<256x4xf32>
    %59 = arith.addf %55, %58 : vector<256x4xf32>
    %c0_62 = arith.constant 0 : index
    %c1_63 = arith.constant 1 : index
    %c1_64 = arith.constant 1 : index
    %c0_65 = arith.constant 0 : index
    %60 = vector.load %arg1[%c0_62, %c1_63, %c1_64, %c0_65] : memref<1x18x18x4xbf16, #tpu.memory_space<vmem>>, vector<1x16x16x4xbf16>
    %61 = vector.shape_cast %60 : vector<1x16x16x4xbf16> to vector<16x16x4xbf16>
    %62 = vector.shape_cast %61 : vector<16x16x4xbf16> to vector<256x4xbf16>
    %c0_66 = arith.constant 0 : index
    %c1_67 = arith.constant 1 : index
    %c1_68 = arith.constant 1 : index
    %c0_69 = arith.constant 0 : index
    %63 = vector.load %arg2[%c0_66, %c1_67, %c1_68, %c0_69] : memref<1x18x18x4xbf16, #tpu.memory_space<vmem>>, vector<1x16x16x4xbf16>
    %64 = vector.shape_cast %63 : vector<1x16x16x4xbf16> to vector<16x16x4xbf16>
    %65 = vector.shape_cast %64 : vector<16x16x4xbf16> to vector<256x4xbf16>
    %c4 = arith.constant 4 : index
    %c0_70 = arith.constant 0 : index
    %c0_71 = arith.constant 0 : index
    %66 = vector.load %arg3[%c4, %c0_70, %c0_71] : memref<9x4x4xbf16, #tpu.memory_space<vmem>>, vector<1x4x4xbf16>
    %67 = vector.shape_cast %66 : vector<1x4x4xbf16> to vector<4x4xbf16>
    %cst_72 = arith.constant dense<0.000000e+00> : vector<256x4xf32>
    %68 = tpu.matmul %62, %67, %cst_72 {dimension_numbers = #tpu.dot_dimension_numbers<[1], [0], [0], [1], [0, 0, 1, 1], [], []>} : vector<256x4xbf16>, vector<4x4xbf16>, vector<256x4xf32> -> vector<256x4xf32>
    %69 = arith.addf %59, %68 : vector<256x4xf32>
    %c4_73 = arith.constant 4 : index
    %c0_74 = arith.constant 0 : index
    %c0_75 = arith.constant 0 : index
    %70 = vector.load %arg4[%c4_73, %c0_74, %c0_75] : memref<9x4x4xbf16, #tpu.memory_space<vmem>>, vector<1x4x4xbf16>
    %71 = vector.shape_cast %70 : vector<1x4x4xbf16> to vector<4x4xbf16>
    %cst_76 = arith.constant dense<0.000000e+00> : vector<256x4xf32>
    %72 = tpu.matmul %65, %71, %cst_76 {dimension_numbers = #tpu.dot_dimension_numbers<[1], [0], [0], [1], [0, 0, 1, 1], [], []>} : vector<256x4xbf16>, vector<4x4xbf16>, vector<256x4xf32> -> vector<256x4xf32>
    %73 = arith.addf %69, %72 : vector<256x4xf32>
    %c0_77 = arith.constant 0 : index
    %c1_78 = arith.constant 1 : index
    %c2_79 = arith.constant 2 : index
    %c0_80 = arith.constant 0 : index
    %74 = vector.load %arg1[%c0_77, %c1_78, %c2_79, %c0_80] : memref<1x18x18x4xbf16, #tpu.memory_space<vmem>>, vector<1x16x16x4xbf16>
    %75 = vector.shape_cast %74 : vector<1x16x16x4xbf16> to vector<16x16x4xbf16>
    %76 = vector.shape_cast %75 : vector<16x16x4xbf16> to vector<256x4xbf16>
    %c0_81 = arith.constant 0 : index
    %c1_82 = arith.constant 1 : index
    %c2_83 = arith.constant 2 : index
    %c0_84 = arith.constant 0 : index
    %77 = vector.load %arg2[%c0_81, %c1_82, %c2_83, %c0_84] : memref<1x18x18x4xbf16, #tpu.memory_space<vmem>>, vector<1x16x16x4xbf16>
    %78 = vector.shape_cast %77 : vector<1x16x16x4xbf16> to vector<16x16x4xbf16>
    %79 = vector.shape_cast %78 : vector<16x16x4xbf16> to vector<256x4xbf16>
    %c5 = arith.constant 5 : index
    %c0_85 = arith.constant 0 : index
    %c0_86 = arith.constant 0 : index
    %80 = vector.load %arg3[%c5, %c0_85, %c0_86] : memref<9x4x4xbf16, #tpu.memory_space<vmem>>, vector<1x4x4xbf16>
    %81 = vector.shape_cast %80 : vector<1x4x4xbf16> to vector<4x4xbf16>
    %cst_87 = arith.constant dense<0.000000e+00> : vector<256x4xf32>
    %82 = tpu.matmul %76, %81, %cst_87 {dimension_numbers = #tpu.dot_dimension_numbers<[1], [0], [0], [1], [0, 0, 1, 1], [], []>} : vector<256x4xbf16>, vector<4x4xbf16>, vector<256x4xf32> -> vector<256x4xf32>
    %83 = arith.addf %73, %82 : vector<256x4xf32>
    %c5_88 = arith.constant 5 : index
    %c0_89 = arith.constant 0 : index
    %c0_90 = arith.constant 0 : index
    %84 = vector.load %arg4[%c5_88, %c0_89, %c0_90] : memref<9x4x4xbf16, #tpu.memory_space<vmem>>, vector<1x4x4xbf16>
    %85 = vector.shape_cast %84 : vector<1x4x4xbf16> to vector<4x4xbf16>
    %cst_91 = arith.constant dense<0.000000e+00> : vector<256x4xf32>
    %86 = tpu.matmul %79, %85, %cst_91 {dimension_numbers = #tpu.dot_dimension_numbers<[1], [0], [0], [1], [0, 0, 1, 1], [], []>} : vector<256x4xbf16>, vector<4x4xbf16>, vector<256x4xf32> -> vector<256x4xf32>
    %87 = arith.addf %83, %86 : vector<256x4xf32>
    %c0_92 = arith.constant 0 : index
    %c2_93 = arith.constant 2 : index
    %c0_94 = arith.constant 0 : index
    %c0_95 = arith.constant 0 : index
    %88 = vector.load %arg1[%c0_92, %c2_93, %c0_94, %c0_95] : memref<1x18x18x4xbf16, #tpu.memory_space<vmem>>, vector<1x16x16x4xbf16>
    %89 = vector.shape_cast %88 : vector<1x16x16x4xbf16> to vector<16x16x4xbf16>
    %90 = vector.shape_cast %89 : vector<16x16x4xbf16> to vector<256x4xbf16>
    %c0_96 = arith.constant 0 : index
    %c2_97 = arith.constant 2 : index
    %c0_98 = arith.constant 0 : index
    %c0_99 = arith.constant 0 : index
    %91 = vector.load %arg2[%c0_96, %c2_97, %c0_98, %c0_99] : memref<1x18x18x4xbf16, #tpu.memory_space<vmem>>, vector<1x16x16x4xbf16>
    %92 = vector.shape_cast %91 : vector<1x16x16x4xbf16> to vector<16x16x4xbf16>
    %93 = vector.shape_cast %92 : vector<16x16x4xbf16> to vector<256x4xbf16>
    %c6 = arith.constant 6 : index
    %c0_100 = arith.constant 0 : index
    %c0_101 = arith.constant 0 : index
    %94 = vector.load %arg3[%c6, %c0_100, %c0_101] : memref<9x4x4xbf16, #tpu.memory_space<vmem>>, vector<1x4x4xbf16>
    %95 = vector.shape_cast %94 : vector<1x4x4xbf16> to vector<4x4xbf16>
    %cst_102 = arith.constant dense<0.000000e+00> : vector<256x4xf32>
    %96 = tpu.matmul %90, %95, %cst_102 {dimension_numbers = #tpu.dot_dimension_numbers<[1], [0], [0], [1], [0, 0, 1, 1], [], []>} : vector<256x4xbf16>, vector<4x4xbf16>, vector<256x4xf32> -> vector<256x4xf32>
    %97 = arith.addf %87, %96 : vector<256x4xf32>
    %c6_103 = arith.constant 6 : index
    %c0_104 = arith.constant 0 : index
    %c0_105 = arith.constant 0 : index
    %98 = vector.load %arg4[%c6_103, %c0_104, %c0_105] : memref<9x4x4xbf16, #tpu.memory_space<vmem>>, vector<1x4x4xbf16>
    %99 = vector.shape_cast %98 : vector<1x4x4xbf16> to vector<4x4xbf16>
    %cst_106 = arith.constant dense<0.000000e+00> : vector<256x4xf32>
    %100 = tpu.matmul %93, %99, %cst_106 {dimension_numbers = #tpu.dot_dimension_numbers<[1], [0], [0], [1], [0, 0, 1, 1], [], []>} : vector<256x4xbf16>, vector<4x4xbf16>, vector<256x4xf32> -> vector<256x4xf32>
    %101 = arith.addf %97, %100 : vector<256x4xf32>
    %c0_107 = arith.constant 0 : index
    %c2_108 = arith.constant 2 : index
    %c1_109 = arith.constant 1 : index
    %c0_110 = arith.constant 0 : index
    %102 = vector.load %arg1[%c0_107, %c2_108, %c1_109, %c0_110] : memref<1x18x18x4xbf16, #tpu.memory_space<vmem>>, vector<1x16x16x4xbf16>
    %103 = vector.shape_cast %102 : vector<1x16x16x4xbf16> to vector<16x16x4xbf16>
    %104 = vector.shape_cast %103 : vector<16x16x4xbf16> to vector<256x4xbf16>
    %c0_111 = arith.constant 0 : index
    %c2_112 = arith.constant 2 : index
    %c1_113 = arith.constant 1 : index
    %c0_114 = arith.constant 0 : index
    %105 = vector.load %arg2[%c0_111, %c2_112, %c1_113, %c0_114] : memref<1x18x18x4xbf16, #tpu.memory_space<vmem>>, vector<1x16x16x4xbf16>
    %106 = vector.shape_cast %105 : vector<1x16x16x4xbf16> to vector<16x16x4xbf16>
    %107 = vector.shape_cast %106 : vector<16x16x4xbf16> to vector<256x4xbf16>
    %c7 = arith.constant 7 : index
    %c0_115 = arith.constant 0 : index
    %c0_116 = arith.constant 0 : index
    %108 = vector.load %arg3[%c7, %c0_115, %c0_116] : memref<9x4x4xbf16, #tpu.memory_space<vmem>>, vector<1x4x4xbf16>
    %109 = vector.shape_cast %108 : vector<1x4x4xbf16> to vector<4x4xbf16>
    %cst_117 = arith.constant dense<0.000000e+00> : vector<256x4xf32>
    %110 = tpu.matmul %104, %109, %cst_117 {dimension_numbers = #tpu.dot_dimension_numbers<[1], [0], [0], [1], [0, 0, 1, 1], [], []>} : vector<256x4xbf16>, vector<4x4xbf16>, vector<256x4xf32> -> vector<256x4xf32>
    %111 = arith.addf %101, %110 : vector<256x4xf32>
    %c7_118 = arith.constant 7 : index
    %c0_119 = arith.constant 0 : index
    %c0_120 = arith.constant 0 : index
    %112 = vector.load %arg4[%c7_118, %c0_119, %c0_120] : memref<9x4x4xbf16, #tpu.memory_space<vmem>>, vector<1x4x4xbf16>
    %113 = vector.shape_cast %112 : vector<1x4x4xbf16> to vector<4x4xbf16>
    %cst_121 = arith.constant dense<0.000000e+00> : vector<256x4xf32>
    %114 = tpu.matmul %107, %113, %cst_121 {dimension_numbers = #tpu.dot_dimension_numbers<[1], [0], [0], [1], [0, 0, 1, 1], [], []>} : vector<256x4xbf16>, vector<4x4xbf16>, vector<256x4xf32> -> vector<256x4xf32>
    %115 = arith.addf %111, %114 : vector<256x4xf32>
    %c0_122 = arith.constant 0 : index
    %c2_123 = arith.constant 2 : index
    %c2_124 = arith.constant 2 : index
    %c0_125 = arith.constant 0 : index
    %116 = vector.load %arg1[%c0_122, %c2_123, %c2_124, %c0_125] : memref<1x18x18x4xbf16, #tpu.memory_space<vmem>>, vector<1x16x16x4xbf16>
    %117 = vector.shape_cast %116 : vector<1x16x16x4xbf16> to vector<16x16x4xbf16>
    %118 = vector.shape_cast %117 : vector<16x16x4xbf16> to vector<256x4xbf16>
    %c0_126 = arith.constant 0 : index
    %c2_127 = arith.constant 2 : index
    %c2_128 = arith.constant 2 : index
    %c0_129 = arith.constant 0 : index
    %119 = vector.load %arg2[%c0_126, %c2_127, %c2_128, %c0_129] : memref<1x18x18x4xbf16, #tpu.memory_space<vmem>>, vector<1x16x16x4xbf16>
    %120 = vector.shape_cast %119 : vector<1x16x16x4xbf16> to vector<16x16x4xbf16>
    %121 = vector.shape_cast %120 : vector<16x16x4xbf16> to vector<256x4xbf16>
    %c8 = arith.constant 8 : index
    %c0_130 = arith.constant 0 : index
    %c0_131 = arith.constant 0 : index
    %122 = vector.load %arg3[%c8, %c0_130, %c0_131] : memref<9x4x4xbf16, #tpu.memory_space<vmem>>, vector<1x4x4xbf16>
    %123 = vector.shape_cast %122 : vector<1x4x4xbf16> to vector<4x4xbf16>
    %cst_132 = arith.constant dense<0.000000e+00> : vector<256x4xf32>
    %124 = tpu.matmul %118, %123, %cst_132 {dimension_numbers = #tpu.dot_dimension_numbers<[1], [0], [0], [1], [0, 0, 1, 1], [], []>} : vector<256x4xbf16>, vector<4x4xbf16>, vector<256x4xf32> -> vector<256x4xf32>
    %125 = arith.addf %115, %124 : vector<256x4xf32>
    %c8_133 = arith.constant 8 : index
    %c0_134 = arith.constant 0 : index
    %c0_135 = arith.constant 0 : index
    %126 = vector.load %arg4[%c8_133, %c0_134, %c0_135] : memref<9x4x4xbf16, #tpu.memory_space<vmem>>, vector<1x4x4xbf16>
    %127 = vector.shape_cast %126 : vector<1x4x4xbf16> to vector<4x4xbf16>
    %cst_136 = arith.constant dense<0.000000e+00> : vector<256x4xf32>
    %128 = tpu.matmul %121, %127, %cst_136 {dimension_numbers = #tpu.dot_dimension_numbers<[1], [0], [0], [1], [0, 0, 1, 1], [], []>} : vector<256x4xbf16>, vector<4x4xbf16>, vector<256x4xf32> -> vector<256x4xf32>
    %129 = arith.addf %125, %128 : vector<256x4xf32>
    %cst_137 = arith.constant 0.000000e+00 : f32
    %130 = vector.broadcast %cst_137 : f32 to vector<256x4xf32>
    %131 = arith.cmpf oge, %129, %130 : vector<256x4xf32>
    %cst_138 = arith.constant 0.00999999977 : f32
    %132 = vector.broadcast %cst_138 : f32 to vector<256x4xf32>
    %133 = arith.mulf %132, %129 : vector<256x4xf32>
    %134 = arith.select %131, %129, %133 : vector<256x4xi1>, vector<256x4xf32>
    %135 = vector.shape_cast %134 : vector<256x4xf32> to vector<1x16x16x4xf32>
    %c0_139 = arith.constant 0 : index
    %c0_140 = arith.constant 0 : index
    %c0_141 = arith.constant 0 : index
    %c0_142 = arith.constant 0 : index
    %136 = vector.load %arg6[%c0_139, %c0_140, %c0_141, %c0_142] : memref<1x16x16x4xf32, #tpu.memory_space<vmem>>, vector<1x16x16x4xf32>
    tpu.vector_store %arg6[%c0_139, %c0_140, %c0_141, %c0_142], %135 {strides = array<i32>} : memref<1x16x16x4xf32, #tpu.memory_space<vmem>>, vector<1x16x16x4xf32>,
    return
  }
  func.func @transform_0(%arg0: i32) -> (i32, i32, i32, i32) {
    %c0_i32 = arith.constant 0 : i32
    %c0_i32_0 = arith.constant 0 : i32
    %c0_i32_1 = arith.constant 0 : i32
    %c0_i32_2 = arith.constant 0 : i32
    return %arg0, %c0_i32, %c0_i32_0, %c0_i32_1 : i32, i32, i32, i32
  }
  func.func @transform_1(%arg0: i32) -> (i32, i32, i32, i32) {
    %c0_i32 = arith.constant 0 : i32
    %c0_i32_0 = arith.constant 0 : i32
    %c0_i32_1 = arith.constant 0 : i32
    %c0_i32_2 = arith.constant 0 : i32
    return %arg0, %c0_i32, %c0_i32_0, %c0_i32_1 : i32, i32, i32, i32
  }
  func.func @transform_2(%arg0: i32) -> (i32, i32, i32) {
    %c0_i32 = arith.constant 0 : i32
    %c0_i32_0 = arith.constant 0 : i32
    %c0_i32_1 = arith.constant 0 : i32
    %c0_i32_2 = arith.constant 0 : i32
    return %c0_i32, %c0_i32_0, %c0_i32_1 : i32, i32, i32
  }
  func.func @transform_3(%arg0: i32) -> (i32, i32, i32) {
    %c0_i32 = arith.constant 0 : i32
    %c0_i32_0 = arith.constant 0 : i32
    %c0_i32_1 = arith.constant 0 : i32
    %c0_i32_2 = arith.constant 0 : i32
    return %c0_i32, %c0_i32_0, %c0_i32_1 : i32, i32, i32
  }
  func.func @transform_4(%arg0: i32) -> (i32, i32) {
    %c0_i32 = arith.constant 0 : i32
    %c0_i32_0 = arith.constant 0 : i32
    %c0_i32_1 = arith.constant 0 : i32
    return %c0_i32, %c0_i32_0 : i32, i32
  }
  func.func @transform_5(%arg0: i32) -> (i32, i32, i32, i32) {
    %c0_i32 = arith.constant 0 : i32
    %c0_i32_0 = arith.constant 0 : i32
    %c0_i32_1 = arith.constant 0 : i32
    %c0_i32_2 = arith.constant 0 : i32
    return %arg0, %c0_i32, %c0_i32_0, %c0_i32_1 : i32, i32, i32, i32
  }
}

module attributes {stable_mosaic.version = 11 : i64} {
  func.func @_up_kernel(%arg0: i32, %arg1: i32, %arg2: memref<1x4x8x8xf32, #tpu.memory_space<vmem>>, %arg3: memref<1x4x8xf32, #tpu.memory_space<vmem>>, %arg4: memref<1x8xf32, #tpu.memory_space<vmem>>, %arg5: memref<8x1x8x8xbf16, #tpu.memory_space<vmem>>) attributes {dimension_semantics = [#tpu.dimension_semantics<parallel>, #tpu.dimension_semantics<parallel>], iteration_bounds = array<i64: 2, 2>, scalar_prefetch = 0 : i64, scratch_operands = 0 : i64, tpu.core_type = #tpu.core_type<tc>, window_params = [{transform_indices = @transform_0, window_bounds = array<i64: 1, 4, 8, 8>}, {transform_indices = @transform_1, window_bounds = array<i64: 1, 4, 8>}, {pipeline_mode = #tpu.pipeline_mode<synchronous>, transform_indices = @transform_2, window_bounds = array<i64: 1, 8>}, {transform_indices = @transform_3, window_bounds = array<i64: 8, 1, 8, 8>}]} {
    %cst = arith.constant 0.000000e+00 : f32
    %0 = vector.broadcast %cst : f32 to vector<8x8x8xf32>
    %c0 = arith.constant 0 : index
    %c0_0 = arith.constant 0 : index
    %1 = vector.load %arg4[%c0, %c0_0] : memref<1x8xf32, #tpu.memory_space<vmem>>, vector<1x8xf32>
    %2 = vector.shape_cast %1 : vector<1x8xf32> to vector<1x1x8xf32>
    %3 = vector.broadcast %2 : vector<1x1x8xf32> to vector<8x8x8xf32>
    %4 = arith.addf %0, %3 : vector<8x8x8xf32>
    %c0_1 = arith.constant 0 : index
    %c0_2 = arith.constant 0 : index
    %c0_3 = arith.constant 0 : index
    %c0_4 = arith.constant 0 : index
    %5 = vector.load %arg2[%c0_1, %c0_2, %c0_3, %c0_4] : memref<1x4x8x8xf32, #tpu.memory_space<vmem>>, vector<1x1x8x8xf32>
    %6 = vector.shape_cast %5 : vector<1x1x8x8xf32> to vector<8x8xf32>
    %c0_5 = arith.constant 0 : index
    %c0_6 = arith.constant 0 : index
    %c0_7 = arith.constant 0 : index
    %7 = vector.load %arg3[%c0_5, %c0_6, %c0_7] : memref<1x4x8xf32, #tpu.memory_space<vmem>>, vector<1x1x8xf32>
    %8 = vector.shape_cast %7 : vector<1x1x8xf32> to vector<1x8xf32>
    %9 = vector.shape_cast %6 : vector<8x8xf32> to vector<8x8x1xf32>
    %10 = vector.shape_cast %8 : vector<1x8xf32> to vector<1x1x8xf32>
    %11 = vector.broadcast %9 : vector<8x8x1xf32> to vector<8x8x8xf32>
    %12 = vector.broadcast %10 : vector<1x1x8xf32> to vector<8x8x8xf32>
    %13 = arith.mulf %11, %12 : vector<8x8x8xf32>
    %14 = arith.addf %4, %13 : vector<8x8x8xf32>
    %c0_8 = arith.constant 0 : index
    %c1 = arith.constant 1 : index
    %c0_9 = arith.constant 0 : index
    %c0_10 = arith.constant 0 : index
    %15 = vector.load %arg2[%c0_8, %c1, %c0_9, %c0_10] : memref<1x4x8x8xf32, #tpu.memory_space<vmem>>, vector<1x1x8x8xf32>
    %16 = vector.shape_cast %15 : vector<1x1x8x8xf32> to vector<8x8xf32>
    %c0_11 = arith.constant 0 : index
    %c1_12 = arith.constant 1 : index
    %c0_13 = arith.constant 0 : index
    %17 = vector.load %arg3[%c0_11, %c1_12, %c0_13] : memref<1x4x8xf32, #tpu.memory_space<vmem>>, vector<1x1x8xf32>
    %18 = vector.shape_cast %17 : vector<1x1x8xf32> to vector<1x8xf32>
    %19 = vector.shape_cast %16 : vector<8x8xf32> to vector<8x8x1xf32>
    %20 = vector.shape_cast %18 : vector<1x8xf32> to vector<1x1x8xf32>
    %21 = vector.broadcast %19 : vector<8x8x1xf32> to vector<8x8x8xf32>
    %22 = vector.broadcast %20 : vector<1x1x8xf32> to vector<8x8x8xf32>
    %23 = arith.mulf %21, %22 : vector<8x8x8xf32>
    %24 = arith.addf %14, %23 : vector<8x8x8xf32>
    %c0_14 = arith.constant 0 : index
    %c2 = arith.constant 2 : index
    %c0_15 = arith.constant 0 : index
    %c0_16 = arith.constant 0 : index
    %25 = vector.load %arg2[%c0_14, %c2, %c0_15, %c0_16] : memref<1x4x8x8xf32, #tpu.memory_space<vmem>>, vector<1x1x8x8xf32>
    %26 = vector.shape_cast %25 : vector<1x1x8x8xf32> to vector<8x8xf32>
    %c0_17 = arith.constant 0 : index
    %c2_18 = arith.constant 2 : index
    %c0_19 = arith.constant 0 : index
    %27 = vector.load %arg3[%c0_17, %c2_18, %c0_19] : memref<1x4x8xf32, #tpu.memory_space<vmem>>, vector<1x1x8xf32>
    %28 = vector.shape_cast %27 : vector<1x1x8xf32> to vector<1x8xf32>
    %29 = vector.shape_cast %26 : vector<8x8xf32> to vector<8x8x1xf32>
    %30 = vector.shape_cast %28 : vector<1x8xf32> to vector<1x1x8xf32>
    %31 = vector.broadcast %29 : vector<8x8x1xf32> to vector<8x8x8xf32>
    %32 = vector.broadcast %30 : vector<1x1x8xf32> to vector<8x8x8xf32>
    %33 = arith.mulf %31, %32 : vector<8x8x8xf32>
    %34 = arith.addf %24, %33 : vector<8x8x8xf32>
    %c0_20 = arith.constant 0 : index
    %c3 = arith.constant 3 : index
    %c0_21 = arith.constant 0 : index
    %c0_22 = arith.constant 0 : index
    %35 = vector.load %arg2[%c0_20, %c3, %c0_21, %c0_22] : memref<1x4x8x8xf32, #tpu.memory_space<vmem>>, vector<1x1x8x8xf32>
    %36 = vector.shape_cast %35 : vector<1x1x8x8xf32> to vector<8x8xf32>
    %c0_23 = arith.constant 0 : index
    %c3_24 = arith.constant 3 : index
    %c0_25 = arith.constant 0 : index
    %37 = vector.load %arg3[%c0_23, %c3_24, %c0_25] : memref<1x4x8xf32, #tpu.memory_space<vmem>>, vector<1x1x8xf32>
    %38 = vector.shape_cast %37 : vector<1x1x8xf32> to vector<1x8xf32>
    %39 = vector.shape_cast %36 : vector<8x8xf32> to vector<8x8x1xf32>
    %40 = vector.shape_cast %38 : vector<1x8xf32> to vector<1x1x8xf32>
    %41 = vector.broadcast %39 : vector<8x8x1xf32> to vector<8x8x8xf32>
    %42 = vector.broadcast %40 : vector<1x1x8xf32> to vector<8x8x8xf32>
    %43 = arith.mulf %41, %42 : vector<8x8x8xf32>
    %44 = arith.addf %34, %43 : vector<8x8x8xf32>
    %45 = vector.shape_cast %44 : vector<8x8x8xf32> to vector<8x1x8x8xf32>
    %46 = arith.truncf %45 : vector<8x1x8x8xf32> to vector<8x1x8x8xbf16>
    %c0_26 = arith.constant 0 : index
    %c0_27 = arith.constant 0 : index
    %c0_28 = arith.constant 0 : index
    %c0_29 = arith.constant 0 : index
    %47 = vector.load %arg5[%c0_26, %c0_27, %c0_28, %c0_29] : memref<8x1x8x8xbf16, #tpu.memory_space<vmem>>, vector<8x1x8x8xbf16>
    tpu.vector_store %arg5[%c0_26, %c0_27, %c0_28, %c0_29], %46 {strides = array<i32>} : memref<8x1x8x8xbf16, #tpu.memory_space<vmem>>, vector<8x1x8x8xbf16>,
    return
  }
  func.func @transform_0(%arg0: i32, %arg1: i32) -> (i32, i32, i32, i32) {
    %c0_i32 = arith.constant 0 : i32
    %c0_i32_0 = arith.constant 0 : i32
    %c0_i32_1 = arith.constant 0 : i32
    %c0_i32_2 = arith.constant 0 : i32
    return %arg0, %c0_i32, %c0_i32_0, %c0_i32_1 : i32, i32, i32, i32
  }
  func.func @transform_1(%arg0: i32, %arg1: i32) -> (i32, i32, i32) {
    %c0_i32 = arith.constant 0 : i32
    %c0_i32_0 = arith.constant 0 : i32
    %c0_i32_1 = arith.constant 0 : i32
    return %arg1, %c0_i32, %c0_i32_0 : i32, i32, i32
  }
  func.func @transform_2(%arg0: i32, %arg1: i32) -> (i32, i32) {
    %c0_i32 = arith.constant 0 : i32
    %c0_i32_0 = arith.constant 0 : i32
    %c0_i32_1 = arith.constant 0 : i32
    return %c0_i32, %c0_i32_0 : i32, i32
  }
  func.func @transform_3(%arg0: i32, %arg1: i32) -> (i32, i32, i32, i32) {
    %c0_i32 = arith.constant 0 : i32
    %c0_i32_0 = arith.constant 0 : i32
    %c0_i32_1 = arith.constant 0 : i32
    return %arg0, %arg1, %c0_i32, %c0_i32_0 : i32, i32, i32, i32
  }
}

</mosaic_0001>

<llo_original>
// kernel: tile.8
$region0: #{tile.8}
  #allocation0 [shape = 's32[1]{0}', space=sflag, size = 0x4, scoped, tag = 'scoped memory for tile.8']
  %s0 = inlined_call_operand.vmem [shape: f32[4], index: 0, kind: input, shape index: {}]
  %s1 = inlined_call_operand.vmem [shape: f32[2,4], index: 1, kind: output, shape index: {}]
  // Predicated region
  $region2: #{tile.8} parent=0 // pred_check
    _
  $region3: #{tile.8} parent=0 // pred_check_branch
    %3 = sbr.rel (0) target = $region5
  $region4: #{tile.8} parent=0 // pred_region
    _
  $region5: #{tile.8} parent=0 // pred_fallthru
    _
  %v4 = vld [vmem:[%s0] ss:$0 sm:$0xff]
  %5 = vst [vmem:[%s1] sm:$0x3] %v4

// kernel: tile.9
$region0: #{tile.9}
  %s0 = inlined_call_operand.vmem [shape: f32[2,4], index: 0, kind: input, shape index: {}]
  %s1 = inlined_call_operand.vmem [shape: f32[1,8], index: 1, kind: output, shape index: {}]
  $region1: #{tile.9} parent=0
    #allocation0 [shape = 'u8[4096]{0}', space=vmem, size = 0x1000, scoped, tag = 'scoped mem for output reshape']
    #allocation1 [shape = 'u8[4096]{0}', space=vmem, size = 0x1000, scoped, tag = 'scoped mem for input reshape']
    %s3 = sshllo.u32 0, 2
    %v4 = vld [vmem:[%s0] sm:%s3]
    %5 = vst [vmem:[#allocation1] sm:%s3] %v4
    %v6 = vld [vmem:[#allocation1] sm:$0x1]
    %vm7 = vcmask 31744
    %8 = vst.msk [vmem:[#allocation0] sm:$0x1] %vm7, %v6
    %s9 = scalar_lea.vmem [#allocation1], 1
    %v10 = vld [vmem:[%s9] sm:$0x1]
    %11 = vrot.lane.b32.xlu0 %v10, 4
    %v12 = vpop.permute.xlu0 %11
    %vm13 = vcmask 64544
    %14 = vst.msk [vmem:[#allocation0] sm:$0x1] %vm13, %v12
    %s16 = sshllo.u32 0, 1
    %v18 = vld [vmem:[#allocation0] sm:%s16]
    %s19 = sshllo.u32 0, 1
    %20 = vst [vmem:[%s1] sm:%s19] %v18

// kernel: decoder_forward.2
$region0: #{decoder_forward.2}
  #allocation0 [shape = 'u32[]', space=smem, size = 0x4, offset = 0x4, fixed_abs, tag = 'smem constant byte address 0x4 - core index']
  #allocation1 [shape = 'u32[144,128]{1,0:T(1,128)}', space=vmem, size = 0x12000, scoped, tag = 'internal scratch']
  %s0 = inlined_call_operand.vmem [shape: f32[2,4,8,8], index: 0, kind: input, shape index: {}]
  %s1 = inlined_call_operand.vmem [shape: f32[2,4,8], index: 1, kind: input, shape index: {}]
  %s2 = inlined_call_operand.vmem [shape: f32[1,8], index: 2, kind: input, shape index: {}]
  %s3 = inlined_call_operand.vmem [shape: bf16[16,2,8,8], index: 3, kind: output, shape index: {}]
  %s4 = sld [smem:[#allocation0]]
  $region82: #{decoder_forward.2} parent=0
    _
  %s6 = ssub.s32 1, %s4
  %s7 = scalar_select 0, %s6, %s4
  $region1: #{decoder_forward.2} parent=0
    #allocation2 [shape = 'u8[32768]{0}', space=vmem, size = 0x8000, scoped, tag = 'output window, operand 0']
    loop: start=0, step=1, limit=6
    $region2: #{decoder_forward.2} parent=1 // loop_pre_header
      _
    $region3: #{decoder_forward.2} parent=1 // loop_header
      %s9 = sphi 0, %s13
      %p10 = scmp.ge.s32.totalorder %s9, 6
      %s16 = sphi 0, %s28
      %s17 = sphi 0, %s24
      %s18 = sphi 0, %s16
      %s19 = sphi 0, %s17
      %s20 = sphi 0, %s18
      %s21 = sphi 0, %s19
      %s31 = sphi 0, %s33
      %s34 = sphi 0, %s31
      %s35 = sphi 0, %s34
      %s51 = sphi 0, %s35
      %s57 = sphi 0, %s59
      %s60 = sphi 0, %s57
      %s61 = sphi 0, %s60
      %s77 = sphi 0, %s61
      %s81 = sphi 0, %s81
      %s83 = sphi 0, %s81
      %s84 = sphi 0, %s83
      %s98 = sphi 0, %s84
      %s106 = sphi 0, %s108
      %s109 = sphi 0, %s106
      %s110 = sphi 0, %s109
      %s126 = sphi 0, %s110
    $region4: #{decoder_forward.2} parent=1 // loop_header_branch
      %12 = sbr.rel (%p10) target = $region8
    $region5: #{decoder_forward.2} parent=1 // loop_body
      %s14 = ssub.s32 %s9, 1
      %s15 = ssub.s32 %s9, 2
      %s22 = sadd.s32 1, %s17
      %p23 = scmp.ge.s32.totalorder %s22, 2
      %s24 = scalar_select %p23, 0, %s22
      %s25 = sadd.s32 1, %s16
      %s26 = scalar_select %p23, %s25, %s16
      %p27 = scmp.ge.s32.totalorder %s26, 2
      %s28 = scalar_select %p27, 0, %s26
      %s29 = ssub.s32 %s16, %s28
      %p30 = scmp.eq.s32.totalorder %s29, 0
      %s32 = sadd.s32 %s31, 1
      %s33 = scalar_select %p30, %s31, %s32
      %p36 = pneg %p30
      %p37 = scmp.eq.s32.totalorder %s9, 3
      %p38 = por %p36, %p37
      %p39 = scmp.ne.s32.totalorder %s31, %s34
      %p40 = scmp.eq.s32.totalorder %s9, 0
      %p41 = por %p39, %p40
      %p42 = scmp.ne.s32.totalorder %s31, %s34
      %p43 = scmp.eq.s32.totalorder %s14, 3
      %p44 = por %p42, %p43
      %p45 = scmp.ne.s32.totalorder %s34, %s35
      %p46 = scmp.eq.s32.totalorder %s14, 0
      %p47 = por %p45, %p46
      %p48 = scmp.ne.s32.totalorder %s34, %s35
      %p49 = scmp.eq.s32.totalorder %s15, 3
      %p50 = por %p48, %p49
      %p52 = scmp.ne.s32.totalorder %s35, %s51
      %p53 = scmp.eq.s32.totalorder %s15, 0
      %p54 = por %p52, %p53
      %s55 = ssub.s32 %s17, %s24
      %p56 = scmp.eq.s32.totalorder %s55, 0
      %s58 = sadd.s32 %s57, 1
      %s59 = scalar_select %p56, %s57, %s58
      %p62 = pneg %p56
      %p63 = scmp.eq.s32.totalorder %s9, 3
      %p64 = por %p62, %p63
      %p65 = scmp.ne.s32.totalorder %s57, %s60
      %p66 = scmp.eq.s32.totalorder %s9, 0
      %p67 = por %p65, %p66
      %p68 = scmp.ne.s32.totalorder %s57, %s60
      %p69 = scmp.eq.s32.totalorder %s14, 3
      %p70 = por %p68, %p69
      %p71 = scmp.ne.s32.totalorder %s60, %s61
      %p72 = scmp.eq.s32.totalorder %s14, 0
      %p73 = por %p71, %p72
      %p74 = scmp.ne.s32.totalorder %s60, %s61
      %p75 = scmp.eq.s32.totalorder %s15, 3
      %p76 = por %p74, %p75
      %p78 = scmp.ne.s32.totalorder %s61, %s77
      %p79 = scmp.eq.s32.totalorder %s15, 0
      %p80 = por %p78, %p79
      %s82 = sadd.s32 %s81, 1
      %p85 = scmp.eq.s32.totalorder %s9, 3
      %p86 = scmp.ne.s32.totalorder %s81, %s83
      %p87 = scmp.eq.s32.totalorder %s9, 0
      %p88 = por %p86, %p87
      %p89 = scmp.ne.s32.totalorder %s81, %s83
      %p90 = scmp.eq.s32.totalorder %s14, 3
      %p91 = por %p89, %p90
      %p92 = scmp.ne.s32.totalorder %s83, %s84
      %p93 = scmp.eq.s32.totalorder %s14, 0
      %p94 = por %p92, %p93
      %p95 = scmp.ne.s32.totalorder %s83, %s84
      %p96 = scmp.eq.s32.totalorder %s15, 3
      %p97 = por %p95, %p96
      %p99 = scmp.ne.s32.totalorder %s84, %s98
      %p100 = scmp.eq.s32.totalorder %s15, 0
      %p101 = por %p99, %p100
      %s102 = ssub.s32 %s16, %s28
      %s103 = ssub.s32 %s17, %s24
      %s104 = sor.u32 %s102, %s103
      %p105 = scmp.eq.s32.totalorder %s104, 0
      %s107 = sadd.s32 %s106, 1
      %s108 = scalar_select %p105, %s106, %s107
      %p111 = pneg %p105
      %p112 = scmp.eq.s32.totalorder %s9, 3
      %p113 = por %p111, %p112
      %p114 = scmp.ne.s32.totalorder %s106, %s109
      %p115 = scmp.eq.s32.totalorder %s9, 0
      %p116 = por %p114, %p115
      %p117 = scmp.ne.s32.totalorder %s106, %s109
      %p118 = scmp.eq.s32.totalorder %s14, 3
      %p119 = por %p117, %p118
      %p120 = scmp.ne.s32.totalorder %s109, %s110
      %p121 = scmp.eq.s32.totalorder %s14, 0
      %p122 = por %p120, %p121
      %p123 = scmp.ne.s32.totalorder %s109, %s110
      %p124 = scmp.eq.s32.totalorder %s15, 3
      %p125 = por %p123, %p124
      %p127 = scmp.ne.s32.totalorder %s110, %s126
      %p128 = scmp.eq.s32.totalorder %s15, 0
      %p129 = por %p127, %p128
      %p130 = scmp.le.s32.totalorder 1, %s9
      %p131 = scmp.lt.s32.totalorder %s9, 5
      %p132 = pnand %p130, %p131
      %p133 = pneg %p132
      // Predicated region
      $region9: #{decoder_forward.2} parent=5 // pred_check
        _
      $region10: #{decoder_forward.2} parent=5 // pred_check_branch
        %135 = sbr.rel (%p132) target = $region12
      $region11: #{decoder_forward.2} parent=5 // pred_region
        %s136 = ssub.s32 %s9, 1
        // Predicated region
        $region13: #{decoder_forward.2} parent=11 // pred_check
          %p137 = pneg %p94
        $region14: #{decoder_forward.2} parent=11 // pred_check_branch
          %139 = sbr.rel (%p137) target = $region16
        $region15: #{decoder_forward.2} parent=11 // pred_region
          _
        $region16: #{decoder_forward.2} parent=11 // pred_fallthru
          _
      $region12: #{decoder_forward.2} parent=5 // pred_fallthru
        _
      %p140 = scmp.lt.s32.totalorder %s9, 4
      // Predicated region
      $region17: #{decoder_forward.2} parent=5 // pred_check
        %p141 = pneg %p140
      $region18: #{decoder_forward.2} parent=5 // pred_check_branch
        %143 = sbr.rel (%p141) target = $region20
      $region19: #{decoder_forward.2} parent=5 // pred_region
        // Predicated region
        $region21: #{decoder_forward.2} parent=19 // pred_check
          %p144 = pneg %p41
        $region22: #{decoder_forward.2} parent=19 // pred_check_branch
          %146 = sbr.rel (%p144) target = $region24
        $region23: #{decoder_forward.2} parent=19 // pred_region
          %p147 = scmp.lt.s32.totalorder %s16, 1
          %s148 = scalar_select %p147, %s16, 1
          %s149 = smul.addr %s148, 4
          %s150 = smul.addr %s149, 8
          %s151 = scalar_lea.vmem %s0, %s150
        $region24: #{decoder_forward.2} parent=19 // pred_fallthru
          _
        // Predicated region
        $region25: #{decoder_forward.2} parent=19 // pred_check
          %p152 = pneg %p67
        $region26: #{decoder_forward.2} parent=19 // pred_check_branch
          %154 = sbr.rel (%p152) target = $region28
        $region27: #{decoder_forward.2} parent=19 // pred_region
          %p155 = scmp.lt.s32.totalorder %s17, 1
          %s156 = scalar_select %p155, %s17, 1
          %s157 = smul.addr %s156, 4
          %s158 = scalar_lea.vmem %s1, %s157
        $region28: #{decoder_forward.2} parent=19 // pred_fallthru
          _
      $region20: #{decoder_forward.2} parent=5 // pred_fallthru
        _
      %p159 = scmp.le.s32.totalorder 1, %s9
      %p160 = scmp.lt.s32.totalorder %s9, 5
      %p161 = pnand %p159, %p160
      %p162 = pneg %p161
      // Predicated region
      $region29: #{decoder_forward.2} parent=5 // pred_check
        _
      $region30: #{decoder_forward.2} parent=5 // pred_check_branch
        %164 = sbr.rel (%p161) target = $region32
      $region31: #{decoder_forward.2} parent=5 // pred_region
        %s165 = ssub.s32 %s9, 1
        %p166 = scmp.lt.s32.totalorder %s18, 1
        %s167 = scalar_select %p166, %s18, 1
        %s168 = smul.addr %s167, 4
        %s169 = smul.addr %s168, 8
        %s170 = scalar_lea.vmem %s0, %s169
        %p171 = pneg %p47
        %p172 = pneg %p44
        %p173 = scmp.lt.s32.totalorder %s19, 1
        %s174 = scalar_select %p173, %s19, 1
        %s175 = smul.addr %s174, 4
        %s176 = scalar_lea.vmem %s1, %s175
        %p177 = pneg %p73
        %p178 = pneg %p70
        %p179 = pneg %p94
        %p180 = pneg %p91
        %p181 = pneg %p122
        %p182 = pneg %p119
        %s183 = sand.u32 %s109, 1
        %s184 = sand.u32 %s109, 1
        %s185 = smul.addr %s184, 32
        %s186 = scalar_lea.vmem [#allocation2], %s185
        %p187 = scmp.lt.s32.totalorder %s18, 1
        %s188 = scalar_select %p187, %s18, 1
        %s189 = smul.addr %s188, 4
        %s190 = smul.addr %s189, 8
        %s191 = scalar_lea.vmem %s0, %s190
        %p192 = scmp.lt.s32.totalorder %s19, 1
        %s193 = scalar_select %p192, %s19, 1
        %s194 = smul.addr %s193, 4
        %s195 = scalar_lea.vmem %s1, %s194
        %s196 = smul.u32 8, %s18
        %v197 = vld [vmem:[%s2] sm:$0x1]
        %v199 = vlaneseq
        %v200 = vshrl.u32 %v199, 7
        %v201 = vsub.s32 0, %v200
        %v202 = vrot.slane %v197, %v201
        %v204 = vadd.f32 %v202, 0.0
        %v205 = vld [vmem:[%s191] sm:$0xff]
        %v206 = vld [vmem:[%s195] sm:$0x1]
        %v207 = vlaneseq
        %v208 = vshrl.u32 %v207, 7
        %v209 = vsub.s32 0, %v208
        %v210 = vrot.slane %v205, %v209
        %212 = vbcast.lane.b32.xlu0 %v210, 256
        %v213 = vpop.permute.xlu0 %212
        %v214 = vlaneseq
        %v215 = vshrl.u32 %v214, 7
        %v216 = vsub.s32 1, %v215
        %v217 = vrot.slane %v205, %v216
        %219 = vbcast.lane.b32.xlu0 %v217, 256
        %v220 = vpop.permute.xlu0 %219
        %v221 = vlaneseq
        %v222 = vshrl.u32 %v221, 7
        %v223 = vsub.s32 2, %v222
        %v224 = vrot.slane %v205, %v223
        %226 = vbcast.lane.b32.xlu0 %v224, 256
        %v227 = vpop.permute.xlu0 %226
        %v228 = vlaneseq
        %v229 = vshrl.u32 %v228, 7
        %v230 = vsub.s32 3, %v229
        %v231 = vrot.slane %v205, %v230
        %233 = vbcast.lane.b32.xlu0 %v231, 256
        %v234 = vpop.permute.xlu0 %233
        %v235 = vlaneseq
        %v236 = vshrl.u32 %v235, 7
        %v237 = vsub.s32 4, %v236
        %v238 = vrot.slane %v205, %v237
        %240 = vbcast.lane.b32.xlu0 %v238, 256
        %v241 = vpop.permute.xlu0 %240
        %v242 = vlaneseq
        %v243 = vshrl.u32 %v242, 7
        %v244 = vsub.s32 5, %v243
        %v245 = vrot.slane %v205, %v244
        %247 = vbcast.lane.b32.xlu0 %v245, 256
        %v248 = vpop.permute.xlu0 %247
        %v249 = vlaneseq
        %v250 = vshrl.u32 %v249, 7
        %v251 = vsub.s32 6, %v250
        %v252 = vrot.slane %v205, %v251
        %254 = vbcast.lane.b32.xlu0 %v252, 256
        %v255 = vpop.permute.xlu0 %254
        %v256 = vlaneseq
        %v257 = vshrl.u32 %v256, 7
        %v258 = vsub.s32 7, %v257
        %v259 = vrot.slane %v205, %v258
        %261 = vbcast.lane.b32.xlu0 %v259, 256
        %v262 = vpop.permute.xlu0 %261
        %v263 = vlaneseq
        %v264 = vshrl.u32 %v263, 7
        %v265 = vsub.s32 0, %v264
        %v266 = vrot.slane %v206, %v265
        %v267 = vmul.f32 %v213, %v266
        %v268 = vmul.f32 %v220, %v266
        %v269 = vmul.f32 %v227, %v266
        %v270 = vmul.f32 %v234, %v266
        %v271 = vmul.f32 %v241, %v266
        %v272 = vmul.f32 %v248, %v266
        %v273 = vmul.f32 %v255, %v266
        %v274 = vmul.f32 %v262, %v266
        %v275 = vadd.f32 %v204, %v267
        %v276 = vadd.f32 %v204, %v268
        %v277 = vadd.f32 %v204, %v269
        %v278 = vadd.f32 %v204, %v270
        %v279 = vadd.f32 %v204, %v271
        %v280 = vadd.f32 %v204, %v272
        %v281 = vadd.f32 %v204, %v273
        %v282 = vadd.f32 %v204, %v274
        %s283 = scalar_lea.vmem %s191, 8
        %v284 = vld [vmem:[%s283] sm:$0xff]
        %v285 = vld [vmem:[%s195 + $0x1] sm:$0x1]
        %v286 = vlaneseq
        %v287 = vshrl.u32 %v286, 7
        %v288 = vsub.s32 0, %v287
        %v289 = vrot.slane %v284, %v288
        %291 = vbcast.lane.b32.xlu0 %v289, 256
        %v292 = vpop.permute.xlu0 %291
        %v293 = vlaneseq
        %v294 = vshrl.u32 %v293, 7
        %v295 = vsub.s32 1, %v294
        %v296 = vrot.slane %v284, %v295
        %298 = vbcast.lane.b32.xlu0 %v296, 256
        %v299 = vpop.permute.xlu0 %298
        %v300 = vlaneseq
        %v301 = vshrl.u32 %v300, 7
        %v302 = vsub.s32 2, %v301
        %v303 = vrot.slane %v284, %v302
        %305 = vbcast.lane.b32.xlu0 %v303, 256
        %v306 = vpop.permute.xlu0 %305
        %v307 = vlaneseq
        %v308 = vshrl.u32 %v307, 7
        %v309 = vsub.s32 3, %v308
        %v310 = vrot.slane %v284, %v309
        %312 = vbcast.lane.b32.xlu0 %v310, 256
        %v313 = vpop.permute.xlu0 %312
        %v314 = vlaneseq
        %v315 = vshrl.u32 %v314, 7
        %v316 = vsub.s32 4, %v315
        %v317 = vrot.slane %v284, %v316
        %319 = vbcast.lane.b32.xlu0 %v317, 256
        %v320 = vpop.permute.xlu0 %319
        %v321 = vlaneseq
        %v322 = vshrl.u32 %v321, 7
        %v323 = vsub.s32 5, %v322
        %v324 = vrot.slane %v284, %v323
        %326 = vbcast.lane.b32.xlu0 %v324, 256
        %v327 = vpop.permute.xlu0 %326
        %v328 = vlaneseq
        %v329 = vshrl.u32 %v328, 7
        %v330 = vsub.s32 6, %v329
        %v331 = vrot.slane %v284, %v330
        %333 = vbcast.lane.b32.xlu0 %v331, 256
        %v334 = vpop.permute.xlu0 %333
        %v335 = vlaneseq
        %v336 = vshrl.u32 %v335, 7
        %v337 = vsub.s32 7, %v336
        %v338 = vrot.slane %v284, %v337
        %340 = vbcast.lane.b32.xlu0 %v338, 256
        %v341 = vpop.permute.xlu0 %340
        %v342 = vlaneseq
        %v343 = vshrl.u32 %v342, 7
        %v344 = vsub.s32 0, %v343
        %v345 = vrot.slane %v285, %v344
        %v346 = vmul.f32 %v292, %v345
        %v347 = vmul.f32 %v299, %v345
        %v348 = vmul.f32 %v306, %v345
        %v349 = vmul.f32 %v313, %v345
        %v350 = vmul.f32 %v320, %v345
        %v351 = vmul.f32 %v327, %v345
        %v352 = vmul.f32 %v334, %v345
        %v353 = vmul.f32 %v341, %v345
        %v354 = vadd.f32 %v275, %v346
        %v355 = vadd.f32 %v276, %v347
        %v356 = vadd.f32 %v277, %v348
        %v357 = vadd.f32 %v278, %v349
        %v358 = vadd.f32 %v279, %v350
        %v359 = vadd.f32 %v280, %v351
        %v360 = vadd.f32 %v281, %v352
        %v361 = vadd.f32 %v282, %v353
        %s362 = scalar_lea.vmem %s191, 16
        %v363 = vld [vmem:[%s362] sm:$0xff]
        %v364 = vld [vmem:[%s195 + $0x2] sm:$0x1]
        %v365 = vlaneseq
        %v366 = vshrl.u32 %v365, 7
        %v367 = vsub.s32 0, %v366
        %v368 = vrot.slane %v363, %v367
        %370 = vbcast.lane.b32.xlu0 %v368, 256
        %v371 = vpop.permute.xlu0 %370
        %v372 = vlaneseq
        %v373 = vshrl.u32 %v372, 7
        %v374 = vsub.s32 1, %v373
        %v375 = vrot.slane %v363, %v374
        %377 = vbcast.lane.b32.xlu0 %v375, 256
        %v378 = vpop.permute.xlu0 %377
        %v379 = vlaneseq
        %v380 = vshrl.u32 %v379, 7
        %v381 = vsub.s32 2, %v380
        %v382 = vrot.slane %v363, %v381
        %384 = vbcast.lane.b32.xlu0 %v382, 256
        %v385 = vpop.permute.xlu0 %384
        %v386 = vlaneseq
        %v387 = vshrl.u32 %v386, 7
        %v388 = vsub.s32 3, %v387
        %v389 = vrot.slane %v363, %v388
        %391 = vbcast.lane.b32.xlu0 %v389, 256
        %v392 = vpop.permute.xlu0 %391
        %v393 = vlaneseq
        %v394 = vshrl.u32 %v393, 7
        %v395 = vsub.s32 4, %v394
        %v396 = vrot.slane %v363, %v395
        %398 = vbcast.lane.b32.xlu0 %v396, 256
        %v399 = vpop.permute.xlu0 %398
        %v400 = vlaneseq
        %v401 = vshrl.u32 %v400, 7
        %v402 = vsub.s32 5, %v401
        %v403 = vrot.slane %v363, %v402
        %405 = vbcast.lane.b32.xlu0 %v403, 256
        %v406 = vpop.permute.xlu0 %405
        %v407 = vlaneseq
        %v408 = vshrl.u32 %v407, 7
        %v409 = vsub.s32 6, %v408
        %v410 = vrot.slane %v363, %v409
        %412 = vbcast.lane.b32.xlu0 %v410, 256
        %v413 = vpop.permute.xlu0 %412
        %v414 = vlaneseq
        %v415 = vshrl.u32 %v414, 7
        %v416 = vsub.s32 7, %v415
        %v417 = vrot.slane %v363, %v416
        %419 = vbcast.lane.b32.xlu0 %v417, 256
        %v420 = vpop.permute.xlu0 %419
        %v421 = vlaneseq
        %v422 = vshrl.u32 %v421, 7
        %v423 = vsub.s32 0, %v422
        %v424 = vrot.slane %v364, %v423
        %v425 = vmul.f32 %v371, %v424
        %v426 = vmul.f32 %v378, %v424
        %v427 = vmul.f32 %v385, %v424
        %v428 = vmul.f32 %v392, %v424
        %v429 = vmul.f32 %v399, %v424
        %v430 = vmul.f32 %v406, %v424
        %v431 = vmul.f32 %v413, %v424
        %v432 = vmul.f32 %v420, %v424
        %v433 = vadd.f32 %v354, %v425
        %v434 = vadd.f32 %v355, %v426
        %v435 = vadd.f32 %v356, %v427
        %v436 = vadd.f32 %v357, %v428
        %v437 = vadd.f32 %v358, %v429
        %v438 = vadd.f32 %v359, %v430
        %v439 = vadd.f32 %v360, %v431
        %v440 = vadd.f32 %v361, %v432
        %s441 = scalar_lea.vmem %s191, 24
        %v442 = vld [vmem:[%s441] sm:$0xff]
        %v443 = vld [vmem:[%s195 + $0x3] sm:$0x1]
        %v444 = vlaneseq
        %v445 = vshrl.u32 %v444, 7
        %v446 = vsub.s32 0, %v445
        %v447 = vrot.slane %v442, %v446
        %449 = vbcast.lane.b32.xlu0 %v447, 256
        %v450 = vpop.permute.xlu0 %449
        %v451 = vlaneseq
        %v452 = vshrl.u32 %v451, 7
        %v453 = vsub.s32 1, %v452
        %v454 = vrot.slane %v442, %v453
        %456 = vbcast.lane.b32.xlu0 %v454, 256
        %v457 = vpop.permute.xlu0 %456
        %v458 = vlaneseq
        %v459 = vshrl.u32 %v458, 7
        %v460 = vsub.s32 2, %v459
        %v461 = vrot.slane %v442, %v460
        %463 = vbcast.lane.b32.xlu0 %v461, 256
        %v464 = vpop.permute.xlu0 %463
        %v465 = vlaneseq
        %v466 = vshrl.u32 %v465, 7
        %v467 = vsub.s32 3, %v466
        %v468 = vrot.slane %v442, %v467
        %470 = vbcast.lane.b32.xlu0 %v468, 256
        %v471 = vpop.permute.xlu0 %470
        %v472 = vlaneseq
        %v473 = vshrl.u32 %v472, 7
        %v474 = vsub.s32 4, %v473
        %v475 = vrot.slane %v442, %v474
        %477 = vbcast.lane.b32.xlu0 %v475, 256
        %v478 = vpop.permute.xlu0 %477
        %v479 = vlaneseq
        %v480 = vshrl.u32 %v479, 7
        %v481 = vsub.s32 5, %v480
        %v482 = vrot.slane %v442, %v481
        %484 = vbcast.lane.b32.xlu0 %v482, 256
        %v485 = vpop.permute.xlu0 %484
        %v486 = vlaneseq
        %v487 = vshrl.u32 %v486, 7
        %v488 = vsub.s32 6, %v487
        %v489 = vrot.slane %v442, %v488
        %491 = vbcast.lane.b32.xlu0 %v489, 256
        %v492 = vpop.permute.xlu0 %491
        %v493 = vlaneseq
        %v494 = vshrl.u32 %v493, 7
        %v495 = vsub.s32 7, %v494
        %v496 = vrot.slane %v442, %v495
        %498 = vbcast.lane.b32.xlu0 %v496, 256
        %v499 = vpop.permute.xlu0 %498
        %v500 = vlaneseq
        %v501 = vshrl.u32 %v500, 7
        %v502 = vsub.s32 0, %v501
        %v503 = vrot.slane %v443, %v502
        %v504 = vmul.f32 %v450, %v503
        %v505 = vmul.f32 %v457, %v503
        %v506 = vmul.f32 %v464, %v503
        %v507 = vmul.f32 %v471, %v503
        %v508 = vmul.f32 %v478, %v503
        %v509 = vmul.f32 %v485, %v503
        %v510 = vmul.f32 %v492, %v503
        %v511 = vmul.f32 %v499, %v503
        %v512 = vadd.f32 %v433, %v504
        %v513 = vadd.f32 %v434, %v505
        %v514 = vadd.f32 %v435, %v506
        %v515 = vadd.f32 %v436, %v507
        %v516 = vadd.f32 %v437, %v508
        %v517 = vadd.f32 %v438, %v509
        %v518 = vadd.f32 %v439, %v510
        %v519 = vadd.f32 %v440, %v511
        %v520 = vpack.c.bf16 %v512, %v512
        %v521 = vpack.c.bf16 %v513, %v513
        %v522 = vpack.c.bf16 %v514, %v514
        %v523 = vpack.c.bf16 %v515, %v515
        %v524 = vpack.c.bf16 %v516, %v516
        %v525 = vpack.c.bf16 %v517, %v517
        %v526 = vpack.c.bf16 %v518, %v518
        %v527 = vpack.c.bf16 %v519, %v519
        %vm528 = vcmask 60416
        %529 = vst.msk [vmem:[%s186] sm:$0xf] %vm528, %v520
        %530 = vst.msk [vmem:[%s186 + $0x4] sm:$0xf] %vm528, %v521
        %531 = vst.msk [vmem:[%s186 + $0x8] sm:$0xf] %vm528, %v522
        %532 = vst.msk [vmem:[%s186 + $0xc] sm:$0xf] %vm528, %v523
        %533 = vst.msk [vmem:[%s186 + $0x10] sm:$0xf] %vm528, %v524
        %534 = vst.msk [vmem:[%s186 + $0x14] sm:$0xf] %vm528, %v525
        %535 = vst.msk [vmem:[%s186 + $0x18] sm:$0xf] %vm528, %v526
        %536 = vst.msk [vmem:[%s186 + $0x1c] sm:$0xf] %vm528, %v527
        %s537 = sand.u32 %s109, 1
        %s538 = sand.u32 %s109, 1
        %s539 = smul.addr %s538, 32
        %s540 = scalar_lea.vmem [#allocation2], %s539
        // Predicated region
        $region33: #{decoder_forward.2} parent=31 // pred_check
          %p541 = pneg %p119
        $region34: #{decoder_forward.2} parent=31 // pred_check_branch
          %543 = sbr.rel (%p541) target = $region36
        $region35: #{decoder_forward.2} parent=31 // pred_region
          %s544 = smul.u32 8, %s18
          %s545 = smul.addr %s544, 2
          %s546 = sadd.s32 %s19, %s545
          %s547 = smul.addr %s546, 4
          %s548 = scalar_lea.vmem %s3, %s547
          // Predicated region
          $region37: #{decoder_forward.2} parent=35 // pred_check
            _
          $region38: #{decoder_forward.2} parent=35 // pred_check_branch
            %550 = sbr.rel (0) target = $region40
          $region39: #{decoder_forward.2} parent=35 // pred_region
            // Predicated region
            $region41: #{decoder_forward.2} parent=39 // pred_check
              _
            $region42: #{decoder_forward.2} parent=39 // pred_check_branch
              %552 = sbr.rel target = $region44
            $region43: #{decoder_forward.2} parent=39 // pred_region
              // Predicated region
              $region56: #{decoder_forward.2} parent=43 // pred_check
                _
              $region57: #{decoder_forward.2} parent=43 // pred_check_branch
                %581 = sbr.rel (0) target = $region59
              $region58: #{decoder_forward.2} parent=43 // pred_region
                loop: start=0, step=1, limit=1
                $region60: #{decoder_forward.2} parent=58 // loop_pre_header
                  _
                $region61: #{decoder_forward.2} parent=58 // loop_header
                  %s583 = sphi 0, %s587
                  %p584 = scmp.ge.s32.totalorder %s583, 1
                  %s588 = sphi %s540, %s540
                  %s589 = sphi %s548, %s548
                $region62: #{decoder_forward.2} parent=58 // loop_header_branch
                  %586 = sbr.rel (%p584) target = $region66
                $region63: #{decoder_forward.2} parent=58 // loop_body
                  _
                $region64: #{decoder_forward.2} parent=58 // loop_footer
                  %s587 = sadd.s32 1, %s583
                $region65: #{decoder_forward.2} parent=58 // loop_footer_branch
                  %582 = sbr.rel target = $region61
                $region66: #{decoder_forward.2} parent=58 // loop_exit
                  _
                loop: start=0, step=1, limit=1
                $region67: #{decoder_forward.2} parent=58 // loop_pre_header
                  _
                $region68: #{decoder_forward.2} parent=58 // loop_header
                  %s592 = sphi 0, %s596
                  %p593 = scmp.ge.s32.totalorder %s592, 1
                  %s597 = sphi %s540, %s540
                  %s598 = sphi %s548, %s548
                $region69: #{decoder_forward.2} parent=58 // loop_header_branch
                  %595 = sbr.rel (%p593) target = $region73
                $region70: #{decoder_forward.2} parent=58 // loop_body
                  %v599 = vld [vmem:[%s597] sm:$0xf]
                  %600 = vst [vmem:[%s598] sm:$0xf] %v599
                  %v601 = vld [vmem:[%s597 + $0x4] sm:$0xf]
                  %602 = vst [vmem:[%s598 + $0x8] sm:$0xf] %v601
                  %v603 = vld [vmem:[%s597 + $0x8] sm:$0xf]
                  %604 = vst [vmem:[%s598 + $0x10] sm:$0xf] %v603
                  %v605 = vld [vmem:[%s597 + $0xc] sm:$0xf]
                  %606 = vst [vmem:[%s598 + $0x18] sm:$0xf] %v605
                  %v607 = vld [vmem:[%s597 + $0x10] sm:$0xf]
                  %608 = vst [vmem:[%s598 + $0x20] sm:$0xf] %v607
                  %v609 = vld [vmem:[%s597 + $0x14] sm:$0xf]
                  %610 = vst [vmem:[%s598 + $0x28] sm:$0xf] %v609
                  %v611 = vld [vmem:[%s597 + $0x18] sm:$0xf]
                  %612 = vst [vmem:[%s598 + $0x30] sm:$0xf] %v611
                  %v613 = vld [vmem:[%s597 + $0x1c] sm:$0xf]
                  %614 = vst [vmem:[%s598 + $0x38] sm:$0xf] %v613
                $region71: #{decoder_forward.2} parent=58 // loop_footer
                  %s596 = sadd.s32 1, %s592
                $region72: #{decoder_forward.2} parent=58 // loop_footer_branch
                  %591 = sbr.rel target = $region68
                $region73: #{decoder_forward.2} parent=58 // loop_exit
                  _
              $region59: #{decoder_forward.2} parent=43 // pred_fallthru
                _
            $region44: #{decoder_forward.2} parent=39 // pred_fallthru
              _
            // Predicated region
            $region45: #{decoder_forward.2} parent=39 // pred_check
              _
            $region46: #{decoder_forward.2} parent=39 // pred_check_branch
              %554 = sbr.rel (0) target = $region48
            $region47: #{decoder_forward.2} parent=39 // pred_region
              loop: start=0, step=1, limit=1
              $region49: #{decoder_forward.2} parent=47 // loop_pre_header
                _
              $region50: #{decoder_forward.2} parent=47 // loop_header
                %s557 = sphi 0, %s561
                %p558 = scmp.ge.s32.totalorder %s557, 1
                %s562 = sphi %s540, %s540
                %s563 = sphi %s548, %s548
              $region51: #{decoder_forward.2} parent=47 // loop_header_branch
                %560 = sbr.rel (%p558) target = $region55
              $region52: #{decoder_forward.2} parent=47 // loop_body
                %v564 = vld [vmem:[%s562] sm:$0xf]
                %565 = vst [vmem:[%s563] sm:$0xf] %v564
                %v566 = vld [vmem:[%s562 + $0x4] sm:$0xf]
                %567 = vst [vmem:[%s563 + $0x8] sm:$0xf] %v566
                %v568 = vld [vmem:[%s562 + $0x8] sm:$0xf]
                %569 = vst [vmem:[%s563 + $0x10] sm:$0xf] %v568
                %v570 = vld [vmem:[%s562 + $0xc] sm:$0xf]
                %571 = vst [vmem:[%s563 + $0x18] sm:$0xf] %v570
                %v572 = vld [vmem:[%s562 + $0x10] sm:$0xf]
                %573 = vst [vmem:[%s563 + $0x20] sm:$0xf] %v572
                %v574 = vld [vmem:[%s562 + $0x14] sm:$0xf]
                %575 = vst [vmem:[%s563 + $0x28] sm:$0xf] %v574
                %v576 = vld [vmem:[%s562 + $0x18] sm:$0xf]
                %577 = vst [vmem:[%s563 + $0x30] sm:$0xf] %v576
                %v578 = vld [vmem:[%s562 + $0x1c] sm:$0xf]
                %579 = vst [vmem:[%s563 + $0x38] sm:$0xf] %v578
              $region53: #{decoder_forward.2} parent=47 // loop_footer
                %s561 = sadd.s32 1, %s557
              $region54: #{decoder_forward.2} parent=47 // loop_footer_branch
                %556 = sbr.rel target = $region50
              $region55: #{decoder_forward.2} parent=47 // loop_exit
                _
            $region48: #{decoder_forward.2} parent=39 // pred_fallthru
              _
          $region40: #{decoder_forward.2} parent=35 // pred_fallthru
            _
          %615 = vnop
        $region36: #{decoder_forward.2} parent=31 // pred_fallthru
          _
      $region32: #{decoder_forward.2} parent=5 // pred_fallthru
        _
      %p616 = scmp.le.s32.totalorder 2, %s9
      // Predicated region
      $region74: #{decoder_forward.2} parent=5 // pred_check
        %p617 = pneg %p616
      $region75: #{decoder_forward.2} parent=5 // pred_check_branch
        %619 = sbr.rel (%p617) target = $region77
      $region76: #{decoder_forward.2} parent=5 // pred_region
        %s620 = ssub.s32 %s9, 2
        // Predicated region
        $region78: #{decoder_forward.2} parent=76 // pred_check
          %p621 = pneg %p125
        $region79: #{decoder_forward.2} parent=76 // pred_check_branch
          %623 = sbr.rel (%p621) target = $region81
        $region80: #{decoder_forward.2} parent=76 // pred_region
          %s624 = sand.u32 %s110, 1
          %s625 = sand.u32 %s110, 1
          %s626 = smul.addr %s625, 32
          %s627 = scalar_lea.vmem [#allocation2], %s626
        $region81: #{decoder_forward.2} parent=76 // pred_fallthru
          _
      $region77: #{decoder_forward.2} parent=5 // pred_fallthru
        _
    $region6: #{decoder_forward.2} parent=1 // loop_footer
      %s13 = sadd.s32 1, %s9
    $region7: #{decoder_forward.2} parent=1 // loop_footer_branch
      %8 = sbr.rel target = $region3
    $region8: #{decoder_forward.2} parent=1 // loop_exit
      _

// kernel: decoder_forward.3
$region0: #{decoder_forward.3}
  #allocation0 [shape = 'u32[]', space=smem, size = 0x4, offset = 0x4, fixed_abs, tag = 'smem constant byte address 0x4 - core index']
  #allocation1 [shape = 'u32[144,128]{1,0:T(1,128)}', space=vmem, size = 0x12000, scoped, tag = 'internal scratch']
  %s0 = inlined_call_operand.vmem [shape: bf16[2,18,18,4], index: 0, kind: input, shape index: {}]
  %s1 = inlined_call_operand.vmem [shape: bf16[2,18,18,4], index: 1, kind: input, shape index: {}]
  %s2 = inlined_call_operand.vmem [shape: bf16[9,4,4], index: 2, kind: input, shape index: {}]
  %s3 = inlined_call_operand.vmem [shape: bf16[9,4,4], index: 3, kind: input, shape index: {}]
  %s4 = inlined_call_operand.vmem [shape: f32[1,4], index: 4, kind: input, shape index: {}]
  %s5 = inlined_call_operand.vmem [shape: f32[2,16,16,4], index: 5, kind: output, shape index: {}]
  %s6 = sld [smem:[#allocation0]]
  $region53: #{decoder_forward.3} parent=0
    _
  %s8 = ssub.s32 1, %s6
  %s9 = scalar_select 0, %s8, %s6
  loop: start=0, step=1, limit=4
  $region2: #{decoder_forward.3} parent=0 // loop_pre_header
    _
  $region3: #{decoder_forward.3} parent=0 // loop_header
    %s11 = sphi 0, %s15
    %p12 = scmp.ge.s32.totalorder %s11, 4
    %s21 = sphi 0, %s23
    %s24 = sphi 0, %s21
    %s25 = sphi 0, %s24
    %s41 = sphi 0, %s25
    %s47 = sphi 0, %s49
    %s50 = sphi 0, %s47
    %s51 = sphi 0, %s50
    %s67 = sphi 0, %s51
    %s71 = sphi 0, %s71
    %s73 = sphi 0, %s71
    %s74 = sphi 0, %s73
    %s88 = sphi 0, %s74
    %s92 = sphi 0, %s92
    %s94 = sphi 0, %s92
    %s95 = sphi 0, %s94
    %s109 = sphi 0, %s95
    %s113 = sphi 0, %s113
    %s115 = sphi 0, %s113
    %s116 = sphi 0, %s115
    %s130 = sphi 0, %s116
    %s136 = sphi 0, %s138
    %s139 = sphi 0, %s136
    %s140 = sphi 0, %s139
    %s156 = sphi 0, %s140
  $region4: #{decoder_forward.3} parent=0 // loop_header_branch
    %14 = sbr.rel (%p12) target = $region8
  $region5: #{decoder_forward.3} parent=0 // loop_body
    %s16 = ssub.s32 %s11, 1
    %s17 = ssub.s32 %s11, 2
    %s18 = sadd.s32 %s11, 1
    %s19 = ssub.s32 %s11, %s18
    %p20 = scmp.eq.s32.totalorder %s19, 0
    %s22 = sadd.s32 %s21, 1
    %s23 = scalar_select %p20, %s21, %s22
    %p26 = pneg %p20
    %p27 = scmp.eq.s32.totalorder %s11, 1
    %p28 = por %p26, %p27
    %p29 = scmp.ne.s32.totalorder %s21, %s24
    %p30 = scmp.eq.s32.totalorder %s11, 0
    %p31 = por %p29, %p30
    %p32 = scmp.ne.s32.totalorder %s21, %s24
    %p33 = scmp.eq.s32.totalorder %s16, 1
    %p34 = por %p32, %p33
    %p35 = scmp.ne.s32.totalorder %s24, %s25
    %p36 = scmp.eq.s32.totalorder %s16, 0
    %p37 = por %p35, %p36
    %p38 = scmp.ne.s32.totalorder %s24, %s25
    %p39 = scmp.eq.s32.totalorder %s17, 1
    %p40 = por %p38, %p39
    %p42 = scmp.ne.s32.totalorder %s25, %s41
    %p43 = scmp.eq.s32.totalorder %s17, 0
    %p44 = por %p42, %p43
    %s45 = ssub.s32 %s11, %s18
    %p46 = scmp.eq.s32.totalorder %s45, 0
    %s48 = sadd.s32 %s47, 1
    %s49 = scalar_select %p46, %s47, %s48
    %p52 = pneg %p46
    %p53 = scmp.eq.s32.totalorder %s11, 1
    %p54 = por %p52, %p53
    %p55 = scmp.ne.s32.totalorder %s47, %s50
    %p56 = scmp.eq.s32.totalorder %s11, 0
    %p57 = por %p55, %p56
    %p58 = scmp.ne.s32.totalorder %s47, %s50
    %p59 = scmp.eq.s32.totalorder %s16, 1
    %p60 = por %p58, %p59
    %p61 = scmp.ne.s32.totalorder %s50, %s51
    %p62 = scmp.eq.s32.totalorder %s16, 0
    %p63 = por %p61, %p62
    %p64 = scmp.ne.s32.totalorder %s50, %s51
    %p65 = scmp.eq.s32.totalorder %s17, 1
    %p66 = por %p64, %p65
    %p68 = scmp.ne.s32.totalorder %s51, %s67
    %p69 = scmp.eq.s32.totalorder %s17, 0
    %p70 = por %p68, %p69
    %s72 = sadd.s32 %s71, 1
    %p75 = scmp.eq.s32.totalorder %s11, 1
    %p76 = scmp.ne.s32.totalorder %s71, %s73
    %p77 = scmp.eq.s32.totalorder %s11, 0
    %p78 = por %p76, %p77
    %p79 = scmp.ne.s32.totalorder %s71, %s73
    %p80 = scmp.eq.s32.totalorder %s16, 1
    %p81 = por %p79, %p80
    %p82 = scmp.ne.s32.totalorder %s73, %s74
    %p83 = scmp.eq.s32.totalorder %s16, 0
    %p84 = por %p82, %p83
    %p85 = scmp.ne.s32.totalorder %s73, %s74
    %p86 = scmp.eq.s32.totalorder %s17, 1
    %p87 = por %p85, %p86
    %p89 = scmp.ne.s32.totalorder %s74, %s88
    %p90 = scmp.eq.s32.totalorder %s17, 0
    %p91 = por %p89, %p90
    %s93 = sadd.s32 %s92, 1
    %p96 = scmp.eq.s32.totalorder %s11, 1
    %p97 = scmp.ne.s32.totalorder %s92, %s94
    %p98 = scmp.eq.s32.totalorder %s11, 0
    %p99 = por %p97, %p98
    %p100 = scmp.ne.s32.totalorder %s92, %s94
    %p101 = scmp.eq.s32.totalorder %s16, 1
    %p102 = por %p100, %p101
    %p103 = scmp.ne.s32.totalorder %s94, %s95
    %p104 = scmp.eq.s32.totalorder %s16, 0
    %p105 = por %p103, %p104
    %p106 = scmp.ne.s32.totalorder %s94, %s95
    %p107 = scmp.eq.s32.totalorder %s17, 1
    %p108 = por %p106, %p107
    %p110 = scmp.ne.s32.totalorder %s95, %s109
    %p111 = scmp.eq.s32.totalorder %s17, 0
    %p112 = por %p110, %p111
    %s114 = sadd.s32 %s113, 1
    %p117 = scmp.eq.s32.totalorder %s11, 1
    %p118 = scmp.ne.s32.totalorder %s113, %s115
    %p119 = scmp.eq.s32.totalorder %s11, 0
    %p120 = por %p118, %p119
    %p121 = scmp.ne.s32.totalorder %s113, %s115
    %p122 = scmp.eq.s32.totalorder %s16, 1
    %p123 = por %p121, %p122
    %p124 = scmp.ne.s32.totalorder %s115, %s116
    %p125 = scmp.eq.s32.totalorder %s16, 0
    %p126 = por %p124, %p125
    %p127 = scmp.ne.s32.totalorder %s115, %s116
    %p128 = scmp.eq.s32.totalorder %s17, 1
    %p129 = por %p127, %p128
    %p131 = scmp.ne.s32.totalorder %s116, %s130
    %p132 = scmp.eq.s32.totalorder %s17, 0
    %p133 = por %p131, %p132
    %s134 = ssub.s32 %s11, %s18
    %p135 = scmp.eq.s32.totalorder %s134, 0
    %s137 = sadd.s32 %s136, 1
    %s138 = scalar_select %p135, %s136, %s137
    %p141 = pneg %p135
    %p142 = scmp.eq.s32.totalorder %s11, 1
    %p143 = por %p141, %p142
    %p144 = scmp.ne.s32.totalorder %s136, %s139
    %p145 = scmp.eq.s32.totalorder %s11, 0
    %p146 = por %p144, %p145
    %p147 = scmp.ne.s32.totalorder %s136, %s139
    %p148 = scmp.eq.s32.totalorder %s16, 1
    %p149 = por %p147, %p148
    %p150 = scmp.ne.s32.totalorder %s139, %s140
    %p151 = scmp.eq.s32.totalorder %s16, 0
    %p152 = por %p150, %p151
    %p153 = scmp.ne.s32.totalorder %s139, %s140
    %p154 = scmp.eq.s32.totalorder %s17, 1
    %p155 = por %p153, %p154
    %p157 = scmp.ne.s32.totalorder %s140, %s156
    %p158 = scmp.eq.s32.totalorder %s17, 0
    %p159 = por %p157, %p158
    %p160 = scmp.le.s32.totalorder 1, %s11
    %p161 = scmp.lt.s32.totalorder %s11, 3
    %p162 = pnand %p160, %p161
    %p163 = pneg %p162
    // Predicated region
    $region9: #{decoder_forward.3} parent=5 // pred_check
      _
    $region10: #{decoder_forward.3} parent=5 // pred_check_branch
      %165 = sbr.rel (%p162) target = $region12
    $region11: #{decoder_forward.3} parent=5 // pred_region
      %s166 = ssub.s32 %s11, 1
      // Predicated region
      $region13: #{decoder_forward.3} parent=11 // pred_check
        %p167 = pneg %p84
      $region14: #{decoder_forward.3} parent=11 // pred_check_branch
        %169 = sbr.rel (%p167) target = $region16
      $region15: #{decoder_forward.3} parent=11 // pred_region
        _
      $region16: #{decoder_forward.3} parent=11 // pred_fallthru
        _
      // Predicated region
      $region17: #{decoder_forward.3} parent=11 // pred_check
        %p170 = pneg %p105
      $region18: #{decoder_forward.3} parent=11 // pred_check_branch
        %172 = sbr.rel (%p170) target = $region20
      $region19: #{decoder_forward.3} parent=11 // pred_region
        _
      $region20: #{decoder_forward.3} parent=11 // pred_fallthru
        _
      // Predicated region
      $region21: #{decoder_forward.3} parent=11 // pred_check
        %p173 = pneg %p126
      $region22: #{decoder_forward.3} parent=11 // pred_check_branch
        %175 = sbr.rel (%p173) target = $region24
      $region23: #{decoder_forward.3} parent=11 // pred_region
        _
      $region24: #{decoder_forward.3} parent=11 // pred_fallthru
        _
    $region12: #{decoder_forward.3} parent=5 // pred_fallthru
      _
    %p176 = scmp.lt.s32.totalorder %s11, 2
    // Predicated region
    $region25: #{decoder_forward.3} parent=5 // pred_check
      %p177 = pneg %p176
    $region26: #{decoder_forward.3} parent=5 // pred_check_branch
      %179 = sbr.rel (%p177) target = $region28
    $region27: #{decoder_forward.3} parent=5 // pred_region
      // Predicated region
      $region29: #{decoder_forward.3} parent=27 // pred_check
        %p180 = pneg %p31
      $region30: #{decoder_forward.3} parent=27 // pred_check_branch
        %182 = sbr.rel (%p180) target = $region32
      $region31: #{decoder_forward.3} parent=27 // pred_region
        %p183 = scmp.lt.s32.totalorder %s11, 1
        %s184 = scalar_select %p183, %s11, 1
        %s185 = smul.addr %s184, 54
        %s186 = smul.addr %s185, 4
        %s187 = scalar_lea.vmem %s0, %s186
      $region32: #{decoder_forward.3} parent=27 // pred_fallthru
        _
      // Predicated region
      $region33: #{decoder_forward.3} parent=27 // pred_check
        %p188 = pneg %p57
      $region34: #{decoder_forward.3} parent=27 // pred_check_branch
        %190 = sbr.rel (%p188) target = $region36
      $region35: #{decoder_forward.3} parent=27 // pred_region
        %p191 = scmp.lt.s32.totalorder %s11, 1
        %s192 = scalar_select %p191, %s11, 1
        %s193 = smul.addr %s192, 54
        %s194 = smul.addr %s193, 4
        %s195 = scalar_lea.vmem %s1, %s194
      $region36: #{decoder_forward.3} parent=27 // pred_fallthru
        _
    $region28: #{decoder_forward.3} parent=5 // pred_fallthru
      _
    %p196 = scmp.le.s32.totalorder 1, %s11
    %p197 = scmp.lt.s32.totalorder %s11, 3
    %p198 = pnand %p196, %p197
    %p199 = pneg %p198
    // Predicated region
    $region37: #{decoder_forward.3} parent=5 // pred_check
      _
    $region38: #{decoder_forward.3} parent=5 // pred_check_branch
      %201 = sbr.rel (%p198) target = $region40
    $region39: #{decoder_forward.3} parent=5 // pred_region
      %s202 = ssub.s32 %s11, 1
      %p203 = scmp.lt.s32.totalorder %s16, 1
      %s204 = scalar_select %p203, %s16, 1
      %s205 = smul.addr %s204, 54
      %s206 = smul.addr %s205, 4
      %s207 = scalar_lea.vmem %s0, %s206
      %p208 = pneg %p37
      %p209 = pneg %p34
      %p210 = scmp.lt.s32.totalorder %s16, 1
      %s211 = scalar_select %p210, %s16, 1
      %s212 = smul.addr %s211, 54
      %s213 = smul.addr %s212, 4
      %s214 = scalar_lea.vmem %s1, %s213
      %p215 = pneg %p63
      %p216 = pneg %p60
      %p217 = pneg %p84
      %p218 = pneg %p81
      %p219 = pneg %p105
      %p220 = pneg %p102
      %p221 = pneg %p126
      %p222 = pneg %p123
      %p223 = pneg %p152
      %p224 = pneg %p149
      %p225 = scmp.lt.s32.totalorder %s16, 1
      %s226 = scalar_select %p225, %s16, 1
      %s227 = smul.addr %s226, 32
      %s228 = smul.addr %s227, 8
      %s229 = scalar_lea.vmem %s5, %s228
      %p230 = scmp.lt.s32.totalorder %s16, 1
      %s231 = scalar_select %p230, %s16, 1
      %s232 = smul.addr %s231, 54
      %s233 = smul.addr %s232, 4
      %s234 = scalar_lea.vmem %s0, %s233
      %p235 = scmp.lt.s32.totalorder %s16, 1
      %s236 = scalar_select %p235, %s16, 1
      %s237 = smul.addr %s236, 54
      %s238 = smul.addr %s237, 4
      %s239 = scalar_lea.vmem %s1, %s238
      %p240 = scmp.lt.s32.totalorder %s16, 1
      %s241 = scalar_select %p240, %s16, 1
      %s242 = smul.addr %s241, 32
      %s243 = smul.addr %s242, 8
      %s244 = scalar_lea.vmem %s5, %s243
      %v246 = vld [vmem:[%s4] sm:$0x1]
      %v248 = vlaneseq
      %v249 = vshrl.u32 %v248, 7
      %v250 = vsub.s32 0, %v249
      %v251 = vrot.slane %v246, %v250
      %v253 = vadd.f32 %v251, 0.0
      %v254 = vld [vmem:[%s234] sm:$0xf]
      %v255 = vld [vmem:[%s234 + $0x4] sm:$0xf]
      %v256 = vld [vmem:[%s234 + $0xc] sm:$0xf]
      %v257 = vld [vmem:[%s234 + $0x10] sm:$0xf]
      %v258 = vld [vmem:[%s234 + $0x18] sm:$0xf]
      %v259 = vld [vmem:[%s234 + $0x1c] sm:$0xf]
      %v260 = vld [vmem:[%s234 + $0x24] sm:$0xf]
      %v261 = vld [vmem:[%s234 + $0x28] sm:$0xf]
      %v262 = vld [vmem:[%s234 + $0x30] sm:$0xf]
      %v263 = vld [vmem:[%s234 + $0x34] sm:$0xf]
      %v264 = vld [vmem:[%s234 + $0x3c] sm:$0xf]
      %v265 = vld [vmem:[%s234 + $0x40] sm:$0xf]
      %v266 = vld [vmem:[%s234 + $0x48] sm:$0xf]
      %v267 = vld [vmem:[%s234 + $0x4c] sm:$0xf]
      %v268 = vld [vmem:[%s234 + $0x54] sm:$0xf]
      %v269 = vld [vmem:[%s234 + $0x58] sm:$0xf]
      %v270 = vld [vmem:[%s234 + $0x60] sm:$0xf]
      %v271 = vld [vmem:[%s234 + $0x64] sm:$0xf]
      %v272 = vld [vmem:[%s234 + $0x6c] sm:$0xf]
      %v273 = vld [vmem:[%s234 + $0x70] sm:$0xf]
      %v274 = vld [vmem:[%s234 + $0x78] sm:$0xf]
      %v275 = vld [vmem:[%s234 + $0x7c] sm:$0xf]
      %v276 = vld [vmem:[%s234 + $0x84] sm:$0xf]
      %v277 = vld [vmem:[%s234 + $0x88] sm:$0xf]
      %v278 = vld [vmem:[%s234 + $0x90] sm:$0xf]
      %v279 = vld [vmem:[%s234 + $0x94] sm:$0xf]
      %v280 = vld [vmem:[%s234 + $0x9c] sm:$0xf]
      %v281 = vld [vmem:[%s234 + $0xa0] sm:$0xf]
      %v282 = vld [vmem:[%s234 + $0xa8] sm:$0xf]
      %v283 = vld [vmem:[%s234 + $0xac] sm:$0xf]
      %v284 = vld [vmem:[%s234 + $0xb4] sm:$0xf]
      %v285 = vld [vmem:[%s234 + $0xb8] sm:$0xf]
      %v286 = vld [vmem:[%s239] sm:$0xf]
      %v287 = vld [vmem:[%s239 + $0x4] sm:$0xf]
      %v288 = vld [vmem:[%s239 + $0xc] sm:$0xf]
      %v289 = vld [vmem:[%s239 + $0x10] sm:$0xf]
      %v290 = vld [vmem:[%s239 + $0x18] sm:$0xf]
      %v291 = vld [vmem:[%s239 + $0x1c] sm:$0xf]
      %v292 = vld [vmem:[%s239 + $0x24] sm:$0xf]
      %v293 = vld [vmem:[%s239 + $0x28] sm:$0xf]
      %v294 = vld [vmem:[%s239 + $0x30] sm:$0xf]
      %v295 = vld [vmem:[%s239 + $0x34] sm:$0xf]
      %v296 = vld [vmem:[%s239 + $0x3c] sm:$0xf]
      %v297 = vld [vmem:[%s239 + $0x40] sm:$0xf]
      %v298 = vld [vmem:[%s239 + $0x48] sm:$0xf]
      %v299 = vld [vmem:[%s239 + $0x4c] sm:$0xf]
      %v300 = vld [vmem:[%s239 + $0x54] sm:$0xf]
      %v301 = vld [vmem:[%s239 + $0x58] sm:$0xf]
      %v302 = vld [vmem:[%s239 + $0x60] sm:$0xf]
      %v303 = vld [vmem:[%s239 + $0x64] sm:$0xf]
      %v304 = vld [vmem:[%s239 + $0x6c] sm:$0xf]
      %v305 = vld [vmem:[%s239 + $0x70] sm:$0xf]
      %v306 = vld [vmem:[%s239 + $0x78] sm:$0xf]
      %v307 = vld [vmem:[%s239 + $0x7c] sm:$0xf]
      %v308 = vld [vmem:[%s239 + $0x84] sm:$0xf]
      %v309 = vld [vmem:[%s239 + $0x88] sm:$0xf]
      %v310 = vld [vmem:[%s239 + $0x90] sm:$0xf]
      %v311 = vld [vmem:[%s239 + $0x94] sm:$0xf]
      %v312 = vld [vmem:[%s239 + $0x9c] sm:$0xf]
      %v313 = vld [vmem:[%s239 + $0xa0] sm:$0xf]
      %v314 = vld [vmem:[%s239 + $0xa8] sm:$0xf]
      %v315 = vld [vmem:[%s239 + $0xac] sm:$0xf]
      %v316 = vld [vmem:[%s239 + $0xb4] sm:$0xf]
      %v317 = vld [vmem:[%s239 + $0xb8] sm:$0xf]
      %v318 = vld [vmem:[%s2] sm:$0x3]
      %v351 = vunpack.c.l.b16 %v254
      %v352 = vunpack.c.l.b16 %v255
      %v353 = vunpack.c.l.b16 %v256
      %v354 = vunpack.c.l.b16 %v257
      %v355 = vunpack.c.l.b16 %v258
      %v356 = vunpack.c.l.b16 %v259
      %v357 = vunpack.c.l.b16 %v260
      %v358 = vunpack.c.l.b16 %v261
      %v359 = vunpack.c.l.b16 %v262
      %v360 = vunpack.c.l.b16 %v263
      %v361 = vunpack.c.l.b16 %v264
      %v362 = vunpack.c.l.b16 %v265
      %v363 = vunpack.c.l.b16 %v266
      %v364 = vunpack.c.l.b16 %v267
      %v365 = vunpack.c.l.b16 %v268
      %v366 = vunpack.c.l.b16 %v269
      %v367 = vunpack.c.l.b16 %v270
      %v368 = vunpack.c.l.b16 %v271
      %v369 = vunpack.c.l.b16 %v272
      %v370 = vunpack.c.l.b16 %v273
      %v371 = vunpack.c.l.b16 %v274
      %v372 = vunpack.c.l.b16 %v275
      %v373 = vunpack.c.l.b16 %v276
      %v374 = vunpack.c.l.b16 %v277
      %v375 = vunpack.c.l.b16 %v278
      %v376 = vunpack.c.l.b16 %v279
      %v377 = vunpack.c.l.b16 %v280
      %v378 = vunpack.c.l.b16 %v281
      %v379 = vunpack.c.l.b16 %v282
      %v380 = vunpack.c.l.b16 %v283
      %v381 = vunpack.c.l.b16 %v284
      %v382 = vunpack.c.l.b16 %v285
      %v383 = vpack.c.b16 %v352, %v351
      %v384 = vpack.c.b16 %v354, %v353
      %v385 = vpack.c.b16 %v356, %v355
      %v386 = vpack.c.b16 %v358, %v357
      %v387 = vpack.c.b16 %v360, %v359
      %v388 = vpack.c.b16 %v362, %v361
      %v389 = vpack.c.b16 %v364, %v363
      %v390 = vpack.c.b16 %v366, %v365
      %v391 = vpack.c.b16 %v368, %v367
      %v392 = vpack.c.b16 %v370, %v369
      %v393 = vpack.c.b16 %v372, %v371
      %v394 = vpack.c.b16 %v374, %v373
      %v395 = vpack.c.b16 %v376, %v375
      %v396 = vpack.c.b16 %v378, %v377
      %v397 = vpack.c.b16 %v380, %v379
      %v398 = vpack.c.b16 %v382, %v381
      %vm399 = vcmask 31744
      %v401 = vsel %vm399, %v383, 0
      %v404 = vsel %vm399, %v384, 0
      %v407 = vsel %vm399, %v385, 0
      %v410 = vsel %vm399, %v386, 0
      %v413 = vsel %vm399, %v387, 0
      %v416 = vsel %vm399, %v388, 0
      %v419 = vsel %vm399, %v389, 0
      %v422 = vsel %vm399, %v390, 0
      %v425 = vsel %vm399, %v391, 0
      %v428 = vsel %vm399, %v392, 0
      %v431 = vsel %vm399, %v393, 0
      %v434 = vsel %vm399, %v394, 0
      %v437 = vsel %vm399, %v395, 0
      %v440 = vsel %vm399, %v396, 0
      %v443 = vsel %vm399, %v397, 0
      %v446 = vsel %vm399, %v398, 0
      %vm448 = vcmask 1041408
      %v450 = vsel %vm448, %v318, 0
      %452 = vmatprep.subr.bf16.mxu0 0
      %453 = vmatpush1.bf16.msra.mxu0 %v450
      %454 = vmatprep.subr.bf16.mxu0 0
      %455 = vmatpush1.bf16.msra.mxu0 0
      %456 = vmatprep.subr.bf16.mxu0 0
      %457 = vmatpush1.bf16.msra.mxu0 0
      %458 = vmatprep.subr.bf16.mxu0 0
      %459 = vmatpush1.bf16.msra.mxu0 0
      %460 = vmatprep.subr.bf16.mxu0 0
      %461 = vmatpush1.bf16.msra.mxu0 0
      %462 = vmatprep.subr.bf16.mxu0 0
      %463 = vmatpush1.bf16.msra.mxu0 0
      %464 = vmatprep.subr.bf16.mxu0 0
      %465 = vmatpush1.bf16.msra.mxu0 0
      %466 = vmatprep.subr.bf16.mxu0 0
      %467 = vmatpush1.bf16.msra.mxu0 0
      %468 = vmatprep.subr.bf16.mxu0 0
      %469 = vmatpush1.bf16.msra.mxu0 0
      %470 = vmatprep.subr.bf16.mxu0 0
      %471 = vmatpush1.bf16.msra.mxu0 0
      %472 = vmatprep.subr.bf16.mxu0 0
      %473 = vmatpush1.bf16.msra.mxu0 0
      %474 = vmatprep.subr.bf16.mxu0 0
      %475 = vmatpush1.bf16.msra.mxu0 0
      %476 = vmatprep.subr.bf16.mxu0 0
      %477 = vmatpush1.bf16.msra.mxu0 0
      %478 = vmatprep.subr.bf16.mxu0 0
      %479 = vmatpush1.bf16.msra.mxu0 0
      %480 = vmatprep.subr.bf16.mxu0 0
      %481 = vmatpush1.bf16.msra.mxu0 0
      %482 = vmatprep.subr.bf16.mxu0 0
      %483 = vmatpush1.bf16.msra.mxu0 0
      %484 = vmatprep.mubr.bf16.mxu0 0
      %485 = vmatmul.mubr.bf16.gmra.mrb[0].mxu0 %v401
      %v486 = vpop.f32.mrb[0].mxu0
      %v487 = vadd.f32 0.0, %v486
      %v488 = vpop.f32.mrb[0].mxu0
      %v489 = vpop.f32.mrb[0].mxu0
      %v490 = vadd.f32 0.0, %v489
      %v491 = vpop.f32.mrb[0].mxu0
      %492 = vmatprep.mubr.bf16.mxu0 0
      %493 = vmatmul.mubr.bf16.gmra.mrb[0].mxu0 %v404
      %v494 = vpop.f32.mrb[0].mxu0
      %v495 = vadd.f32 0.0, %v494
      %v496 = vpop.f32.mrb[0].mxu0
      %v497 = vpop.f32.mrb[0].mxu0
      %v498 = vadd.f32 0.0, %v497
      %v499 = vpop.f32.mrb[0].mxu0
      %500 = vmatprep.mubr.bf16.mxu0 0
      %501 = vmatmul.mubr.bf16.gmra.mrb[0].mxu0 %v407
      %v502 = vpop.f32.mrb[0].mxu0
      %v503 = vadd.f32 0.0, %v502
      %v504 = vpop.f32.mrb[0].mxu0
      %v505 = vpop.f32.mrb[0].mxu0
      %v506 = vadd.f32 0.0, %v505
      %v507 = vpop.f32.mrb[0].mxu0
      %508 = vmatprep.mubr.bf16.mxu0 0
      %509 = vmatmul.mubr.bf16.gmra.mrb[0].mxu0 %v410
      %v510 = vpop.f32.mrb[0].mxu0
      %v511 = vadd.f32 0.0, %v510
      %v512 = vpop.f32.mrb[0].mxu0
      %v513 = vpop.f32.mrb[0].mxu0
      %v514 = vadd.f32 0.0, %v513
      %v515 = vpop.f32.mrb[0].mxu0
      %516 = vmatprep.mubr.bf16.mxu0 0
      %517 = vmatmul.mubr.bf16.gmra.mrb[0].mxu0 %v413
      %v518 = vpop.f32.mrb[0].mxu0
      %v519 = vadd.f32 0.0, %v518
      %v520 = vpop.f32.mrb[0].mxu0
      %v521 = vpop.f32.mrb[0].mxu0
      %v522 = vadd.f32 0.0, %v521
      %v523 = vpop.f32.mrb[0].mxu0
      %524 = vmatprep.mubr.bf16.mxu0 0
      %525 = vmatmul.mubr.bf16.gmra.mrb[0].mxu0 %v416
      %v526 = vpop.f32.mrb[0].mxu0
      %v527 = vadd.f32 0.0, %v526
      %v528 = vpop.f32.mrb[0].mxu0
      %v529 = vpop.f32.mrb[0].mxu0
      %v530 = vadd.f32 0.0, %v529
      %v531 = vpop.f32.mrb[0].mxu0
      %532 = vmatprep.mubr.bf16.mxu0 0
      %533 = vmatmul.mubr.bf16.gmra.mrb[0].mxu0 %v419
      %v534 = vpop.f32.mrb[0].mxu0
      %v535 = vadd.f32 0.0, %v534
      %v536 = vpop.f32.mrb[0].mxu0
      %v537 = vpop.f32.mrb[0].mxu0
      %v538 = vadd.f32 0.0, %v537
      %v539 = vpop.f32.mrb[0].mxu0
      %540 = vmatprep.mubr.bf16.mxu0 0
      %541 = vmatmul.mubr.bf16.gmra.mrb[0].mxu0 %v422
      %v542 = vpop.f32.mrb[0].mxu0
      %v543 = vadd.f32 0.0, %v542
      %v544 = vpop.f32.mrb[0].mxu0
      %v545 = vpop.f32.mrb[0].mxu0
      %v546 = vadd.f32 0.0, %v545
      %v547 = vpop.f32.mrb[0].mxu0
      %548 = vmatprep.mubr.bf16.mxu0 0
      %549 = vmatmul.mubr.bf16.gmra.mrb[0].mxu0 %v425
      %v550 = vpop.f32.mrb[0].mxu0
      %v551 = vadd.f32 0.0, %v550
      %v552 = vpop.f32.mrb[0].mxu0
      %v553 = vpop.f32.mrb[0].mxu0
      %v554 = vadd.f32 0.0, %v553
      %v555 = vpop.f32.mrb[0].mxu0
      %556 = vmatprep.mubr.bf16.mxu0 0
      %557 = vmatmul.mubr.bf16.gmra.mrb[0].mxu0 %v428
      %v558 = vpop.f32.mrb[0].mxu0
      %v559 = vadd.f32 0.0, %v558
      %v560 = vpop.f32.mrb[0].mxu0
      %v561 = vpop.f32.mrb[0].mxu0
      %v562 = vadd.f32 0.0, %v561
      %v563 = vpop.f32.mrb[0].mxu0
      %564 = vmatprep.mubr.bf16.mxu0 0
      %565 = vmatmul.mubr.bf16.gmra.mrb[0].mxu0 %v431
      %v566 = vpop.f32.mrb[0].mxu0
      %v567 = vadd.f32 0.0, %v566
      %v568 = vpop.f32.mrb[0].mxu0
      %v569 = vpop.f32.mrb[0].mxu0
      %v570 = vadd.f32 0.0, %v569
      %v571 = vpop.f32.mrb[0].mxu0
      %572 = vmatprep.mubr.bf16.mxu0 0
      %573 = vmatmul.mubr.bf16.gmra.mrb[0].mxu0 %v434
      %v574 = vpop.f32.mrb[0].mxu0
      %v575 = vadd.f32 0.0, %v574
      %v576 = vpop.f32.mrb[0].mxu0
      %v577 = vpop.f32.mrb[0].mxu0
      %v578 = vadd.f32 0.0, %v577
      %v579 = vpop.f32.mrb[0].mxu0
      %580 = vmatprep.mubr.bf16.mxu0 0
      %581 = vmatmul.mubr.bf16.gmra.mrb[0].mxu0 %v437
      %v582 = vpop.f32.mrb[0].mxu0
      %v583 = vadd.f32 0.0, %v582
      %v584 = vpop.f32.mrb[0].mxu0
      %v585 = vpop.f32.mrb[0].mxu0
      %v586 = vadd.f32 0.0, %v585
      %v587 = vpop.f32.mrb[0].mxu0
      %588 = vmatprep.mubr.bf16.mxu0 0
      %589 = vmatmul.mubr.bf16.gmra.mrb[0].mxu0 %v440
      %v590 = vpop.f32.mrb[0].mxu0
      %v591 = vadd.f32 0.0, %v590
      %v592 = vpop.f32.mrb[0].mxu0
      %v593 = vpop.f32.mrb[0].mxu0
      %v594 = vadd.f32 0.0, %v593
      %v595 = vpop.f32.mrb[0].mxu0
      %596 = vmatprep.mubr.bf16.mxu0 0
      %597 = vmatmul.mubr.bf16.gmra.mrb[0].mxu0 %v443
      %v598 = vpop.f32.mrb[0].mxu0
      %v599 = vadd.f32 0.0, %v598
      %v600 = vpop.f32.mrb[0].mxu0
      %v601 = vpop.f32.mrb[0].mxu0
      %v602 = vadd.f32 0.0, %v601
      %v603 = vpop.f32.mrb[0].mxu0
      %604 = vmatprep.mubr.bf16.mxu0 0
      %605 = vmatmul.mubr.bf16.gmra.mrb[0].mxu0 %v446
      %v606 = vpop.f32.mrb[0].mxu0
      %v607 = vadd.f32 0.0, %v606
      %v608 = vpop.f32.mrb[0].mxu0
      %v609 = vpop.f32.mrb[0].mxu0
      %v610 = vadd.f32 0.0, %v609
      %v611 = vpop.f32.mrb[0].mxu0
      %612 = vdwg.mxu0
      %v613 = vadd.f32 %v253, %v487
      %v614 = vadd.f32 %v253, %v490
      %v615 = vadd.f32 %v253, %v495
      %v616 = vadd.f32 %v253, %v498
      %v617 = vadd.f32 %v253, %v503
      %v618 = vadd.f32 %v253, %v506
      %v619 = vadd.f32 %v253, %v511
      %v620 = vadd.f32 %v253, %v514
      %v621 = vadd.f32 %v253, %v519
      %v622 = vadd.f32 %v253, %v522
      %v623 = vadd.f32 %v253, %v527
      %v624 = vadd.f32 %v253, %v530
      %v625 = vadd.f32 %v253, %v535
      %v626 = vadd.f32 %v253, %v538
      %v627 = vadd.f32 %v253, %v543
      %v628 = vadd.f32 %v253, %v546
      %v629 = vadd.f32 %v253, %v551
      %v630 = vadd.f32 %v253, %v554
      %v631 = vadd.f32 %v253, %v559
      %v632 = vadd.f32 %v253, %v562
      %v633 = vadd.f32 %v253, %v567
      %v634 = vadd.f32 %v253, %v570
      %v635 = vadd.f32 %v253, %v575
      %v636 = vadd.f32 %v253, %v578
      %v637 = vadd.f32 %v253, %v583
      %v638 = vadd.f32 %v253, %v586
      %v639 = vadd.f32 %v253, %v591
      %v640 = vadd.f32 %v253, %v594
      %v641 = vadd.f32 %v253, %v599
      %v642 = vadd.f32 %v253, %v602
      %v643 = vadd.f32 %v253, %v607
      %v644 = vadd.f32 %v253, %v610
      %v645 = vld [vmem:[%s3] sm:$0x3]
      %v678 = vunpack.c.l.b16 %v286
      %v679 = vunpack.c.l.b16 %v287
      %v680 = vunpack.c.l.b16 %v288
      %v681 = vunpack.c.l.b16 %v289
      %v682 = vunpack.c.l.b16 %v290
      %v683 = vunpack.c.l.b16 %v291
      %v684 = vunpack.c.l.b16 %v292
      %v685 = vunpack.c.l.b16 %v293
      %v686 = vunpack.c.l.b16 %v294
      %v687 = vunpack.c.l.b16 %v295
      %v688 = vunpack.c.l.b16 %v296
      %v689 = vunpack.c.l.b16 %v297
      %v690 = vunpack.c.l.b16 %v298
      %v691 = vunpack.c.l.b16 %v299
      %v692 = vunpack.c.l.b16 %v300
      %v693 = vunpack.c.l.b16 %v301
      %v694 = vunpack.c.l.b16 %v302
      %v695 = vunpack.c.l.b16 %v303
      %v696 = vunpack.c.l.b16 %v304
      %v697 = vunpack.c.l.b16 %v305
      %v698 = vunpack.c.l.b16 %v306
      %v699 = vunpack.c.l.b16 %v307
      %v700 = vunpack.c.l.b16 %v308
      %v701 = vunpack.c.l.b16 %v309
      %v702 = vunpack.c.l.b16 %v310
      %v703 = vunpack.c.l.b16 %v311
      %v704 = vunpack.c.l.b16 %v312
      %v705 = vunpack.c.l.b16 %v313
      %v706 = vunpack.c.l.b16 %v314
      %v707 = vunpack.c.l.b16 %v315
      %v708 = vunpack.c.l.b16 %v316
      %v709 = vunpack.c.l.b16 %v317
      %v710 = vpack.c.b16 %v679, %v678
      %v711 = vpack.c.b16 %v681, %v680
      %v712 = vpack.c.b16 %v683, %v682
      %v713 = vpack.c.b16 %v685, %v684
      %v714 = vpack.c.b16 %v687, %v686
      %v715 = vpack.c.b16 %v689, %v688
      %v716 = vpack.c.b16 %v691, %v690
      %v717 = vpack.c.b16 %v693, %v692
      %v718 = vpack.c.b16 %v695, %v694
      %v719 = vpack.c.b16 %v697, %v696
      %v720 = vpack.c.b16 %v699, %v698
      %v721 = vpack.c.b16 %v701, %v700
      %v722 = vpack.c.b16 %v703, %v702
      %v723 = vpack.c.b16 %v705, %v704
      %v724 = vpack.c.b16 %v707, %v706
      %v725 = vpack.c.b16 %v709, %v708
      %v727 = vsel %vm399, %v710, 0
      %v730 = vsel %vm399, %v711, 0
      %v733 = vsel %vm399, %v712, 0
      %v736 = vsel %vm399, %v713, 0
      %v739 = vsel %vm399, %v714, 0
      %v742 = vsel %vm399, %v715, 0
      %v745 = vsel %vm399, %v716, 0
      %v748 = vsel %vm399, %v717, 0
      %v751 = vsel %vm399, %v718, 0
      %v754 = vsel %vm399, %v719, 0
      %v757 = vsel %vm399, %v720, 0
      %v760 = vsel %vm399, %v721, 0
      %v763 = vsel %vm399, %v722, 0
      %v766 = vsel %vm399, %v723, 0
      %v769 = vsel %vm399, %v724, 0
      %v772 = vsel %vm399, %v725, 0
      %v775 = vsel %vm448, %v645, 0
      %777 = vmatprep.subr.bf16.mxu0 0
      %778 = vmatpush1.bf16.msra.mxu0 %v775
      %779 = vmatprep.subr.bf16.mxu0 0
      %780 = vmatpush1.bf16.msra.mxu0 0
      %781 = vmatprep.subr.bf16.mxu0 0
      %782 = vmatpush1.bf16.msra.mxu0 0
      %783 = vmatprep.subr.bf16.mxu0 0
      %784 = vmatpush1.bf16.msra.mxu0 0
      %785 = vmatprep.subr.bf16.mxu0 0
      %786 = vmatpush1.bf16.msra.mxu0 0
      %787 = vmatprep.subr.bf16.mxu0 0
      %788 = vmatpush1.bf16.msra.mxu0 0
      %789 = vmatprep.subr.bf16.mxu0 0
      %790 = vmatpush1.bf16.msra.mxu0 0
      %791 = vmatprep.subr.bf16.mxu0 0
      %792 = vmatpush1.bf16.msra.mxu0 0
      %793 = vmatprep.subr.bf16.mxu0 0
      %794 = vmatpush1.bf16.msra.mxu0 0
      %795 = vmatprep.subr.bf16.mxu0 0
      %796 = vmatpush1.bf16.msra.mxu0 0
      %797 = vmatprep.subr.bf16.mxu0 0
      %798 = vmatpush1.bf16.msra.mxu0 0
      %799 = vmatprep.subr.bf16.mxu0 0
      %800 = vmatpush1.bf16.msra.mxu0 0
      %801 = vmatprep.subr.bf16.mxu0 0
      %802 = vmatpush1.bf16.msra.mxu0 0
      %803 = vmatprep.subr.bf16.mxu0 0
      %804 = vmatpush1.bf16.msra.mxu0 0
      %805 = vmatprep.subr.bf16.mxu0 0
      %806 = vmatpush1.bf16.msra.mxu0 0
      %807 = vmatprep.subr.bf16.mxu0 0
      %808 = vmatpush1.bf16.msra.mxu0 0
      %809 = vmatprep.mubr.bf16.mxu0 0
      %810 = vmatmul.mubr.bf16.gmra.mrb[0].mxu0 %v727
      %v811 = vpop.f32.mrb[0].mxu0
      %v812 = vadd.f32 0.0, %v811
      %v813 = vpop.f32.mrb[0].mxu0
      %v814 = vpop.f32.mrb[0].mxu0
      %v815 = vadd.f32 0.0, %v814
      %v816 = vpop.f32.mrb[0].mxu0
      %817 = vmatprep.mubr.bf16.mxu0 0
      %818 = vmatmul.mubr.bf16.gmra.mrb[0].mxu0 %v730
      %v819 = vpop.f32.mrb[0].mxu0
      %v820 = vadd.f32 0.0, %v819
      %v821 = vpop.f32.mrb[0].mxu0
      %v822 = vpop.f32.mrb[0].mxu0
      %v823 = vadd.f32 0.0, %v822
      %v824 = vpop.f32.mrb[0].mxu0
      %825 = vmatprep.mubr.bf16.mxu0 0
      %826 = vmatmul.mubr.bf16.gmra.mrb[0].mxu0 %v733
      %v827 = vpop.f32.mrb[0].mxu0
      %v828 = vadd.f32 0.0, %v827
      %v829 = vpop.f32.mrb[0].mxu0
      %v830 = vpop.f32.mrb[0].mxu0
      %v831 = vadd.f32 0.0, %v830
      %v832 = vpop.f32.mrb[0].mxu0
      %833 = vmatprep.mubr.bf16.mxu0 0
      %834 = vmatmul.mubr.bf16.gmra.mrb[0].mxu0 %v736
      %v835 = vpop.f32.mrb[0].mxu0
      %v836 = vadd.f32 0.0, %v835
      %v837 = vpop.f32.mrb[0].mxu0
      %v838 = vpop.f32.mrb[0].mxu0
      %v839 = vadd.f32 0.0, %v838
      %v840 = vpop.f32.mrb[0].mxu0
      %841 = vmatprep.mubr.bf16.mxu0 0
      %842 = vmatmul.mubr.bf16.gmra.mrb[0].mxu0 %v739
      %v843 = vpop.f32.mrb[0].mxu0
      %v844 = vadd.f32 0.0, %v843
      %v845 = vpop.f32.mrb[0].mxu0
      %v846 = vpop.f32.mrb[0].mxu0
      %v847 = vadd.f32 0.0, %v846
      %v848 = vpop.f32.mrb[0].mxu0
      %849 = vmatprep.mubr.bf16.mxu0 0
      %850 = vmatmul.mubr.bf16.gmra.mrb[0].mxu0 %v742
      %v851 = vpop.f32.mrb[0].mxu0
      %v852 = vadd.f32 0.0, %v851
      %v853 = vpop.f32.mrb[0].mxu0
      %v854 = vpop.f32.mrb[0].mxu0
      %v855 = vadd.f32 0.0, %v854
      %v856 = vpop.f32.mrb[0].mxu0
      %857 = vmatprep.mubr.bf16.mxu0 0
      %858 = vmatmul.mubr.bf16.gmra.mrb[0].mxu0 %v745
      %v859 = vpop.f32.mrb[0].mxu0
      %v860 = vadd.f32 0.0, %v859
      %v861 = vpop.f32.mrb[0].mxu0
      %v862 = vpop.f32.mrb[0].mxu0
      %v863 = vadd.f32 0.0, %v862
      %v864 = vpop.f32.mrb[0].mxu0
      %865 = vmatprep.mubr.bf16.mxu0 0
      %866 = vmatmul.mubr.bf16.gmra.mrb[0].mxu0 %v748
      %v867 = vpop.f32.mrb[0].mxu0
      %v868 = vadd.f32 0.0, %v867
      %v869 = vpop.f32.mrb[0].mxu0
      %v870 = vpop.f32.mrb[0].mxu0
      %v871 = vadd.f32 0.0, %v870
      %v872 = vpop.f32.mrb[0].mxu0
      %873 = vmatprep.mubr.bf16.mxu0 0
      %874 = vmatmul.mubr.bf16.gmra.mrb[0].mxu0 %v751
      %v875 = vpop.f32.mrb[0].mxu0
      %v876 = vadd.f32 0.0, %v875
      %v877 = vpop.f32.mrb[0].mxu0
      %v878 = vpop.f32.mrb[0].mxu0
      %v879 = vadd.f32 0.0, %v878
      %v880 = vpop.f32.mrb[0].mxu0
      %881 = vmatprep.mubr.bf16.mxu0 0
      %882 = vmatmul.mubr.bf16.gmra.mrb[0].mxu0 %v754
      %v883 = vpop.f32.mrb[0].mxu0
      %v884 = vadd.f32 0.0, %v883
      %v885 = vpop.f32.mrb[0].mxu0
      %v886 = vpop.f32.mrb[0].mxu0
      %v887 = vadd.f32 0.0, %v886
      %v888 = vpop.f32.mrb[0].mxu0
      %889 = vmatprep.mubr.bf16.mxu0 0
      %890 = vmatmul.mubr.bf16.gmra.mrb[0].mxu0 %v757
      %v891 = vpop.f32.mrb[0].mxu0
      %v892 = vadd.f32 0.0, %v891
      %v893 = vpop.f32.mrb[0].mxu0
      %v894 = vpop.f32.mrb[0].mxu0
      %v895 = vadd.f32 0.0, %v894
      %v896 = vpop.f32.mrb[0].mxu0
      %897 = vmatprep.mubr.bf16.mxu0 0
      %898 = vmatmul.mubr.bf16.gmra.mrb[0].mxu0 %v760
      %v899 = vpop.f32.mrb[0].mxu0
      %v900 = vadd.f32 0.0, %v899
      %v901 = vpop.f32.mrb[0].mxu0
      %v902 = vpop.f32.mrb[0].mxu0
      %v903 = vadd.f32 0.0, %v902
      %v904 = vpop.f32.mrb[0].mxu0
      %905 = vmatprep.mubr.bf16.mxu0 0
      %906 = vmatmul.mubr.bf16.gmra.mrb[0].mxu0 %v763
      %v907 = vpop.f32.mrb[0].mxu0
      %v908 = vadd.f32 0.0, %v907
      %v909 = vpop.f32.mrb[0].mxu0
      %v910 = vpop.f32.mrb[0].mxu0
      %v911 = vadd.f32 0.0, %v910
      %v912 = vpop.f32.mrb[0].mxu0
      %913 = vmatprep.mubr.bf16.mxu0 0
      %914 = vmatmul.mubr.bf16.gmra.mrb[0].mxu0 %v766
      %v915 = vpop.f32.mrb[0].mxu0
      %v916 = vadd.f32 0.0, %v915
      %v917 = vpop.f32.mrb[0].mxu0
      %v918 = vpop.f32.mrb[0].mxu0
      %v919 = vadd.f32 0.0, %v918
      %v920 = vpop.f32.mrb[0].mxu0
      %921 = vmatprep.mubr.bf16.mxu0 0
      %922 = vmatmul.mubr.bf16.gmra.mrb[0].mxu0 %v769
      %v923 = vpop.f32.mrb[0].mxu0
      %v924 = vadd.f32 0.0, %v923
      %v925 = vpop.f32.mrb[0].mxu0
      %v926 = vpop.f32.mrb[0].mxu0
      %v927 = vadd.f32 0.0, %v926
      %v928 = vpop.f32.mrb[0].mxu0
      %929 = vmatprep.mubr.bf16.mxu0 0
      %930 = vmatmul.mubr.bf16.gmra.mrb[0].mxu0 %v772
      %v931 = vpop.f32.mrb[0].mxu0
      %v932 = vadd.f32 0.0, %v931
      %v933 = vpop.f32.mrb[0].mxu0
      %v934 = vpop.f32.mrb[0].mxu0
      %v935 = vadd.f32 0.0, %v934
      %v936 = vpop.f32.mrb[0].mxu0
      %937 = vdwg.mxu0
      %v938 = vadd.f32 %v613, %v812
      %v939 = vadd.f32 %v614, %v815
      %v940 = vadd.f32 %v615, %v820
      %v941 = vadd.f32 %v616, %v823
      %v942 = vadd.f32 %v617, %v828
      %v943 = vadd.f32 %v618, %v831
      %v944 = vadd.f32 %v619, %v836
      %v945 = vadd.f32 %v620, %v839
      %v946 = vadd.f32 %v621, %v844
      %v947 = vadd.f32 %v622, %v847
      %v948 = vadd.f32 %v623, %v852
      %v949 = vadd.f32 %v624, %v855
      %v950 = vadd.f32 %v625, %v860
      %v951 = vadd.f32 %v626, %v863
      %v952 = vadd.f32 %v627, %v868
      %v953 = vadd.f32 %v628, %v871
      %v954 = vadd.f32 %v629, %v876
      %v955 = vadd.f32 %v630, %v879
      %v956 = vadd.f32 %v631, %v884
      %v957 = vadd.f32 %v632, %v887
      %v958 = vadd.f32 %v633, %v892
      %v959 = vadd.f32 %v634, %v895
      %v960 = vadd.f32 %v635, %v900
      %v961 = vadd.f32 %v636, %v903
      %v962 = vadd.f32 %v637, %v908
      %v963 = vadd.f32 %v638, %v911
      %v964 = vadd.f32 %v639, %v916
      %v965 = vadd.f32 %v640, %v919
      %v966 = vadd.f32 %v641, %v924
      %v967 = vadd.f32 %v642, %v927
      %v968 = vadd.f32 %v643, %v932
      %v969 = vadd.f32 %v644, %v935
      %v970 = vld [vmem:[%s234] sm:$0xf]
      %v971 = vld [vmem:[%s234 + $0x4] sm:$0xf]
      %v972 = vld [vmem:[%s234 + $0x8] sm:$0x1]
      %v973 = vld [vmem:[%s234 + $0xc] sm:$0xf]
      %v974 = vld [vmem:[%s234 + $0x10] sm:$0xf]
      %v975 = vld [vmem:[%s234 + $0x14] sm:$0x1]
      %v976 = vld [vmem:[%s234 + $0x18] sm:$0xf]
      %v977 = vld [vmem:[%s234 + $0x1c] sm:$0xf]
      %v978 = vld [vmem:[%s234 + $0x20] sm:$0x1]
      %v979 = vld [vmem:[%s234 + $0x24] sm:$0xf]
      %v980 = vld [vmem:[%s234 + $0x28] sm:$0xf]
      %v981 = vld [vmem:[%s234 + $0x2c] sm:$0x1]
      %v982 = vld [vmem:[%s234 + $0x30] sm:$0xf]
      %v983 = vld [vmem:[%s234 + $0x34] sm:$0xf]
      %v984 = vld [vmem:[%s234 + $0x38] sm:$0x1]
      %v985 = vld [vmem:[%s234 + $0x3c] sm:$0xf]
      %v986 = vld [vmem:[%s234 + $0x40] sm:$0xf]
      %v987 = vld [vmem:[%s234 + $0x44] sm:$0x1]
      %v988 = vld [vmem:[%s234 + $0x48] sm:$0xf]
      %v989 = vld [vmem:[%s234 + $0x4c] sm:$0xf]
      %v990 = vld [vmem:[%s234 + $0x50] sm:$0x1]
      %v991 = vld [vmem:[%s234 + $0x54] sm:$0xf]
      %v992 = vld [vmem:[%s234 + $0x58] sm:$0xf]
      %v993 = vld [vmem:[%s234 + $0x5c] sm:$0x1]
      %v994 = vld [vmem:[%s234 + $0x60] sm:$0xf]
      %v995 = vld [vmem:[%s234 + $0x64] sm:$0xf]
      %v996 = vld [vmem:[%s234 + $0x68] sm:$0x1]
      %v997 = vld [vmem:[%s234 + $0x6c] sm:$0xf]
      %v998 = vld [vmem:[%s234 + $0x70] sm:$0xf]
      %v999 = vld [vmem:[%s234 + $0x74] sm:$0x1]
      %v1000 = vld [vmem:[%s234 + $0x78] sm:$0xf]
      %v1001 = vld [vmem:[%s234 + $0x7c] sm:$0xf]
      %v1002 = vld [vmem:[%s234 + $0x80] sm:$0x1]
      %v1003 = vld [vmem:[%s234 + $0x84] sm:$0xf]
      %v1004 = vld [vmem:[%s234 + $0x88] sm:$0xf]
      %v1005 = vld [vmem:[%s234 + $0x8c] sm:$0x1]
      %v1006 = vld [vmem:[%s234 + $0x90] sm:$0xf]
      %v1007 = vld [vmem:[%s234 + $0x94] sm:$0xf]
      %v1008 = vld [vmem:[%s234 + $0x98] sm:$0x1]
      %v1009 = vld [vmem:[%s234 + $0x9c] sm:$0xf]
      %v1010 = vld [vmem:[%s234 + $0xa0] sm:$0xf]
      %v1011 = vld [vmem:[%s234 + $0xa4] sm:$0x1]
      %v1012 = vld [vmem:[%s234 + $0xa8] sm:$0xf]
      %v1013 = vld [vmem:[%s234 + $0xac] sm:$0xf]
      %v1014 = vld [vmem:[%s234 + $0xb0] sm:$0x1]
      %v1015 = vld [vmem:[%s234 + $0xb4] sm:$0xf]
      %v1016 = vld [vmem:[%s234 + $0xb8] sm:$0xf]
      %v1017 = vld [vmem:[%s234 + $0xbc] sm:$0x1]
      %vm1018 = vsmask.f32 3328
      %vm1019 = vsmask.f32 7440
      %vm1020 = vmor %vm1018, %vm1019
      %v1022 = vshrl.u32 %v970, 16
      %v1024 = vrot.slane %v1022, 4
      %v1025 = vshll.u32 %v970, 16
      %v1027 = vrot.slane %v1025, 5
      %v1028 = vor.u32 %v1024, %v1027
      %v1029 = vrot.slane %v1028, 4
      %v1031 = vshll.u32 %v971, 16
      %v1033 = vrot.slane %v1031, 5
      %v1034 = vsel %vm1020, %v1029, %v1033
      %v1035 = vshrl.u32 %v971, 16
      %v1037 = vrot.slane %v1035, 4
      %v1038 = vor.u32 %v1037, %v1033
      %v1039 = vrot.slane %v1038, 4
      %v1041 = vshll.u32 %v972, 16
      %v1043 = vrot.slane %v1041, 5
      %v1044 = vsel %vm1020, %v1039, %v1043
      %v1046 = vshrl.u32 %v973, 16
      %v1048 = vrot.slane %v1046, 4
      %v1049 = vshll.u32 %v973, 16
      %v1051 = vrot.slane %v1049, 5
      %v1052 = vor.u32 %v1048, %v1051
      %v1053 = vrot.slane %v1052, 4
      %v1055 = vshll.u32 %v974, 16
      %v1057 = vrot.slane %v1055, 5
      %v1058 = vsel %vm1020, %v1053, %v1057
      %v1059 = vshrl.u32 %v974, 16
      %v1061 = vrot.slane %v1059, 4
      %v1062 = vor.u32 %v1061, %v1057
      %v1063 = vrot.slane %v1062, 4
      %v1065 = vshll.u32 %v975, 16
      %v1067 = vrot.slane %v1065, 5
      %v1068 = vsel %vm1020, %v1063, %v1067
      %v1070 = vshrl.u32 %v976, 16
      %v1072 = vrot.slane %v1070, 4
      %v1073 = vshll.u32 %v976, 16
      %v1075 = vrot.slane %v1073, 5
      %v1076 = vor.u32 %v1072, %v1075
      %v1077 = vrot.slane %v1076, 4
      %v1079 = vshll.u32 %v977, 16
      %v1081 = vrot.slane %v1079, 5
      %v1082 = vsel %vm1020, %v1077, %v1081
      %v1083 = vshrl.u32 %v977, 16
      %v1085 = vrot.slane %v1083, 4
      %v1086 = vor.u32 %v1085, %v1081
      %v1087 = vrot.slane %v1086, 4
      %v1089 = vshll.u32 %v978, 16
      %v1091 = vrot.slane %v1089, 5
      %v1092 = vsel %vm1020, %v1087, %v1091
      %v1094 = vshrl.u32 %v979, 16
      %v1096 = vrot.slane %v1094, 4
      %v1097 = vshll.u32 %v979, 16
      %v1099 = vrot.slane %v1097, 5
      %v1100 = vor.u32 %v1096, %v1099
      %v1101 = vrot.slane %v1100, 4
      %v1103 = vshll.u32 %v980, 16
      %v1105 = vrot.slane %v1103, 5
      %v1106 = vsel %vm1020, %v1101, %v1105
      %v1107 = vshrl.u32 %v980, 16
      %v1109 = vrot.slane %v1107, 4
      %v1110 = vor.u32 %v1109, %v1105
      %v1111 = vrot.slane %v1110, 4
      %v1113 = vshll.u32 %v981, 16
      %v1115 = vrot.slane %v1113, 5
      %v1116 = vsel %vm1020, %v1111, %v1115
      %v1118 = vshrl.u32 %v982, 16
      %v1120 = vrot.slane %v1118, 4
      %v1121 = vshll.u32 %v982, 16
      %v1123 = vrot.slane %v1121, 5
      %v1124 = vor.u32 %v1120, %v1123
      %v1125 = vrot.slane %v1124, 4
      %v1127 = vshll.u32 %v983, 16
      %v1129 = vrot.slane %v1127, 5
      %v1130 = vsel %vm1020, %v1125, %v1129
      %v1131 = vshrl.u32 %v983, 16
      %v1133 = vrot.slane %v1131, 4
      %v1134 = vor.u32 %v1133, %v1129
      %v1135 = vrot.slane %v1134, 4
      %v1137 = vshll.u32 %v984, 16
      %v1139 = vrot.slane %v1137, 5
      %v1140 = vsel %vm1020, %v1135, %v1139
      %v1142 = vshrl.u32 %v985, 16
      %v1144 = vrot.slane %v1142, 4
      %v1145 = vshll.u32 %v985, 16
      %v1147 = vrot.slane %v1145, 5
      %v1148 = vor.u32 %v1144, %v1147
      %v1149 = vrot.slane %v1148, 4
      %v1151 = vshll.u32 %v986, 16
      %v1153 = vrot.slane %v1151, 5
      %v1154 = vsel %vm1020, %v1149, %v1153
      %v1155 = vshrl.u32 %v986, 16
      %v1157 = vrot.slane %v1155, 4
      %v1158 = vor.u32 %v1157, %v1153
      %v1159 = vrot.slane %v1158, 4
      %v1161 = vshll.u32 %v987, 16
      %v1163 = vrot.slane %v1161, 5
      %v1164 = vsel %vm1020, %v1159, %v1163
      %v1166 = vshrl.u32 %v988, 16
      %v1168 = vrot.slane %v1166, 4
      %v1169 = vshll.u32 %v988, 16
      %v1171 = vrot.slane %v1169, 5
      %v1172 = vor.u32 %v1168, %v1171
      %v1173 = vrot.slane %v1172, 4
      %v1175 = vshll.u32 %v989, 16
      %v1177 = vrot.slane %v1175, 5
      %v1178 = vsel %vm1020, %v1173, %v1177
      %v1179 = vshrl.u32 %v989, 16
      %v1181 = vrot.slane %v1179, 4
      %v1182 = vor.u32 %v1181, %v1177
      %v1183 = vrot.slane %v1182, 4
      %v1185 = vshll.u32 %v990, 16
      %v1187 = vrot.slane %v1185, 5
      %v1188 = vsel %vm1020, %v1183, %v1187
      %v1190 = vshrl.u32 %v991, 16
      %v1192 = vrot.slane %v1190, 4
      %v1193 = vshll.u32 %v991, 16
      %v1195 = vrot.slane %v1193, 5
      %v1196 = vor.u32 %v1192, %v1195
      %v1197 = vrot.slane %v1196, 4
      %v1199 = vshll.u32 %v992, 16
      %v1201 = vrot.slane %v1199, 5
      %v1202 = vsel %vm1020, %v1197, %v1201
      %v1203 = vshrl.u32 %v992, 16
      %v1205 = vrot.slane %v1203, 4
      %v1206 = vor.u32 %v1205, %v1201
      %v1207 = vrot.slane %v1206, 4
      %v1209 = vshll.u32 %v993, 16
      %v1211 = vrot.slane %v1209, 5
      %v1212 = vsel %vm1020, %v1207, %v1211
      %v1214 = vshrl.u32 %v994, 16
      %v1216 = vrot.slane %v1214, 4
      %v1217 = vshll.u32 %v994, 16
      %v1219 = vrot.slane %v1217, 5
      %v1220 = vor.u32 %v1216, %v1219
      %v1221 = vrot.slane %v1220, 4
      %v1223 = vshll.u32 %v995, 16
      %v1225 = vrot.slane %v1223, 5
      %v1226 = vsel %vm1020, %v1221, %v1225
      %v1227 = vshrl.u32 %v995, 16
      %v1229 = vrot.slane %v1227, 4
      %v1230 = vor.u32 %v1229, %v1225
      %v1231 = vrot.slane %v1230, 4
      %v1233 = vshll.u32 %v996, 16
      %v1235 = vrot.slane %v1233, 5
      %v1236 = vsel %vm1020, %v1231, %v1235
      %v1238 = vshrl.u32 %v997, 16
      %v1240 = vrot.slane %v1238, 4
      %v1241 = vshll.u32 %v997, 16
      %v1243 = vrot.slane %v1241, 5
      %v1244 = vor.u32 %v1240, %v1243
      %v1245 = vrot.slane %v1244, 4
      %v1247 = vshll.u32 %v998, 16
      %v1249 = vrot.slane %v1247, 5
      %v1250 = vsel %vm1020, %v1245, %v1249
      %v1251 = vshrl.u32 %v998, 16
      %v1253 = vrot.slane %v1251, 4
      %v1254 = vor.u32 %v1253, %v1249
      %v1255 = vrot.slane %v1254, 4
      %v1257 = vshll.u32 %v999, 16
      %v1259 = vrot.slane %v1257, 5
      %v1260 = vsel %vm1020, %v1255, %v1259
      %v1262 = vshrl.u32 %v1000, 16
      %v1264 = vrot.slane %v1262, 4
      %v1265 = vshll.u32 %v1000, 16
      %v1267 = vrot.slane %v1265, 5
      %v1268 = vor.u32 %v1264, %v1267
      %v1269 = vrot.slane %v1268, 4
      %v1271 = vshll.u32 %v1001, 16
      %v1273 = vrot.slane %v1271, 5
      %v1274 = vsel %vm1020, %v1269, %v1273
      %v1275 = vshrl.u32 %v1001, 16
      %v1277 = vrot.slane %v1275, 4
      %v1278 = vor.u32 %v1277, %v1273
      %v1279 = vrot.slane %v1278, 4
      %v1281 = vshll.u32 %v1002, 16
      %v1283 = vrot.slane %v1281, 5
      %v1284 = vsel %vm1020, %v1279, %v1283
      %v1286 = vshrl.u32 %v1003, 16
      %v1288 = vrot.slane %v1286, 4
      %v1289 = vshll.u32 %v1003, 16
      %v1291 = vrot.slane %v1289, 5
      %v1292 = vor.u32 %v1288, %v1291
      %v1293 = vrot.slane %v1292, 4
      %v1295 = vshll.u32 %v1004, 16
      %v1297 = vrot.slane %v1295, 5
      %v1298 = vsel %vm1020, %v1293, %v1297
      %v1299 = vshrl.u32 %v1004, 16
      %v1301 = vrot.slane %v1299, 4
      %v1302 = vor.u32 %v1301, %v1297
      %v1303 = vrot.slane %v1302, 4
      %v1305 = vshll.u32 %v1005, 16
      %v1307 = vrot.slane %v1305, 5
      %v1308 = vsel %vm1020, %v1303, %v1307
      %v1310 = vshrl.u32 %v1006, 16
      %v1312 = vrot.slane %v1310, 4
      %v1313 = vshll.u32 %v1006, 16
      %v1315 = vrot.slane %v1313, 5
      %v1316 = vor.u32 %v1312, %v1315
      %v1317 = vrot.slane %v1316, 4
      %v1319 = vshll.u32 %v1007, 16
      %v1321 = vrot.slane %v1319, 5
      %v1322 = vsel %vm1020, %v1317, %v1321
      %v1323 = vshrl.u32 %v1007, 16
      %v1325 = vrot.slane %v1323, 4
      %v1326 = vor.u32 %v1325, %v1321
      %v1327 = vrot.slane %v1326, 4
      %v1329 = vshll.u32 %v1008, 16
      %v1331 = vrot.slane %v1329, 5
      %v1332 = vsel %vm1020, %v1327, %v1331
      %v1334 = vshrl.u32 %v1009, 16
      %v1336 = vrot.slane %v1334, 4
      %v1337 = vshll.u32 %v1009, 16
      %v1339 = vrot.slane %v1337, 5
      %v1340 = vor.u32 %v1336, %v1339
      %v1341 = vrot.slane %v1340, 4
      %v1343 = vshll.u32 %v1010, 16
      %v1345 = vrot.slane %v1343, 5
      %v1346 = vsel %vm1020, %v1341, %v1345
      %v1347 = vshrl.u32 %v1010, 16
      %v1349 = vrot.slane %v1347, 4
      %v1350 = vor.u32 %v1349, %v1345
      %v1351 = vrot.slane %v1350, 4
      %v1353 = vshll.u32 %v1011, 16
      %v1355 = vrot.slane %v1353, 5
      %v1356 = vsel %vm1020, %v1351, %v1355
      %v1358 = vshrl.u32 %v1012, 16
      %v1360 = vrot.slane %v1358, 4
      %v1361 = vshll.u32 %v1012, 16
      %v1363 = vrot.slane %v1361, 5
      %v1364 = vor.u32 %v1360, %v1363
      %v1365 = vrot.slane %v1364, 4
      %v1367 = vshll.u32 %v1013, 16
      %v1369 = vrot.slane %v1367, 5
      %v1370 = vsel %vm1020, %v1365, %v1369
      %v1371 = vshrl.u32 %v1013, 16
      %v1373 = vrot.slane %v1371, 4
      %v1374 = vor.u32 %v1373, %v1369
      %v1375 = vrot.slane %v1374, 4
      %v1377 = vshll.u32 %v1014, 16
      %v1379 = vrot.slane %v1377, 5
      %v1380 = vsel %vm1020, %v1375, %v1379
      %v1382 = vshrl.u32 %v1015, 16
      %v1384 = vrot.slane %v1382, 4
      %v1385 = vshll.u32 %v1015, 16
      %v1387 = vrot.slane %v1385, 5
      %v1388 = vor.u32 %v1384, %v1387
      %v1389 = vrot.slane %v1388, 4
      %v1391 = vshll.u32 %v1016, 16
      %v1393 = vrot.slane %v1391, 5
      %v1394 = vsel %vm1020, %v1389, %v1393
      %v1395 = vshrl.u32 %v1016, 16
      %v1397 = vrot.slane %v1395, 4
      %v1398 = vor.u32 %v1397, %v1393
      %v1399 = vrot.slane %v1398, 4
      %v1401 = vshll.u32 %v1017, 16
      %v1403 = vrot.slane %v1401, 5
      %v1404 = vsel %vm1020, %v1399, %v1403
      %v1405 = vld [vmem:[%s239] sm:$0xf]
      %v1406 = vld [vmem:[%s239 + $0x4] sm:$0xf]
      %v1407 = vld [vmem:[%s239 + $0x8] sm:$0x1]
      %v1408 = vld [vmem:[%s239 + $0xc] sm:$0xf]
      %v1409 = vld [vmem:[%s239 + $0x10] sm:$0xf]
      %v1410 = vld [vmem:[%s239 + $0x14] sm:$0x1]
      %v1411 = vld [vmem:[%s239 + $0x18] sm:$0xf]
      %v1412 = vld [vmem:[%s239 + $0x1c] sm:$0xf]
      %v1413 = vld [vmem:[%s239 + $0x20] sm:$0x1]
      %v1414 = vld [vmem:[%s239 + $0x24] sm:$0xf]
      %v1415 = vld [vmem:[%s239 + $0x28] sm:$0xf]
      %v1416 = vld [vmem:[%s239 + $0x2c] sm:$0x1]
      %v1417 = vld [vmem:[%s239 + $0x30] sm:$0xf]
      %v1418 = vld [vmem:[%s239 + $0x34] sm:$0xf]
      %v1419 = vld [vmem:[%s239 + $0x38] sm:$0x1]
      %v1420 = vld [vmem:[%s239 + $0x3c] sm:$0xf]
      %v1421 = vld [vmem:[%s239 + $0x40] sm:$0xf]
      %v1422 = vld [vmem:[%s239 + $0x44] sm:$0x1]
      %v1423 = vld [vmem:[%s239 + $0x48] sm:$0xf]
      %v1424 = vld [vmem:[%s239 + $0x4c] sm:$0xf]
      %v1425 = vld [vmem:[%s239 + $0x50] sm:$0x1]
      %v1426 = vld [vmem:[%s239 + $0x54] sm:$0xf]
      %v1427 = vld [vmem:[%s239 + $0x58] sm:$0xf]
      %v1428 = vld [vmem:[%s239 + $0x5c] sm:$0x1]
      %v1429 = vld [vmem:[%s239 + $0x60] sm:$0xf]
      %v1430 = vld [vmem:[%s239 + $0x64] sm:$0xf]
      %v1431 = vld [vmem:[%s239 + $0x68] sm:$0x1]
      %v1432 = vld [vmem:[%s239 + $0x6c] sm:$0xf]
      %v1433 = vld [vmem:[%s239 + $0x70] sm:$0xf]
      %v1434 = vld [vmem:[%s239 + $0x74] sm:$0x1]
      %v1435 = vld [vmem:[%s239 + $0x78] sm:$0xf]
      %v1436 = vld [vmem:[%s239 + $0x7c] sm:$0xf]
      %v1437 = vld [vmem:[%s239 + $0x80] sm:$0x1]
      %v1438 = vld [vmem:[%s239 + $0x84] sm:$0xf]
      %v1439 = vld [vmem:[%s239 + $0x88] sm:$0xf]
      %v1440 = vld [vmem:[%s239 + $0x8c] sm:$0x1]
      %v1441 = vld [vmem:[%s239 + $0x90] sm:$0xf]
      %v1442 = vld [vmem:[%s239 + $0x94] sm:$0xf]
      %v1443 = vld [vmem:[%s239 + $0x98] sm:$0x1]
      %v1444 = vld [vmem:[%s239 + $0x9c] sm:$0xf]
      %v1445 = vld [vmem:[%s239 + $0xa0] sm:$0xf]
      %v1446 = vld [vmem:[%s239 + $0xa4] sm:$0x1]
      %v1447 = vld [vmem:[%s239 + $0xa8] sm:$0xf]
      %v1448 = vld [vmem:[%s239 + $0xac] sm:$0xf]
      %v1449 = vld [vmem:[%s239 + $0xb0] sm:$0x1]
      %v1450 = vld [vmem:[%s239 + $0xb4] sm:$0xf]
      %v1451 = vld [vmem:[%s239 + $0xb8] sm:$0xf]
      %v1452 = vld [vmem:[%s239 + $0xbc] sm:$0x1]
      %v1454 = vshrl.u32 %v1405, 16
      %v1456 = vrot.slane %v1454, 4
      %v1457 = vshll.u32 %v1405, 16
      %v1459 = vrot.slane %v1457, 5
      %v1460 = vor.u32 %v1456, %v1459
      %v1461 = vrot.slane %v1460, 4
      %v1463 = vshll.u32 %v1406, 16
      %v1465 = vrot.slane %v1463, 5
      %v1466 = vsel %vm1020, %v1461, %v1465
      %v1467 = vshrl.u32 %v1406, 16
      %v1469 = vrot.slane %v1467, 4
      %v1470 = vor.u32 %v1469, %v1465
      %v1471 = vrot.slane %v1470, 4
      %v1473 = vshll.u32 %v1407, 16
      %v1475 = vrot.slane %v1473, 5
      %v1476 = vsel %vm1020, %v1471, %v1475
      %v1478 = vshrl.u32 %v1408, 16
      %v1480 = vrot.slane %v1478, 4
      %v1481 = vshll.u32 %v1408, 16
      %v1483 = vrot.slane %v1481, 5
      %v1484 = vor.u32 %v1480, %v1483
      %v1485 = vrot.slane %v1484, 4
      %v1487 = vshll.u32 %v1409, 16
      %v1489 = vrot.slane %v1487, 5
      %v1490 = vsel %vm1020, %v1485, %v1489
      %v1491 = vshrl.u32 %v1409, 16
      %v1493 = vrot.slane %v1491, 4
      %v1494 = vor.u32 %v1493, %v1489
      %v1495 = vrot.slane %v1494, 4
      %v1497 = vshll.u32 %v1410, 16
      %v1499 = vrot.slane %v1497, 5
      %v1500 = vsel %vm1020, %v1495, %v1499
      %v1502 = vshrl.u32 %v1411, 16
      %v1504 = vrot.slane %v1502, 4
      %v1505 = vshll.u32 %v1411, 16
      %v1507 = vrot.slane %v1505, 5
      %v1508 = vor.u32 %v1504, %v1507
      %v1509 = vrot.slane %v1508, 4
      %v1511 = vshll.u32 %v1412, 16
      %v1513 = vrot.slane %v1511, 5
      %v1514 = vsel %vm1020, %v1509, %v1513
      %v1515 = vshrl.u32 %v1412, 16
      %v1517 = vrot.slane %v1515, 4
      %v1518 = vor.u32 %v1517, %v1513
      %v1519 = vrot.slane %v1518, 4
      %v1521 = vshll.u32 %v1413, 16
      %v1523 = vrot.slane %v1521, 5
      %v1524 = vsel %vm1020, %v1519, %v1523
      %v1526 = vshrl.u32 %v1414, 16
      %v1528 = vrot.slane %v1526, 4
      %v1529 = vshll.u32 %v1414, 16
      %v1531 = vrot.slane %v1529, 5
      %v1532 = vor.u32 %v1528, %v1531
      %v1533 = vrot.slane %v1532, 4
      %v1535 = vshll.u32 %v1415, 16
      %v1537 = vrot.slane %v1535, 5
      %v1538 = vsel %vm1020, %v1533, %v1537
      %v1539 = vshrl.u32 %v1415, 16
      %v1541 = vrot.slane %v1539, 4
      %v1542 = vor.u32 %v1541, %v1537
      %v1543 = vrot.slane %v1542, 4
      %v1545 = vshll.u32 %v1416, 16
      %v1547 = vrot.slane %v1545, 5
      %v1548 = vsel %vm1020, %v1543, %v1547
      %v1550 = vshrl.u32 %v1417, 16
      %v1552 = vrot.slane %v1550, 4
      %v1553 = vshll.u32 %v1417, 16
      %v1555 = vrot.slane %v1553, 5
      %v1556 = vor.u32 %v1552, %v1555
      %v1557 = vrot.slane %v1556, 4
      %v1559 = vshll.u32 %v1418, 16
      %v1561 = vrot.slane %v1559, 5
      %v1562 = vsel %vm1020, %v1557, %v1561
      %v1563 = vshrl.u32 %v1418, 16
      %v1565 = vrot.slane %v1563, 4
      %v1566 = vor.u32 %v1565, %v1561
      %v1567 = vrot.slane %v1566, 4
      %v1569 = vshll.u32 %v1419, 16
      %v1571 = vrot.slane %v1569, 5
      %v1572 = vsel %vm1020, %v1567, %v1571
      %v1574 = vshrl.u32 %v1420, 16
      %v1576 = vrot.slane %v1574, 4
      %v1577 = vshll.u32 %v1420, 16
      %v1579 = vrot.slane %v1577, 5
      %v1580 = vor.u32 %v1576, %v1579
      %v1581 = vrot.slane %v1580, 4
      %v1583 = vshll.u32 %v1421, 16
      %v1585 = vrot.slane %v1583, 5
      %v1586 = vsel %vm1020, %v1581, %v1585
      %v1587 = vshrl.u32 %v1421, 16
      %v1589 = vrot.slane %v1587, 4
      %v1590 = vor.u32 %v1589, %v1585
      %v1591 = vrot.slane %v1590, 4
      %v1593 = vshll.u32 %v1422, 16
      %v1595 = vrot.slane %v1593, 5
      %v1596 = vsel %vm1020, %v1591, %v1595
      %v1598 = vshrl.u32 %v1423, 16
      %v1600 = vrot.slane %v1598, 4
      %v1601 = vshll.u32 %v1423, 16
      %v1603 = vrot.slane %v1601, 5
      %v1604 = vor.u32 %v1600, %v1603
      %v1605 = vrot.slane %v1604, 4
      %v1607 = vshll.u32 %v1424, 16
      %v1609 = vrot.slane %v1607, 5
      %v1610 = vsel %vm1020, %v1605, %v1609
      %v1611 = vshrl.u32 %v1424, 16
      %v1613 = vrot.slane %v1611, 4
      %v1614 = vor.u32 %v1613, %v1609
      %v1615 = vrot.slane %v1614, 4
      %v1617 = vshll.u32 %v1425, 16
      %v1619 = vrot.slane %v1617, 5
      %v1620 = vsel %vm1020, %v1615, %v1619
      %v1622 = vshrl.u32 %v1426, 16
      %v1624 = vrot.slane %v1622, 4
      %v1625 = vshll.u32 %v1426, 16
      %v1627 = vrot.slane %v1625, 5
      %v1628 = vor.u32 %v1624, %v1627
      %v1629 = vrot.slane %v1628, 4
      %v1631 = vshll.u32 %v1427, 16
      %v1633 = vrot.slane %v1631, 5
      %v1634 = vsel %vm1020, %v1629, %v1633
      %v1635 = vshrl.u32 %v1427, 16
      %v1637 = vrot.slane %v1635, 4
      %v1638 = vor.u32 %v1637, %v1633
      %v1639 = vrot.slane %v1638, 4
      %v1641 = vshll.u32 %v1428, 16
      %v1643 = vrot.slane %v1641, 5
      %v1644 = vsel %vm1020, %v1639, %v1643
      %v1646 = vshrl.u32 %v1429, 16
      %v1648 = vrot.slane %v1646, 4
      %v1649 = vshll.u32 %v1429, 16
      %v1651 = vrot.slane %v1649, 5
      %v1652 = vor.u32 %v1648, %v1651
      %v1653 = vrot.slane %v1652, 4
      %v1655 = vshll.u32 %v1430, 16
      %v1657 = vrot.slane %v1655, 5
      %v1658 = vsel %vm1020, %v1653, %v1657
      %v1659 = vshrl.u32 %v1430, 16
      %v1661 = vrot.slane %v1659, 4
      %v1662 = vor.u32 %v1661, %v1657
      %v1663 = vrot.slane %v1662, 4
      %v1665 = vshll.u32 %v1431, 16
      %v1667 = vrot.slane %v1665, 5
      %v1668 = vsel %vm1020, %v1663, %v1667
      %v1670 = vshrl.u32 %v1432, 16
      %v1672 = vrot.slane %v1670, 4
      %v1673 = vshll.u32 %v1432, 16
      %v1675 = vrot.slane %v1673, 5
      %v1676 = vor.u32 %v1672, %v1675
      %v1677 = vrot.slane %v1676, 4
      %v1679 = vshll.u32 %v1433, 16
      %v1681 = vrot.slane %v1679, 5
      %v1682 = vsel %vm1020, %v1677, %v1681
      %v1683 = vshrl.u32 %v1433, 16
      %v1685 = vrot.slane %v1683, 4
      %v1686 = vor.u32 %v1685, %v1681
      %v1687 = vrot.slane %v1686, 4
      %v1689 = vshll.u32 %v1434, 16
      %v1691 = vrot.slane %v1689, 5
      %v1692 = vsel %vm1020, %v1687, %v1691
      %v1694 = vshrl.u32 %v1435, 16
      %v1696 = vrot.slane %v1694, 4
      %v1697 = vshll.u32 %v1435, 16
      %v1699 = vrot.slane %v1697, 5
      %v1700 = vor.u32 %v1696, %v1699
      %v1701 = vrot.slane %v1700, 4
      %v1703 = vshll.u32 %v1436, 16
      %v1705 = vrot.slane %v1703, 5
      %v1706 = vsel %vm1020, %v1701, %v1705
      %v1707 = vshrl.u32 %v1436, 16
      %v1709 = vrot.slane %v1707, 4
      %v1710 = vor.u32 %v1709, %v1705
      %v1711 = vrot.slane %v1710, 4
      %v1713 = vshll.u32 %v1437, 16
      %v1715 = vrot.slane %v1713, 5
      %v1716 = vsel %vm1020, %v1711, %v1715
      %v1718 = vshrl.u32 %v1438, 16
      %v1720 = vrot.slane %v1718, 4
      %v1721 = vshll.u32 %v1438, 16
      %v1723 = vrot.slane %v1721, 5
      %v1724 = vor.u32 %v1720, %v1723
      %v1725 = vrot.slane %v1724, 4
      %v1727 = vshll.u32 %v1439, 16
      %v1729 = vrot.slane %v1727, 5
      %v1730 = vsel %vm1020, %v1725, %v1729
      %v1731 = vshrl.u32 %v1439, 16
      %v1733 = vrot.slane %v1731, 4
      %v1734 = vor.u32 %v1733, %v1729
      %v1735 = vrot.slane %v1734, 4
      %v1737 = vshll.u32 %v1440, 16
      %v1739 = vrot.slane %v1737, 5
      %v1740 = vsel %vm1020, %v1735, %v1739
      %v1742 = vshrl.u32 %v1441, 16
      %v1744 = vrot.slane %v1742, 4
      %v1745 = vshll.u32 %v1441, 16
      %v1747 = vrot.slane %v1745, 5
      %v1748 = vor.u32 %v1744, %v1747
      %v1749 = vrot.slane %v1748, 4
      %v1751 = vshll.u32 %v1442, 16
      %v1753 = vrot.slane %v1751, 5
      %v1754 = vsel %vm1020, %v1749, %v1753
      %v1755 = vshrl.u32 %v1442, 16
      %v1757 = vrot.slane %v1755, 4
      %v1758 = vor.u32 %v1757, %v1753
      %v1759 = vrot.slane %v1758, 4
      %v1761 = vshll.u32 %v1443, 16
      %v1763 = vrot.slane %v1761, 5
      %v1764 = vsel %vm1020, %v1759, %v1763
      %v1766 = vshrl.u32 %v1444, 16
      %v1768 = vrot.slane %v1766, 4
      %v1769 = vshll.u32 %v1444, 16
      %v1771 = vrot.slane %v1769, 5
      %v1772 = vor.u32 %v1768, %v1771
      %v1773 = vrot.slane %v1772, 4
      %v1775 = vshll.u32 %v1445, 16
      %v1777 = vrot.slane %v1775, 5
      %v1778 = vsel %vm1020, %v1773, %v1777
      %v1779 = vshrl.u32 %v1445, 16
      %v1781 = vrot.slane %v1779, 4
      %v1782 = vor.u32 %v1781, %v1777
      %v1783 = vrot.slane %v1782, 4
      %v1785 = vshll.u32 %v1446, 16
      %v1787 = vrot.slane %v1785, 5
      %v1788 = vsel %vm1020, %v1783, %v1787
      %v1790 = vshrl.u32 %v1447, 16
      %v1792 = vrot.slane %v1790, 4
      %v1793 = vshll.u32 %v1447, 16
      %v1795 = vrot.slane %v1793, 5
      %v1796 = vor.u32 %v1792, %v1795
      %v1797 = vrot.slane %v1796, 4
      %v1799 = vshll.u32 %v1448, 16
      %v1801 = vrot.slane %v1799, 5
      %v1802 = vsel %vm1020, %v1797, %v1801
      %v1803 = vshrl.u32 %v1448, 16
      %v1805 = vrot.slane %v1803, 4
      %v1806 = vor.u32 %v1805, %v1801
      %v1807 = vrot.slane %v1806, 4
      %v1809 = vshll.u32 %v1449, 16
      %v1811 = vrot.slane %v1809, 5
      %v1812 = vsel %vm1020, %v1807, %v1811
      %v1814 = vshrl.u32 %v1450, 16
      %v1816 = vrot.slane %v1814, 4
      %v1817 = vshll.u32 %v1450, 16
      %v1819 = vrot.slane %v1817, 5
      %v1820 = vor.u32 %v1816, %v1819
      %v1821 = vrot.slane %v1820, 4
      %v1823 = vshll.u32 %v1451, 16
      %v1825 = vrot.slane %v1823, 5
      %v1826 = vsel %vm1020, %v1821, %v1825
      %v1827 = vshrl.u32 %v1451, 16
      %v1829 = vrot.slane %v1827, 4
      %v1830 = vor.u32 %v1829, %v1825
      %v1831 = vrot.slane %v1830, 4
      %v1833 = vshll.u32 %v1452, 16
      %v1835 = vrot.slane %v1833, 5
      %v1836 = vsel %vm1020, %v1831, %v1835
      %s1837 = scalar_lea.vmem %s2, 2
      %v1838 = vld [vmem:[%s1837] sm:$0x3]
      %v1839 = vunpack.c.l.b16 %v1034
      %v1840 = vunpack.c.l.b16 %v1044
      %v1841 = vunpack.c.l.b16 %v1058
      %v1842 = vunpack.c.l.b16 %v1068
      %v1843 = vunpack.c.l.b16 %v1082
      %v1844 = vunpack.c.l.b16 %v1092
      %v1845 = vunpack.c.l.b16 %v1106
      %v1846 = vunpack.c.l.b16 %v1116
      %v1847 = vunpack.c.l.b16 %v1130
      %v1848 = vunpack.c.l.b16 %v1140
      %v1849 = vunpack.c.l.b16 %v1154
      %v1850 = vunpack.c.l.b16 %v1164
      %v1851 = vunpack.c.l.b16 %v1178
      %v1852 = vunpack.c.l.b16 %v1188
      %v1853 = vunpack.c.l.b16 %v1202
      %v1854 = vunpack.c.l.b16 %v1212
      %v1855 = vunpack.c.l.b16 %v1226
      %v1856 = vunpack.c.l.b16 %v1236
      %v1857 = vunpack.c.l.b16 %v1250
      %v1858 = vunpack.c.l.b16 %v1260
      %v1859 = vunpack.c.l.b16 %v1274
      %v1860 = vunpack.c.l.b16 %v1284
      %v1861 = vunpack.c.l.b16 %v1298
      %v1862 = vunpack.c.l.b16 %v1308
      %v1863 = vunpack.c.l.b16 %v1322
      %v1864 = vunpack.c.l.b16 %v1332
      %v1865 = vunpack.c.l.b16 %v1346
      %v1866 = vunpack.c.l.b16 %v1356
      %v1867 = vunpack.c.l.b16 %v1370
      %v1868 = vunpack.c.l.b16 %v1380
      %v1869 = vunpack.c.l.b16 %v1394
      %v1870 = vunpack.c.l.b16 %v1404
      %v1871 = vpack.c.b16 %v1840, %v1839
      %v1872 = vpack.c.b16 %v1842, %v1841
      %v1873 = vpack.c.b16 %v1844, %v1843
      %v1874 = vpack.c.b16 %v1846, %v1845
      %v1875 = vpack.c.b16 %v1848, %v1847
      %v1876 = vpack.c.b16 %v1850, %v1849
      %v1877 = vpack.c.b16 %v1852, %v1851
      %v1878 = vpack.c.b16 %v1854, %v1853
      %v1879 = vpack.c.b16 %v1856, %v1855
      %v1880 = vpack.c.b16 %v1858, %v1857
      %v1881 = vpack.c.b16 %v1860, %v1859
      %v1882 = vpack.c.b16 %v1862, %v1861
      %v1883 = vpack.c.b16 %v1864, %v1863
      %v1884 = vpack.c.b16 %v1866, %v1865
      %v1885 = vpack.c.b16 %v1868, %v1867
      %v1886 = vpack.c.b16 %v1870, %v1869
      %v1888 = vsel %vm399, %v1871, 0
      %v1891 = vsel %vm399, %v1872, 0
      %v1894 = vsel %vm399, %v1873, 0
      %v1897 = vsel %vm399, %v1874, 0
      %v1900 = vsel %vm399, %v1875, 0
      %v1903 = vsel %vm399, %v1876, 0
      %v1906 = vsel %vm399, %v1877, 0
      %v1909 = vsel %vm399, %v1878, 0
      %v1912 = vsel %vm399, %v1879, 0
      %v1915 = vsel %vm399, %v1880, 0
      %v1918 = vsel %vm399, %v1881, 0
      %v1921 = vsel %vm399, %v1882, 0
      %v1924 = vsel %vm399, %v1883, 0
      %v1927 = vsel %vm399, %v1884, 0
      %v1930 = vsel %vm399, %v1885, 0
      %v1933 = vsel %vm399, %v1886, 0
      %v1936 = vsel %vm448, %v1838, 0
      %1938 = vmatprep.subr.bf16.mxu0 0
      %1939 = vmatpush1.bf16.msra.mxu0 %v1936
      %1940 = vmatprep.subr.bf16.mxu0 0
      %1941 = vmatpush1.bf16.msra.mxu0 0
      %1942 = vmatprep.subr.bf16.mxu0 0
      %1943 = vmatpush1.bf16.msra.mxu0 0
      %1944 = vmatprep.subr.bf16.mxu0 0
      %1945 = vmatpush1.bf16.msra.mxu0 0
      %1946 = vmatprep.subr.bf16.mxu0 0
      %1947 = vmatpush1.bf16.msra.mxu0 0
      %1948 = vmatprep.subr.bf16.mxu0 0
      %1949 = vmatpush1.bf16.msra.mxu0 0
      %1950 = vmatprep.subr.bf16.mxu0 0
      %1951 = vmatpush1.bf16.msra.mxu0 0
      %1952 = vmatprep.subr.bf16.mxu0 0
      %1953 = vmatpush1.bf16.msra.mxu0 0
      %1954 = vmatprep.subr.bf16.mxu0 0
      %1955 = vmatpush1.bf16.msra.mxu0 0
      %1956 = vmatprep.subr.bf16.mxu0 0
      %1957 = vmatpush1.bf16.msra.mxu0 0
      %1958 = vmatprep.subr.bf16.mxu0 0
      %1959 = vmatpush1.bf16.msra.mxu0 0
      %1960 = vmatprep.subr.bf16.mxu0 0
      %1961 = vmatpush1.bf16.msra.mxu0 0
      %1962 = vmatprep.subr.bf16.mxu0 0
      %1963 = vmatpush1.bf16.msra.mxu0 0
      %1964 = vmatprep.subr.bf16.mxu0 0
      %1965 = vmatpush1.bf16.msra.mxu0 0
      %1966 = vmatprep.subr.bf16.mxu0 0
      %1967 = vmatpush1.bf16.msra.mxu0 0
      %1968 = vmatprep.subr.bf16.mxu0 0
      %1969 = vmatpush1.bf16.msra.mxu0 0
      %1970 = vmatprep.mubr.bf16.mxu0 0
      %1971 = vmatmul.mubr.bf16.gmra.mrb[0].mxu0 %v1888
      %v1972 = vpop.f32.mrb[0].mxu0
      %v1973 = vadd.f32 0.0, %v1972
      %v1974 = vpop.f32.mrb[0].mxu0
      %v1975 = vpop.f32.mrb[0].mxu0
      %v1976 = vadd.f32 0.0, %v1975
      %v1977 = vpop.f32.mrb[0].mxu0
      %1978 = vmatprep.mubr.bf16.mxu0 0
      %1979 = vmatmul.mubr.bf16.gmra.mrb[0].mxu0 %v1891
      %v1980 = vpop.f32.mrb[0].mxu0
      %v1981 = vadd.f32 0.0, %v1980
      %v1982 = vpop.f32.mrb[0].mxu0
      %v1983 = vpop.f32.mrb[0].mxu0
      %v1984 = vadd.f32 0.0, %v1983
      %v1985 = vpop.f32.mrb[0].mxu0
      %1986 = vmatprep.mubr.bf16.mxu0 0
      %1987 = vmatmul.mubr.bf16.gmra.mrb[0].mxu0 %v1894
      %v1988 = vpop.f32.mrb[0].mxu0
      %v1989 = vadd.f32 0.0, %v1988
      %v1990 = vpop.f32.mrb[0].mxu0
      %v1991 = vpop.f32.mrb[0].mxu0
      %v1992 = vadd.f32 0.0, %v1991
      %v1993 = vpop.f32.mrb[0].mxu0
      %1994 = vmatprep.mubr.bf16.mxu0 0
      %1995 = vmatmul.mubr.bf16.gmra.mrb[0].mxu0 %v1897
      %v1996 = vpop.f32.mrb[0].mxu0
      %v1997 = vadd.f32 0.0, %v1996
      %v1998 = vpop.f32.mrb[0].mxu0
      %v1999 = vpop.f32.mrb[0].mxu0
      %v2000 = vadd.f32 0.0, %v1999
      %v2001 = vpop.f32.mrb[0].mxu0
      %2002 = vmatprep.mubr.bf16.mxu0 0
      %2003 = vmatmul.mubr.bf16.gmra.mrb[0].mxu0 %v1900
      %v2004 = vpop.f32.mrb[0].mxu0
      %v2005 = vadd.f32 0.0, %v2004
      %v2006 = vpop.f32.mrb[0].mxu0
      %v2007 = vpop.f32.mrb[0].mxu0
      %v2008 = vadd.f32 0.0, %v2007
      %v2009 = vpop.f32.mrb[0].mxu0
      %2010 = vmatprep.mubr.bf16.mxu0 0
      %2011 = vmatmul.mubr.bf16.gmra.mrb[0].mxu0 %v1903
      %v2012 = vpop.f32.mrb[0].mxu0
      %v2013 = vadd.f32 0.0, %v2012
      %v2014 = vpop.f32.mrb[0].mxu0
      %v2015 = vpop.f32.mrb[0].mxu0
      %v2016 = vadd.f32 0.0, %v2015
      %v2017 = vpop.f32.mrb[0].mxu0
      %2018 = vmatprep.mubr.bf16.mxu0 0
      %2019 = vmatmul.mubr.bf16.gmra.mrb[0].mxu0 %v1906
      %v2020 = vpop.f32.mrb[0].mxu0
      %v2021 = vadd.f32 0.0, %v2020
      %v2022 = vpop.f32.mrb[0].mxu0
      %v2023 = vpop.f32.mrb[0].mxu0
      %v2024 = vadd.f32 0.0, %v2023
      %v2025 = vpop.f32.mrb[0].mxu0
      %2026 = vmatprep.mubr.bf16.mxu0 0
      %2027 = vmatmul.mubr.bf16.gmra.mrb[0].mxu0 %v1909
      %v2028 = vpop.f32.mrb[0].mxu0
      %v2029 = vadd.f32 0.0, %v2028
      %v2030 = vpop.f32.mrb[0].mxu0
      %v2031 = vpop.f32.mrb[0].mxu0
      %v2032 = vadd.f32 0.0, %v2031
      %v2033 = vpop.f32.mrb[0].mxu0
      %2034 = vmatprep.mubr.bf16.mxu0 0
      %2035 = vmatmul.mubr.bf16.gmra.mrb[0].mxu0 %v1912
      %v2036 = vpop.f32.mrb[0].mxu0
      %v2037 = vadd.f32 0.0, %v2036
      %v2038 = vpop.f32.mrb[0].mxu0
      %v2039 = vpop.f32.mrb[0].mxu0
      %v2040 = vadd.f32 0.0, %v2039
      %v2041 = vpop.f32.mrb[0].mxu0
      %2042 = vmatprep.mubr.bf16.mxu0 0
      %2043 = vmatmul.mubr.bf16.gmra.mrb[0].mxu0 %v1915
      %v2044 = vpop.f32.mrb[0].mxu0
      %v2045 = vadd.f32 0.0, %v2044
      %v2046 = vpop.f32.mrb[0].mxu0
      %v2047 = vpop.f32.mrb[0].mxu0
      %v2048 = vadd.f32 0.0, %v2047
      %v2049 = vpop.f32.mrb[0].mxu0
      %2050 = vmatprep.mubr.bf16.mxu0 0
      %2051 = vmatmul.mubr.bf16.gmra.mrb[0].mxu0 %v1918
      %v2052 = vpop.f32.mrb[0].mxu0
      %v2053 = vadd.f32 0.0, %v2052
      %v2054 = vpop.f32.mrb[0].mxu0
      %v2055 = vpop.f32.mrb[0].mxu0
      %v2056 = vadd.f32 0.0, %v2055
      %v2057 = vpop.f32.mrb[0].mxu0
      %2058 = vmatprep.mubr.bf16.mxu0 0
      %2059 = vmatmul.mubr.bf16.gmra.mrb[0].mxu0 %v1921
      %v2060 = vpop.f32.mrb[0].mxu0
      %v2061 = vadd.f32 0.0, %v2060
      %v2062 = vpop.f32.mrb[0].mxu0
      %v2063 = vpop.f32.mrb[0].mxu0
      %v2064 = vadd.f32 0.0, %v2063
      %v2065 = vpop.f32.mrb[0].mxu0
      %2066 = vmatprep.mubr.bf16.mxu0 0
      %2067 = vmatmul.mubr.bf16.gmra.mrb[0].mxu0 %v1924
      %v2068 = vpop.f32.mrb[0].mxu0
      %v2069 = vadd.f32 0.0, %v2068
      %v2070 = vpop.f32.mrb[0].mxu0
      %v2071 = vpop.f32.mrb[0].mxu0
      %v2072 = vadd.f32 0.0, %v2071
      %v2073 = vpop.f32.mrb[0].mxu0
      %2074 = vmatprep.mubr.bf16.mxu0 0
      %2075 = vmatmul.mubr.bf16.gmra.mrb[0].mxu0 %v1927
      %v2076 = vpop.f32.mrb[0].mxu0
      %v2077 = vadd.f32 0.0, %v2076
      %v2078 = vpop.f32.mrb[0].mxu0
      %v2079 = vpop.f32.mrb[0].mxu0
      %v2080 = vadd.f32 0.0, %v2079
      %v2081 = vpop.f32.mrb[0].mxu0
      %2082 = vmatprep.mubr.bf16.mxu0 0
      %2083 = vmatmul.mubr.bf16.gmra.mrb[0].mxu0 %v1930
      %v2084 = vpop.f32.mrb[0].mxu0
      %v2085 = vadd.f32 0.0, %v2084
      %v2086 = vpop.f32.mrb[0].mxu0
      %v2087 = vpop.f32.mrb[0].mxu0
      %v2088 = vadd.f32 0.0, %v2087
      %v2089 = vpop.f32.mrb[0].mxu0
      %2090 = vmatprep.mubr.bf16.mxu0 0
      %2091 = vmatmul.mubr.bf16.gmra.mrb[0].mxu0 %v1933
      %v2092 = vpop.f32.mrb[0].mxu0
      %v2093 = vadd.f32 0.0, %v2092
      %v2094 = vpop.f32.mrb[0].mxu0
      %v2095 = vpop.f32.mrb[0].mxu0
      %v2096 = vadd.f32 0.0, %v2095
      %v2097 = vpop.f32.mrb[0].mxu0
      %2098 = vdwg.mxu0
      %v2099 = vadd.f32 %v938, %v1973
      %v2100 = vadd.f32 %v939, %v1976
      %v2101 = vadd.f32 %v940, %v1981
      %v2102 = vadd.f32 %v941, %v1984
      %v2103 = vadd.f32 %v942, %v1989
      %v2104 = vadd.f32 %v943, %v1992
      %v2105 = vadd.f32 %v944, %v1997
      %v2106 = vadd.f32 %v945, %v2000
      %v2107 = vadd.f32 %v946, %v2005
      %v2108 = vadd.f32 %v947, %v2008
      %v2109 = vadd.f32 %v948, %v2013
      %v2110 = vadd.f32 %v949, %v2016
      %v2111 = vadd.f32 %v950, %v2021
      %v2112 = vadd.f32 %v951, %v2024
      %v2113 = vadd.f32 %v952, %v2029
      %v2114 = vadd.f32 %v953, %v2032
      %v2115 = vadd.f32 %v954, %v2037
      %v2116 = vadd.f32 %v955, %v2040
      %v2117 = vadd.f32 %v956, %v2045
      %v2118 = vadd.f32 %v957, %v2048
      %v2119 = vadd.f32 %v958, %v2053
      %v2120 = vadd.f32 %v959, %v2056
      %v2121 = vadd.f32 %v960, %v2061
      %v2122 = vadd.f32 %v961, %v2064
      %v2123 = vadd.f32 %v962, %v2069
      %v2124 = vadd.f32 %v963, %v2072
      %v2125 = vadd.f32 %v964, %v2077
      %v2126 = vadd.f32 %v965, %v2080
      %v2127 = vadd.f32 %v966, %v2085
      %v2128 = vadd.f32 %v967, %v2088
      %v2129 = vadd.f32 %v968, %v2093
      %v2130 = vadd.f32 %v969, %v2096
      %s2131 = scalar_lea.vmem %s3, 2
      %v2132 = vld [vmem:[%s2131] sm:$0x3]
      %v2133 = vunpack.c.l.b16 %v1466
      %v2134 = vunpack.c.l.b16 %v1476
      %v2135 = vunpack.c.l.b16 %v1490
      %v2136 = vunpack.c.l.b16 %v1500
      %v2137 = vunpack.c.l.b16 %v1514
      %v2138 = vunpack.c.l.b16 %v1524
      %v2139 = vunpack.c.l.b16 %v1538
      %v2140 = vunpack.c.l.b16 %v1548
      %v2141 = vunpack.c.l.b16 %v1562
      %v2142 = vunpack.c.l.b16 %v1572
      %v2143 = vunpack.c.l.b16 %v1586
      %v2144 = vunpack.c.l.b16 %v1596
      %v2145 = vunpack.c.l.b16 %v1610
      %v2146 = vunpack.c.l.b16 %v1620
      %v2147 = vunpack.c.l.b16 %v1634
      %v2148 = vunpack.c.l.b16 %v1644
      %v2149 = vunpack.c.l.b16 %v1658
      %v2150 = vunpack.c.l.b16 %v1668
      %v2151 = vunpack.c.l.b16 %v1682
      %v2152 = vunpack.c.l.b16 %v1692
      %v2153 = vunpack.c.l.b16 %v1706
      %v2154 = vunpack.c.l.b16 %v1716
      %v2155 = vunpack.c.l.b16 %v1730
      %v2156 = vunpack.c.l.b16 %v1740
      %v2157 = vunpack.c.l.b16 %v1754
      %v2158 = vunpack.c.l.b16 %v1764
      %v2159 = vunpack.c.l.b16 %v1778
      %v2160 = vunpack.c.l.b16 %v1788
      %v2161 = vunpack.c.l.b16 %v1802
      %v2162 = vunpack.c.l.b16 %v1812
      %v2163 = vunpack.c.l.b16 %v1826
      %v2164 = vunpack.c.l.b16 %v1836
      %v2165 = vpack.c.b16 %v2134, %v2133
      %v2166 = vpack.c.b16 %v2136, %v2135
      %v2167 = vpack.c.b16 %v2138, %v2137
      %v2168 = vpack.c.b16 %v2140, %v2139
      %v2169 = vpack.c.b16 %v2142, %v2141
      %v2170 = vpack.c.b16 %v2144, %v2143
      %v2171 = vpack.c.b16 %v2146, %v2145
      %v2172 = vpack.c.b16 %v2148, %v2147
      %v2173 = vpack.c.b16 %v2150, %v2149
      %v2174 = vpack.c.b16 %v2152, %v2151
      %v2175 = vpack.c.b16 %v2154, %v2153
      %v2176 = vpack.c.b16 %v2156, %v2155
      %v2177 = vpack.c.b16 %v2158, %v2157
      %v2178 = vpack.c.b16 %v2160, %v2159
      %v2179 = vpack.c.b16 %v2162, %v2161
      %v2180 = vpack.c.b16 %v2164, %v2163
      %v2182 = vsel %vm399, %v2165, 0
      %v2185 = vsel %vm399, %v2166, 0
      %v2188 = vsel %vm399, %v2167, 0
      %v2191 = vsel %vm399, %v2168, 0
      %v2194 = vsel %vm399, %v2169, 0
      %v2197 = vsel %vm399, %v2170, 0
      %v2200 = vsel %vm399, %v2171, 0
      %v2203 = vsel %vm399, %v2172, 0
      %v2206 = vsel %vm399, %v2173, 0
      %v2209 = vsel %vm399, %v2174, 0
      %v2212 = vsel %vm399, %v2175, 0
      %v2215 = vsel %vm399, %v2176, 0
      %v2218 = vsel %vm399, %v2177, 0
      %v2221 = vsel %vm399, %v2178, 0
      %v2224 = vsel %vm399, %v2179, 0
      %v2227 = vsel %vm399, %v2180, 0
      %v2230 = vsel %vm448, %v2132, 0
      %2232 = vmatprep.subr.bf16.mxu0 0
      %2233 = vmatpush1.bf16.msra.mxu0 %v2230
      %2234 = vmatprep.subr.bf16.mxu0 0
      %2235 = vmatpush1.bf16.msra.mxu0 0
      %2236 = vmatprep.subr.bf16.mxu0 0
      %2237 = vmatpush1.bf16.msra.mxu0 0
      %2238 = vmatprep.subr.bf16.mxu0 0
      %2239 = vmatpush1.bf16.msra.mxu0 0
      %2240 = vmatprep.subr.bf16.mxu0 0
      %2241 = vmatpush1.bf16.msra.mxu0 0
      %2242 = vmatprep.subr.bf16.mxu0 0
      %2243 = vmatpush1.bf16.msra.mxu0 0
      %2244 = vmatprep.subr.bf16.mxu0 0
      %2245 = vmatpush1.bf16.msra.mxu0 0
      %2246 = vmatprep.subr.bf16.mxu0 0
      %2247 = vmatpush1.bf16.msra.mxu0 0
      %2248 = vmatprep.subr.bf16.mxu0 0
      %2249 = vmatpush1.bf16.msra.mxu0 0
      %2250 = vmatprep.subr.bf16.mxu0 0
      %2251 = vmatpush1.bf16.msra.mxu0 0
      %2252 = vmatprep.subr.bf16.mxu0 0
      %2253 = vmatpush1.bf16.msra.mxu0 0
      %2254 = vmatprep.subr.bf16.mxu0 0
      %2255 = vmatpush1.bf16.msra.mxu0 0
      %2256 = vmatprep.subr.bf16.mxu0 0
      %2257 = vmatpush1.bf16.msra.mxu0 0
      %2258 = vmatprep.subr.bf16.mxu0 0
      %2259 = vmatpush1.bf16.msra.mxu0 0
      %2260 = vmatprep.subr.bf16.mxu0 0
      %2261 = vmatpush1.bf16.msra.mxu0 0
      %2262 = vmatprep.subr.bf16.mxu0 0
      %2263 = vmatpush1.bf16.msra.mxu0 0
      %2264 = vmatprep.mubr.bf16.mxu0 0
      %2265 = vmatmul.mubr.bf16.gmra.mrb[0].mxu0 %v2182
      %v2266 = vpop.f32.mrb[0].mxu0
      %v2267 = vadd.f32 0.0, %v2266
      %v2268 = vpop.f32.mrb[0].mxu0
      %v2269 = vpop.f32.mrb[0].mxu0
      %v2270 = vadd.f32 0.0, %v2269
      %v2271 = vpop.f32.mrb[0].mxu0
      %2272 = vmatprep.mubr.bf16.mxu0 0
      %2273 = vmatmul.mubr.bf16.gmra.mrb[0].mxu0 %v2185
      %v2274 = vpop.f32.mrb[0].mxu0
      %v2275 = vadd.f32 0.0, %v2274
      %v2276 = vpop.f32.mrb[0].mxu0
      %v2277 = vpop.f32.mrb[0].mxu0
      %v2278 = vadd.f32 0.0, %v2277
      %v2279 = vpop.f32.mrb[0].mxu0
      %2280 = vmatprep.mubr.bf16.mxu0 0
      %2281 = vmatmul.mubr.bf16.gmra.mrb[0].mxu0 %v2188
      %v2282 = vpop.f32.mrb[0].mxu0
      %v2283 = vadd.f32 0.0, %v2282
      %v2284 = vpop.f32.mrb[0].mxu0
      %v2285 = vpop.f32.mrb[0].mxu0
      %v2286 = vadd.f32 0.0, %v2285
      %v2287 = vpop.f32.mrb[0].mxu0
      %2288 = vmatprep.mubr.bf16.mxu0 0
      %2289 = vmatmul.mubr.bf16.gmra.mrb[0].mxu0 %v2191
      %v2290 = vpop.f32.mrb[0].mxu0
      %v2291 = vadd.f32 0.0, %v2290
      %v2292 = vpop.f32.mrb[0].mxu0
      %v2293 = vpop.f32.mrb[0].mxu0
      %v2294 = vadd.f32 0.0, %v2293
      %v2295 = vpop.f32.mrb[0].mxu0
      %2296 = vmatprep.mubr.bf16.mxu0 0
      %2297 = vmatmul.mubr.bf16.gmra.mrb[0].mxu0 %v2194
      %v2298 = vpop.f32.mrb[0].mxu0
      %v2299 = vadd.f32 0.0, %v2298
      %v2300 = vpop.f32.mrb[0].mxu0
      %v2301 = vpop.f32.mrb[0].mxu0
      %v2302 = vadd.f32 0.0, %v2301
      %v2303 = vpop.f32.mrb[0].mxu0
      %2304 = vmatprep.mubr.bf16.mxu0 0
      %2305 = vmatmul.mubr.bf16.gmra.mrb[0].mxu0 %v2197
      %v2306 = vpop.f32.mrb[0].mxu0
      %v2307 = vadd.f32 0.0, %v2306
      %v2308 = vpop.f32.mrb[0].mxu0
      %v2309 = vpop.f32.mrb[0].mxu0
      %v2310 = vadd.f32 0.0, %v2309
      %v2311 = vpop.f32.mrb[0].mxu0
      %2312 = vmatprep.mubr.bf16.mxu0 0
      %2313 = vmatmul.mubr.bf16.gmra.mrb[0].mxu0 %v2200
      %v2314 = vpop.f32.mrb[0].mxu0
      %v2315 = vadd.f32 0.0, %v2314
      %v2316 = vpop.f32.mrb[0].mxu0
      %v2317 = vpop.f32.mrb[0].mxu0
      %v2318 = vadd.f32 0.0, %v2317
      %v2319 = vpop.f32.mrb[0].mxu0
      %2320 = vmatprep.mubr.bf16.mxu0 0
      %2321 = vmatmul.mubr.bf16.gmra.mrb[0].mxu0 %v2203
      %v2322 = vpop.f32.mrb[0].mxu0
      %v2323 = vadd.f32 0.0, %v2322
      %v2324 = vpop.f32.mrb[0].mxu0
      %v2325 = vpop.f32.mrb[0].mxu0
      %v2326 = vadd.f32 0.0, %v2325
      %v2327 = vpop.f32.mrb[0].mxu0
      %2328 = vmatprep.mubr.bf16.mxu0 0
      %2329 = vmatmul.mubr.bf16.gmra.mrb[0].mxu0 %v2206
      %v2330 = vpop.f32.mrb[0].mxu0
      %v2331 = vadd.f32 0.0, %v2330
      %v2332 = vpop.f32.mrb[0].mxu0
      %v2333 = vpop.f32.mrb[0].mxu0
      %v2334 = vadd.f32 0.0, %v2333
      %v2335 = vpop.f32.mrb[0].mxu0
      %2336 = vmatprep.mubr.bf16.mxu0 0
      %2337 = vmatmul.mubr.bf16.gmra.mrb[0].mxu0 %v2209
      %v2338 = vpop.f32.mrb[0].mxu0
      %v2339 = vadd.f32 0.0, %v2338
      %v2340 = vpop.f32.mrb[0].mxu0
      %v2341 = vpop.f32.mrb[0].mxu0
      %v2342 = vadd.f32 0.0, %v2341
      %v2343 = vpop.f32.mrb[0].mxu0
      %2344 = vmatprep.mubr.bf16.mxu0 0
      %2345 = vmatmul.mubr.bf16.gmra.mrb[0].mxu0 %v2212
      %v2346 = vpop.f32.mrb[0].mxu0
      %v2347 = vadd.f32 0.0, %v2346
      %v2348 = vpop.f32.mrb[0].mxu0
      %v2349 = vpop.f32.mrb[0].mxu0
      %v2350 = vadd.f32 0.0, %v2349
      %v2351 = vpop.f32.mrb[0].mxu0
      %2352 = vmatprep.mubr.bf16.mxu0 0
      %2353 = vmatmul.mubr.bf16.gmra.mrb[0].mxu0 %v2215
      %v2354 = vpop.f32.mrb[0].mxu0
      %v2355 = vadd.f32 0.0, %v2354
      %v2356 = vpop.f32.mrb[0].mxu0
      %v2357 = vpop.f32.mrb[0].mxu0
      %v2358 = vadd.f32 0.0, %v2357
      %v2359 = vpop.f32.mrb[0].mxu0
      %2360 = vmatprep.mubr.bf16.mxu0 0
      %2361 = vmatmul.mubr.bf16.gmra.mrb[0].mxu0 %v2218
      %v2362 = vpop.f32.mrb[0].mxu0
      %v2363 = vadd.f32 0.0, %v2362
      %v2364 = vpop.f32.mrb[0].mxu0
      %v2365 = vpop.f32.mrb[0].mxu0
      %v2366 = vadd.f32 0.0, %v2365
      %v2367 = vpop.f32.mrb[0].mxu0
      %2368 = vmatprep.mubr.bf16.mxu0 0
      %2369 = vmatmul.mubr.bf16.gmra.mrb[0].mxu0 %v2221
      %v2370 = vpop.f32.mrb[0].mxu0
      %v2371 = vadd.f32 0.0, %v2370
      %v2372 = vpop.f32.mrb[0].mxu0
      %v2373 = vpop.f32.mrb[0].mxu0
      %v2374 = vadd.f32 0.0, %v2373
      %v2375 = vpop.f32.mrb[0].mxu0
      %2376 = vmatprep.mubr.bf16.mxu0 0
      %2377 = vmatmul.mubr.bf16.gmra.mrb[0].mxu0 %v2224
      %v2378 = vpop.f32.mrb[0].mxu0
      %v2379 = vadd.f32 0.0, %v2378
      %v2380 = vpop.f32.mrb[0].mxu0
      %v2381 = vpop.f32.mrb[0].mxu0
      %v2382 = vadd.f32 0.0, %v2381
      %v2383 = vpop.f32.mrb[0].mxu0
      %2384 = vmatprep.mubr.bf16.mxu0 0
      %2385 = vmatmul.mubr.bf16.gmra.mrb[0].mxu0 %v2227
      %v2386 = vpop.f32.mrb[0].mxu0
      %v2387 = vadd.f32 0.0, %v2386
      %v2388 = vpop.f32.mrb[0].mxu0
      %v2389 = vpop.f32.mrb[0].mxu0
      %v2390 = vadd.f32 0.0, %v2389
      %v2391 = vpop.f32.mrb[0].mxu0
      %2392 = vdwg.mxu0
      %v2393 = vadd.f32 %v2099, %v2267
      %v2394 = vadd.f32 %v2100, %v2270
      %v2395 = vadd.f32 %v2101, %v2275
      %v2396 = vadd.f32 %v2102, %v2278
      %v2397 = vadd.f32 %v2103, %v2283
      %v2398 = vadd.f32 %v2104, %v2286
      %v2399 = vadd.f32 %v2105, %v2291
      %v2400 = vadd.f32 %v2106, %v2294
      %v2401 = vadd.f32 %v2107, %v2299
      %v2402 = vadd.f32 %v2108, %v2302
      %v2403 = vadd.f32 %v2109, %v2307
      %v2404 = vadd.f32 %v2110, %v2310
      %v2405 = vadd.f32 %v2111, %v2315
      %v2406 = vadd.f32 %v2112, %v2318
      %v2407 = vadd.f32 %v2113, %v2323
      %v2408 = vadd.f32 %v2114, %v2326
      %v2409 = vadd.f32 %v2115, %v2331
      %v2410 = vadd.f32 %v2116, %v2334
      %v2411 = vadd.f32 %v2117, %v2339
      %v2412 = vadd.f32 %v2118, %v2342
      %v2413 = vadd.f32 %v2119, %v2347
      %v2414 = vadd.f32 %v2120, %v2350
      %v2415 = vadd.f32 %v2121, %v2355
      %v2416 = vadd.f32 %v2122, %v2358
      %v2417 = vadd.f32 %v2123, %v2363
      %v2418 = vadd.f32 %v2124, %v2366
      %v2419 = vadd.f32 %v2125, %v2371
      %v2420 = vadd.f32 %v2126, %v2374
      %v2421 = vadd.f32 %v2127, %v2379
      %v2422 = vadd.f32 %v2128, %v2382
      %v2423 = vadd.f32 %v2129, %v2387
      %v2424 = vadd.f32 %v2130, %v2390
      %v2425 = vld [vmem:[%s234] sm:$0xe]
      %v2426 = vld [vmem:[%s234 + $0xc] sm:$0xe]
      %v2427 = vld [vmem:[%s234 + $0x18] sm:$0xe]
      %v2428 = vld [vmem:[%s234 + $0x24] sm:$0xe]
      %v2429 = vld [vmem:[%s234 + $0x30] sm:$0xe]
      %v2430 = vld [vmem:[%s234 + $0x3c] sm:$0xe]
      %v2431 = vld [vmem:[%s234 + $0x48] sm:$0xe]
      %v2432 = vld [vmem:[%s234 + $0x54] sm:$0xe]
      %v2433 = vld [vmem:[%s234 + $0x60] sm:$0xe]
      %v2434 = vld [vmem:[%s234 + $0x6c] sm:$0xe]
      %v2435 = vld [vmem:[%s234 + $0x78] sm:$0xe]
      %v2436 = vld [vmem:[%s234 + $0x84] sm:$0xe]
      %v2437 = vld [vmem:[%s234 + $0x90] sm:$0xe]
      %v2438 = vld [vmem:[%s234 + $0x9c] sm:$0xe]
      %v2439 = vld [vmem:[%s234 + $0xa8] sm:$0xe]
      %v2440 = vld [vmem:[%s234 + $0xb4] sm:$0xe]
      %vm2489 = vcmask 1042432
      %vm2490 = vcmask 1046532
      %vm2491 = vmor %vm2489, %vm2490
      %v2492 = vrot.slane %v2425, 5
      %v2493 = vrot.slane %v2492, 4
      %v2494 = vrot.slane %v971, 5
      %v2495 = vsel %vm2491, %v2493, %v2494
      %v2496 = vrot.slane %v2494, 4
      %v2497 = vrot.slane %v972, 5
      %v2498 = vsel %vm2491, %v2496, %v2497
      %v2499 = vrot.slane %v2426, 5
      %v2500 = vrot.slane %v2499, 4
      %v2501 = vrot.slane %v974, 5
      %v2502 = vsel %vm2491, %v2500, %v2501
      %v2503 = vrot.slane %v2501, 4
      %v2504 = vrot.slane %v975, 5
      %v2505 = vsel %vm2491, %v2503, %v2504
      %v2506 = vrot.slane %v2427, 5
      %v2507 = vrot.slane %v2506, 4
      %v2508 = vrot.slane %v977, 5
      %v2509 = vsel %vm2491, %v2507, %v2508
      %v2510 = vrot.slane %v2508, 4
      %v2511 = vrot.slane %v978, 5
      %v2512 = vsel %vm2491, %v2510, %v2511
      %v2513 = vrot.slane %v2428, 5
      %v2514 = vrot.slane %v2513, 4
      %v2515 = vrot.slane %v980, 5
      %v2516 = vsel %vm2491, %v2514, %v2515
      %v2517 = vrot.slane %v2515, 4
      %v2518 = vrot.slane %v981, 5
      %v2519 = vsel %vm2491, %v2517, %v2518
      %v2520 = vrot.slane %v2429, 5
      %v2521 = vrot.slane %v2520, 4
      %v2522 = vrot.slane %v983, 5
      %v2523 = vsel %vm2491, %v2521, %v2522
      %v2524 = vrot.slane %v2522, 4
      %v2525 = vrot.slane %v984, 5
      %v2526 = vsel %vm2491, %v2524, %v2525
      %v2527 = vrot.slane %v2430, 5
      %v2528 = vrot.slane %v2527, 4
      %v2529 = vrot.slane %v986, 5
      %v2530 = vsel %vm2491, %v2528, %v2529
      %v2531 = vrot.slane %v2529, 4
      %v2532 = vrot.slane %v987, 5
      %v2533 = vsel %vm2491, %v2531, %v2532
      %v2534 = vrot.slane %v2431, 5
      %v2535 = vrot.slane %v2534, 4
      %v2536 = vrot.slane %v989, 5
      %v2537 = vsel %vm2491, %v2535, %v2536
      %v2538 = vrot.slane %v2536, 4
      %v2539 = vrot.slane %v990, 5
      %v2540 = vsel %vm2491, %v2538, %v2539
      %v2541 = vrot.slane %v2432, 5
      %v2542 = vrot.slane %v2541, 4
      %v2543 = vrot.slane %v992, 5
      %v2544 = vsel %vm2491, %v2542, %v2543
      %v2545 = vrot.slane %v2543, 4
      %v2546 = vrot.slane %v993, 5
      %v2547 = vsel %vm2491, %v2545, %v2546
      %v2548 = vrot.slane %v2433, 5
      %v2549 = vrot.slane %v2548, 4
      %v2550 = vrot.slane %v995, 5
      %v2551 = vsel %vm2491, %v2549, %v2550
      %v2552 = vrot.slane %v2550, 4
      %v2553 = vrot.slane %v996, 5
      %v2554 = vsel %vm2491, %v2552, %v2553
      %v2555 = vrot.slane %v2434, 5
      %v2556 = vrot.slane %v2555, 4
      %v2557 = vrot.slane %v998, 5
      %v2558 = vsel %vm2491, %v2556, %v2557
      %v2559 = vrot.slane %v2557, 4
      %v2560 = vrot.slane %v999, 5
      %v2561 = vsel %vm2491, %v2559, %v2560
      %v2562 = vrot.slane %v2435, 5
      %v2563 = vrot.slane %v2562, 4
      %v2564 = vrot.slane %v1001, 5
      %v2565 = vsel %vm2491, %v2563, %v2564
      %v2566 = vrot.slane %v2564, 4
      %v2567 = vrot.slane %v1002, 5
      %v2568 = vsel %vm2491, %v2566, %v2567
      %v2569 = vrot.slane %v2436, 5
      %v2570 = vrot.slane %v2569, 4
      %v2571 = vrot.slane %v1004, 5
      %v2572 = vsel %vm2491, %v2570, %v2571
      %v2573 = vrot.slane %v2571, 4
      %v2574 = vrot.slane %v1005, 5
      %v2575 = vsel %vm2491, %v2573, %v2574
      %v2576 = vrot.slane %v2437, 5
      %v2577 = vrot.slane %v2576, 4
      %v2578 = vrot.slane %v1007, 5
      %v2579 = vsel %vm2491, %v2577, %v2578
      %v2580 = vrot.slane %v2578, 4
      %v2581 = vrot.slane %v1008, 5
      %v2582 = vsel %vm2491, %v2580, %v2581
      %v2583 = vrot.slane %v2438, 5
      %v2584 = vrot.slane %v2583, 4
      %v2585 = vrot.slane %v1010, 5
      %v2586 = vsel %vm2491, %v2584, %v2585
      %v2587 = vrot.slane %v2585, 4
      %v2588 = vrot.slane %v1011, 5
      %v2589 = vsel %vm2491, %v2587, %v2588
      %v2590 = vrot.slane %v2439, 5
      %v2591 = vrot.slane %v2590, 4
      %v2592 = vrot.slane %v1013, 5
      %v2593 = vsel %vm2491, %v2591, %v2592
      %v2594 = vrot.slane %v2592, 4
      %v2595 = vrot.slane %v1014, 5
      %v2596 = vsel %vm2491, %v2594, %v2595
      %v2597 = vrot.slane %v2440, 5
      %v2598 = vrot.slane %v2597, 4
      %v2599 = vrot.slane %v1016, 5
      %v2600 = vsel %vm2491, %v2598, %v2599
      %v2601 = vrot.slane %v2599, 4
      %v2602 = vrot.slane %v1017, 5
      %v2603 = vsel %vm2491, %v2601, %v2602
      %v2604 = vld [vmem:[%s239] sm:$0xe]
      %v2605 = vld [vmem:[%s239 + $0xc] sm:$0xe]
      %v2606 = vld [vmem:[%s239 + $0x18] sm:$0xe]
      %v2607 = vld [vmem:[%s239 + $0x24] sm:$0xe]
      %v2608 = vld [vmem:[%s239 + $0x30] sm:$0xe]
      %v2609 = vld [vmem:[%s239 + $0x3c] sm:$0xe]
      %v2610 = vld [vmem:[%s239 + $0x48] sm:$0xe]
      %v2611 = vld [vmem:[%s239 + $0x54] sm:$0xe]
      %v2612 = vld [vmem:[%s239 + $0x60] sm:$0xe]
      %v2613 = vld [vmem:[%s239 + $0x6c] sm:$0xe]
      %v2614 = vld [vmem:[%s239 + $0x78] sm:$0xe]
      %v2615 = vld [vmem:[%s239 + $0x84] sm:$0xe]
      %v2616 = vld [vmem:[%s239 + $0x90] sm:$0xe]
      %v2617 = vld [vmem:[%s239 + $0x9c] sm:$0xe]
      %v2618 = vld [vmem:[%s239 + $0xa8] sm:$0xe]
      %v2619 = vld [vmem:[%s239 + $0xb4] sm:$0xe]
      %v2668 = vrot.slane %v2604, 5
      %v2669 = vrot.slane %v2668, 4
      %v2670 = vrot.slane %v1406, 5
      %v2671 = vsel %vm2491, %v2669, %v2670
      %v2672 = vrot.slane %v2670, 4
      %v2673 = vrot.slane %v1407, 5
      %v2674 = vsel %vm2491, %v2672, %v2673
      %v2675 = vrot.slane %v2605, 5
      %v2676 = vrot.slane %v2675, 4
      %v2677 = vrot.slane %v1409, 5
      %v2678 = vsel %vm2491, %v2676, %v2677
      %v2679 = vrot.slane %v2677, 4
      %v2680 = vrot.slane %v1410, 5
      %v2681 = vsel %vm2491, %v2679, %v2680
      %v2682 = vrot.slane %v2606, 5
      %v2683 = vrot.slane %v2682, 4
      %v2684 = vrot.slane %v1412, 5
      %v2685 = vsel %vm2491, %v2683, %v2684
      %v2686 = vrot.slane %v2684, 4
      %v2687 = vrot.slane %v1413, 5
      %v2688 = vsel %vm2491, %v2686, %v2687
      %v2689 = vrot.slane %v2607, 5
      %v2690 = vrot.slane %v2689, 4
      %v2691 = vrot.slane %v1415, 5
      %v2692 = vsel %vm2491, %v2690, %v2691
      %v2693 = vrot.slane %v2691, 4
      %v2694 = vrot.slane %v1416, 5
      %v2695 = vsel %vm2491, %v2693, %v2694
      %v2696 = vrot.slane %v2608, 5
      %v2697 = vrot.slane %v2696, 4
      %v2698 = vrot.slane %v1418, 5
      %v2699 = vsel %vm2491, %v2697, %v2698
      %v2700 = vrot.slane %v2698, 4
      %v2701 = vrot.slane %v1419, 5
      %v2702 = vsel %vm2491, %v2700, %v2701
      %v2703 = vrot.slane %v2609, 5
      %v2704 = vrot.slane %v2703, 4
      %v2705 = vrot.slane %v1421, 5
      %v2706 = vsel %vm2491, %v2704, %v2705
      %v2707 = vrot.slane %v2705, 4
      %v2708 = vrot.slane %v1422, 5
      %v2709 = vsel %vm2491, %v2707, %v2708
      %v2710 = vrot.slane %v2610, 5
      %v2711 = vrot.slane %v2710, 4
      %v2712 = vrot.slane %v1424, 5
      %v2713 = vsel %vm2491, %v2711, %v2712
      %v2714 = vrot.slane %v2712, 4
      %v2715 = vrot.slane %v1425, 5
      %v2716 = vsel %vm2491, %v2714, %v2715
      %v2717 = vrot.slane %v2611, 5
      %v2718 = vrot.slane %v2717, 4
      %v2719 = vrot.slane %v1427, 5
      %v2720 = vsel %vm2491, %v2718, %v2719
      %v2721 = vrot.slane %v2719, 4
      %v2722 = vrot.slane %v1428, 5
      %v2723 = vsel %vm2491, %v2721, %v2722
      %v2724 = vrot.slane %v2612, 5
      %v2725 = vrot.slane %v2724, 4
      %v2726 = vrot.slane %v1430, 5
      %v2727 = vsel %vm2491, %v2725, %v2726
      %v2728 = vrot.slane %v2726, 4
      %v2729 = vrot.slane %v1431, 5
      %v2730 = vsel %vm2491, %v2728, %v2729
      %v2731 = vrot.slane %v2613, 5
      %v2732 = vrot.slane %v2731, 4
      %v2733 = vrot.slane %v1433, 5
      %v2734 = vsel %vm2491, %v2732, %v2733
      %v2735 = vrot.slane %v2733, 4
      %v2736 = vrot.slane %v1434, 5
      %v2737 = vsel %vm2491, %v2735, %v2736
      %v2738 = vrot.slane %v2614, 5
      %v2739 = vrot.slane %v2738, 4
      %v2740 = vrot.slane %v1436, 5
      %v2741 = vsel %vm2491, %v2739, %v2740
      %v2742 = vrot.slane %v2740, 4
      %v2743 = vrot.slane %v1437, 5
      %v2744 = vsel %vm2491, %v2742, %v2743
      %v2745 = vrot.slane %v2615, 5
      %v2746 = vrot.slane %v2745, 4
      %v2747 = vrot.slane %v1439, 5
      %v2748 = vsel %vm2491, %v2746, %v2747
      %v2749 = vrot.slane %v2747, 4
      %v2750 = vrot.slane %v1440, 5
      %v2751 = vsel %vm2491, %v2749, %v2750
      %v2752 = vrot.slane %v2616, 5
      %v2753 = vrot.slane %v2752, 4
      %v2754 = vrot.slane %v1442, 5
      %v2755 = vsel %vm2491, %v2753, %v2754
      %v2756 = vrot.slane %v2754, 4
      %v2757 = vrot.slane %v1443, 5
      %v2758 = vsel %vm2491, %v2756, %v2757
      %v2759 = vrot.slane %v2617, 5
      %v2760 = vrot.slane %v2759, 4
      %v2761 = vrot.slane %v1445, 5
      %v2762 = vsel %vm2491, %v2760, %v2761
      %v2763 = vrot.slane %v2761, 4
      %v2764 = vrot.slane %v1446, 5
      %v2765 = vsel %vm2491, %v2763, %v2764
      %v2766 = vrot.slane %v2618, 5
      %v2767 = vrot.slane %v2766, 4
      %v2768 = vrot.slane %v1448, 5
      %v2769 = vsel %vm2491, %v2767, %v2768
      %v2770 = vrot.slane %v2768, 4
      %v2771 = vrot.slane %v1449, 5
      %v2772 = vsel %vm2491, %v2770, %v2771
      %v2773 = vrot.slane %v2619, 5
      %v2774 = vrot.slane %v2773, 4
      %v2775 = vrot.slane %v1451, 5
      %v2776 = vsel %vm2491, %v2774, %v2775
      %v2777 = vrot.slane %v2775, 4
      %v2778 = vrot.slane %v1452, 5
      %v2779 = vsel %vm2491, %v2777, %v2778
      %s2780 = scalar_lea.vmem %s2, 4
      %v2781 = vld [vmem:[%s2780] sm:$0x3]
      %v2782 = vunpack.c.l.b16 %v2495
      %v2783 = vunpack.c.l.b16 %v2498
      %v2784 = vunpack.c.l.b16 %v2502
      %v2785 = vunpack.c.l.b16 %v2505
      %v2786 = vunpack.c.l.b16 %v2509
      %v2787 = vunpack.c.l.b16 %v2512
      %v2788 = vunpack.c.l.b16 %v2516
      %v2789 = vunpack.c.l.b16 %v2519
      %v2790 = vunpack.c.l.b16 %v2523
      %v2791 = vunpack.c.l.b16 %v2526
      %v2792 = vunpack.c.l.b16 %v2530
      %v2793 = vunpack.c.l.b16 %v2533
      %v2794 = vunpack.c.l.b16 %v2537
      %v2795 = vunpack.c.l.b16 %v2540
      %v2796 = vunpack.c.l.b16 %v2544
      %v2797 = vunpack.c.l.b16 %v2547
      %v2798 = vunpack.c.l.b16 %v2551
      %v2799 = vunpack.c.l.b16 %v2554
      %v2800 = vunpack.c.l.b16 %v2558
      %v2801 = vunpack.c.l.b16 %v2561
      %v2802 = vunpack.c.l.b16 %v2565
      %v2803 = vunpack.c.l.b16 %v2568
      %v2804 = vunpack.c.l.b16 %v2572
      %v2805 = vunpack.c.l.b16 %v2575
      %v2806 = vunpack.c.l.b16 %v2579
      %v2807 = vunpack.c.l.b16 %v2582
      %v2808 = vunpack.c.l.b16 %v2586
      %v2809 = vunpack.c.l.b16 %v2589
      %v2810 = vunpack.c.l.b16 %v2593
      %v2811 = vunpack.c.l.b16 %v2596
      %v2812 = vunpack.c.l.b16 %v2600
      %v2813 = vunpack.c.l.b16 %v2603
      %v2814 = vpack.c.b16 %v2783, %v2782
      %v2815 = vpack.c.b16 %v2785, %v2784
      %v2816 = vpack.c.b16 %v2787, %v2786
      %v2817 = vpack.c.b16 %v2789, %v2788
      %v2818 = vpack.c.b16 %v2791, %v2790
      %v2819 = vpack.c.b16 %v2793, %v2792
      %v2820 = vpack.c.b16 %v2795, %v2794
      %v2821 = vpack.c.b16 %v2797, %v2796
      %v2822 = vpack.c.b16 %v2799, %v2798
      %v2823 = vpack.c.b16 %v2801, %v2800
      %v2824 = vpack.c.b16 %v2803, %v2802
      %v2825 = vpack.c.b16 %v2805, %v2804
      %v2826 = vpack.c.b16 %v2807, %v2806
      %v2827 = vpack.c.b16 %v2809, %v2808
      %v2828 = vpack.c.b16 %v2811, %v2810
      %v2829 = vpack.c.b16 %v2813, %v2812
      %v2831 = vsel %vm399, %v2814, 0
      %v2834 = vsel %vm399, %v2815, 0
      %v2837 = vsel %vm399, %v2816, 0
      %v2840 = vsel %vm399, %v2817, 0
      %v2843 = vsel %vm399, %v2818, 0
      %v2846 = vsel %vm399, %v2819, 0
      %v2849 = vsel %vm399, %v2820, 0
      %v2852 = vsel %vm399, %v2821, 0
      %v2855 = vsel %vm399, %v2822, 0
      %v2858 = vsel %vm399, %v2823, 0
      %v2861 = vsel %vm399, %v2824, 0
      %v2864 = vsel %vm399, %v2825, 0
      %v2867 = vsel %vm399, %v2826, 0
      %v2870 = vsel %vm399, %v2827, 0
      %v2873 = vsel %vm399, %v2828, 0
      %v2876 = vsel %vm399, %v2829, 0
      %v2879 = vsel %vm448, %v2781, 0
      %2881 = vmatprep.subr.bf16.mxu0 0
      %2882 = vmatpush1.bf16.msra.mxu0 %v2879
      %2883 = vmatprep.subr.bf16.mxu0 0
      %2884 = vmatpush1.bf16.msra.mxu0 0
      %2885 = vmatprep.subr.bf16.mxu0 0
      %2886 = vmatpush1.bf16.msra.mxu0 0
      %2887 = vmatprep.subr.bf16.mxu0 0
      %2888 = vmatpush1.bf16.msra.mxu0 0
      %2889 = vmatprep.subr.bf16.mxu0 0
      %2890 = vmatpush1.bf16.msra.mxu0 0
      %2891 = vmatprep.subr.bf16.mxu0 0
      %2892 = vmatpush1.bf16.msra.mxu0 0
      %2893 = vmatprep.subr.bf16.mxu0 0
      %2894 = vmatpush1.bf16.msra.mxu0 0
      %2895 = vmatprep.subr.bf16.mxu0 0
      %2896 = vmatpush1.bf16.msra.mxu0 0
      %2897 = vmatprep.subr.bf16.mxu0 0
      %2898 = vmatpush1.bf16.msra.mxu0 0
      %2899 = vmatprep.subr.bf16.mxu0 0
      %2900 = vmatpush1.bf16.msra.mxu0 0
      %2901 = vmatprep.subr.bf16.mxu0 0
      %2902 = vmatpush1.bf16.msra.mxu0 0
      %2903 = vmatprep.subr.bf16.mxu0 0
      %2904 = vmatpush1.bf16.msra.mxu0 0
      %2905 = vmatprep.subr.bf16.mxu0 0
      %2906 = vmatpush1.bf16.msra.mxu0 0
      %2907 = vmatprep.subr.bf16.mxu0 0
      %2908 = vmatpush1.bf16.msra.mxu0 0
      %2909 = vmatprep.subr.bf16.mxu0 0
      %2910 = vmatpush1.bf16.msra.mxu0 0
      %2911 = vmatprep.subr.bf16.mxu0 0
      %2912 = vmatpush1.bf16.msra.mxu0 0
      %2913 = vmatprep.mubr.bf16.mxu0 0
      %2914 = vmatmul.mubr.bf16.gmra.mrb[0].mxu0 %v2831
      %v2915 = vpop.f32.mrb[0].mxu0
      %v2916 = vadd.f32 0.0, %v2915
      %v2917 = vpop.f32.mrb[0].mxu0
      %v2918 = vpop.f32.mrb[0].mxu0
      %v2919 = vadd.f32 0.0, %v2918
      %v2920 = vpop.f32.mrb[0].mxu0
      %2921 = vmatprep.mubr.bf16.mxu0 0
      %2922 = vmatmul.mubr.bf16.gmra.mrb[0].mxu0 %v2834
      %v2923 = vpop.f32.mrb[0].mxu0
      %v2924 = vadd.f32 0.0, %v2923
      %v2925 = vpop.f32.mrb[0].mxu0
      %v2926 = vpop.f32.mrb[0].mxu0
      %v2927 = vadd.f32 0.0, %v2926
      %v2928 = vpop.f32.mrb[0].mxu0
      %2929 = vmatprep.mubr.bf16.mxu0 0
      %2930 = vmatmul.mubr.bf16.gmra.mrb[0].mxu0 %v2837
      %v2931 = vpop.f32.mrb[0].mxu0
      %v2932 = vadd.f32 0.0, %v2931
      %v2933 = vpop.f32.mrb[0].mxu0
      %v2934 = vpop.f32.mrb[0].mxu0
      %v2935 = vadd.f32 0.0, %v2934
      %v2936 = vpop.f32.mrb[0].mxu0
      %2937 = vmatprep.mubr.bf16.mxu0 0
      %2938 = vmatmul.mubr.bf16.gmra.mrb[0].mxu0 %v2840
      %v2939 = vpop.f32.mrb[0].mxu0
      %v2940 = vadd.f32 0.0, %v2939
      %v2941 = vpop.f32.mrb[0].mxu0
      %v2942 = vpop.f32.mrb[0].mxu0
      %v2943 = vadd.f32 0.0, %v2942
      %v2944 = vpop.f32.mrb[0].mxu0
      %2945 = vmatprep.mubr.bf16.mxu0 0
      %2946 = vmatmul.mubr.bf16.gmra.mrb[0].mxu0 %v2843
      %v2947 = vpop.f32.mrb[0].mxu0
      %v2948 = vadd.f32 0.0, %v2947
      %v2949 = vpop.f32.mrb[0].mxu0
      %v2950 = vpop.f32.mrb[0].mxu0
      %v2951 = vadd.f32 0.0, %v2950
      %v2952 = vpop.f32.mrb[0].mxu0
      %2953 = vmatprep.mubr.bf16.mxu0 0
      %2954 = vmatmul.mubr.bf16.gmra.mrb[0].mxu0 %v2846
      %v2955 = vpop.f32.mrb[0].mxu0
      %v2956 = vadd.f32 0.0, %v2955
      %v2957 = vpop.f32.mrb[0].mxu0
      %v2958 = vpop.f32.mrb[0].mxu0
      %v2959 = vadd.f32 0.0, %v2958
      %v2960 = vpop.f32.mrb[0].mxu0
      %2961 = vmatprep.mubr.bf16.mxu0 0
      %2962 = vmatmul.mubr.bf16.gmra.mrb[0].mxu0 %v2849
      %v2963 = vpop.f32.mrb[0].mxu0
      %v2964 = vadd.f32 0.0, %v2963
      %v2965 = vpop.f32.mrb[0].mxu0
      %v2966 = vpop.f32.mrb[0].mxu0
      %v2967 = vadd.f32 0.0, %v2966
      %v2968 = vpop.f32.mrb[0].mxu0
      %2969 = vmatprep.mubr.bf16.mxu0 0
      %2970 = vmatmul.mubr.bf16.gmra.mrb[0].mxu0 %v2852
      %v2971 = vpop.f32.mrb[0].mxu0
      %v2972 = vadd.f32 0.0, %v2971
      %v2973 = vpop.f32.mrb[0].mxu0
      %v2974 = vpop.f32.mrb[0].mxu0
      %v2975 = vadd.f32 0.0, %v2974
      %v2976 = vpop.f32.mrb[0].mxu0
      %2977 = vmatprep.mubr.bf16.mxu0 0
      %2978 = vmatmul.mubr.bf16.gmra.mrb[0].mxu0 %v2855
      %v2979 = vpop.f32.mrb[0].mxu0
      %v2980 = vadd.f32 0.0, %v2979
      %v2981 = vpop.f32.mrb[0].mxu0
      %v2982 = vpop.f32.mrb[0].mxu0
      %v2983 = vadd.f32 0.0, %v2982
      %v2984 = vpop.f32.mrb[0].mxu0
      %2985 = vmatprep.mubr.bf16.mxu0 0
      %2986 = vmatmul.mubr.bf16.gmra.mrb[0].mxu0 %v2858
      %v2987 = vpop.f32.mrb[0].mxu0
      %v2988 = vadd.f32 0.0, %v2987
      %v2989 = vpop.f32.mrb[0].mxu0
      %v2990 = vpop.f32.mrb[0].mxu0
      %v2991 = vadd.f32 0.0, %v2990
      %v2992 = vpop.f32.mrb[0].mxu0
      %2993 = vmatprep.mubr.bf16.mxu0 0
      %2994 = vmatmul.mubr.bf16.gmra.mrb[0].mxu0 %v2861
      %v2995 = vpop.f32.mrb[0].mxu0
      %v2996 = vadd.f32 0.0, %v2995
      %v2997 = vpop.f32.mrb[0].mxu0
      %v2998 = vpop.f32.mrb[0].mxu0
      %v2999 = vadd.f32 0.0, %v2998
      %v3000 = vpop.f32.mrb[0].mxu0
      %3001 = vmatprep.mubr.bf16.mxu0 0
      %3002 = vmatmul.mubr.bf16.gmra.mrb[0].mxu0 %v2864
      %v3003 = vpop.f32.mrb[0].mxu0
      %v3004 = vadd.f32 0.0, %v3003
      %v3005 = vpop.f32.mrb[0].mxu0
      %v3006 = vpop.f32.mrb[0].mxu0
      %v3007 = vadd.f32 0.0, %v3006
      %v3008 = vpop.f32.mrb[0].mxu0
      %3009 = vmatprep.mubr.bf16.mxu0 0
      %3010 = vmatmul.mubr.bf16.gmra.mrb[0].mxu0 %v2867
      %v3011 = vpop.f32.mrb[0].mxu0
      %v3012 = vadd.f32 0.0, %v3011
      %v3013 = vpop.f32.mrb[0].mxu0
      %v3014 = vpop.f32.mrb[0].mxu0
      %v3015 = vadd.f32 0.0, %v3014
      %v3016 = vpop.f32.mrb[0].mxu0
      %3017 = vmatprep.mubr.bf16.mxu0 0
      %3018 = vmatmul.mubr.bf16.gmra.mrb[0].mxu0 %v2870
      %v3019 = vpop.f32.mrb[0].mxu0
      %v3020 = vadd.f32 0.0, %v3019
      %v3021 = vpop.f32.mrb[0].mxu0
      %v3022 = vpop.f32.mrb[0].mxu0
      %v3023 = vadd.f32 0.0, %v3022
      %v3024 = vpop.f32.mrb[0].mxu0
      %3025 = vmatprep.mubr.bf16.mxu0 0
      %3026 = vmatmul.mubr.bf16.gmra.mrb[0].mxu0 %v2873
      %v3027 = vpop.f32.mrb[0].mxu0
      %v3028 = vadd.f32 0.0, %v3027
      %v3029 = vpop.f32.mrb[0].mxu0
      %v3030 = vpop.f32.mrb[0].mxu0
      %v3031 = vadd.f32 0.0, %v3030
      %v3032 = vpop.f32.mrb[0].mxu0
      %3033 = vmatprep.mubr.bf16.mxu0 0
      %3034 = vmatmul.mubr.bf16.gmra.mrb[0].mxu0 %v2876
      %v3035 = vpop.f32.mrb[0].mxu0
      %v3036 = vadd.f32 0.0, %v3035
      %v3037 = vpop.f32.mrb[0].mxu0
      %v3038 = vpop.f32.mrb[0].mxu0
      %v3039 = vadd.f32 0.0, %v3038
      %v3040 = vpop.f32.mrb[0].mxu0
      %3041 = vdwg.mxu0
      %v3042 = vadd.f32 %v2393, %v2916
      %v3043 = vadd.f32 %v2394, %v2919
      %v3044 = vadd.f32 %v2395, %v2924
      %v3045 = vadd.f32 %v2396, %v2927
      %v3046 = vadd.f32 %v2397, %v2932
      %v3047 = vadd.f32 %v2398, %v2935
      %v3048 = vadd.f32 %v2399, %v2940
      %v3049 = vadd.f32 %v2400, %v2943
      %v3050 = vadd.f32 %v2401, %v2948
      %v3051 = vadd.f32 %v2402, %v2951
      %v3052 = vadd.f32 %v2403, %v2956
      %v3053 = vadd.f32 %v2404, %v2959
      %v3054 = vadd.f32 %v2405, %v2964
      %v3055 = vadd.f32 %v2406, %v2967
      %v3056 = vadd.f32 %v2407, %v2972
      %v3057 = vadd.f32 %v2408, %v2975
      %v3058 = vadd.f32 %v2409, %v2980
      %v3059 = vadd.f32 %v2410, %v2983
      %v3060 = vadd.f32 %v2411, %v2988
      %v3061 = vadd.f32 %v2412, %v2991
      %v3062 = vadd.f32 %v2413, %v2996
      %v3063 = vadd.f32 %v2414, %v2999
      %v3064 = vadd.f32 %v2415, %v3004
      %v3065 = vadd.f32 %v2416, %v3007
      %v3066 = vadd.f32 %v2417, %v3012
      %v3067 = vadd.f32 %v2418, %v3015
      %v3068 = vadd.f32 %v2419, %v3020
      %v3069 = vadd.f32 %v2420, %v3023
      %v3070 = vadd.f32 %v2421, %v3028
      %v3071 = vadd.f32 %v2422, %v3031
      %v3072 = vadd.f32 %v2423, %v3036
      %v3073 = vadd.f32 %v2424, %v3039
      %s3074 = scalar_lea.vmem %s3, 4
      %v3075 = vld [vmem:[%s3074] sm:$0x3]
      %v3076 = vunpack.c.l.b16 %v2671
      %v3077 = vunpack.c.l.b16 %v2674
      %v3078 = vunpack.c.l.b16 %v2678
      %v3079 = vunpack.c.l.b16 %v2681
      %v3080 = vunpack.c.l.b16 %v2685
      %v3081 = vunpack.c.l.b16 %v2688
      %v3082 = vunpack.c.l.b16 %v2692
      %v3083 = vunpack.c.l.b16 %v2695
      %v3084 = vunpack.c.l.b16 %v2699
      %v3085 = vunpack.c.l.b16 %v2702
      %v3086 = vunpack.c.l.b16 %v2706
      %v3087 = vunpack.c.l.b16 %v2709
      %v3088 = vunpack.c.l.b16 %v2713
      %v3089 = vunpack.c.l.b16 %v2716
      %v3090 = vunpack.c.l.b16 %v2720
      %v3091 = vunpack.c.l.b16 %v2723
      %v3092 = vunpack.c.l.b16 %v2727
      %v3093 = vunpack.c.l.b16 %v2730
      %v3094 = vunpack.c.l.b16 %v2734
      %v3095 = vunpack.c.l.b16 %v2737
      %v3096 = vunpack.c.l.b16 %v2741
      %v3097 = vunpack.c.l.b16 %v2744
      %v3098 = vunpack.c.l.b16 %v2748
      %v3099 = vunpack.c.l.b16 %v2751
      %v3100 = vunpack.c.l.b16 %v2755
      %v3101 = vunpack.c.l.b16 %v2758
      %v3102 = vunpack.c.l.b16 %v2762
      %v3103 = vunpack.c.l.b16 %v2765
      %v3104 = vunpack.c.l.b16 %v2769
      %v3105 = vunpack.c.l.b16 %v2772
      %v3106 = vunpack.c.l.b16 %v2776
      %v3107 = vunpack.c.l.b16 %v2779
      %v3108 = vpack.c.b16 %v3077, %v3076
      %v3109 = vpack.c.b16 %v3079, %v3078
      %v3110 = vpack.c.b16 %v3081, %v3080
      %v3111 = vpack.c.b16 %v3083, %v3082
      %v3112 = vpack.c.b16 %v3085, %v3084
      %v3113 = vpack.c.b16 %v3087, %v3086
      %v3114 = vpack.c.b16 %v3089, %v3088
      %v3115 = vpack.c.b16 %v3091, %v3090
      %v3116 = vpack.c.b16 %v3093, %v3092
      %v3117 = vpack.c.b16 %v3095, %v3094
      %v3118 = vpack.c.b16 %v3097, %v3096
      %v3119 = vpack.c.b16 %v3099, %v3098
      %v3120 = vpack.c.b16 %v3101, %v3100
      %v3121 = vpack.c.b16 %v3103, %v3102
      %v3122 = vpack.c.b16 %v3105, %v3104
      %v3123 = vpack.c.b16 %v3107, %v3106
      %v3125 = vsel %vm399, %v3108, 0
      %v3128 = vsel %vm399, %v3109, 0
      %v3131 = vsel %vm399, %v3110, 0
      %v3134 = vsel %vm399, %v3111, 0
      %v3137 = vsel %vm399, %v3112, 0
      %v3140 = vsel %vm399, %v3113, 0
      %v3143 = vsel %vm399, %v3114, 0
      %v3146 = vsel %vm399, %v3115, 0
      %v3149 = vsel %vm399, %v3116, 0
      %v3152 = vsel %vm399, %v3117, 0
      %v3155 = vsel %vm399, %v3118, 0
      %v3158 = vsel %vm399, %v3119, 0
      %v3161 = vsel %vm399, %v3120, 0
      %v3164 = vsel %vm399, %v3121, 0
      %v3167 = vsel %vm399, %v3122, 0
      %v3170 = vsel %vm399, %v3123, 0
      %v3173 = vsel %vm448, %v3075, 0
      %3175 = vmatprep.subr.bf16.mxu0 0
      %3176 = vmatpush1.bf16.msra.mxu0 %v3173
      %3177 = vmatprep.subr.bf16.mxu0 0
      %3178 = vmatpush1.bf16.msra.mxu0 0
      %3179 = vmatprep.subr.bf16.mxu0 0
      %3180 = vmatpush1.bf16.msra.mxu0 0
      %3181 = vmatprep.subr.bf16.mxu0 0
      %3182 = vmatpush1.bf16.msra.mxu0 0
      %3183 = vmatprep.subr.bf16.mxu0 0
      %3184 = vmatpush1.bf16.msra.mxu0 0
      %3185 = vmatprep.subr.bf16.mxu0 0
      %3186 = vmatpush1.bf16.msra.mxu0 0
      %3187 = vmatprep.subr.bf16.mxu0 0
      %3188 = vmatpush1.bf16.msra.mxu0 0
      %3189 = vmatprep.subr.bf16.mxu0 0
      %3190 = vmatpush1.bf16.msra.mxu0 0
      %3191 = vmatprep.subr.bf16.mxu0 0
      %3192 = vmatpush1.bf16.msra.mxu0 0
      %3193 = vmatprep.subr.bf16.mxu0 0
      %3194 = vmatpush1.bf16.msra.mxu0 0
      %3195 = vmatprep.subr.bf16.mxu0 0
      %3196 = vmatpush1.bf16.msra.mxu0 0
      %3197 = vmatprep.subr.bf16.mxu0 0
      %3198 = vmatpush1.bf16.msra.mxu0 0
      %3199 = vmatprep.subr.bf16.mxu0 0
      %3200 = vmatpush1.bf16.msra.mxu0 0
      %3201 = vmatprep.subr.bf16.mxu0 0
      %3202 = vmatpush1.bf16.msra.mxu0 0
      %3203 = vmatprep.subr.bf16.mxu0 0
      %3204 = vmatpush1.bf16.msra.mxu0 0
      %3205 = vmatprep.subr.bf16.mxu0 0
      %3206 = vmatpush1.bf16.msra.mxu0 0
      %3207 = vmatprep.mubr.bf16.mxu0 0
      %3208 = vmatmul.mubr.bf16.gmra.mrb[0].mxu0 %v3125
      %v3209 = vpop.f32.mrb[0].mxu0
      %v3210 = vadd.f32 0.0, %v3209
      %v3211 = vpop.f32.mrb[0].mxu0
      %v3212 = vpop.f32.mrb[0].mxu0
      %v3213 = vadd.f32 0.0, %v3212
      %v3214 = vpop.f32.mrb[0].mxu0
      %3215 = vmatprep.mubr.bf16.mxu0 0
      %3216 = vmatmul.mubr.bf16.gmra.mrb[0].mxu0 %v3128
      %v3217 = vpop.f32.mrb[0].mxu0
      %v3218 = vadd.f32 0.0, %v3217
      %v3219 = vpop.f32.mrb[0].mxu0
      %v3220 = vpop.f32.mrb[0].mxu0
      %v3221 = vadd.f32 0.0, %v3220
      %v3222 = vpop.f32.mrb[0].mxu0
      %3223 = vmatprep.mubr.bf16.mxu0 0
      %3224 = vmatmul.mubr.bf16.gmra.mrb[0].mxu0 %v3131
      %v3225 = vpop.f32.mrb[0].mxu0
      %v3226 = vadd.f32 0.0, %v3225
      %v3227 = vpop.f32.mrb[0].mxu0
      %v3228 = vpop.f32.mrb[0].mxu0
      %v3229 = vadd.f32 0.0, %v3228
      %v3230 = vpop.f32.mrb[0].mxu0
      %3231 = vmatprep.mubr.bf16.mxu0 0
      %3232 = vmatmul.mubr.bf16.gmra.mrb[0].mxu0 %v3134
      %v3233 = vpop.f32.mrb[0].mxu0
      %v3234 = vadd.f32 0.0, %v3233
      %v3235 = vpop.f32.mrb[0].mxu0
      %v3236 = vpop.f32.mrb[0].mxu0
      %v3237 = vadd.f32 0.0, %v3236
      %v3238 = vpop.f32.mrb[0].mxu0
      %3239 = vmatprep.mubr.bf16.mxu0 0
      %3240 = vmatmul.mubr.bf16.gmra.mrb[0].mxu0 %v3137
      %v3241 = vpop.f32.mrb[0].mxu0
      %v3242 = vadd.f32 0.0, %v3241
      %v3243 = vpop.f32.mrb[0].mxu0
      %v3244 = vpop.f32.mrb[0].mxu0
      %v3245 = vadd.f32 0.0, %v3244
      %v3246 = vpop.f32.mrb[0].mxu0
      %3247 = vmatprep.mubr.bf16.mxu0 0
      %3248 = vmatmul.mubr.bf16.gmra.mrb[0].mxu0 %v3140
      %v3249 = vpop.f32.mrb[0].mxu0
      %v3250 = vadd.f32 0.0, %v3249
      %v3251 = vpop.f32.mrb[0].mxu0
      %v3252 = vpop.f32.mrb[0].mxu0
      %v3253 = vadd.f32 0.0, %v3252
      %v3254 = vpop.f32.mrb[0].mxu0
      %3255 = vmatprep.mubr.bf16.mxu0 0
      %3256 = vmatmul.mubr.bf16.gmra.mrb[0].mxu0 %v3143
      %v3257 = vpop.f32.mrb[0].mxu0
      %v3258 = vadd.f32 0.0, %v3257
      %v3259 = vpop.f32.mrb[0].mxu0
      %v3260 = vpop.f32.mrb[0].mxu0
      %v3261 = vadd.f32 0.0, %v3260
      %v3262 = vpop.f32.mrb[0].mxu0
      %3263 = vmatprep.mubr.bf16.mxu0 0
      %3264 = vmatmul.mubr.bf16.gmra.mrb[0].mxu0 %v3146
      %v3265 = vpop.f32.mrb[0].mxu0
      %v3266 = vadd.f32 0.0, %v3265
      %v3267 = vpop.f32.mrb[0].mxu0
      %v3268 = vpop.f32.mrb[0].mxu0
      %v3269 = vadd.f32 0.0, %v3268
      %v3270 = vpop.f32.mrb[0].mxu0
      %3271 = vmatprep.mubr.bf16.mxu0 0
      %3272 = vmatmul.mubr.bf16.gmra.mrb[0].mxu0 %v3149
      %v3273 = vpop.f32.mrb[0].mxu0
      %v3274 = vadd.f32 0.0, %v3273
      %v3275 = vpop.f32.mrb[0].mxu0
      %v3276 = vpop.f32.mrb[0].mxu0
      %v3277 = vadd.f32 0.0, %v3276
      %v3278 = vpop.f32.mrb[0].mxu0
      %3279 = vmatprep.mubr.bf16.mxu0 0
      %3280 = vmatmul.mubr.bf16.gmra.mrb[0].mxu0 %v3152
      %v3281 = vpop.f32.mrb[0].mxu0
      %v3282 = vadd.f32 0.0, %v3281
      %v3283 = vpop.f32.mrb[0].mxu0
      %v3284 = vpop.f32.mrb[0].mxu0
      %v3285 = vadd.f32 0.0, %v3284
      %v3286 = vpop.f32.mrb[0].mxu0
      %3287 = vmatprep.mubr.bf16.mxu0 0
      %3288 = vmatmul.mubr.bf16.gmra.mrb[0].mxu0 %v3155
      %v3289 = vpop.f32.mrb[0].mxu0
      %v3290 = vadd.f32 0.0, %v3289
      %v3291 = vpop.f32.mrb[0].mxu0
      %v3292 = vpop.f32.mrb[0].mxu0
      %v3293 = vadd.f32 0.0, %v3292
      %v3294 = vpop.f32.mrb[0].mxu0
      %3295 = vmatprep.mubr.bf16.mxu0 0
      %3296 = vmatmul.mubr.bf16.gmra.mrb[0].mxu0 %v3158
      %v3297 = vpop.f32.mrb[0].mxu0
      %v3298 = vadd.f32 0.0, %v3297
      %v3299 = vpop.f32.mrb[0].mxu0
      %v3300 = vpop.f32.mrb[0].mxu0
      %v3301 = vadd.f32 0.0, %v3300
      %v3302 = vpop.f32.mrb[0].mxu0
      %3303 = vmatprep.mubr.bf16.mxu0 0
      %3304 = vmatmul.mubr.bf16.gmra.mrb[0].mxu0 %v3161
      %v3305 = vpop.f32.mrb[0].mxu0
      %v3306 = vadd.f32 0.0, %v3305
      %v3307 = vpop.f32.mrb[0].mxu0
      %v3308 = vpop.f32.mrb[0].mxu0
      %v3309 = vadd.f32 0.0, %v3308
      %v3310 = vpop.f32.mrb[0].mxu0
      %3311 = vmatprep.mubr.bf16.mxu0 0
      %3312 = vmatmul.mubr.bf16.gmra.mrb[0].mxu0 %v3164
      %v3313 = vpop.f32.mrb[0].mxu0
      %v3314 = vadd.f32 0.0, %v3313
      %v3315 = vpop.f32.mrb[0].mxu0
      %v3316 = vpop.f32.mrb[0].mxu0
      %v3317 = vadd.f32 0.0, %v3316
      %v3318 = vpop.f32.mrb[0].mxu0
      %3319 = vmatprep.mubr.bf16.mxu0 0
      %3320 = vmatmul.mubr.bf16.gmra.mrb[0].mxu0 %v3167
      %v3321 = vpop.f32.mrb[0].mxu0
      %v3322 = vadd.f32 0.0, %v3321
      %v3323 = vpop.f32.mrb[0].mxu0
      %v3324 = vpop.f32.mrb[0].mxu0
      %v3325 = vadd.f32 0.0, %v3324
      %v3326 = vpop.f32.mrb[0].mxu0
      %3327 = vmatprep.mubr.bf16.mxu0 0
      %3328 = vmatmul.mubr.bf16.gmra.mrb[0].mxu0 %v3170
      %v3329 = vpop.f32.mrb[0].mxu0
      %v3330 = vadd.f32 0.0, %v3329
      %v3331 = vpop.f32.mrb[0].mxu0
      %v3332 = vpop.f32.mrb[0].mxu0
      %v3333 = vadd.f32 0.0, %v3332
      %v3334 = vpop.f32.mrb[0].mxu0
      %3335 = vdwg.mxu0
      %v3336 = vadd.f32 %v3042, %v3210
      %v3337 = vadd.f32 %v3043, %v3213
      %v3338 = vadd.f32 %v3044, %v3218
      %v3339 = vadd.f32 %v3045, %v3221
      %v3340 = vadd.f32 %v3046, %v3226
      %v3341 = vadd.f32 %v3047, %v3229
      %v3342 = vadd.f32 %v3048, %v3234
      %v3343 = vadd.f32 %v3049, %v3237
      %v3344 = vadd.f32 %v3050, %v3242
      %v3345 = vadd.f32 %v3051, %v3245
      %v3346 = vadd.f32 %v3052, %v3250
      %v3347 = vadd.f32 %v3053, %v3253
      %v3348 = vadd.f32 %v3054, %v3258
      %v3349 = vadd.f32 %v3055, %v3261
      %v3350 = vadd.f32 %v3056, %v3266
      %v3351 = vadd.f32 %v3057, %v3269
      %v3352 = vadd.f32 %v3058, %v3274
      %v3353 = vadd.f32 %v3059, %v3277
      %v3354 = vadd.f32 %v3060, %v3282
      %v3355 = vadd.f32 %v3061, %v3285
      %v3356 = vadd.f32 %v3062, %v3290
      %v3357 = vadd.f32 %v3063, %v3293
      %v3358 = vadd.f32 %v3064, %v3298
      %v3359 = vadd.f32 %v3065, %v3301
      %v3360 = vadd.f32 %v3066, %v3306
      %v3361 = vadd.f32 %v3067, %v3309
      %v3362 = vadd.f32 %v3068, %v3314
      %v3363 = vadd.f32 %v3069, %v3317
      %v3364 = vadd.f32 %v3070, %v3322
      %v3365 = vadd.f32 %v3071, %v3325
      %v3366 = vadd.f32 %v3072, %v3330
      %v3367 = vadd.f32 %v3073, %v3333
      %s3368 = scalar_lea.vmem %s234, 12
      %v3369 = vld [vmem:[%s3368] sm:$0xf]
      %v3370 = vld [vmem:[%s3368 + $0x4] sm:$0xf]
      %v3371 = vld [vmem:[%s3368 + $0xc] sm:$0xf]
      %v3372 = vld [vmem:[%s3368 + $0x10] sm:$0xf]
      %v3373 = vld [vmem:[%s3368 + $0x18] sm:$0xf]
      %v3374 = vld [vmem:[%s3368 + $0x1c] sm:$0xf]
      %v3375 = vld [vmem:[%s3368 + $0x24] sm:$0xf]
      %v3376 = vld [vmem:[%s3368 + $0x28] sm:$0xf]
      %v3377 = vld [vmem:[%s3368 + $0x30] sm:$0xf]
      %v3378 = vld [vmem:[%s3368 + $0x34] sm:$0xf]
      %v3379 = vld [vmem:[%s3368 + $0x3c] sm:$0xf]
      %v3380 = vld [vmem:[%s3368 + $0x40] sm:$0xf]
      %v3381 = vld [vmem:[%s3368 + $0x48] sm:$0xf]
      %v3382 = vld [vmem:[%s3368 + $0x4c] sm:$0xf]
      %v3383 = vld [vmem:[%s3368 + $0x54] sm:$0xf]
      %v3384 = vld [vmem:[%s3368 + $0x58] sm:$0xf]
      %v3385 = vld [vmem:[%s3368 + $0x60] sm:$0xf]
      %v3386 = vld [vmem:[%s3368 + $0x64] sm:$0xf]
      %v3387 = vld [vmem:[%s3368 + $0x6c] sm:$0xf]
      %v3388 = vld [vmem:[%s3368 + $0x70] sm:$0xf]
      %v3389 = vld [vmem:[%s3368 + $0x78] sm:$0xf]
      %v3390 = vld [vmem:[%s3368 + $0x7c] sm:$0xf]
      %v3391 = vld [vmem:[%s3368 + $0x84] sm:$0xf]
      %v3392 = vld [vmem:[%s3368 + $0x88] sm:$0xf]
      %v3393 = vld [vmem:[%s3368 + $0x90] sm:$0xf]
      %v3394 = vld [vmem:[%s3368 + $0x94] sm:$0xf]
      %v3395 = vld [vmem:[%s3368 + $0x9c] sm:$0xf]
      %v3396 = vld [vmem:[%s3368 + $0xa0] sm:$0xf]
      %v3397 = vld [vmem:[%s3368 + $0xa8] sm:$0xf]
      %v3398 = vld [vmem:[%s3368 + $0xac] sm:$0xf]
      %v3399 = vld [vmem:[%s3368 + $0xb4] sm:$0xf]
      %v3400 = vld [vmem:[%s3368 + $0xb8] sm:$0xf]
      %s3401 = scalar_lea.vmem %s239, 12
      %v3402 = vld [vmem:[%s3401] sm:$0xf]
      %v3403 = vld [vmem:[%s3401 + $0x4] sm:$0xf]
      %v3404 = vld [vmem:[%s3401 + $0xc] sm:$0xf]
      %v3405 = vld [vmem:[%s3401 + $0x10] sm:$0xf]
      %v3406 = vld [vmem:[%s3401 + $0x18] sm:$0xf]
      %v3407 = vld [vmem:[%s3401 + $0x1c] sm:$0xf]
      %v3408 = vld [vmem:[%s3401 + $0x24] sm:$0xf]
      %v3409 = vld [vmem:[%s3401 + $0x28] sm:$0xf]
      %v3410 = vld [vmem:[%s3401 + $0x30] sm:$0xf]
      %v3411 = vld [vmem:[%s3401 + $0x34] sm:$0xf]
      %v3412 = vld [vmem:[%s3401 + $0x3c] sm:$0xf]
      %v3413 = vld [vmem:[%s3401 + $0x40] sm:$0xf]
      %v3414 = vld [vmem:[%s3401 + $0x48] sm:$0xf]
      %v3415 = vld [vmem:[%s3401 + $0x4c] sm:$0xf]
      %v3416 = vld [vmem:[%s3401 + $0x54] sm:$0xf]
      %v3417 = vld [vmem:[%s3401 + $0x58] sm:$0xf]
      %v3418 = vld [vmem:[%s3401 + $0x60] sm:$0xf]
      %v3419 = vld [vmem:[%s3401 + $0x64] sm:$0xf]
      %v3420 = vld [vmem:[%s3401 + $0x6c] sm:$0xf]
      %v3421 = vld [vmem:[%s3401 + $0x70] sm:$0xf]
      %v3422 = vld [vmem:[%s3401 + $0x78] sm:$0xf]
      %v3423 = vld [vmem:[%s3401 + $0x7c] sm:$0xf]
      %v3424 = vld [vmem:[%s3401 + $0x84] sm:$0xf]
      %v3425 = vld [vmem:[%s3401 + $0x88] sm:$0xf]
      %v3426 = vld [vmem:[%s3401 + $0x90] sm:$0xf]
      %v3427 = vld [vmem:[%s3401 + $0x94] sm:$0xf]
      %v3428 = vld [vmem:[%s3401 + $0x9c] sm:$0xf]
      %v3429 = vld [vmem:[%s3401 + $0xa0] sm:$0xf]
      %v3430 = vld [vmem:[%s3401 + $0xa8] sm:$0xf]
      %v3431 = vld [vmem:[%s3401 + $0xac] sm:$0xf]
      %v3432 = vld [vmem:[%s3401 + $0xb4] sm:$0xf]
      %v3433 = vld [vmem:[%s3401 + $0xb8] sm:$0xf]
      %s3434 = scalar_lea.vmem %s2, 6
      %v3435 = vld [vmem:[%s3434] sm:$0x3]
      %v3468 = vunpack.c.l.b16 %v3369
      %v3469 = vunpack.c.l.b16 %v3370
      %v3470 = vunpack.c.l.b16 %v3371
      %v3471 = vunpack.c.l.b16 %v3372
      %v3472 = vunpack.c.l.b16 %v3373
      %v3473 = vunpack.c.l.b16 %v3374
      %v3474 = vunpack.c.l.b16 %v3375
      %v3475 = vunpack.c.l.b16 %v3376
      %v3476 = vunpack.c.l.b16 %v3377
      %v3477 = vunpack.c.l.b16 %v3378
      %v3478 = vunpack.c.l.b16 %v3379
      %v3479 = vunpack.c.l.b16 %v3380
      %v3480 = vunpack.c.l.b16 %v3381
      %v3481 = vunpack.c.l.b16 %v3382
      %v3482 = vunpack.c.l.b16 %v3383
      %v3483 = vunpack.c.l.b16 %v3384
      %v3484 = vunpack.c.l.b16 %v3385
      %v3485 = vunpack.c.l.b16 %v3386
      %v3486 = vunpack.c.l.b16 %v3387
      %v3487 = vunpack.c.l.b16 %v3388
      %v3488 = vunpack.c.l.b16 %v3389
      %v3489 = vunpack.c.l.b16 %v3390
      %v3490 = vunpack.c.l.b16 %v3391
      %v3491 = vunpack.c.l.b16 %v3392
      %v3492 = vunpack.c.l.b16 %v3393
      %v3493 = vunpack.c.l.b16 %v3394
      %v3494 = vunpack.c.l.b16 %v3395
      %v3495 = vunpack.c.l.b16 %v3396
      %v3496 = vunpack.c.l.b16 %v3397
      %v3497 = vunpack.c.l.b16 %v3398
      %v3498 = vunpack.c.l.b16 %v3399
      %v3499 = vunpack.c.l.b16 %v3400
      %v3500 = vpack.c.b16 %v3469, %v3468
      %v3501 = vpack.c.b16 %v3471, %v3470
      %v3502 = vpack.c.b16 %v3473, %v3472
      %v3503 = vpack.c.b16 %v3475, %v3474
      %v3504 = vpack.c.b16 %v3477, %v3476
      %v3505 = vpack.c.b16 %v3479, %v3478
      %v3506 = vpack.c.b16 %v3481, %v3480
      %v3507 = vpack.c.b16 %v3483, %v3482
      %v3508 = vpack.c.b16 %v3485, %v3484
      %v3509 = vpack.c.b16 %v3487, %v3486
      %v3510 = vpack.c.b16 %v3489, %v3488
      %v3511 = vpack.c.b16 %v3491, %v3490
      %v3512 = vpack.c.b16 %v3493, %v3492
      %v3513 = vpack.c.b16 %v3495, %v3494
      %v3514 = vpack.c.b16 %v3497, %v3496
      %v3515 = vpack.c.b16 %v3499, %v3498
      %v3517 = vsel %vm399, %v3500, 0
      %v3520 = vsel %vm399, %v3501, 0
      %v3523 = vsel %vm399, %v3502, 0
      %v3526 = vsel %vm399, %v3503, 0
      %v3529 = vsel %vm399, %v3504, 0
      %v3532 = vsel %vm399, %v3505, 0
      %v3535 = vsel %vm399, %v3506, 0
      %v3538 = vsel %vm399, %v3507, 0
      %v3541 = vsel %vm399, %v3508, 0
      %v3544 = vsel %vm399, %v3509, 0
      %v3547 = vsel %vm399, %v3510, 0
      %v3550 = vsel %vm399, %v3511, 0
      %v3553 = vsel %vm399, %v3512, 0
      %v3556 = vsel %vm399, %v3513, 0
      %v3559 = vsel %vm399, %v3514, 0
      %v3562 = vsel %vm399, %v3515, 0
      %v3565 = vsel %vm448, %v3435, 0
      %3567 = vmatprep.subr.bf16.mxu0 0
      %3568 = vmatpush1.bf16.msra.mxu0 %v3565
      %3569 = vmatprep.subr.bf16.mxu0 0
      %3570 = vmatpush1.bf16.msra.mxu0 0
      %3571 = vmatprep.subr.bf16.mxu0 0
      %3572 = vmatpush1.bf16.msra.mxu0 0
      %3573 = vmatprep.subr.bf16.mxu0 0
      %3574 = vmatpush1.bf16.msra.mxu0 0
      %3575 = vmatprep.subr.bf16.mxu0 0
      %3576 = vmatpush1.bf16.msra.mxu0 0
      %3577 = vmatprep.subr.bf16.mxu0 0
      %3578 = vmatpush1.bf16.msra.mxu0 0
      %3579 = vmatprep.subr.bf16.mxu0 0
      %3580 = vmatpush1.bf16.msra.mxu0 0
      %3581 = vmatprep.subr.bf16.mxu0 0
      %3582 = vmatpush1.bf16.msra.mxu0 0
      %3583 = vmatprep.subr.bf16.mxu0 0
      %3584 = vmatpush1.bf16.msra.mxu0 0
      %3585 = vmatprep.subr.bf16.mxu0 0
      %3586 = vmatpush1.bf16.msra.mxu0 0
      %3587 = vmatprep.subr.bf16.mxu0 0
      %3588 = vmatpush1.bf16.msra.mxu0 0
      %3589 = vmatprep.subr.bf16.mxu0 0
      %3590 = vmatpush1.bf16.msra.mxu0 0
      %3591 = vmatprep.subr.bf16.mxu0 0
      %3592 = vmatpush1.bf16.msra.mxu0 0
      %3593 = vmatprep.subr.bf16.mxu0 0
      %3594 = vmatpush1.bf16.msra.mxu0 0
      %3595 = vmatprep.subr.bf16.mxu0 0
      %3596 = vmatpush1.bf16.msra.mxu0 0
      %3597 = vmatprep.subr.bf16.mxu0 0
      %3598 = vmatpush1.bf16.msra.mxu0 0
      %3599 = vmatprep.mubr.bf16.mxu0 0
      %3600 = vmatmul.mubr.bf16.gmra.mrb[0].mxu0 %v3517
      %v3601 = vpop.f32.mrb[0].mxu0
      %v3602 = vadd.f32 0.0, %v3601
      %v3603 = vpop.f32.mrb[0].mxu0
      %v3604 = vpop.f32.mrb[0].mxu0
      %v3605 = vadd.f32 0.0, %v3604
      %v3606 = vpop.f32.mrb[0].mxu0
      %3607 = vmatprep.mubr.bf16.mxu0 0
      %3608 = vmatmul.mubr.bf16.gmra.mrb[0].mxu0 %v3520
      %v3609 = vpop.f32.mrb[0].mxu0
      %v3610 = vadd.f32 0.0, %v3609
      %v3611 = vpop.f32.mrb[0].mxu0
      %v3612 = vpop.f32.mrb[0].mxu0
      %v3613 = vadd.f32 0.0, %v3612
      %v3614 = vpop.f32.mrb[0].mxu0
      %3615 = vmatprep.mubr.bf16.mxu0 0
      %3616 = vmatmul.mubr.bf16.gmra.mrb[0].mxu0 %v3523
      %v3617 = vpop.f32.mrb[0].mxu0
      %v3618 = vadd.f32 0.0, %v3617
      %v3619 = vpop.f32.mrb[0].mxu0
      %v3620 = vpop.f32.mrb[0].mxu0
      %v3621 = vadd.f32 0.0, %v3620
      %v3622 = vpop.f32.mrb[0].mxu0
      %3623 = vmatprep.mubr.bf16.mxu0 0
      %3624 = vmatmul.mubr.bf16.gmra.mrb[0].mxu0 %v3526
      %v3625 = vpop.f32.mrb[0].mxu0
      %v3626 = vadd.f32 0.0, %v3625
      %v3627 = vpop.f32.mrb[0].mxu0
      %v3628 = vpop.f32.mrb[0].mxu0
      %v3629 = vadd.f32 0.0, %v3628
      %v3630 = vpop.f32.mrb[0].mxu0
      %3631 = vmatprep.mubr.bf16.mxu0 0
      %3632 = vmatmul.mubr.bf16.gmra.mrb[0].mxu0 %v3529
      %v3633 = vpop.f32.mrb[0].mxu0
      %v3634 = vadd.f32 0.0, %v3633
      %v3635 = vpop.f32.mrb[0].mxu0
      %v3636 = vpop.f32.mrb[0].mxu0
      %v3637 = vadd.f32 0.0, %v3636
      %v3638 = vpop.f32.mrb[0].mxu0
      %3639 = vmatprep.mubr.bf16.mxu0 0
      %3640 = vmatmul.mubr.bf16.gmra.mrb[0].mxu0 %v3532
      %v3641 = vpop.f32.mrb[0].mxu0
      %v3642 = vadd.f32 0.0, %v3641
      %v3643 = vpop.f32.mrb[0].mxu0
      %v3644 = vpop.f32.mrb[0].mxu0
      %v3645 = vadd.f32 0.0, %v3644
      %v3646 = vpop.f32.mrb[0].mxu0
      %3647 = vmatprep.mubr.bf16.mxu0 0
      %3648 = vmatmul.mubr.bf16.gmra.mrb[0].mxu0 %v3535
      %v3649 = vpop.f32.mrb[0].mxu0
      %v3650 = vadd.f32 0.0, %v3649
      %v3651 = vpop.f32.mrb[0].mxu0
      %v3652 = vpop.f32.mrb[0].mxu0
      %v3653 = vadd.f32 0.0, %v3652
      %v3654 = vpop.f32.mrb[0].mxu0
      %3655 = vmatprep.mubr.bf16.mxu0 0
      %3656 = vmatmul.mubr.bf16.gmra.mrb[0].mxu0 %v3538
      %v3657 = vpop.f32.mrb[0].mxu0
      %v3658 = vadd.f32 0.0, %v3657
      %v3659 = vpop.f32.mrb[0].mxu0
      %v3660 = vpop.f32.mrb[0].mxu0
      %v3661 = vadd.f32 0.0, %v3660
      %v3662 = vpop.f32.mrb[0].mxu0
      %3663 = vmatprep.mubr.bf16.mxu0 0
      %3664 = vmatmul.mubr.bf16.gmra.mrb[0].mxu0 %v3541
      %v3665 = vpop.f32.mrb[0].mxu0
      %v3666 = vadd.f32 0.0, %v3665
      %v3667 = vpop.f32.mrb[0].mxu0
      %v3668 = vpop.f32.mrb[0].mxu0
      %v3669 = vadd.f32 0.0, %v3668
      %v3670 = vpop.f32.mrb[0].mxu0
      %3671 = vmatprep.mubr.bf16.mxu0 0
      %3672 = vmatmul.mubr.bf16.gmra.mrb[0].mxu0 %v3544
      %v3673 = vpop.f32.mrb[0].mxu0
      %v3674 = vadd.f32 0.0, %v3673
      %v3675 = vpop.f32.mrb[0].mxu0
      %v3676 = vpop.f32.mrb[0].mxu0
      %v3677 = vadd.f32 0.0, %v3676
      %v3678 = vpop.f32.mrb[0].mxu0
      %3679 = vmatprep.mubr.bf16.mxu0 0
      %3680 = vmatmul.mubr.bf16.gmra.mrb[0].mxu0 %v3547
      %v3681 = vpop.f32.mrb[0].mxu0
      %v3682 = vadd.f32 0.0, %v3681
      %v3683 = vpop.f32.mrb[0].mxu0
      %v3684 = vpop.f32.mrb[0].mxu0
      %v3685 = vadd.f32 0.0, %v3684
      %v3686 = vpop.f32.mrb[0].mxu0
      %3687 = vmatprep.mubr.bf16.mxu0 0
      %3688 = vmatmul.mubr.bf16.gmra.mrb[0].mxu0 %v3550
      %v3689 = vpop.f32.mrb[0].mxu0
      %v3690 = vadd.f32 0.0, %v3689
      %v3691 = vpop.f32.mrb[0].mxu0
      %v3692 = vpop.f32.mrb[0].mxu0
      %v3693 = vadd.f32 0.0, %v3692
      %v3694 = vpop.f32.mrb[0].mxu0
      %3695 = vmatprep.mubr.bf16.mxu0 0
      %3696 = vmatmul.mubr.bf16.gmra.mrb[0].mxu0 %v3553
      %v3697 = vpop.f32.mrb[0].mxu0
      %v3698 = vadd.f32 0.0, %v3697
      %v3699 = vpop.f32.mrb[0].mxu0
      %v3700 = vpop.f32.mrb[0].mxu0
      %v3701 = vadd.f32 0.0, %v3700
      %v3702 = vpop.f32.mrb[0].mxu0
      %3703 = vmatprep.mubr.bf16.mxu0 0
      %3704 = vmatmul.mubr.bf16.gmra.mrb[0].mxu0 %v3556
      %v3705 = vpop.f32.mrb[0].mxu0
      %v3706 = vadd.f32 0.0, %v3705
      %v3707 = vpop.f32.mrb[0].mxu0
      %v3708 = vpop.f32.mrb[0].mxu0
      %v3709 = vadd.f32 0.0, %v3708
      %v3710 = vpop.f32.mrb[0].mxu0
      %3711 = vmatprep.mubr.bf16.mxu0 0
      %3712 = vmatmul.mubr.bf16.gmra.mrb[0].mxu0 %v3559
      %v3713 = vpop.f32.mrb[0].mxu0
      %v3714 = vadd.f32 0.0, %v3713
      %v3715 = vpop.f32.mrb[0].mxu0
      %v3716 = vpop.f32.mrb[0].mxu0
      %v3717 = vadd.f32 0.0, %v3716
      %v3718 = vpop.f32.mrb[0].mxu0
      %3719 = vmatprep.mubr.bf16.mxu0 0
      %3720 = vmatmul.mubr.bf16.gmra.mrb[0].mxu0 %v3562
      %v3721 = vpop.f32.mrb[0].mxu0
      %v3722 = vadd.f32 0.0, %v3721
      %v3723 = vpop.f32.mrb[0].mxu0
      %v3724 = vpop.f32.mrb[0].mxu0
      %v3725 = vadd.f32 0.0, %v3724
      %v3726 = vpop.f32.mrb[0].mxu0
      %3727 = vdwg.mxu0
      %v3728 = vadd.f32 %v3336, %v3602
      %v3729 = vadd.f32 %v3337, %v3605
      %v3730 = vadd.f32 %v3338, %v3610
      %v3731 = vadd.f32 %v3339, %v3613
      %v3732 = vadd.f32 %v3340, %v3618
      %v3733 = vadd.f32 %v3341, %v3621
      %v3734 = vadd.f32 %v3342, %v3626
      %v3735 = vadd.f32 %v3343, %v3629
      %v3736 = vadd.f32 %v3344, %v3634
      %v3737 = vadd.f32 %v3345, %v3637
      %v3738 = vadd.f32 %v3346, %v3642
      %v3739 = vadd.f32 %v3347, %v3645
      %v3740 = vadd.f32 %v3348, %v3650
      %v3741 = vadd.f32 %v3349, %v3653
      %v3742 = vadd.f32 %v3350, %v3658
      %v3743 = vadd.f32 %v3351, %v3661
      %v3744 = vadd.f32 %v3352, %v3666
      %v3745 = vadd.f32 %v3353, %v3669
      %v3746 = vadd.f32 %v3354, %v3674
      %v3747 = vadd.f32 %v3355, %v3677
      %v3748 = vadd.f32 %v3356, %v3682
      %v3749 = vadd.f32 %v3357, %v3685
      %v3750 = vadd.f32 %v3358, %v3690
      %v3751 = vadd.f32 %v3359, %v3693
      %v3752 = vadd.f32 %v3360, %v3698
      %v3753 = vadd.f32 %v3361, %v3701
      %v3754 = vadd.f32 %v3362, %v3706
      %v3755 = vadd.f32 %v3363, %v3709
      %v3756 = vadd.f32 %v3364, %v3714
      %v3757 = vadd.f32 %v3365, %v3717
      %v3758 = vadd.f32 %v3366, %v3722
      %v3759 = vadd.f32 %v3367, %v3725
      %s3760 = scalar_lea.vmem %s3, 6
      %v3761 = vld [vmem:[%s3760] sm:$0x3]
      %v3794 = vunpack.c.l.b16 %v3402
      %v3795 = vunpack.c.l.b16 %v3403
      %v3796 = vunpack.c.l.b16 %v3404
      %v3797 = vunpack.c.l.b16 %v3405
      %v3798 = vunpack.c.l.b16 %v3406
      %v3799 = vunpack.c.l.b16 %v3407
      %v3800 = vunpack.c.l.b16 %v3408
      %v3801 = vunpack.c.l.b16 %v3409
      %v3802 = vunpack.c.l.b16 %v3410
      %v3803 = vunpack.c.l.b16 %v3411
      %v3804 = vunpack.c.l.b16 %v3412
      %v3805 = vunpack.c.l.b16 %v3413
      %v3806 = vunpack.c.l.b16 %v3414
      %v3807 = vunpack.c.l.b16 %v3415
      %v3808 = vunpack.c.l.b16 %v3416
      %v3809 = vunpack.c.l.b16 %v3417
      %v3810 = vunpack.c.l.b16 %v3418
      %v3811 = vunpack.c.l.b16 %v3419
      %v3812 = vunpack.c.l.b16 %v3420
      %v3813 = vunpack.c.l.b16 %v3421
      %v3814 = vunpack.c.l.b16 %v3422
      %v3815 = vunpack.c.l.b16 %v3423
      %v3816 = vunpack.c.l.b16 %v3424
      %v3817 = vunpack.c.l.b16 %v3425
      %v3818 = vunpack.c.l.b16 %v3426
      %v3819 = vunpack.c.l.b16 %v3427
      %v3820 = vunpack.c.l.b16 %v3428
      %v3821 = vunpack.c.l.b16 %v3429
      %v3822 = vunpack.c.l.b16 %v3430
      %v3823 = vunpack.c.l.b16 %v3431
      %v3824 = vunpack.c.l.b16 %v3432
      %v3825 = vunpack.c.l.b16 %v3433
      %v3826 = vpack.c.b16 %v3795, %v3794
      %v3827 = vpack.c.b16 %v3797, %v3796
      %v3828 = vpack.c.b16 %v3799, %v3798
      %v3829 = vpack.c.b16 %v3801, %v3800
      %v3830 = vpack.c.b16 %v3803, %v3802
      %v3831 = vpack.c.b16 %v3805, %v3804
      %v3832 = vpack.c.b16 %v3807, %v3806
      %v3833 = vpack.c.b16 %v3809, %v3808
      %v3834 = vpack.c.b16 %v3811, %v3810
      %v3835 = vpack.c.b16 %v3813, %v3812
      %v3836 = vpack.c.b16 %v3815, %v3814
      %v3837 = vpack.c.b16 %v3817, %v3816
      %v3838 = vpack.c.b16 %v3819, %v3818
      %v3839 = vpack.c.b16 %v3821, %v3820
      %v3840 = vpack.c.b16 %v3823, %v3822
      %v3841 = vpack.c.b16 %v3825, %v3824
      %v3843 = vsel %vm399, %v3826, 0
      %v3846 = vsel %vm399, %v3827, 0
      %v3849 = vsel %vm399, %v3828, 0
      %v3852 = vsel %vm399, %v3829, 0
      %v3855 = vsel %vm399, %v3830, 0
      %v3858 = vsel %vm399, %v3831, 0
      %v3861 = vsel %vm399, %v3832, 0
      %v3864 = vsel %vm399, %v3833, 0
      %v3867 = vsel %vm399, %v3834, 0
      %v3870 = vsel %vm399, %v3835, 0
      %v3873 = vsel %vm399, %v3836, 0
      %v3876 = vsel %vm399, %v3837, 0
      %v3879 = vsel %vm399, %v3838, 0
      %v3882 = vsel %vm399, %v3839, 0
      %v3885 = vsel %vm399, %v3840, 0
      %v3888 = vsel %vm399, %v3841, 0
      %v3891 = vsel %vm448, %v3761, 0
      %3893 = vmatprep.subr.bf16.mxu0 0
      %3894 = vmatpush1.bf16.msra.mxu0 %v3891
      %3895 = vmatprep.subr.bf16.mxu0 0
      %3896 = vmatpush1.bf16.msra.mxu0 0
      %3897 = vmatprep.subr.bf16.mxu0 0
      %3898 = vmatpush1.bf16.msra.mxu0 0
      %3899 = vmatprep.subr.bf16.mxu0 0
      %3900 = vmatpush1.bf16.msra.mxu0 0
      %3901 = vmatprep.subr.bf16.mxu0 0
      %3902 = vmatpush1.bf16.msra.mxu0 0
      %3903 = vmatprep.subr.bf16.mxu0 0
      %3904 = vmatpush1.bf16.msra.mxu0 0
      %3905 = vmatprep.subr.bf16.mxu0 0
      %3906 = vmatpush1.bf16.msra.mxu0 0
      %3907 = vmatprep.subr.bf16.mxu0 0
      %3908 = vmatpush1.bf16.msra.mxu0 0
      %3909 = vmatprep.subr.bf16.mxu0 0
      %3910 = vmatpush1.bf16.msra.mxu0 0
      %3911 = vmatprep.subr.bf16.mxu0 0
      %3912 = vmatpush1.bf16.msra.mxu0 0
      %3913 = vmatprep.subr.bf16.mxu0 0
      %3914 = vmatpush1.bf16.msra.mxu0 0
      %3915 = vmatprep.subr.bf16.mxu0 0
      %3916 = vmatpush1.bf16.msra.mxu0 0
      %3917 = vmatprep.subr.bf16.mxu0 0
      %3918 = vmatpush1.bf16.msra.mxu0 0
      %3919 = vmatprep.subr.bf16.mxu0 0
      %3920 = vmatpush1.bf16.msra.mxu0 0
      %3921 = vmatprep.subr.bf16.mxu0 0
      %3922 = vmatpush1.bf16.msra.mxu0 0
      %3923 = vmatprep.subr.bf16.mxu0 0
      %3924 = vmatpush1.bf16.msra.mxu0 0
      %3925 = vmatprep.mubr.bf16.mxu0 0
      %3926 = vmatmul.mubr.bf16.gmra.mrb[0].mxu0 %v3843
      %v3927 = vpop.f32.mrb[0].mxu0
      %v3928 = vadd.f32 0.0, %v3927
      %v3929 = vpop.f32.mrb[0].mxu0
      %v3930 = vpop.f32.mrb[0].mxu0
      %v3931 = vadd.f32 0.0, %v3930
      %v3932 = vpop.f32.mrb[0].mxu0
      %3933 = vmatprep.mubr.bf16.mxu0 0
      %3934 = vmatmul.mubr.bf16.gmra.mrb[0].mxu0 %v3846
      %v3935 = vpop.f32.mrb[0].mxu0
      %v3936 = vadd.f32 0.0, %v3935
      %v3937 = vpop.f32.mrb[0].mxu0
      %v3938 = vpop.f32.mrb[0].mxu0
      %v3939 = vadd.f32 0.0, %v3938
      %v3940 = vpop.f32.mrb[0].mxu0
      %3941 = vmatprep.mubr.bf16.mxu0 0
      %3942 = vmatmul.mubr.bf16.gmra.mrb[0].mxu0 %v3849
      %v3943 = vpop.f32.mrb[0].mxu0
      %v3944 = vadd.f32 0.0, %v3943
      %v3945 = vpop.f32.mrb[0].mxu0
      %v3946 = vpop.f32.mrb[0].mxu0
      %v3947 = vadd.f32 0.0, %v3946
      %v3948 = vpop.f32.mrb[0].mxu0
      %3949 = vmatprep.mubr.bf16.mxu0 0
      %3950 = vmatmul.mubr.bf16.gmra.mrb[0].mxu0 %v3852
      %v3951 = vpop.f32.mrb[0].mxu0
      %v3952 = vadd.f32 0.0, %v3951
      %v3953 = vpop.f32.mrb[0].mxu0
      %v3954 = vpop.f32.mrb[0].mxu0
      %v3955 = vadd.f32 0.0, %v3954
      %v3956 = vpop.f32.mrb[0].mxu0
      %3957 = vmatprep.mubr.bf16.mxu0 0
      %3958 = vmatmul.mubr.bf16.gmra.mrb[0].mxu0 %v3855
      %v3959 = vpop.f32.mrb[0].mxu0
      %v3960 = vadd.f32 0.0, %v3959
      %v3961 = vpop.f32.mrb[0].mxu0
      %v3962 = vpop.f32.mrb[0].mxu0
      %v3963 = vadd.f32 0.0, %v3962
      %v3964 = vpop.f32.mrb[0].mxu0
      %3965 = vmatprep.mubr.bf16.mxu0 0
      %3966 = vmatmul.mubr.bf16.gmra.mrb[0].mxu0 %v3858
      %v3967 = vpop.f32.mrb[0].mxu0
      %v3968 = vadd.f32 0.0, %v3967
      %v3969 = vpop.f32.mrb[0].mxu0
      %v3970 = vpop.f32.mrb[0].mxu0
      %v3971 = vadd.f32 0.0, %v3970
      %v3972 = vpop.f32.mrb[0].mxu0
      %3973 = vmatprep.mubr.bf16.mxu0 0
      %3974 = vmatmul.mubr.bf16.gmra.mrb[0].mxu0 %v3861
      %v3975 = vpop.f32.mrb[0].mxu0
      %v3976 = vadd.f32 0.0, %v3975
      %v3977 = vpop.f32.mrb[0].mxu0
      %v3978 = vpop.f32.mrb[0].mxu0
      %v3979 = vadd.f32 0.0, %v3978
      %v3980 = vpop.f32.mrb[0].mxu0
      %3981 = vmatprep.mubr.bf16.mxu0 0
      %3982 = vmatmul.mubr.bf16.gmra.mrb[0].mxu0 %v3864
      %v3983 = vpop.f32.mrb[0].mxu0
      %v3984 = vadd.f32 0.0, %v3983
      %v3985 = vpop.f32.mrb[0].mxu0
      %v3986 = vpop.f32.mrb[0].mxu0
      %v3987 = vadd.f32 0.0, %v3986
      %v3988 = vpop.f32.mrb[0].mxu0
      %3989 = vmatprep.mubr.bf16.mxu0 0
      %3990 = vmatmul.mubr.bf16.gmra.mrb[0].mxu0 %v3867
      %v3991 = vpop.f32.mrb[0].mxu0
      %v3992 = vadd.f32 0.0, %v3991
      %v3993 = vpop.f32.mrb[0].mxu0
      %v3994 = vpop.f32.mrb[0].mxu0
      %v3995 = vadd.f32 0.0, %v3994
      %v3996 = vpop.f32.mrb[0].mxu0
      %3997 = vmatprep.mubr.bf16.mxu0 0
      %3998 = vmatmul.mubr.bf16.gmra.mrb[0].mxu0 %v3870
      %v3999 = vpop.f32.mrb[0].mxu0
      %v4000 = vadd.f32 0.0, %v3999
      %v4001 = vpop.f32.mrb[0].mxu0
      %v4002 = vpop.f32.mrb[0].mxu0
      %v4003 = vadd.f32 0.0, %v4002
      %v4004 = vpop.f32.mrb[0].mxu0
      %4005 = vmatprep.mubr.bf16.mxu0 0
      %4006 = vmatmul.mubr.bf16.gmra.mrb[0].mxu0 %v3873
      %v4007 = vpop.f32.mrb[0].mxu0
      %v4008 = vadd.f32 0.0, %v4007
      %v4009 = vpop.f32.mrb[0].mxu0
      %v4010 = vpop.f32.mrb[0].mxu0
      %v4011 = vadd.f32 0.0, %v4010
      %v4012 = vpop.f32.mrb[0].mxu0
      %4013 = vmatprep.mubr.bf16.mxu0 0
      %4014 = vmatmul.mubr.bf16.gmra.mrb[0].mxu0 %v3876
      %v4015 = vpop.f32.mrb[0].mxu0
      %v4016 = vadd.f32 0.0, %v4015
      %v4017 = vpop.f32.mrb[0].mxu0
      %v4018 = vpop.f32.mrb[0].mxu0
      %v4019 = vadd.f32 0.0, %v4018
      %v4020 = vpop.f32.mrb[0].mxu0
      %4021 = vmatprep.mubr.bf16.mxu0 0
      %4022 = vmatmul.mubr.bf16.gmra.mrb[0].mxu0 %v3879
      %v4023 = vpop.f32.mrb[0].mxu0
      %v4024 = vadd.f32 0.0, %v4023
      %v4025 = vpop.f32.mrb[0].mxu0
      %v4026 = vpop.f32.mrb[0].mxu0
      %v4027 = vadd.f32 0.0, %v4026
      %v4028 = vpop.f32.mrb[0].mxu0
      %4029 = vmatprep.mubr.bf16.mxu0 0
      %4030 = vmatmul.mubr.bf16.gmra.mrb[0].mxu0 %v3882
      %v4031 = vpop.f32.mrb[0].mxu0
      %v4032 = vadd.f32 0.0, %v4031
      %v4033 = vpop.f32.mrb[0].mxu0
      %v4034 = vpop.f32.mrb[0].mxu0
      %v4035 = vadd.f32 0.0, %v4034
      %v4036 = vpop.f32.mrb[0].mxu0
      %4037 = vmatprep.mubr.bf16.mxu0 0
      %4038 = vmatmul.mubr.bf16.gmra.mrb[0].mxu0 %v3885
      %v4039 = vpop.f32.mrb[0].mxu0
      %v4040 = vadd.f32 0.0, %v4039
      %v4041 = vpop.f32.mrb[0].mxu0
      %v4042 = vpop.f32.mrb[0].mxu0
      %v4043 = vadd.f32 0.0, %v4042
      %v4044 = vpop.f32.mrb[0].mxu0
      %4045 = vmatprep.mubr.bf16.mxu0 0
      %4046 = vmatmul.mubr.bf16.gmra.mrb[0].mxu0 %v3888
      %v4047 = vpop.f32.mrb[0].mxu0
      %v4048 = vadd.f32 0.0, %v4047
      %v4049 = vpop.f32.mrb[0].mxu0
      %v4050 = vpop.f32.mrb[0].mxu0
      %v4051 = vadd.f32 0.0, %v4050
      %v4052 = vpop.f32.mrb[0].mxu0
      %4053 = vdwg.mxu0
      %v4054 = vadd.f32 %v3728, %v3928
      %v4055 = vadd.f32 %v3729, %v3931
      %v4056 = vadd.f32 %v3730, %v3936
      %v4057 = vadd.f32 %v3731, %v3939
      %v4058 = vadd.f32 %v3732, %v3944
      %v4059 = vadd.f32 %v3733, %v3947
      %v4060 = vadd.f32 %v3734, %v3952
      %v4061 = vadd.f32 %v3735, %v3955
      %v4062 = vadd.f32 %v3736, %v3960
      %v4063 = vadd.f32 %v3737, %v3963
      %v4064 = vadd.f32 %v3738, %v3968
      %v4065 = vadd.f32 %v3739, %v3971
      %v4066 = vadd.f32 %v3740, %v3976
      %v4067 = vadd.f32 %v3741, %v3979
      %v4068 = vadd.f32 %v3742, %v3984
      %v4069 = vadd.f32 %v3743, %v3987
      %v4070 = vadd.f32 %v3744, %v3992
      %v4071 = vadd.f32 %v3745, %v3995
      %v4072 = vadd.f32 %v3746, %v4000
      %v4073 = vadd.f32 %v3747, %v4003
      %v4074 = vadd.f32 %v3748, %v4008
      %v4075 = vadd.f32 %v3749, %v4011
      %v4076 = vadd.f32 %v3750, %v4016
      %v4077 = vadd.f32 %v3751, %v4019
      %v4078 = vadd.f32 %v3752, %v4024
      %v4079 = vadd.f32 %v3753, %v4027
      %v4080 = vadd.f32 %v3754, %v4032
      %v4081 = vadd.f32 %v3755, %v4035
      %v4082 = vadd.f32 %v3756, %v4040
      %v4083 = vadd.f32 %v3757, %v4043
      %v4084 = vadd.f32 %v3758, %v4048
      %v4085 = vadd.f32 %v3759, %v4051
      %v4086 = vld [vmem:[%s3368] sm:$0xf]
      %v4087 = vld [vmem:[%s3368 + $0x4] sm:$0xf]
      %v4088 = vld [vmem:[%s3368 + $0x8] sm:$0x1]
      %v4089 = vld [vmem:[%s3368 + $0xc] sm:$0xf]
      %v4090 = vld [vmem:[%s3368 + $0x10] sm:$0xf]
      %v4091 = vld [vmem:[%s3368 + $0x14] sm:$0x1]
      %v4092 = vld [vmem:[%s3368 + $0x18] sm:$0xf]
      %v4093 = vld [vmem:[%s3368 + $0x1c] sm:$0xf]
      %v4094 = vld [vmem:[%s3368 + $0x20] sm:$0x1]
      %v4095 = vld [vmem:[%s3368 + $0x24] sm:$0xf]
      %v4096 = vld [vmem:[%s3368 + $0x28] sm:$0xf]
      %v4097 = vld [vmem:[%s3368 + $0x2c] sm:$0x1]
      %v4098 = vld [vmem:[%s3368 + $0x30] sm:$0xf]
      %v4099 = vld [vmem:[%s3368 + $0x34] sm:$0xf]
      %v4100 = vld [vmem:[%s3368 + $0x38] sm:$0x1]
      %v4101 = vld [vmem:[%s3368 + $0x3c] sm:$0xf]
      %v4102 = vld [vmem:[%s3368 + $0x40] sm:$0xf]
      %v4103 = vld [vmem:[%s3368 + $0x44] sm:$0x1]
      %v4104 = vld [vmem:[%s3368 + $0x48] sm:$0xf]
      %v4105 = vld [vmem:[%s3368 + $0x4c] sm:$0xf]
      %v4106 = vld [vmem:[%s3368 + $0x50] sm:$0x1]
      %v4107 = vld [vmem:[%s3368 + $0x54] sm:$0xf]
      %v4108 = vld [vmem:[%s3368 + $0x58] sm:$0xf]
      %v4109 = vld [vmem:[%s3368 + $0x5c] sm:$0x1]
      %v4110 = vld [vmem:[%s3368 + $0x60] sm:$0xf]
      %v4111 = vld [vmem:[%s3368 + $0x64] sm:$0xf]
      %v4112 = vld [vmem:[%s3368 + $0x68] sm:$0x1]
      %v4113 = vld [vmem:[%s3368 + $0x6c] sm:$0xf]
      %v4114 = vld [vmem:[%s3368 + $0x70] sm:$0xf]
      %v4115 = vld [vmem:[%s3368 + $0x74] sm:$0x1]
      %v4116 = vld [vmem:[%s3368 + $0x78] sm:$0xf]
      %v4117 = vld [vmem:[%s3368 + $0x7c] sm:$0xf]
      %v4118 = vld [vmem:[%s3368 + $0x80] sm:$0x1]
      %v4119 = vld [vmem:[%s3368 + $0x84] sm:$0xf]
      %v4120 = vld [vmem:[%s3368 + $0x88] sm:$0xf]
      %v4121 = vld [vmem:[%s3368 + $0x8c] sm:$0x1]
      %v4122 = vld [vmem:[%s3368 + $0x90] sm:$0xf]
      %v4123 = vld [vmem:[%s3368 + $0x94] sm:$0xf]
      %v4124 = vld [vmem:[%s3368 + $0x98] sm:$0x1]
      %v4125 = vld [vmem:[%s3368 + $0x9c] sm:$0xf]
      %v4126 = vld [vmem:[%s3368 + $0xa0] sm:$0xf]
      %v4127 = vld [vmem:[%s3368 + $0xa4] sm:$0x1]
      %v4128 = vld [vmem:[%s3368 + $0xa8] sm:$0xf]
      %v4129 = vld [vmem:[%s3368 + $0xac] sm:$0xf]
      %v4130 = vld [vmem:[%s3368 + $0xb0] sm:$0x1]
      %v4131 = vld [vmem:[%s3368 + $0xb4] sm:$0xf]
      %v4132 = vld [vmem:[%s3368 + $0xb8] sm:$0xf]
      %v4133 = vld [vmem:[%s3368 + $0xbc] sm:$0x1]
      %v4135 = vshrl.u32 %v4086, 16
      %v4137 = vrot.slane %v4135, 4
      %v4138 = vshll.u32 %v4086, 16
      %v4140 = vrot.slane %v4138, 5
      %v4141 = vor.u32 %v4137, %v4140
      %v4142 = vrot.slane %v4141, 4
      %v4144 = vshll.u32 %v4087, 16
      %v4146 = vrot.slane %v4144, 5
      %v4147 = vsel %vm1020, %v4142, %v4146
      %v4148 = vshrl.u32 %v4087, 16
      %v4150 = vrot.slane %v4148, 4
      %v4151 = vor.u32 %v4150, %v4146
      %v4152 = vrot.slane %v4151, 4
      %v4154 = vshll.u32 %v4088, 16
      %v4156 = vrot.slane %v4154, 5
      %v4157 = vsel %vm1020, %v4152, %v4156
      %v4159 = vshrl.u32 %v4089, 16
      %v4161 = vrot.slane %v4159, 4
      %v4162 = vshll.u32 %v4089, 16
      %v4164 = vrot.slane %v4162, 5
      %v4165 = vor.u32 %v4161, %v4164
      %v4166 = vrot.slane %v4165, 4
      %v4168 = vshll.u32 %v4090, 16
      %v4170 = vrot.slane %v4168, 5
      %v4171 = vsel %vm1020, %v4166, %v4170
      %v4172 = vshrl.u32 %v4090, 16
      %v4174 = vrot.slane %v4172, 4
      %v4175 = vor.u32 %v4174, %v4170
      %v4176 = vrot.slane %v4175, 4
      %v4178 = vshll.u32 %v4091, 16
      %v4180 = vrot.slane %v4178, 5
      %v4181 = vsel %vm1020, %v4176, %v4180
      %v4183 = vshrl.u32 %v4092, 16
      %v4185 = vrot.slane %v4183, 4
      %v4186 = vshll.u32 %v4092, 16
      %v4188 = vrot.slane %v4186, 5
      %v4189 = vor.u32 %v4185, %v4188
      %v4190 = vrot.slane %v4189, 4
      %v4192 = vshll.u32 %v4093, 16
      %v4194 = vrot.slane %v4192, 5
      %v4195 = vsel %vm1020, %v4190, %v4194
      %v4196 = vshrl.u32 %v4093, 16
      %v4198 = vrot.slane %v4196, 4
      %v4199 = vor.u32 %v4198, %v4194
      %v4200 = vrot.slane %v4199, 4
      %v4202 = vshll.u32 %v4094, 16
      %v4204 = vrot.slane %v4202, 5
      %v4205 = vsel %vm1020, %v4200, %v4204
      %v4207 = vshrl.u32 %v4095, 16
      %v4209 = vrot.slane %v4207, 4
      %v4210 = vshll.u32 %v4095, 16
      %v4212 = vrot.slane %v4210, 5
      %v4213 = vor.u32 %v4209, %v4212
      %v4214 = vrot.slane %v4213, 4
      %v4216 = vshll.u32 %v4096, 16
      %v4218 = vrot.slane %v4216, 5
      %v4219 = vsel %vm1020, %v4214, %v4218
      %v4220 = vshrl.u32 %v4096, 16
      %v4222 = vrot.slane %v4220, 4
      %v4223 = vor.u32 %v4222, %v4218
      %v4224 = vrot.slane %v4223, 4
      %v4226 = vshll.u32 %v4097, 16
      %v4228 = vrot.slane %v4226, 5
      %v4229 = vsel %vm1020, %v4224, %v4228
      %v4231 = vshrl.u32 %v4098, 16
      %v4233 = vrot.slane %v4231, 4
      %v4234 = vshll.u32 %v4098, 16
      %v4236 = vrot.slane %v4234, 5
      %v4237 = vor.u32 %v4233, %v4236
      %v4238 = vrot.slane %v4237, 4
      %v4240 = vshll.u32 %v4099, 16
      %v4242 = vrot.slane %v4240, 5
      %v4243 = vsel %vm1020, %v4238, %v4242
      %v4244 = vshrl.u32 %v4099, 16
      %v4246 = vrot.slane %v4244, 4
      %v4247 = vor.u32 %v4246, %v4242
      %v4248 = vrot.slane %v4247, 4
      %v4250 = vshll.u32 %v4100, 16
      %v4252 = vrot.slane %v4250, 5
      %v4253 = vsel %vm1020, %v4248, %v4252
      %v4255 = vshrl.u32 %v4101, 16
      %v4257 = vrot.slane %v4255, 4
      %v4258 = vshll.u32 %v4101, 16
      %v4260 = vrot.slane %v4258, 5
      %v4261 = vor.u32 %v4257, %v4260
      %v4262 = vrot.slane %v4261, 4
      %v4264 = vshll.u32 %v4102, 16
      %v4266 = vrot.slane %v4264, 5
      %v4267 = vsel %vm1020, %v4262, %v4266
      %v4268 = vshrl.u32 %v4102, 16
      %v4270 = vrot.slane %v4268, 4
      %v4271 = vor.u32 %v4270, %v4266
      %v4272 = vrot.slane %v4271, 4
      %v4274 = vshll.u32 %v4103, 16
      %v4276 = vrot.slane %v4274, 5
      %v4277 = vsel %vm1020, %v4272, %v4276
      %v4279 = vshrl.u32 %v4104, 16
      %v4281 = vrot.slane %v4279, 4
      %v4282 = vshll.u32 %v4104, 16
      %v4284 = vrot.slane %v4282, 5
      %v4285 = vor.u32 %v4281, %v4284
      %v4286 = vrot.slane %v4285, 4
      %v4288 = vshll.u32 %v4105, 16
      %v4290 = vrot.slane %v4288, 5
      %v4291 = vsel %vm1020, %v4286, %v4290
      %v4292 = vshrl.u32 %v4105, 16
      %v4294 = vrot.slane %v4292, 4
      %v4295 = vor.u32 %v4294, %v4290
      %v4296 = vrot.slane %v4295, 4
      %v4298 = vshll.u32 %v4106, 16
      %v4300 = vrot.slane %v4298, 5
      %v4301 = vsel %vm1020, %v4296, %v4300
      %v4303 = vshrl.u32 %v4107, 16
      %v4305 = vrot.slane %v4303, 4
      %v4306 = vshll.u32 %v4107, 16
      %v4308 = vrot.slane %v4306, 5
      %v4309 = vor.u32 %v4305, %v4308
      %v4310 = vrot.slane %v4309, 4
      %v4312 = vshll.u32 %v4108, 16
      %v4314 = vrot.slane %v4312, 5
      %v4315 = vsel %vm1020, %v4310, %v4314
      %v4316 = vshrl.u32 %v4108, 16
      %v4318 = vrot.slane %v4316, 4
      %v4319 = vor.u32 %v4318, %v4314
      %v4320 = vrot.slane %v4319, 4
      %v4322 = vshll.u32 %v4109, 16
      %v4324 = vrot.slane %v4322, 5
      %v4325 = vsel %vm1020, %v4320, %v4324
      %v4327 = vshrl.u32 %v4110, 16
      %v4329 = vrot.slane %v4327, 4
      %v4330 = vshll.u32 %v4110, 16
      %v4332 = vrot.slane %v4330, 5
      %v4333 = vor.u32 %v4329, %v4332
      %v4334 = vrot.slane %v4333, 4
      %v4336 = vshll.u32 %v4111, 16
      %v4338 = vrot.slane %v4336, 5
      %v4339 = vsel %vm1020, %v4334, %v4338
      %v4340 = vshrl.u32 %v4111, 16
      %v4342 = vrot.slane %v4340, 4
      %v4343 = vor.u32 %v4342, %v4338
      %v4344 = vrot.slane %v4343, 4
      %v4346 = vshll.u32 %v4112, 16
      %v4348 = vrot.slane %v4346, 5
      %v4349 = vsel %vm1020, %v4344, %v4348
      %v4351 = vshrl.u32 %v4113, 16
      %v4353 = vrot.slane %v4351, 4
      %v4354 = vshll.u32 %v4113, 16
      %v4356 = vrot.slane %v4354, 5
      %v4357 = vor.u32 %v4353, %v4356
      %v4358 = vrot.slane %v4357, 4
      %v4360 = vshll.u32 %v4114, 16
      %v4362 = vrot.slane %v4360, 5
      %v4363 = vsel %vm1020, %v4358, %v4362
      %v4364 = vshrl.u32 %v4114, 16
      %v4366 = vrot.slane %v4364, 4
      %v4367 = vor.u32 %v4366, %v4362
      %v4368 = vrot.slane %v4367, 4
      %v4370 = vshll.u32 %v4115, 16
      %v4372 = vrot.slane %v4370, 5
      %v4373 = vsel %vm1020, %v4368, %v4372
      %v4375 = vshrl.u32 %v4116, 16
      %v4377 = vrot.slane %v4375, 4
      %v4378 = vshll.u32 %v4116, 16
      %v4380 = vrot.slane %v4378, 5
      %v4381 = vor.u32 %v4377, %v4380
      %v4382 = vrot.slane %v4381, 4
      %v4384 = vshll.u32 %v4117, 16
      %v4386 = vrot.slane %v4384, 5
      %v4387 = vsel %vm1020, %v4382, %v4386
      %v4388 = vshrl.u32 %v4117, 16
      %v4390 = vrot.slane %v4388, 4
      %v4391 = vor.u32 %v4390, %v4386
      %v4392 = vrot.slane %v4391, 4
      %v4394 = vshll.u32 %v4118, 16
      %v4396 = vrot.slane %v4394, 5
      %v4397 = vsel %vm1020, %v4392, %v4396
      %v4399 = vshrl.u32 %v4119, 16
      %v4401 = vrot.slane %v4399, 4
      %v4402 = vshll.u32 %v4119, 16
      %v4404 = vrot.slane %v4402, 5
      %v4405 = vor.u32 %v4401, %v4404
      %v4406 = vrot.slane %v4405, 4
      %v4408 = vshll.u32 %v4120, 16
      %v4410 = vrot.slane %v4408, 5
      %v4411 = vsel %vm1020, %v4406, %v4410
      %v4412 = vshrl.u32 %v4120, 16
      %v4414 = vrot.slane %v4412, 4
      %v4415 = vor.u32 %v4414, %v4410
      %v4416 = vrot.slane %v4415, 4
      %v4418 = vshll.u32 %v4121, 16
      %v4420 = vrot.slane %v4418, 5
      %v4421 = vsel %vm1020, %v4416, %v4420
      %v4423 = vshrl.u32 %v4122, 16
      %v4425 = vrot.slane %v4423, 4
      %v4426 = vshll.u32 %v4122, 16
      %v4428 = vrot.slane %v4426, 5
      %v4429 = vor.u32 %v4425, %v4428
      %v4430 = vrot.slane %v4429, 4
      %v4432 = vshll.u32 %v4123, 16
      %v4434 = vrot.slane %v4432, 5
      %v4435 = vsel %vm1020, %v4430, %v4434
      %v4436 = vshrl.u32 %v4123, 16
      %v4438 = vrot.slane %v4436, 4
      %v4439 = vor.u32 %v4438, %v4434
      %v4440 = vrot.slane %v4439, 4
      %v4442 = vshll.u32 %v4124, 16
      %v4444 = vrot.slane %v4442, 5
      %v4445 = vsel %vm1020, %v4440, %v4444
      %v4447 = vshrl.u32 %v4125, 16
      %v4449 = vrot.slane %v4447, 4
      %v4450 = vshll.u32 %v4125, 16
      %v4452 = vrot.slane %v4450, 5
      %v4453 = vor.u32 %v4449, %v4452
      %v4454 = vrot.slane %v4453, 4
      %v4456 = vshll.u32 %v4126, 16
      %v4458 = vrot.slane %v4456, 5
      %v4459 = vsel %vm1020, %v4454, %v4458
      %v4460 = vshrl.u32 %v4126, 16
      %v4462 = vrot.slane %v4460, 4
      %v4463 = vor.u32 %v4462, %v4458
      %v4464 = vrot.slane %v4463, 4
      %v4466 = vshll.u32 %v4127, 16
      %v4468 = vrot.slane %v4466, 5
      %v4469 = vsel %vm1020, %v4464, %v4468
      %v4471 = vshrl.u32 %v4128, 16
      %v4473 = vrot.slane %v4471, 4
      %v4474 = vshll.u32 %v4128, 16
      %v4476 = vrot.slane %v4474, 5
      %v4477 = vor.u32 %v4473, %v4476
      %v4478 = vrot.slane %v4477, 4
      %v4480 = vshll.u32 %v4129, 16
      %v4482 = vrot.slane %v4480, 5
      %v4483 = vsel %vm1020, %v4478, %v4482
      %v4484 = vshrl.u32 %v4129, 16
      %v4486 = vrot.slane %v4484, 4
      %v4487 = vor.u32 %v4486, %v4482
      %v4488 = vrot.slane %v4487, 4
      %v4490 = vshll.u32 %v4130, 16
      %v4492 = vrot.slane %v4490, 5
      %v4493 = vsel %vm1020, %v4488, %v4492
      %v4495 = vshrl.u32 %v4131, 16
      %v4497 = vrot.slane %v4495, 4
      %v4498 = vshll.u32 %v4131, 16
      %v4500 = vrot.slane %v4498, 5
      %v4501 = vor.u32 %v4497, %v4500
      %v4502 = vrot.slane %v4501, 4
      %v4504 = vshll.u32 %v4132, 16
      %v4506 = vrot.slane %v4504, 5
      %v4507 = vsel %vm1020, %v4502, %v4506
      %v4508 = vshrl.u32 %v4132, 16
      %v4510 = vrot.slane %v4508, 4
      %v4511 = vor.u32 %v4510, %v4506
      %v4512 = vrot.slane %v4511, 4
      %v4514 = vshll.u32 %v4133, 16
      %v4516 = vrot.slane %v4514, 5
      %v4517 = vsel %vm1020, %v4512, %v4516
      %v4518 = vld [vmem:[%s3401] sm:$0xf]
      %v4519 = vld [vmem:[%s3401 + $0x4] sm:$0xf]
      %v4520 = vld [vmem:[%s3401 + $0x8] sm:$0x1]
      %v4521 = vld [vmem:[%s3401 + $0xc] sm:$0xf]
      %v4522 = vld [vmem:[%s3401 + $0x10] sm:$0xf]
      %v4523 = vld [vmem:[%s3401 + $0x14] sm:$0x1]
      %v4524 = vld [vmem:[%s3401 + $0x18] sm:$0xf]
      %v4525 = vld [vmem:[%s3401 + $0x1c] sm:$0xf]
      %v4526 = vld [vmem:[%s3401 + $0x20] sm:$0x1]
      %v4527 = vld [vmem:[%s3401 + $0x24] sm:$0xf]
      %v4528 = vld [vmem:[%s3401 + $0x28] sm:$0xf]
      %v4529 = vld [vmem:[%s3401 + $0x2c] sm:$0x1]
      %v4530 = vld [vmem:[%s3401 + $0x30] sm:$0xf]
      %v4531 = vld [vmem:[%s3401 + $0x34] sm:$0xf]
      %v4532 = vld [vmem:[%s3401 + $0x38] sm:$0x1]
      %v4533 = vld [vmem:[%s3401 + $0x3c] sm:$0xf]
      %v4534 = vld [vmem:[%s3401 + $0x40] sm:$0xf]
      %v4535 = vld [vmem:[%s3401 + $0x44] sm:$0x1]
      %v4536 = vld [vmem:[%s3401 + $0x48] sm:$0xf]
      %v4537 = vld [vmem:[%s3401 + $0x4c] sm:$0xf]
      %v4538 = vld [vmem:[%s3401 + $0x50] sm:$0x1]
      %v4539 = vld [vmem:[%s3401 + $0x54] sm:$0xf]
      %v4540 = vld [vmem:[%s3401 + $0x58] sm:$0xf]
      %v4541 = vld [vmem:[%s3401 + $0x5c] sm:$0x1]
      %v4542 = vld [vmem:[%s3401 + $0x60] sm:$0xf]
      %v4543 = vld [vmem:[%s3401 + $0x64] sm:$0xf]
      %v4544 = vld [vmem:[%s3401 + $0x68] sm:$0x1]
      %v4545 = vld [vmem:[%s3401 + $0x6c] sm:$0xf]
      %v4546 = vld [vmem:[%s3401 + $0x70] sm:$0xf]
      %v4547 = vld [vmem:[%s3401 + $0x74] sm:$0x1]
      %v4548 = vld [vmem:[%s3401 + $0x78] sm:$0xf]
      %v4549 = vld [vmem:[%s3401 + $0x7c] sm:$0xf]
      %v4550 = vld [vmem:[%s3401 + $0x80] sm:$0x1]
      %v4551 = vld [vmem:[%s3401 + $0x84] sm:$0xf]
      %v4552 = vld [vmem:[%s3401 + $0x88] sm:$0xf]
      %v4553 = vld [vmem:[%s3401 + $0x8c] sm:$0x1]
      %v4554 = vld [vmem:[%s3401 + $0x90] sm:$0xf]
      %v4555 = vld [vmem:[%s3401 + $0x94] sm:$0xf]
      %v4556 = vld [vmem:[%s3401 + $0x98] sm:$0x1]
      %v4557 = vld [vmem:[%s3401 + $0x9c] sm:$0xf]
      %v4558 = vld [vmem:[%s3401 + $0xa0] sm:$0xf]
      %v4559 = vld [vmem:[%s3401 + $0xa4] sm:$0x1]
      %v4560 = vld [vmem:[%s3401 + $0xa8] sm:$0xf]
      %v4561 = vld [vmem:[%s3401 + $0xac] sm:$0xf]
      %v4562 = vld [vmem:[%s3401 + $0xb0] sm:$0x1]
      %v4563 = vld [vmem:[%s3401 + $0xb4] sm:$0xf]
      %v4564 = vld [vmem:[%s3401 + $0xb8] sm:$0xf]
      %v4565 = vld [vmem:[%s3401 + $0xbc] sm:$0x1]
      %v4567 = vshrl.u32 %v4518, 16
      %v4569 = vrot.slane %v4567, 4
      %v4570 = vshll.u32 %v4518, 16
      %v4572 = vrot.slane %v4570, 5
      %v4573 = vor.u32 %v4569, %v4572
      %v4574 = vrot.slane %v4573, 4
      %v4576 = vshll.u32 %v4519, 16
      %v4578 = vrot.slane %v4576, 5
      %v4579 = vsel %vm1020, %v4574, %v4578
      %v4580 = vshrl.u32 %v4519, 16
      %v4582 = vrot.slane %v4580, 4
      %v4583 = vor.u32 %v4582, %v4578
      %v4584 = vrot.slane %v4583, 4
      %v4586 = vshll.u32 %v4520, 16
      %v4588 = vrot.slane %v4586, 5
      %v4589 = vsel %vm1020, %v4584, %v4588
      %v4591 = vshrl.u32 %v4521, 16
      %v4593 = vrot.slane %v4591, 4
      %v4594 = vshll.u32 %v4521, 16
      %v4596 = vrot.slane %v4594, 5
      %v4597 = vor.u32 %v4593, %v4596
      %v4598 = vrot.slane %v4597, 4
      %v4600 = vshll.u32 %v4522, 16
      %v4602 = vrot.slane %v4600, 5
      %v4603 = vsel %vm1020, %v4598, %v4602
      %v4604 = vshrl.u32 %v4522, 16
      %v4606 = vrot.slane %v4604, 4
      %v4607 = vor.u32 %v4606, %v4602
      %v4608 = vrot.slane %v4607, 4
      %v4610 = vshll.u32 %v4523, 16
      %v4612 = vrot.slane %v4610, 5
      %v4613 = vsel %vm1020, %v4608, %v4612
      %v4615 = vshrl.u32 %v4524, 16
      %v4617 = vrot.slane %v4615, 4
      %v4618 = vshll.u32 %v4524, 16
      %v4620 = vrot.slane %v4618, 5
      %v4621 = vor.u32 %v4617, %v4620
      %v4622 = vrot.slane %v4621, 4
      %v4624 = vshll.u32 %v4525, 16
      %v4626 = vrot.slane %v4624, 5
      %v4627 = vsel %vm1020, %v4622, %v4626
      %v4628 = vshrl.u32 %v4525, 16
      %v4630 = vrot.slane %v4628, 4
      %v4631 = vor.u32 %v4630, %v4626
      %v4632 = vrot.slane %v4631, 4
      %v4634 = vshll.u32 %v4526, 16
      %v4636 = vrot.slane %v4634, 5
      %v4637 = vsel %vm1020, %v4632, %v4636
      %v4639 = vshrl.u32 %v4527, 16
      %v4641 = vrot.slane %v4639, 4
      %v4642 = vshll.u32 %v4527, 16
      %v4644 = vrot.slane %v4642, 5
      %v4645 = vor.u32 %v4641, %v4644
      %v4646 = vrot.slane %v4645, 4
      %v4648 = vshll.u32 %v4528, 16
      %v4650 = vrot.slane %v4648, 5
      %v4651 = vsel %vm1020, %v4646, %v4650
      %v4652 = vshrl.u32 %v4528, 16
      %v4654 = vrot.slane %v4652, 4
      %v4655 = vor.u32 %v4654, %v4650
      %v4656 = vrot.slane %v4655, 4
      %v4658 = vshll.u32 %v4529, 16
      %v4660 = vrot.slane %v4658, 5
      %v4661 = vsel %vm1020, %v4656, %v4660
      %v4663 = vshrl.u32 %v4530, 16
      %v4665 = vrot.slane %v4663, 4
      %v4666 = vshll.u32 %v4530, 16
      %v4668 = vrot.slane %v4666, 5
      %v4669 = vor.u32 %v4665, %v4668
      %v4670 = vrot.slane %v4669, 4
      %v4672 = vshll.u32 %v4531, 16
      %v4674 = vrot.slane %v4672, 5
      %v4675 = vsel %vm1020, %v4670, %v4674
      %v4676 = vshrl.u32 %v4531, 16
      %v4678 = vrot.slane %v4676, 4
      %v4679 = vor.u32 %v4678, %v4674
      %v4680 = vrot.slane %v4679, 4
      %v4682 = vshll.u32 %v4532, 16
      %v4684 = vrot.slane %v4682, 5
      %v4685 = vsel %vm1020, %v4680, %v4684
      %v4687 = vshrl.u32 %v4533, 16
      %v4689 = vrot.slane %v4687, 4
      %v4690 = vshll.u32 %v4533, 16
      %v4692 = vrot.slane %v4690, 5
      %v4693 = vor.u32 %v4689, %v4692
      %v4694 = vrot.slane %v4693, 4
      %v4696 = vshll.u32 %v4534, 16
      %v4698 = vrot.slane %v4696, 5
      %v4699 = vsel %vm1020, %v4694, %v4698
      %v4700 = vshrl.u32 %v4534, 16
      %v4702 = vrot.slane %v4700, 4
      %v4703 = vor.u32 %v4702, %v4698
      %v4704 = vrot.slane %v4703, 4
      %v4706 = vshll.u32 %v4535, 16
      %v4708 = vrot.slane %v4706, 5
      %v4709 = vsel %vm1020, %v4704, %v4708
      %v4711 = vshrl.u32 %v4536, 16
      %v4713 = vrot.slane %v4711, 4
      %v4714 = vshll.u32 %v4536, 16
      %v4716 = vrot.slane %v4714, 5
      %v4717 = vor.u32 %v4713, %v4716
      %v4718 = vrot.slane %v4717, 4
      %v4720 = vshll.u32 %v4537, 16
      %v4722 = vrot.slane %v4720, 5
      %v4723 = vsel %vm1020, %v4718, %v4722
      %v4724 = vshrl.u32 %v4537, 16
      %v4726 = vrot.slane %v4724, 4
      %v4727 = vor.u32 %v4726, %v4722
      %v4728 = vrot.slane %v4727, 4
      %v4730 = vshll.u32 %v4538, 16
      %v4732 = vrot.slane %v4730, 5
      %v4733 = vsel %vm1020, %v4728, %v4732
      %v4735 = vshrl.u32 %v4539, 16
      %v4737 = vrot.slane %v4735, 4
      %v4738 = vshll.u32 %v4539, 16
      %v4740 = vrot.slane %v4738, 5
      %v4741 = vor.u32 %v4737, %v4740
      %v4742 = vrot.slane %v4741, 4
      %v4744 = vshll.u32 %v4540, 16
      %v4746 = vrot.slane %v4744, 5
      %v4747 = vsel %vm1020, %v4742, %v4746
      %v4748 = vshrl.u32 %v4540, 16
      %v4750 = vrot.slane %v4748, 4
      %v4751 = vor.u32 %v4750, %v4746
      %v4752 = vrot.slane %v4751, 4
      %v4754 = vshll.u32 %v4541, 16
      %v4756 = vrot.slane %v4754, 5
      %v4757 = vsel %vm1020, %v4752, %v4756
      %v4759 = vshrl.u32 %v4542, 16
      %v4761 = vrot.slane %v4759, 4
      %v4762 = vshll.u32 %v4542, 16
      %v4764 = vrot.slane %v4762, 5
      %v4765 = vor.u32 %v4761, %v4764
      %v4766 = vrot.slane %v4765, 4
      %v4768 = vshll.u32 %v4543, 16
      %v4770 = vrot.slane %v4768, 5
      %v4771 = vsel %vm1020, %v4766, %v4770
      %v4772 = vshrl.u32 %v4543, 16
      %v4774 = vrot.slane %v4772, 4
      %v4775 = vor.u32 %v4774, %v4770
      %v4776 = vrot.slane %v4775, 4
      %v4778 = vshll.u32 %v4544, 16
      %v4780 = vrot.slane %v4778, 5
      %v4781 = vsel %vm1020, %v4776, %v4780
      %v4783 = vshrl.u32 %v4545, 16
      %v4785 = vrot.slane %v4783, 4
      %v4786 = vshll.u32 %v4545, 16
      %v4788 = vrot.slane %v4786, 5
      %v4789 = vor.u32 %v4785, %v4788
      %v4790 = vrot.slane %v4789, 4
      %v4792 = vshll.u32 %v4546, 16
      %v4794 = vrot.slane %v4792, 5
      %v4795 = vsel %vm1020, %v4790, %v4794
      %v4796 = vshrl.u32 %v4546, 16
      %v4798 = vrot.slane %v4796, 4
      %v4799 = vor.u32 %v4798, %v4794
      %v4800 = vrot.slane %v4799, 4
      %v4802 = vshll.u32 %v4547, 16
      %v4804 = vrot.slane %v4802, 5
      %v4805 = vsel %vm1020, %v4800, %v4804
      %v4807 = vshrl.u32 %v4548, 16
      %v4809 = vrot.slane %v4807, 4
      %v4810 = vshll.u32 %v4548, 16
      %v4812 = vrot.slane %v4810, 5
      %v4813 = vor.u32 %v4809, %v4812
      %v4814 = vrot.slane %v4813, 4
      %v4816 = vshll.u32 %v4549, 16
      %v4818 = vrot.slane %v4816, 5
      %v4819 = vsel %vm1020, %v4814, %v4818
      %v4820 = vshrl.u32 %v4549, 16
      %v4822 = vrot.slane %v4820, 4
      %v4823 = vor.u32 %v4822, %v4818
      %v4824 = vrot.slane %v4823, 4
      %v4826 = vshll.u32 %v4550, 16
      %v4828 = vrot.slane %v4826, 5
      %v4829 = vsel %vm1020, %v4824, %v4828
      %v4831 = vshrl.u32 %v4551, 16
      %v4833 = vrot.slane %v4831, 4
      %v4834 = vshll.u32 %v4551, 16
      %v4836 = vrot.slane %v4834, 5
      %v4837 = vor.u32 %v4833, %v4836
      %v4838 = vrot.slane %v4837, 4
      %v4840 = vshll.u32 %v4552, 16
      %v4842 = vrot.slane %v4840, 5
      %v4843 = vsel %vm1020, %v4838, %v4842
      %v4844 = vshrl.u32 %v4552, 16
      %v4846 = vrot.slane %v4844, 4
      %v4847 = vor.u32 %v4846, %v4842
      %v4848 = vrot.slane %v4847, 4
      %v4850 = vshll.u32 %v4553, 16
      %v4852 = vrot.slane %v4850, 5
      %v4853 = vsel %vm1020, %v4848, %v4852
      %v4855 = vshrl.u32 %v4554, 16
      %v4857 = vrot.slane %v4855, 4
      %v4858 = vshll.u32 %v4554, 16
      %v4860 = vrot.slane %v4858, 5
      %v4861 = vor.u32 %v4857, %v4860
      %v4862 = vrot.slane %v4861, 4
      %v4864 = vshll.u32 %v4555, 16
      %v4866 = vrot.slane %v4864, 5
      %v4867 = vsel %vm1020, %v4862, %v4866
      %v4868 = vshrl.u32 %v4555, 16
      %v4870 = vrot.slane %v4868, 4
      %v4871 = vor.u32 %v4870, %v4866
      %v4872 = vrot.slane %v4871, 4
      %v4874 = vshll.u32 %v4556, 16
      %v4876 = vrot.slane %v4874, 5
      %v4877 = vsel %vm1020, %v4872, %v4876
      %v4879 = vshrl.u32 %v4557, 16
      %v4881 = vrot.slane %v4879, 4
      %v4882 = vshll.u32 %v4557, 16
      %v4884 = vrot.slane %v4882, 5
      %v4885 = vor.u32 %v4881, %v4884
      %v4886 = vrot.slane %v4885, 4
      %v4888 = vshll.u32 %v4558, 16
      %v4890 = vrot.slane %v4888, 5
      %v4891 = vsel %vm1020, %v4886, %v4890
      %v4892 = vshrl.u32 %v4558, 16
      %v4894 = vrot.slane %v4892, 4
      %v4895 = vor.u32 %v4894, %v4890
      %v4896 = vrot.slane %v4895, 4
      %v4898 = vshll.u32 %v4559, 16
      %v4900 = vrot.slane %v4898, 5
      %v4901 = vsel %vm1020, %v4896, %v4900
      %v4903 = vshrl.u32 %v4560, 16
      %v4905 = vrot.slane %v4903, 4
      %v4906 = vshll.u32 %v4560, 16
      %v4908 = vrot.slane %v4906, 5
      %v4909 = vor.u32 %v4905, %v4908
      %v4910 = vrot.slane %v4909, 4
      %v4912 = vshll.u32 %v4561, 16
      %v4914 = vrot.slane %v4912, 5
      %v4915 = vsel %vm1020, %v4910, %v4914
      %v4916 = vshrl.u32 %v4561, 16
      %v4918 = vrot.slane %v4916, 4
      %v4919 = vor.u32 %v4918, %v4914
      %v4920 = vrot.slane %v4919, 4
      %v4922 = vshll.u32 %v4562, 16
      %v4924 = vrot.slane %v4922, 5
      %v4925 = vsel %vm1020, %v4920, %v4924
      %v4927 = vshrl.u32 %v4563, 16
      %v4929 = vrot.slane %v4927, 4
      %v4930 = vshll.u32 %v4563, 16
      %v4932 = vrot.slane %v4930, 5
      %v4933 = vor.u32 %v4929, %v4932
      %v4934 = vrot.slane %v4933, 4
      %v4936 = vshll.u32 %v4564, 16
      %v4938 = vrot.slane %v4936, 5
      %v4939 = vsel %vm1020, %v4934, %v4938
      %v4940 = vshrl.u32 %v4564, 16
      %v4942 = vrot.slane %v4940, 4
      %v4943 = vor.u32 %v4942, %v4938
      %v4944 = vrot.slane %v4943, 4
      %v4946 = vshll.u32 %v4565, 16
      %v4948 = vrot.slane %v4946, 5
      %v4949 = vsel %vm1020, %v4944, %v4948
      %s4950 = scalar_lea.vmem %s2, 8
      %v4951 = vld [vmem:[%s4950] sm:$0x3]
      %v4952 = vunpack.c.l.b16 %v4147
      %v4953 = vunpack.c.l.b16 %v4157
      %v4954 = vunpack.c.l.b16 %v4171
      %v4955 = vunpack.c.l.b16 %v4181
      %v4956 = vunpack.c.l.b16 %v4195
      %v4957 = vunpack.c.l.b16 %v4205
      %v4958 = vunpack.c.l.b16 %v4219
      %v4959 = vunpack.c.l.b16 %v4229
      %v4960 = vunpack.c.l.b16 %v4243
      %v4961 = vunpack.c.l.b16 %v4253
      %v4962 = vunpack.c.l.b16 %v4267
      %v4963 = vunpack.c.l.b16 %v4277
      %v4964 = vunpack.c.l.b16 %v4291
      %v4965 = vunpack.c.l.b16 %v4301
      %v4966 = vunpack.c.l.b16 %v4315
      %v4967 = vunpack.c.l.b16 %v4325
      %v4968 = vunpack.c.l.b16 %v4339
      %v4969 = vunpack.c.l.b16 %v4349
      %v4970 = vunpack.c.l.b16 %v4363
      %v4971 = vunpack.c.l.b16 %v4373
      %v4972 = vunpack.c.l.b16 %v4387
      %v4973 = vunpack.c.l.b16 %v4397
      %v4974 = vunpack.c.l.b16 %v4411
      %v4975 = vunpack.c.l.b16 %v4421
      %v4976 = vunpack.c.l.b16 %v4435
      %v4977 = vunpack.c.l.b16 %v4445
      %v4978 = vunpack.c.l.b16 %v4459
      %v4979 = vunpack.c.l.b16 %v4469
      %v4980 = vunpack.c.l.b16 %v4483
      %v4981 = vunpack.c.l.b16 %v4493
      %v4982 = vunpack.c.l.b16 %v4507
      %v4983 = vunpack.c.l.b16 %v4517
      %v4984 = vpack.c.b16 %v4953, %v4952
      %v4985 = vpack.c.b16 %v4955, %v4954
      %v4986 = vpack.c.b16 %v4957, %v4956
      %v4987 = vpack.c.b16 %v4959, %v4958
      %v4988 = vpack.c.b16 %v4961, %v4960
      %v4989 = vpack.c.b16 %v4963, %v4962
      %v4990 = vpack.c.b16 %v4965, %v4964
      %v4991 = vpack.c.b16 %v4967, %v4966
      %v4992 = vpack.c.b16 %v4969, %v4968
      %v4993 = vpack.c.b16 %v4971, %v4970
      %v4994 = vpack.c.b16 %v4973, %v4972
      %v4995 = vpack.c.b16 %v4975, %v4974
      %v4996 = vpack.c.b16 %v4977, %v4976
      %v4997 = vpack.c.b16 %v4979, %v4978
      %v4998 = vpack.c.b16 %v4981, %v4980
      %v4999 = vpack.c.b16 %v4983, %v4982
      %v5001 = vsel %vm399, %v4984, 0
      %v5004 = vsel %vm399, %v4985, 0
      %v5007 = vsel %vm399, %v4986, 0
      %v5010 = vsel %vm399, %v4987, 0
      %v5013 = vsel %vm399, %v4988, 0
      %v5016 = vsel %vm399, %v4989, 0
      %v5019 = vsel %vm399, %v4990, 0
      %v5022 = vsel %vm399, %v4991, 0
      %v5025 = vsel %vm399, %v4992, 0
      %v5028 = vsel %vm399, %v4993, 0
      %v5031 = vsel %vm399, %v4994, 0
      %v5034 = vsel %vm399, %v4995, 0
      %v5037 = vsel %vm399, %v4996, 0
      %v5040 = vsel %vm399, %v4997, 0
      %v5043 = vsel %vm399, %v4998, 0
      %v5046 = vsel %vm399, %v4999, 0
      %v5049 = vsel %vm448, %v4951, 0
      %5051 = vmatprep.subr.bf16.mxu0 0
      %5052 = vmatpush1.bf16.msra.mxu0 %v5049
      %5053 = vmatprep.subr.bf16.mxu0 0
      %5054 = vmatpush1.bf16.msra.mxu0 0
      %5055 = vmatprep.subr.bf16.mxu0 0
      %5056 = vmatpush1.bf16.msra.mxu0 0
      %5057 = vmatprep.subr.bf16.mxu0 0
      %5058 = vmatpush1.bf16.msra.mxu0 0
      %5059 = vmatprep.subr.bf16.mxu0 0
      %5060 = vmatpush1.bf16.msra.mxu0 0
      %5061 = vmatprep.subr.bf16.mxu0 0
      %5062 = vmatpush1.bf16.msra.mxu0 0
      %5063 = vmatprep.subr.bf16.mxu0 0
      %5064 = vmatpush1.bf16.msra.mxu0 0
      %5065 = vmatprep.subr.bf16.mxu0 0
      %5066 = vmatpush1.bf16.msra.mxu0 0
      %5067 = vmatprep.subr.bf16.mxu0 0
      %5068 = vmatpush1.bf16.msra.mxu0 0
      %5069 = vmatprep.subr.bf16.mxu0 0
      %5070 = vmatpush1.bf16.msra.mxu0 0
      %5071 = vmatprep.subr.bf16.mxu0 0
      %5072 = vmatpush1.bf16.msra.mxu0 0
      %5073 = vmatprep.subr.bf16.mxu0 0
      %5074 = vmatpush1.bf16.msra.mxu0 0
      %5075 = vmatprep.subr.bf16.mxu0 0
      %5076 = vmatpush1.bf16.msra.mxu0 0
      %5077 = vmatprep.subr.bf16.mxu0 0
      %5078 = vmatpush1.bf16.msra.mxu0 0
      %5079 = vmatprep.subr.bf16.mxu0 0
      %5080 = vmatpush1.bf16.msra.mxu0 0
      %5081 = vmatprep.subr.bf16.mxu0 0
      %5082 = vmatpush1.bf16.msra.mxu0 0
      %5083 = vmatprep.mubr.bf16.mxu0 0
      %5084 = vmatmul.mubr.bf16.gmra.mrb[0].mxu0 %v5001
      %v5085 = vpop.f32.mrb[0].mxu0
      %v5086 = vadd.f32 0.0, %v5085
      %v5087 = vpop.f32.mrb[0].mxu0
      %v5088 = vpop.f32.mrb[0].mxu0
      %v5089 = vadd.f32 0.0, %v5088
      %v5090 = vpop.f32.mrb[0].mxu0
      %5091 = vmatprep.mubr.bf16.mxu0 0
      %5092 = vmatmul.mubr.bf16.gmra.mrb[0].mxu0 %v5004
      %v5093 = vpop.f32.mrb[0].mxu0
      %v5094 = vadd.f32 0.0, %v5093
      %v5095 = vpop.f32.mrb[0].mxu0
      %v5096 = vpop.f32.mrb[0].mxu0
      %v5097 = vadd.f32 0.0, %v5096
      %v5098 = vpop.f32.mrb[0].mxu0
      %5099 = vmatprep.mubr.bf16.mxu0 0
      %5100 = vmatmul.mubr.bf16.gmra.mrb[0].mxu0 %v5007
      %v5101 = vpop.f32.mrb[0].mxu0
      %v5102 = vadd.f32 0.0, %v5101
      %v5103 = vpop.f32.mrb[0].mxu0
      %v5104 = vpop.f32.mrb[0].mxu0
      %v5105 = vadd.f32 0.0, %v5104
      %v5106 = vpop.f32.mrb[0].mxu0
      %5107 = vmatprep.mubr.bf16.mxu0 0
      %5108 = vmatmul.mubr.bf16.gmra.mrb[0].mxu0 %v5010
      %v5109 = vpop.f32.mrb[0].mxu0
      %v5110 = vadd.f32 0.0, %v5109
      %v5111 = vpop.f32.mrb[0].mxu0
      %v5112 = vpop.f32.mrb[0].mxu0
      %v5113 = vadd.f32 0.0, %v5112
      %v5114 = vpop.f32.mrb[0].mxu0
      %5115 = vmatprep.mubr.bf16.mxu0 0
      %5116 = vmatmul.mubr.bf16.gmra.mrb[0].mxu0 %v5013
      %v5117 = vpop.f32.mrb[0].mxu0
      %v5118 = vadd.f32 0.0, %v5117
      %v5119 = vpop.f32.mrb[0].mxu0
      %v5120 = vpop.f32.mrb[0].mxu0
      %v5121 = vadd.f32 0.0, %v5120
      %v5122 = vpop.f32.mrb[0].mxu0
      %5123 = vmatprep.mubr.bf16.mxu0 0
      %5124 = vmatmul.mubr.bf16.gmra.mrb[0].mxu0 %v5016
      %v5125 = vpop.f32.mrb[0].mxu0
      %v5126 = vadd.f32 0.0, %v5125
      %v5127 = vpop.f32.mrb[0].mxu0
      %v5128 = vpop.f32.mrb[0].mxu0
      %v5129 = vadd.f32 0.0, %v5128
      %v5130 = vpop.f32.mrb[0].mxu0
      %5131 = vmatprep.mubr.bf16.mxu0 0
      %5132 = vmatmul.mubr.bf16.gmra.mrb[0].mxu0 %v5019
      %v5133 = vpop.f32.mrb[0].mxu0
      %v5134 = vadd.f32 0.0, %v5133
      %v5135 = vpop.f32.mrb[0].mxu0
      %v5136 = vpop.f32.mrb[0].mxu0
      %v5137 = vadd.f32 0.0, %v5136
      %v5138 = vpop.f32.mrb[0].mxu0
      %5139 = vmatprep.mubr.bf16.mxu0 0
      %5140 = vmatmul.mubr.bf16.gmra.mrb[0].mxu0 %v5022
      %v5141 = vpop.f32.mrb[0].mxu0
      %v5142 = vadd.f32 0.0, %v5141
      %v5143 = vpop.f32.mrb[0].mxu0
      %v5144 = vpop.f32.mrb[0].mxu0
      %v5145 = vadd.f32 0.0, %v5144
      %v5146 = vpop.f32.mrb[0].mxu0
      %5147 = vmatprep.mubr.bf16.mxu0 0
      %5148 = vmatmul.mubr.bf16.gmra.mrb[0].mxu0 %v5025
      %v5149 = vpop.f32.mrb[0].mxu0
      %v5150 = vadd.f32 0.0, %v5149
      %v5151 = vpop.f32.mrb[0].mxu0
      %v5152 = vpop.f32.mrb[0].mxu0
      %v5153 = vadd.f32 0.0, %v5152
      %v5154 = vpop.f32.mrb[0].mxu0
      %5155 = vmatprep.mubr.bf16.mxu0 0
      %5156 = vmatmul.mubr.bf16.gmra.mrb[0].mxu0 %v5028
      %v5157 = vpop.f32.mrb[0].mxu0
      %v5158 = vadd.f32 0.0, %v5157
      %v5159 = vpop.f32.mrb[0].mxu0
      %v5160 = vpop.f32.mrb[0].mxu0
      %v5161 = vadd.f32 0.0, %v5160
      %v5162 = vpop.f32.mrb[0].mxu0
      %5163 = vmatprep.mubr.bf16.mxu0 0
      %5164 = vmatmul.mubr.bf16.gmra.mrb[0].mxu0 %v5031
      %v5165 = vpop.f32.mrb[0].mxu0
      %v5166 = vadd.f32 0.0, %v5165
      %v5167 = vpop.f32.mrb[0].mxu0
      %v5168 = vpop.f32.mrb[0].mxu0
      %v5169 = vadd.f32 0.0, %v5168
      %v5170 = vpop.f32.mrb[0].mxu0
      %5171 = vmatprep.mubr.bf16.mxu0 0
      %5172 = vmatmul.mubr.bf16.gmra.mrb[0].mxu0 %v5034
      %v5173 = vpop.f32.mrb[0].mxu0
      %v5174 = vadd.f32 0.0, %v5173
      %v5175 = vpop.f32.mrb[0].mxu0
      %v5176 = vpop.f32.mrb[0].mxu0
      %v5177 = vadd.f32 0.0, %v5176
      %v5178 = vpop.f32.mrb[0].mxu0
      %5179 = vmatprep.mubr.bf16.mxu0 0
      %5180 = vmatmul.mubr.bf16.gmra.mrb[0].mxu0 %v5037
      %v5181 = vpop.f32.mrb[0].mxu0
      %v5182 = vadd.f32 0.0, %v5181
      %v5183 = vpop.f32.mrb[0].mxu0
      %v5184 = vpop.f32.mrb[0].mxu0
      %v5185 = vadd.f32 0.0, %v5184
      %v5186 = vpop.f32.mrb[0].mxu0
      %5187 = vmatprep.mubr.bf16.mxu0 0
      %5188 = vmatmul.mubr.bf16.gmra.mrb[0].mxu0 %v5040
      %v5189 = vpop.f32.mrb[0].mxu0
      %v5190 = vadd.f32 0.0, %v5189
      %v5191 = vpop.f32.mrb[0].mxu0
      %v5192 = vpop.f32.mrb[0].mxu0
      %v5193 = vadd.f32 0.0, %v5192
      %v5194 = vpop.f32.mrb[0].mxu0
      %5195 = vmatprep.mubr.bf16.mxu0 0
      %5196 = vmatmul.mubr.bf16.gmra.mrb[0].mxu0 %v5043
      %v5197 = vpop.f32.mrb[0].mxu0
      %v5198 = vadd.f32 0.0, %v5197
      %v5199 = vpop.f32.mrb[0].mxu0
      %v5200 = vpop.f32.mrb[0].mxu0
      %v5201 = vadd.f32 0.0, %v5200
      %v5202 = vpop.f32.mrb[0].mxu0
      %5203 = vmatprep.mubr.bf16.mxu0 0
      %5204 = vmatmul.mubr.bf16.gmra.mrb[0].mxu0 %v5046
      %v5205 = vpop.f32.mrb[0].mxu0
      %v5206 = vadd.f32 0.0, %v5205
      %v5207 = vpop.f32.mrb[0].mxu0
      %v5208 = vpop.f32.mrb[0].mxu0
      %v5209 = vadd.f32 0.0, %v5208
      %v5210 = vpop.f32.mrb[0].mxu0
      %5211 = vdwg.mxu0
      %v5212 = vadd.f32 %v4054, %v5086
      %v5213 = vadd.f32 %v4055, %v5089
      %v5214 = vadd.f32 %v4056, %v5094
      %v5215 = vadd.f32 %v4057, %v5097
      %v5216 = vadd.f32 %v4058, %v5102
      %v5217 = vadd.f32 %v4059, %v5105
      %v5218 = vadd.f32 %v4060, %v5110
      %v5219 = vadd.f32 %v4061, %v5113
      %v5220 = vadd.f32 %v4062, %v5118
      %v5221 = vadd.f32 %v4063, %v5121
      %v5222 = vadd.f32 %v4064, %v5126
      %v5223 = vadd.f32 %v4065, %v5129
      %v5224 = vadd.f32 %v4066, %v5134
      %v5225 = vadd.f32 %v4067, %v5137
      %v5226 = vadd.f32 %v4068, %v5142
      %v5227 = vadd.f32 %v4069, %v5145
      %v5228 = vadd.f32 %v4070, %v5150
      %v5229 = vadd.f32 %v4071, %v5153
      %v5230 = vadd.f32 %v4072, %v5158
      %v5231 = vadd.f32 %v4073, %v5161
      %v5232 = vadd.f32 %v4074, %v5166
      %v5233 = vadd.f32 %v4075, %v5169
      %v5234 = vadd.f32 %v4076, %v5174
      %v5235 = vadd.f32 %v4077, %v5177
      %v5236 = vadd.f32 %v4078, %v5182
      %v5237 = vadd.f32 %v4079, %v5185
      %v5238 = vadd.f32 %v4080, %v5190
      %v5239 = vadd.f32 %v4081, %v5193
      %v5240 = vadd.f32 %v4082, %v5198
      %v5241 = vadd.f32 %v4083, %v5201
      %v5242 = vadd.f32 %v4084, %v5206
      %v5243 = vadd.f32 %v4085, %v5209
      %s5244 = scalar_lea.vmem %s3, 8
      %v5245 = vld [vmem:[%s5244] sm:$0x3]
      %v5246 = vunpack.c.l.b16 %v4579
      %v5247 = vunpack.c.l.b16 %v4589
      %v5248 = vunpack.c.l.b16 %v4603
      %v5249 = vunpack.c.l.b16 %v4613
      %v5250 = vunpack.c.l.b16 %v4627
      %v5251 = vunpack.c.l.b16 %v4637
      %v5252 = vunpack.c.l.b16 %v4651
      %v5253 = vunpack.c.l.b16 %v4661
      %v5254 = vunpack.c.l.b16 %v4675
      %v5255 = vunpack.c.l.b16 %v4685
      %v5256 = vunpack.c.l.b16 %v4699
      %v5257 = vunpack.c.l.b16 %v4709
      %v5258 = vunpack.c.l.b16 %v4723
      %v5259 = vunpack.c.l.b16 %v4733
      %v5260 = vunpack.c.l.b16 %v4747
      %v5261 = vunpack.c.l.b16 %v4757
      %v5262 = vunpack.c.l.b16 %v4771
      %v5263 = vunpack.c.l.b16 %v4781
      %v5264 = vunpack.c.l.b16 %v4795
      %v5265 = vunpack.c.l.b16 %v4805
      %v5266 = vunpack.c.l.b16 %v4819
      %v5267 = vunpack.c.l.b16 %v4829
      %v5268 = vunpack.c.l.b16 %v4843
      %v5269 = vunpack.c.l.b16 %v4853
      %v5270 = vunpack.c.l.b16 %v4867
      %v5271 = vunpack.c.l.b16 %v4877
      %v5272 = vunpack.c.l.b16 %v4891
      %v5273 = vunpack.c.l.b16 %v4901
      %v5274 = vunpack.c.l.b16 %v4915
      %v5275 = vunpack.c.l.b16 %v4925
      %v5276 = vunpack.c.l.b16 %v4939
      %v5277 = vunpack.c.l.b16 %v4949
      %v5278 = vpack.c.b16 %v5247, %v5246
      %v5279 = vpack.c.b16 %v5249, %v5248
      %v5280 = vpack.c.b16 %v5251, %v5250
      %v5281 = vpack.c.b16 %v5253, %v5252
      %v5282 = vpack.c.b16 %v5255, %v5254
      %v5283 = vpack.c.b16 %v5257, %v5256
      %v5284 = vpack.c.b16 %v5259, %v5258
      %v5285 = vpack.c.b16 %v5261, %v5260
      %v5286 = vpack.c.b16 %v5263, %v5262
      %v5287 = vpack.c.b16 %v5265, %v5264
      %v5288 = vpack.c.b16 %v5267, %v5266
      %v5289 = vpack.c.b16 %v5269, %v5268
      %v5290 = vpack.c.b16 %v5271, %v5270
      %v5291 = vpack.c.b16 %v5273, %v5272
      %v5292 = vpack.c.b16 %v5275, %v5274
      %v5293 = vpack.c.b16 %v5277, %v5276
      %v5295 = vsel %vm399, %v5278, 0
      %v5298 = vsel %vm399, %v5279, 0
      %v5301 = vsel %vm399, %v5280, 0
      %v5304 = vsel %vm399, %v5281, 0
      %v5307 = vsel %vm399, %v5282, 0
      %v5310 = vsel %vm399, %v5283, 0
      %v5313 = vsel %vm399, %v5284, 0
      %v5316 = vsel %vm399, %v5285, 0
      %v5319 = vsel %vm399, %v5286, 0
      %v5322 = vsel %vm399, %v5287, 0
      %v5325 = vsel %vm399, %v5288, 0
      %v5328 = vsel %vm399, %v5289, 0
      %v5331 = vsel %vm399, %v5290, 0
      %v5334 = vsel %vm399, %v5291, 0
      %v5337 = vsel %vm399, %v5292, 0
      %v5340 = vsel %vm399, %v5293, 0
      %v5343 = vsel %vm448, %v5245, 0
      %5345 = vmatprep.subr.bf16.mxu0 0
      %5346 = vmatpush1.bf16.msra.mxu0 %v5343
      %5347 = vmatprep.subr.bf16.mxu0 0
      %5348 = vmatpush1.bf16.msra.mxu0 0
      %5349 = vmatprep.subr.bf16.mxu0 0
      %5350 = vmatpush1.bf16.msra.mxu0 0
      %5351 = vmatprep.subr.bf16.mxu0 0
      %5352 = vmatpush1.bf16.msra.mxu0 0
      %5353 = vmatprep.subr.bf16.mxu0 0
      %5354 = vmatpush1.bf16.msra.mxu0 0
      %5355 = vmatprep.subr.bf16.mxu0 0
      %5356 = vmatpush1.bf16.msra.mxu0 0
      %5357 = vmatprep.subr.bf16.mxu0 0
      %5358 = vmatpush1.bf16.msra.mxu0 0
      %5359 = vmatprep.subr.bf16.mxu0 0
      %5360 = vmatpush1.bf16.msra.mxu0 0
      %5361 = vmatprep.subr.bf16.mxu0 0
      %5362 = vmatpush1.bf16.msra.mxu0 0
      %5363 = vmatprep.subr.bf16.mxu0 0
      %5364 = vmatpush1.bf16.msra.mxu0 0
      %5365 = vmatprep.subr.bf16.mxu0 0
      %5366 = vmatpush1.bf16.msra.mxu0 0
      %5367 = vmatprep.subr.bf16.mxu0 0
      %5368 = vmatpush1.bf16.msra.mxu0 0
      %5369 = vmatprep.subr.bf16.mxu0 0
      %5370 = vmatpush1.bf16.msra.mxu0 0
      %5371 = vmatprep.subr.bf16.mxu0 0
      %5372 = vmatpush1.bf16.msra.mxu0 0
      %5373 = vmatprep.subr.bf16.mxu0 0
      %5374 = vmatpush1.bf16.msra.mxu0 0
      %5375 = vmatprep.subr.bf16.mxu0 0
      %5376 = vmatpush1.bf16.msra.mxu0 0
      %5377 = vmatprep.mubr.bf16.mxu0 0
      %5378 = vmatmul.mubr.bf16.gmra.mrb[0].mxu0 %v5295
      %v5379 = vpop.f32.mrb[0].mxu0
      %v5380 = vadd.f32 0.0, %v5379
      %v5381 = vpop.f32.mrb[0].mxu0
      %v5382 = vpop.f32.mrb[0].mxu0
      %v5383 = vadd.f32 0.0, %v5382
      %v5384 = vpop.f32.mrb[0].mxu0
      %5385 = vmatprep.mubr.bf16.mxu0 0
      %5386 = vmatmul.mubr.bf16.gmra.mrb[0].mxu0 %v5298
      %v5387 = vpop.f32.mrb[0].mxu0
      %v5388 = vadd.f32 0.0, %v5387
      %v5389 = vpop.f32.mrb[0].mxu0
      %v5390 = vpop.f32.mrb[0].mxu0
      %v5391 = vadd.f32 0.0, %v5390
      %v5392 = vpop.f32.mrb[0].mxu0
      %5393 = vmatprep.mubr.bf16.mxu0 0
      %5394 = vmatmul.mubr.bf16.gmra.mrb[0].mxu0 %v5301
      %v5395 = vpop.f32.mrb[0].mxu0
      %v5396 = vadd.f32 0.0, %v5395
      %v5397 = vpop.f32.mrb[0].mxu0
      %v5398 = vpop.f32.mrb[0].mxu0
      %v5399 = vadd.f32 0.0, %v5398
      %v5400 = vpop.f32.mrb[0].mxu0
      %5401 = vmatprep.mubr.bf16.mxu0 0
      %5402 = vmatmul.mubr.bf16.gmra.mrb[0].mxu0 %v5304
      %v5403 = vpop.f32.mrb[0].mxu0
      %v5404 = vadd.f32 0.0, %v5403
      %v5405 = vpop.f32.mrb[0].mxu0
      %v5406 = vpop.f32.mrb[0].mxu0
      %v5407 = vadd.f32 0.0, %v5406
      %v5408 = vpop.f32.mrb[0].mxu0
      %5409 = vmatprep.mubr.bf16.mxu0 0
      %5410 = vmatmul.mubr.bf16.gmra.mrb[0].mxu0 %v5307
      %v5411 = vpop.f32.mrb[0].mxu0
      %v5412 = vadd.f32 0.0, %v5411
      %v5413 = vpop.f32.mrb[0].mxu0
      %v5414 = vpop.f32.mrb[0].mxu0
      %v5415 = vadd.f32 0.0, %v5414
      %v5416 = vpop.f32.mrb[0].mxu0
      %5417 = vmatprep.mubr.bf16.mxu0 0
      %5418 = vmatmul.mubr.bf16.gmra.mrb[0].mxu0 %v5310
      %v5419 = vpop.f32.mrb[0].mxu0
      %v5420 = vadd.f32 0.0, %v5419
      %v5421 = vpop.f32.mrb[0].mxu0
      %v5422 = vpop.f32.mrb[0].mxu0
      %v5423 = vadd.f32 0.0, %v5422
      %v5424 = vpop.f32.mrb[0].mxu0
      %5425 = vmatprep.mubr.bf16.mxu0 0
      %5426 = vmatmul.mubr.bf16.gmra.mrb[0].mxu0 %v5313
      %v5427 = vpop.f32.mrb[0].mxu0
      %v5428 = vadd.f32 0.0, %v5427
      %v5429 = vpop.f32.mrb[0].mxu0
      %v5430 = vpop.f32.mrb[0].mxu0
      %v5431 = vadd.f32 0.0, %v5430
      %v5432 = vpop.f32.mrb[0].mxu0
      %5433 = vmatprep.mubr.bf16.mxu0 0
      %5434 = vmatmul.mubr.bf16.gmra.mrb[0].mxu0 %v5316
      %v5435 = vpop.f32.mrb[0].mxu0
      %v5436 = vadd.f32 0.0, %v5435
      %v5437 = vpop.f32.mrb[0].mxu0
      %v5438 = vpop.f32.mrb[0].mxu0
      %v5439 = vadd.f32 0.0, %v5438
      %v5440 = vpop.f32.mrb[0].mxu0
      %5441 = vmatprep.mubr.bf16.mxu0 0
      %5442 = vmatmul.mubr.bf16.gmra.mrb[0].mxu0 %v5319
      %v5443 = vpop.f32.mrb[0].mxu0
      %v5444 = vadd.f32 0.0, %v5443
      %v5445 = vpop.f32.mrb[0].mxu0
      %v5446 = vpop.f32.mrb[0].mxu0
      %v5447 = vadd.f32 0.0, %v5446
      %v5448 = vpop.f32.mrb[0].mxu0
      %5449 = vmatprep.mubr.bf16.mxu0 0
      %5450 = vmatmul.mubr.bf16.gmra.mrb[0].mxu0 %v5322
      %v5451 = vpop.f32.mrb[0].mxu0
      %v5452 = vadd.f32 0.0, %v5451
      %v5453 = vpop.f32.mrb[0].mxu0
      %v5454 = vpop.f32.mrb[0].mxu0
      %v5455 = vadd.f32 0.0, %v5454
      %v5456 = vpop.f32.mrb[0].mxu0
      %5457 = vmatprep.mubr.bf16.mxu0 0
      %5458 = vmatmul.mubr.bf16.gmra.mrb[0].mxu0 %v5325
      %v5459 = vpop.f32.mrb[0].mxu0
      %v5460 = vadd.f32 0.0, %v5459
      %v5461 = vpop.f32.mrb[0].mxu0
      %v5462 = vpop.f32.mrb[0].mxu0
      %v5463 = vadd.f32 0.0, %v5462
      %v5464 = vpop.f32.mrb[0].mxu0
      %5465 = vmatprep.mubr.bf16.mxu0 0
      %5466 = vmatmul.mubr.bf16.gmra.mrb[0].mxu0 %v5328
      %v5467 = vpop.f32.mrb[0].mxu0
      %v5468 = vadd.f32 0.0, %v5467
      %v5469 = vpop.f32.mrb[0].mxu0
      %v5470 = vpop.f32.mrb[0].mxu0
      %v5471 = vadd.f32 0.0, %v5470
      %v5472 = vpop.f32.mrb[0].mxu0
      %5473 = vmatprep.mubr.bf16.mxu0 0
      %5474 = vmatmul.mubr.bf16.gmra.mrb[0].mxu0 %v5331
      %v5475 = vpop.f32.mrb[0].mxu0
      %v5476 = vadd.f32 0.0, %v5475
      %v5477 = vpop.f32.mrb[0].mxu0
      %v5478 = vpop.f32.mrb[0].mxu0
      %v5479 = vadd.f32 0.0, %v5478
      %v5480 = vpop.f32.mrb[0].mxu0
      %5481 = vmatprep.mubr.bf16.mxu0 0
      %5482 = vmatmul.mubr.bf16.gmra.mrb[0].mxu0 %v5334
      %v5483 = vpop.f32.mrb[0].mxu0
      %v5484 = vadd.f32 0.0, %v5483
      %v5485 = vpop.f32.mrb[0].mxu0
      %v5486 = vpop.f32.mrb[0].mxu0
      %v5487 = vadd.f32 0.0, %v5486
      %v5488 = vpop.f32.mrb[0].mxu0
      %5489 = vmatprep.mubr.bf16.mxu0 0
      %5490 = vmatmul.mubr.bf16.gmra.mrb[0].mxu0 %v5337
      %v5491 = vpop.f32.mrb[0].mxu0
      %v5492 = vadd.f32 0.0, %v5491
      %v5493 = vpop.f32.mrb[0].mxu0
      %v5494 = vpop.f32.mrb[0].mxu0
      %v5495 = vadd.f32 0.0, %v5494
      %v5496 = vpop.f32.mrb[0].mxu0
      %5497 = vmatprep.mubr.bf16.mxu0 0
      %5498 = vmatmul.mubr.bf16.gmra.mrb[0].mxu0 %v5340
      %v5499 = vpop.f32.mrb[0].mxu0
      %v5500 = vadd.f32 0.0, %v5499
      %v5501 = vpop.f32.mrb[0].mxu0
      %v5502 = vpop.f32.mrb[0].mxu0
      %v5503 = vadd.f32 0.0, %v5502
      %v5504 = vpop.f32.mrb[0].mxu0
      %5505 = vdwg.mxu0
      %v5506 = vadd.f32 %v5212, %v5380
      %v5507 = vadd.f32 %v5213, %v5383
      %v5508 = vadd.f32 %v5214, %v5388
      %v5509 = vadd.f32 %v5215, %v5391
      %v5510 = vadd.f32 %v5216, %v5396
      %v5511 = vadd.f32 %v5217, %v5399
      %v5512 = vadd.f32 %v5218, %v5404
      %v5513 = vadd.f32 %v5219, %v5407
      %v5514 = vadd.f32 %v5220, %v5412
      %v5515 = vadd.f32 %v5221, %v5415
      %v5516 = vadd.f32 %v5222, %v5420
      %v5517 = vadd.f32 %v5223, %v5423
      %v5518 = vadd.f32 %v5224, %v5428
      %v5519 = vadd.f32 %v5225, %v5431
      %v5520 = vadd.f32 %v5226, %v5436
      %v5521 = vadd.f32 %v5227, %v5439
      %v5522 = vadd.f32 %v5228, %v5444
      %v5523 = vadd.f32 %v5229, %v5447
      %v5524 = vadd.f32 %v5230, %v5452
      %v5525 = vadd.f32 %v5231, %v5455
      %v5526 = vadd.f32 %v5232, %v5460
      %v5527 = vadd.f32 %v5233, %v5463
      %v5528 = vadd.f32 %v5234, %v5468
      %v5529 = vadd.f32 %v5235, %v5471
      %v5530 = vadd.f32 %v5236, %v5476
      %v5531 = vadd.f32 %v5237, %v5479
      %v5532 = vadd.f32 %v5238, %v5484
      %v5533 = vadd.f32 %v5239, %v5487
      %v5534 = vadd.f32 %v5240, %v5492
      %v5535 = vadd.f32 %v5241, %v5495
      %v5536 = vadd.f32 %v5242, %v5500
      %v5537 = vadd.f32 %v5243, %v5503
      %v5538 = vld [vmem:[%s3368] sm:$0xe]
      %v5539 = vld [vmem:[%s3368 + $0xc] sm:$0xe]
      %v5540 = vld [vmem:[%s3368 + $0x18] sm:$0xe]
      %v5541 = vld [vmem:[%s3368 + $0x24] sm:$0xe]
      %v5542 = vld [vmem:[%s3368 + $0x30] sm:$0xe]
      %v5543 = vld [vmem:[%s3368 + $0x3c] sm:$0xe]
      %v5544 = vld [vmem:[%s3368 + $0x48] sm:$0xe]
      %v5545 = vld [vmem:[%s3368 + $0x54] sm:$0xe]
      %v5546 = vld [vmem:[%s3368 + $0x60] sm:$0xe]
      %v5547 = vld [vmem:[%s3368 + $0x6c] sm:$0xe]
      %v5548 = vld [vmem:[%s3368 + $0x78] sm:$0xe]
      %v5549 = vld [vmem:[%s3368 + $0x84] sm:$0xe]
      %v5550 = vld [vmem:[%s3368 + $0x90] sm:$0xe]
      %v5551 = vld [vmem:[%s3368 + $0x9c] sm:$0xe]
      %v5552 = vld [vmem:[%s3368 + $0xa8] sm:$0xe]
      %v5553 = vld [vmem:[%s3368 + $0xb4] sm:$0xe]
      %v5602 = vrot.slane %v5538, 5
      %v5603 = vrot.slane %v5602, 4
      %v5604 = vrot.slane %v4087, 5
      %v5605 = vsel %vm2491, %v5603, %v5604
      %v5606 = vrot.slane %v5604, 4
      %v5607 = vrot.slane %v4088, 5
      %v5608 = vsel %vm2491, %v5606, %v5607
      %v5609 = vrot.slane %v5539, 5
      %v5610 = vrot.slane %v5609, 4
      %v5611 = vrot.slane %v4090, 5
      %v5612 = vsel %vm2491, %v5610, %v5611
      %v5613 = vrot.slane %v5611, 4
      %v5614 = vrot.slane %v4091, 5
      %v5615 = vsel %vm2491, %v5613, %v5614
      %v5616 = vrot.slane %v5540, 5
      %v5617 = vrot.slane %v5616, 4
      %v5618 = vrot.slane %v4093, 5
      %v5619 = vsel %vm2491, %v5617, %v5618
      %v5620 = vrot.slane %v5618, 4
      %v5621 = vrot.slane %v4094, 5
      %v5622 = vsel %vm2491, %v5620, %v5621
      %v5623 = vrot.slane %v5541, 5
      %v5624 = vrot.slane %v5623, 4
      %v5625 = vrot.slane %v4096, 5
      %v5626 = vsel %vm2491, %v5624, %v5625
      %v5627 = vrot.slane %v5625, 4
      %v5628 = vrot.slane %v4097, 5
      %v5629 = vsel %vm2491, %v5627, %v5628
      %v5630 = vrot.slane %v5542, 5
      %v5631 = vrot.slane %v5630, 4
      %v5632 = vrot.slane %v4099, 5
      %v5633 = vsel %vm2491, %v5631, %v5632
      %v5634 = vrot.slane %v5632, 4
      %v5635 = vrot.slane %v4100, 5
      %v5636 = vsel %vm2491, %v5634, %v5635
      %v5637 = vrot.slane %v5543, 5
      %v5638 = vrot.slane %v5637, 4
      %v5639 = vrot.slane %v4102, 5
      %v5640 = vsel %vm2491, %v5638, %v5639
      %v5641 = vrot.slane %v5639, 4
      %v5642 = vrot.slane %v4103, 5
      %v5643 = vsel %vm2491, %v5641, %v5642
      %v5644 = vrot.slane %v5544, 5
      %v5645 = vrot.slane %v5644, 4
      %v5646 = vrot.slane %v4105, 5
      %v5647 = vsel %vm2491, %v5645, %v5646
      %v5648 = vrot.slane %v5646, 4
      %v5649 = vrot.slane %v4106, 5
      %v5650 = vsel %vm2491, %v5648, %v5649
      %v5651 = vrot.slane %v5545, 5
      %v5652 = vrot.slane %v5651, 4
      %v5653 = vrot.slane %v4108, 5
      %v5654 = vsel %vm2491, %v5652, %v5653
      %v5655 = vrot.slane %v5653, 4
      %v5656 = vrot.slane %v4109, 5
      %v5657 = vsel %vm2491, %v5655, %v5656
      %v5658 = vrot.slane %v5546, 5
      %v5659 = vrot.slane %v5658, 4
      %v5660 = vrot.slane %v4111, 5
      %v5661 = vsel %vm2491, %v5659, %v5660
      %v5662 = vrot.slane %v5660, 4
      %v5663 = vrot.slane %v4112, 5
      %v5664 = vsel %vm2491, %v5662, %v5663
      %v5665 = vrot.slane %v5547, 5
      %v5666 = vrot.slane %v5665, 4
      %v5667 = vrot.slane %v4114, 5
      %v5668 = vsel %vm2491, %v5666, %v5667
      %v5669 = vrot.slane %v5667, 4
      %v5670 = vrot.slane %v4115, 5
      %v5671 = vsel %vm2491, %v5669, %v5670
      %v5672 = vrot.slane %v5548, 5
      %v5673 = vrot.slane %v5672, 4
      %v5674 = vrot.slane %v4117, 5
      %v5675 = vsel %vm2491, %v5673, %v5674
      %v5676 = vrot.slane %v5674, 4
      %v5677 = vrot.slane %v4118, 5
      %v5678 = vsel %vm2491, %v5676, %v5677
      %v5679 = vrot.slane %v5549, 5
      %v5680 = vrot.slane %v5679, 4
      %v5681 = vrot.slane %v4120, 5
      %v5682 = vsel %vm2491, %v5680, %v5681
      %v5683 = vrot.slane %v5681, 4
      %v5684 = vrot.slane %v4121, 5
      %v5685 = vsel %vm2491, %v5683, %v5684
      %v5686 = vrot.slane %v5550, 5
      %v5687 = vrot.slane %v5686, 4
      %v5688 = vrot.slane %v4123, 5
      %v5689 = vsel %vm2491, %v5687, %v5688
      %v5690 = vrot.slane %v5688, 4
      %v5691 = vrot.slane %v4124, 5
      %v5692 = vsel %vm2491, %v5690, %v5691
      %v5693 = vrot.slane %v5551, 5
      %v5694 = vrot.slane %v5693, 4
      %v5695 = vrot.slane %v4126, 5
      %v5696 = vsel %vm2491, %v5694, %v5695
      %v5697 = vrot.slane %v5695, 4
      %v5698 = vrot.slane %v4127, 5
      %v5699 = vsel %vm2491, %v5697, %v5698
      %v5700 = vrot.slane %v5552, 5
      %v5701 = vrot.slane %v5700, 4
      %v5702 = vrot.slane %v4129, 5
      %v5703 = vsel %vm2491, %v5701, %v5702
      %v5704 = vrot.slane %v5702, 4
      %v5705 = vrot.slane %v4130, 5
      %v5706 = vsel %vm2491, %v5704, %v5705
      %v5707 = vrot.slane %v5553, 5
      %v5708 = vrot.slane %v5707, 4
      %v5709 = vrot.slane %v4132, 5
      %v5710 = vsel %vm2491, %v5708, %v5709
      %v5711 = vrot.slane %v5709, 4
      %v5712 = vrot.slane %v4133, 5
      %v5713 = vsel %vm2491, %v5711, %v5712
      %v5714 = vld [vmem:[%s3401] sm:$0xe]
      %v5715 = vld [vmem:[%s3401 + $0xc] sm:$0xe]
      %v5716 = vld [vmem:[%s3401 + $0x18] sm:$0xe]
      %v5717 = vld [vmem:[%s3401 + $0x24] sm:$0xe]
      %v5718 = vld [vmem:[%s3401 + $0x30] sm:$0xe]
      %v5719 = vld [vmem:[%s3401 + $0x3c] sm:$0xe]
      %v5720 = vld [vmem:[%s3401 + $0x48] sm:$0xe]
      %v5721 = vld [vmem:[%s3401 + $0x54] sm:$0xe]
      %v5722 = vld [vmem:[%s3401 + $0x60] sm:$0xe]
      %v5723 = vld [vmem:[%s3401 + $0x6c] sm:$0xe]
      %v5724 = vld [vmem:[%s3401 + $0x78] sm:$0xe]
      %v5725 = vld [vmem:[%s3401 + $0x84] sm:$0xe]
      %v5726 = vld [vmem:[%s3401 + $0x90] sm:$0xe]
      %v5727 = vld [vmem:[%s3401 + $0x9c] sm:$0xe]
      %v5728 = vld [vmem:[%s3401 + $0xa8] sm:$0xe]
      %v5729 = vld [vmem:[%s3401 + $0xb4] sm:$0xe]
      %v5778 = vrot.slane %v5714, 5
      %v5779 = vrot.slane %v5778, 4
      %v5780 = vrot.slane %v4519, 5
      %v5781 = vsel %vm2491, %v5779, %v5780
      %v5782 = vrot.slane %v5780, 4
      %v5783 = vrot.slane %v4520, 5
      %v5784 = vsel %vm2491, %v5782, %v5783
      %v5785 = vrot.slane %v5715, 5
      %v5786 = vrot.slane %v5785, 4
      %v5787 = vrot.slane %v4522, 5
      %v5788 = vsel %vm2491, %v5786, %v5787
      %v5789 = vrot.slane %v5787, 4
      %v5790 = vrot.slane %v4523, 5
      %v5791 = vsel %vm2491, %v5789, %v5790
      %v5792 = vrot.slane %v5716, 5
      %v5793 = vrot.slane %v5792, 4
      %v5794 = vrot.slane %v4525, 5
      %v5795 = vsel %vm2491, %v5793, %v5794
      %v5796 = vrot.slane %v5794, 4
      %v5797 = vrot.slane %v4526, 5
      %v5798 = vsel %vm2491, %v5796, %v5797
      %v5799 = vrot.slane %v5717, 5
      %v5800 = vrot.slane %v5799, 4
      %v5801 = vrot.slane %v4528, 5
      %v5802 = vsel %vm2491, %v5800, %v5801
      %v5803 = vrot.slane %v5801, 4
      %v5804 = vrot.slane %v4529, 5
      %v5805 = vsel %vm2491, %v5803, %v5804
      %v5806 = vrot.slane %v5718, 5
      %v5807 = vrot.slane %v5806, 4
      %v5808 = vrot.slane %v4531, 5
      %v5809 = vsel %vm2491, %v5807, %v5808
      %v5810 = vrot.slane %v5808, 4
      %v5811 = vrot.slane %v4532, 5
      %v5812 = vsel %vm2491, %v5810, %v5811
      %v5813 = vrot.slane %v5719, 5
      %v5814 = vrot.slane %v5813, 4
      %v5815 = vrot.slane %v4534, 5
      %v5816 = vsel %vm2491, %v5814, %v5815
      %v5817 = vrot.slane %v5815, 4
      %v5818 = vrot.slane %v4535, 5
      %v5819 = vsel %vm2491, %v5817, %v5818
      %v5820 = vrot.slane %v5720, 5
      %v5821 = vrot.slane %v5820, 4
      %v5822 = vrot.slane %v4537, 5
      %v5823 = vsel %vm2491, %v5821, %v5822
      %v5824 = vrot.slane %v5822, 4
      %v5825 = vrot.slane %v4538, 5
      %v5826 = vsel %vm2491, %v5824, %v5825
      %v5827 = vrot.slane %v5721, 5
      %v5828 = vrot.slane %v5827, 4
      %v5829 = vrot.slane %v4540, 5
      %v5830 = vsel %vm2491, %v5828, %v5829
      %v5831 = vrot.slane %v5829, 4
      %v5832 = vrot.slane %v4541, 5
      %v5833 = vsel %vm2491, %v5831, %v5832
      %v5834 = vrot.slane %v5722, 5
      %v5835 = vrot.slane %v5834, 4
      %v5836 = vrot.slane %v4543, 5
      %v5837 = vsel %vm2491, %v5835, %v5836
      %v5838 = vrot.slane %v5836, 4
      %v5839 = vrot.slane %v4544, 5
      %v5840 = vsel %vm2491, %v5838, %v5839
      %v5841 = vrot.slane %v5723, 5
      %v5842 = vrot.slane %v5841, 4
      %v5843 = vrot.slane %v4546, 5
      %v5844 = vsel %vm2491, %v5842, %v5843
      %v5845 = vrot.slane %v5843, 4
      %v5846 = vrot.slane %v4547, 5
      %v5847 = vsel %vm2491, %v5845, %v5846
      %v5848 = vrot.slane %v5724, 5
      %v5849 = vrot.slane %v5848, 4
      %v5850 = vrot.slane %v4549, 5
      %v5851 = vsel %vm2491, %v5849, %v5850
      %v5852 = vrot.slane %v5850, 4
      %v5853 = vrot.slane %v4550, 5
      %v5854 = vsel %vm2491, %v5852, %v5853
      %v5855 = vrot.slane %v5725, 5
      %v5856 = vrot.slane %v5855, 4
      %v5857 = vrot.slane %v4552, 5
      %v5858 = vsel %vm2491, %v5856, %v5857
      %v5859 = vrot.slane %v5857, 4
      %v5860 = vrot.slane %v4553, 5
      %v5861 = vsel %vm2491, %v5859, %v5860
      %v5862 = vrot.slane %v5726, 5
      %v5863 = vrot.slane %v5862, 4
      %v5864 = vrot.slane %v4555, 5
      %v5865 = vsel %vm2491, %v5863, %v5864
      %v5866 = vrot.slane %v5864, 4
      %v5867 = vrot.slane %v4556, 5
      %v5868 = vsel %vm2491, %v5866, %v5867
      %v5869 = vrot.slane %v5727, 5
      %v5870 = vrot.slane %v5869, 4
      %v5871 = vrot.slane %v4558, 5
      %v5872 = vsel %vm2491, %v5870, %v5871
      %v5873 = vrot.slane %v5871, 4
      %v5874 = vrot.slane %v4559, 5
      %v5875 = vsel %vm2491, %v5873, %v5874
      %v5876 = vrot.slane %v5728, 5
      %v5877 = vrot.slane %v5876, 4
      %v5878 = vrot.slane %v4561, 5
      %v5879 = vsel %vm2491, %v5877, %v5878
      %v5880 = vrot.slane %v5878, 4
      %v5881 = vrot.slane %v4562, 5
      %v5882 = vsel %vm2491, %v5880, %v5881
      %v5883 = vrot.slane %v5729, 5
      %v5884 = vrot.slane %v5883, 4
      %v5885 = vrot.slane %v4564, 5
      %v5886 = vsel %vm2491, %v5884, %v5885
      %v5887 = vrot.slane %v5885, 4
      %v5888 = vrot.slane %v4565, 5
      %v5889 = vsel %vm2491, %v5887, %v5888
      %s5890 = scalar_lea.vmem %s2, 10
      %v5891 = vld [vmem:[%s5890] sm:$0x3]
      %v5892 = vunpack.c.l.b16 %v5605
      %v5893 = vunpack.c.l.b16 %v5608
      %v5894 = vunpack.c.l.b16 %v5612
      %v5895 = vunpack.c.l.b16 %v5615
      %v5896 = vunpack.c.l.b16 %v5619
      %v5897 = vunpack.c.l.b16 %v5622
      %v5898 = vunpack.c.l.b16 %v5626
      %v5899 = vunpack.c.l.b16 %v5629
      %v5900 = vunpack.c.l.b16 %v5633
      %v5901 = vunpack.c.l.b16 %v5636
      %v5902 = vunpack.c.l.b16 %v5640
      %v5903 = vunpack.c.l.b16 %v5643
      %v5904 = vunpack.c.l.b16 %v5647
      %v5905 = vunpack.c.l.b16 %v5650
      %v5906 = vunpack.c.l.b16 %v5654
      %v5907 = vunpack.c.l.b16 %v5657
      %v5908 = vunpack.c.l.b16 %v5661
      %v5909 = vunpack.c.l.b16 %v5664
      %v5910 = vunpack.c.l.b16 %v5668
      %v5911 = vunpack.c.l.b16 %v5671
      %v5912 = vunpack.c.l.b16 %v5675
      %v5913 = vunpack.c.l.b16 %v5678
      %v5914 = vunpack.c.l.b16 %v5682
      %v5915 = vunpack.c.l.b16 %v5685
      %v5916 = vunpack.c.l.b16 %v5689
      %v5917 = vunpack.c.l.b16 %v5692
      %v5918 = vunpack.c.l.b16 %v5696
      %v5919 = vunpack.c.l.b16 %v5699
      %v5920 = vunpack.c.l.b16 %v5703
      %v5921 = vunpack.c.l.b16 %v5706
      %v5922 = vunpack.c.l.b16 %v5710
      %v5923 = vunpack.c.l.b16 %v5713
      %v5924 = vpack.c.b16 %v5893, %v5892
      %v5925 = vpack.c.b16 %v5895, %v5894
      %v5926 = vpack.c.b16 %v5897, %v5896
      %v5927 = vpack.c.b16 %v5899, %v5898
      %v5928 = vpack.c.b16 %v5901, %v5900
      %v5929 = vpack.c.b16 %v5903, %v5902
      %v5930 = vpack.c.b16 %v5905, %v5904
      %v5931 = vpack.c.b16 %v5907, %v5906
      %v5932 = vpack.c.b16 %v5909, %v5908
      %v5933 = vpack.c.b16 %v5911, %v5910
      %v5934 = vpack.c.b16 %v5913, %v5912
      %v5935 = vpack.c.b16 %v5915, %v5914
      %v5936 = vpack.c.b16 %v5917, %v5916
      %v5937 = vpack.c.b16 %v5919, %v5918
      %v5938 = vpack.c.b16 %v5921, %v5920
      %v5939 = vpack.c.b16 %v5923, %v5922
      %v5941 = vsel %vm399, %v5924, 0
      %v5944 = vsel %vm399, %v5925, 0
      %v5947 = vsel %vm399, %v5926, 0
      %v5950 = vsel %vm399, %v5927, 0
      %v5953 = vsel %vm399, %v5928, 0
      %v5956 = vsel %vm399, %v5929, 0
      %v5959 = vsel %vm399, %v5930, 0
      %v5962 = vsel %vm399, %v5931, 0
      %v5965 = vsel %vm399, %v5932, 0
      %v5968 = vsel %vm399, %v5933, 0
      %v5971 = vsel %vm399, %v5934, 0
      %v5974 = vsel %vm399, %v5935, 0
      %v5977 = vsel %vm399, %v5936, 0
      %v5980 = vsel %vm399, %v5937, 0
      %v5983 = vsel %vm399, %v5938, 0
      %v5986 = vsel %vm399, %v5939, 0
      %v5989 = vsel %vm448, %v5891, 0
      %5991 = vmatprep.subr.bf16.mxu0 0
      %5992 = vmatpush1.bf16.msra.mxu0 %v5989
      %5993 = vmatprep.subr.bf16.mxu0 0
      %5994 = vmatpush1.bf16.msra.mxu0 0
      %5995 = vmatprep.subr.bf16.mxu0 0
      %5996 = vmatpush1.bf16.msra.mxu0 0
      %5997 = vmatprep.subr.bf16.mxu0 0
      %5998 = vmatpush1.bf16.msra.mxu0 0
      %5999 = vmatprep.subr.bf16.mxu0 0
      %6000 = vmatpush1.bf16.msra.mxu0 0
      %6001 = vmatprep.subr.bf16.mxu0 0
      %6002 = vmatpush1.bf16.msra.mxu0 0
      %6003 = vmatprep.subr.bf16.mxu0 0
      %6004 = vmatpush1.bf16.msra.mxu0 0
      %6005 = vmatprep.subr.bf16.mxu0 0
      %6006 = vmatpush1.bf16.msra.mxu0 0
      %6007 = vmatprep.subr.bf16.mxu0 0
      %6008 = vmatpush1.bf16.msra.mxu0 0
      %6009 = vmatprep.subr.bf16.mxu0 0
      %6010 = vmatpush1.bf16.msra.mxu0 0
      %6011 = vmatprep.subr.bf16.mxu0 0
      %6012 = vmatpush1.bf16.msra.mxu0 0
      %6013 = vmatprep.subr.bf16.mxu0 0
      %6014 = vmatpush1.bf16.msra.mxu0 0
      %6015 = vmatprep.subr.bf16.mxu0 0
      %6016 = vmatpush1.bf16.msra.mxu0 0
      %6017 = vmatprep.subr.bf16.mxu0 0
      %6018 = vmatpush1.bf16.msra.mxu0 0
      %6019 = vmatprep.subr.bf16.mxu0 0
      %6020 = vmatpush1.bf16.msra.mxu0 0
      %6021 = vmatprep.subr.bf16.mxu0 0
      %6022 = vmatpush1.bf16.msra.mxu0 0
      %6023 = vmatprep.mubr.bf16.mxu0 0
      %6024 = vmatmul.mubr.bf16.gmra.mrb[0].mxu0 %v5941
      %v6025 = vpop.f32.mrb[0].mxu0
      %v6026 = vadd.f32 0.0, %v6025
      %v6027 = vpop.f32.mrb[0].mxu0
      %v6028 = vpop.f32.mrb[0].mxu0
      %v6029 = vadd.f32 0.0, %v6028
      %v6030 = vpop.f32.mrb[0].mxu0
      %6031 = vmatprep.mubr.bf16.mxu0 0
      %6032 = vmatmul.mubr.bf16.gmra.mrb[0].mxu0 %v5944
      %v6033 = vpop.f32.mrb[0].mxu0
      %v6034 = vadd.f32 0.0, %v6033
      %v6035 = vpop.f32.mrb[0].mxu0
      %v6036 = vpop.f32.mrb[0].mxu0
      %v6037 = vadd.f32 0.0, %v6036
      %v6038 = vpop.f32.mrb[0].mxu0
      %6039 = vmatprep.mubr.bf16.mxu0 0
      %6040 = vmatmul.mubr.bf16.gmra.mrb[0].mxu0 %v5947
      %v6041 = vpop.f32.mrb[0].mxu0
      %v6042 = vadd.f32 0.0, %v6041
      %v6043 = vpop.f32.mrb[0].mxu0
      %v6044 = vpop.f32.mrb[0].mxu0
      %v6045 = vadd.f32 0.0, %v6044
      %v6046 = vpop.f32.mrb[0].mxu0
      %6047 = vmatprep.mubr.bf16.mxu0 0
      %6048 = vmatmul.mubr.bf16.gmra.mrb[0].mxu0 %v5950
      %v6049 = vpop.f32.mrb[0].mxu0
      %v6050 = vadd.f32 0.0, %v6049
      %v6051 = vpop.f32.mrb[0].mxu0
      %v6052 = vpop.f32.mrb[0].mxu0
      %v6053 = vadd.f32 0.0, %v6052
      %v6054 = vpop.f32.mrb[0].mxu0
      %6055 = vmatprep.mubr.bf16.mxu0 0
      %6056 = vmatmul.mubr.bf16.gmra.mrb[0].mxu0 %v5953
      %v6057 = vpop.f32.mrb[0].mxu0
      %v6058 = vadd.f32 0.0, %v6057
      %v6059 = vpop.f32.mrb[0].mxu0
      %v6060 = vpop.f32.mrb[0].mxu0
      %v6061 = vadd.f32 0.0, %v6060
      %v6062 = vpop.f32.mrb[0].mxu0
      %6063 = vmatprep.mubr.bf16.mxu0 0
      %6064 = vmatmul.mubr.bf16.gmra.mrb[0].mxu0 %v5956
      %v6065 = vpop.f32.mrb[0].mxu0
      %v6066 = vadd.f32 0.0, %v6065
      %v6067 = vpop.f32.mrb[0].mxu0
      %v6068 = vpop.f32.mrb[0].mxu0
      %v6069 = vadd.f32 0.0, %v6068
      %v6070 = vpop.f32.mrb[0].mxu0
      %6071 = vmatprep.mubr.bf16.mxu0 0
      %6072 = vmatmul.mubr.bf16.gmra.mrb[0].mxu0 %v5959
      %v6073 = vpop.f32.mrb[0].mxu0
      %v6074 = vadd.f32 0.0, %v6073
      %v6075 = vpop.f32.mrb[0].mxu0
      %v6076 = vpop.f32.mrb[0].mxu0
      %v6077 = vadd.f32 0.0, %v6076
      %v6078 = vpop.f32.mrb[0].mxu0
      %6079 = vmatprep.mubr.bf16.mxu0 0
      %6080 = vmatmul.mubr.bf16.gmra.mrb[0].mxu0 %v5962
      %v6081 = vpop.f32.mrb[0].mxu0
      %v6082 = vadd.f32 0.0, %v6081
      %v6083 = vpop.f32.mrb[0].mxu0
      %v6084 = vpop.f32.mrb[0].mxu0
      %v6085 = vadd.f32 0.0, %v6084
      %v6086 = vpop.f32.mrb[0].mxu0
      %6087 = vmatprep.mubr.bf16.mxu0 0
      %6088 = vmatmul.mubr.bf16.gmra.mrb[0].mxu0 %v5965
      %v6089 = vpop.f32.mrb[0].mxu0
      %v6090 = vadd.f32 0.0, %v6089
      %v6091 = vpop.f32.mrb[0].mxu0
      %v6092 = vpop.f32.mrb[0].mxu0
      %v6093 = vadd.f32 0.0, %v6092
      %v6094 = vpop.f32.mrb[0].mxu0
      %6095 = vmatprep.mubr.bf16.mxu0 0
      %6096 = vmatmul.mubr.bf16.gmra.mrb[0].mxu0 %v5968
      %v6097 = vpop.f32.mrb[0].mxu0
      %v6098 = vadd.f32 0.0, %v6097
      %v6099 = vpop.f32.mrb[0].mxu0
      %v6100 = vpop.f32.mrb[0].mxu0
      %v6101 = vadd.f32 0.0, %v6100
      %v6102 = vpop.f32.mrb[0].mxu0
      %6103 = vmatprep.mubr.bf16.mxu0 0
      %6104 = vmatmul.mubr.bf16.gmra.mrb[0].mxu0 %v5971
      %v6105 = vpop.f32.mrb[0].mxu0
      %v6106 = vadd.f32 0.0, %v6105
      %v6107 = vpop.f32.mrb[0].mxu0
      %v6108 = vpop.f32.mrb[0].mxu0
      %v6109 = vadd.f32 0.0, %v6108
      %v6110 = vpop.f32.mrb[0].mxu0
      %6111 = vmatprep.mubr.bf16.mxu0 0
      %6112 = vmatmul.mubr.bf16.gmra.mrb[0].mxu0 %v5974
      %v6113 = vpop.f32.mrb[0].mxu0
      %v6114 = vadd.f32 0.0, %v6113
      %v6115 = vpop.f32.mrb[0].mxu0
      %v6116 = vpop.f32.mrb[0].mxu0
      %v6117 = vadd.f32 0.0, %v6116
      %v6118 = vpop.f32.mrb[0].mxu0
      %6119 = vmatprep.mubr.bf16.mxu0 0
      %6120 = vmatmul.mubr.bf16.gmra.mrb[0].mxu0 %v5977
      %v6121 = vpop.f32.mrb[0].mxu0
      %v6122 = vadd.f32 0.0, %v6121
      %v6123 = vpop.f32.mrb[0].mxu0
      %v6124 = vpop.f32.mrb[0].mxu0
      %v6125 = vadd.f32 0.0, %v6124
      %v6126 = vpop.f32.mrb[0].mxu0
      %6127 = vmatprep.mubr.bf16.mxu0 0
      %6128 = vmatmul.mubr.bf16.gmra.mrb[0].mxu0 %v5980
      %v6129 = vpop.f32.mrb[0].mxu0
      %v6130 = vadd.f32 0.0, %v6129
      %v6131 = vpop.f32.mrb[0].mxu0
      %v6132 = vpop.f32.mrb[0].mxu0
      %v6133 = vadd.f32 0.0, %v6132
      %v6134 = vpop.f32.mrb[0].mxu0
      %6135 = vmatprep.mubr.bf16.mxu0 0
      %6136 = vmatmul.mubr.bf16.gmra.mrb[0].mxu0 %v5983
      %v6137 = vpop.f32.mrb[0].mxu0
      %v6138 = vadd.f32 0.0, %v6137
      %v6139 = vpop.f32.mrb[0].mxu0
      %v6140 = vpop.f32.mrb[0].mxu0
      %v6141 = vadd.f32 0.0, %v6140
      %v6142 = vpop.f32.mrb[0].mxu0
      %6143 = vmatprep.mubr.bf16.mxu0 0
      %6144 = vmatmul.mubr.bf16.gmra.mrb[0].mxu0 %v5986
      %v6145 = vpop.f32.mrb[0].mxu0
      %v6146 = vadd.f32 0.0, %v6145
      %v6147 = vpop.f32.mrb[0].mxu0
      %v6148 = vpop.f32.mrb[0].mxu0
      %v6149 = vadd.f32 0.0, %v6148
      %v6150 = vpop.f32.mrb[0].mxu0
      %6151 = vdwg.mxu0
      %v6152 = vadd.f32 %v5506, %v6026
      %v6153 = vadd.f32 %v5507, %v6029
      %v6154 = vadd.f32 %v5508, %v6034
      %v6155 = vadd.f32 %v5509, %v6037
      %v6156 = vadd.f32 %v5510, %v6042
      %v6157 = vadd.f32 %v5511, %v6045
      %v6158 = vadd.f32 %v5512, %v6050
      %v6159 = vadd.f32 %v5513, %v6053
      %v6160 = vadd.f32 %v5514, %v6058
      %v6161 = vadd.f32 %v5515, %v6061
      %v6162 = vadd.f32 %v5516, %v6066
      %v6163 = vadd.f32 %v5517, %v6069
      %v6164 = vadd.f32 %v5518, %v6074
      %v6165 = vadd.f32 %v5519, %v6077
      %v6166 = vadd.f32 %v5520, %v6082
      %v6167 = vadd.f32 %v5521, %v6085
      %v6168 = vadd.f32 %v5522, %v6090
      %v6169 = vadd.f32 %v5523, %v6093
      %v6170 = vadd.f32 %v5524, %v6098
      %v6171 = vadd.f32 %v5525, %v6101
      %v6172 = vadd.f32 %v5526, %v6106
      %v6173 = vadd.f32 %v5527, %v6109
      %v6174 = vadd.f32 %v5528, %v6114
      %v6175 = vadd.f32 %v5529, %v6117
      %v6176 = vadd.f32 %v5530, %v6122
      %v6177 = vadd.f32 %v5531, %v6125
      %v6178 = vadd.f32 %v5532, %v6130
      %v6179 = vadd.f32 %v5533, %v6133
      %v6180 = vadd.f32 %v5534, %v6138
      %v6181 = vadd.f32 %v5535, %v6141
      %v6182 = vadd.f32 %v5536, %v6146
      %v6183 = vadd.f32 %v5537, %v6149
      %s6184 = scalar_lea.vmem %s3, 10
      %v6185 = vld [vmem:[%s6184] sm:$0x3]
      %v6186 = vunpack.c.l.b16 %v5781
      %v6187 = vunpack.c.l.b16 %v5784
      %v6188 = vunpack.c.l.b16 %v5788
      %v6189 = vunpack.c.l.b16 %v5791
      %v6190 = vunpack.c.l.b16 %v5795
      %v6191 = vunpack.c.l.b16 %v5798
      %v6192 = vunpack.c.l.b16 %v5802
      %v6193 = vunpack.c.l.b16 %v5805
      %v6194 = vunpack.c.l.b16 %v5809
      %v6195 = vunpack.c.l.b16 %v5812
      %v6196 = vunpack.c.l.b16 %v5816
      %v6197 = vunpack.c.l.b16 %v5819
      %v6198 = vunpack.c.l.b16 %v5823
      %v6199 = vunpack.c.l.b16 %v5826
      %v6200 = vunpack.c.l.b16 %v5830
      %v6201 = vunpack.c.l.b16 %v5833
      %v6202 = vunpack.c.l.b16 %v5837
      %v6203 = vunpack.c.l.b16 %v5840
      %v6204 = vunpack.c.l.b16 %v5844
      %v6205 = vunpack.c.l.b16 %v5847
      %v6206 = vunpack.c.l.b16 %v5851
      %v6207 = vunpack.c.l.b16 %v5854
      %v6208 = vunpack.c.l.b16 %v5858
      %v6209 = vunpack.c.l.b16 %v5861
      %v6210 = vunpack.c.l.b16 %v5865
      %v6211 = vunpack.c.l.b16 %v5868
      %v6212 = vunpack.c.l.b16 %v5872
      %v6213 = vunpack.c.l.b16 %v5875
      %v6214 = vunpack.c.l.b16 %v5879
      %v6215 = vunpack.c.l.b16 %v5882
      %v6216 = vunpack.c.l.b16 %v5886
      %v6217 = vunpack.c.l.b16 %v5889
      %v6218 = vpack.c.b16 %v6187, %v6186
      %v6219 = vpack.c.b16 %v6189, %v6188
      %v6220 = vpack.c.b16 %v6191, %v6190
      %v6221 = vpack.c.b16 %v6193, %v6192
      %v6222 = vpack.c.b16 %v6195, %v6194
      %v6223 = vpack.c.b16 %v6197, %v6196
      %v6224 = vpack.c.b16 %v6199, %v6198
      %v6225 = vpack.c.b16 %v6201, %v6200
      %v6226 = vpack.c.b16 %v6203, %v6202
      %v6227 = vpack.c.b16 %v6205, %v6204
      %v6228 = vpack.c.b16 %v6207, %v6206
      %v6229 = vpack.c.b16 %v6209, %v6208
      %v6230 = vpack.c.b16 %v6211, %v6210
      %v6231 = vpack.c.b16 %v6213, %v6212
      %v6232 = vpack.c.b16 %v6215, %v6214
      %v6233 = vpack.c.b16 %v6217, %v6216
      %v6235 = vsel %vm399, %v6218, 0
      %v6238 = vsel %vm399, %v6219, 0
      %v6241 = vsel %vm399, %v6220, 0
      %v6244 = vsel %vm399, %v6221, 0
      %v6247 = vsel %vm399, %v6222, 0
      %v6250 = vsel %vm399, %v6223, 0
      %v6253 = vsel %vm399, %v6224, 0
      %v6256 = vsel %vm399, %v6225, 0
      %v6259 = vsel %vm399, %v6226, 0
      %v6262 = vsel %vm399, %v6227, 0
      %v6265 = vsel %vm399, %v6228, 0
      %v6268 = vsel %vm399, %v6229, 0
      %v6271 = vsel %vm399, %v6230, 0
      %v6274 = vsel %vm399, %v6231, 0
      %v6277 = vsel %vm399, %v6232, 0
      %v6280 = vsel %vm399, %v6233, 0
      %v6283 = vsel %vm448, %v6185, 0
      %6285 = vmatprep.subr.bf16.mxu0 0
      %6286 = vmatpush1.bf16.msra.mxu0 %v6283
      %6287 = vmatprep.subr.bf16.mxu0 0
      %6288 = vmatpush1.bf16.msra.mxu0 0
      %6289 = vmatprep.subr.bf16.mxu0 0
      %6290 = vmatpush1.bf16.msra.mxu0 0
      %6291 = vmatprep.subr.bf16.mxu0 0
      %6292 = vmatpush1.bf16.msra.mxu0 0
      %6293 = vmatprep.subr.bf16.mxu0 0
      %6294 = vmatpush1.bf16.msra.mxu0 0
      %6295 = vmatprep.subr.bf16.mxu0 0
      %6296 = vmatpush1.bf16.msra.mxu0 0
      %6297 = vmatprep.subr.bf16.mxu0 0
      %6298 = vmatpush1.bf16.msra.mxu0 0
      %6299 = vmatprep.subr.bf16.mxu0 0
      %6300 = vmatpush1.bf16.msra.mxu0 0
      %6301 = vmatprep.subr.bf16.mxu0 0
      %6302 = vmatpush1.bf16.msra.mxu0 0
      %6303 = vmatprep.subr.bf16.mxu0 0
      %6304 = vmatpush1.bf16.msra.mxu0 0
      %6305 = vmatprep.subr.bf16.mxu0 0
      %6306 = vmatpush1.bf16.msra.mxu0 0
      %6307 = vmatprep.subr.bf16.mxu0 0
      %6308 = vmatpush1.bf16.msra.mxu0 0
      %6309 = vmatprep.subr.bf16.mxu0 0
      %6310 = vmatpush1.bf16.msra.mxu0 0
      %6311 = vmatprep.subr.bf16.mxu0 0
      %6312 = vmatpush1.bf16.msra.mxu0 0
      %6313 = vmatprep.subr.bf16.mxu0 0
      %6314 = vmatpush1.bf16.msra.mxu0 0
      %6315 = vmatprep.subr.bf16.mxu0 0
      %6316 = vmatpush1.bf16.msra.mxu0 0
      %6317 = vmatprep.mubr.bf16.mxu0 0
      %6318 = vmatmul.mubr.bf16.gmra.mrb[0].mxu0 %v6235
      %v6319 = vpop.f32.mrb[0].mxu0
      %v6320 = vadd.f32 0.0, %v6319
      %v6321 = vpop.f32.mrb[0].mxu0
      %v6322 = vpop.f32.mrb[0].mxu0
      %v6323 = vadd.f32 0.0, %v6322
      %v6324 = vpop.f32.mrb[0].mxu0
      %6325 = vmatprep.mubr.bf16.mxu0 0
      %6326 = vmatmul.mubr.bf16.gmra.mrb[0].mxu0 %v6238
      %v6327 = vpop.f32.mrb[0].mxu0
      %v6328 = vadd.f32 0.0, %v6327
      %v6329 = vpop.f32.mrb[0].mxu0
      %v6330 = vpop.f32.mrb[0].mxu0
      %v6331 = vadd.f32 0.0, %v6330
      %v6332 = vpop.f32.mrb[0].mxu0
      %6333 = vmatprep.mubr.bf16.mxu0 0
      %6334 = vmatmul.mubr.bf16.gmra.mrb[0].mxu0 %v6241
      %v6335 = vpop.f32.mrb[0].mxu0
      %v6336 = vadd.f32 0.0, %v6335
      %v6337 = vpop.f32.mrb[0].mxu0
      %v6338 = vpop.f32.mrb[0].mxu0
      %v6339 = vadd.f32 0.0, %v6338
      %v6340 = vpop.f32.mrb[0].mxu0
      %6341 = vmatprep.mubr.bf16.mxu0 0
      %6342 = vmatmul.mubr.bf16.gmra.mrb[0].mxu0 %v6244
      %v6343 = vpop.f32.mrb[0].mxu0
      %v6344 = vadd.f32 0.0, %v6343
      %v6345 = vpop.f32.mrb[0].mxu0
      %v6346 = vpop.f32.mrb[0].mxu0
      %v6347 = vadd.f32 0.0, %v6346
      %v6348 = vpop.f32.mrb[0].mxu0
      %6349 = vmatprep.mubr.bf16.mxu0 0
      %6350 = vmatmul.mubr.bf16.gmra.mrb[0].mxu0 %v6247
      %v6351 = vpop.f32.mrb[0].mxu0
      %v6352 = vadd.f32 0.0, %v6351
      %v6353 = vpop.f32.mrb[0].mxu0
      %v6354 = vpop.f32.mrb[0].mxu0
      %v6355 = vadd.f32 0.0, %v6354
      %v6356 = vpop.f32.mrb[0].mxu0
      %6357 = vmatprep.mubr.bf16.mxu0 0
      %6358 = vmatmul.mubr.bf16.gmra.mrb[0].mxu0 %v6250
      %v6359 = vpop.f32.mrb[0].mxu0
      %v6360 = vadd.f32 0.0, %v6359
      %v6361 = vpop.f32.mrb[0].mxu0
      %v6362 = vpop.f32.mrb[0].mxu0
      %v6363 = vadd.f32 0.0, %v6362
      %v6364 = vpop.f32.mrb[0].mxu0
      %6365 = vmatprep.mubr.bf16.mxu0 0
      %6366 = vmatmul.mubr.bf16.gmra.mrb[0].mxu0 %v6253
      %v6367 = vpop.f32.mrb[0].mxu0
      %v6368 = vadd.f32 0.0, %v6367
      %v6369 = vpop.f32.mrb[0].mxu0
      %v6370 = vpop.f32.mrb[0].mxu0
      %v6371 = vadd.f32 0.0, %v6370
      %v6372 = vpop.f32.mrb[0].mxu0
      %6373 = vmatprep.mubr.bf16.mxu0 0
      %6374 = vmatmul.mubr.bf16.gmra.mrb[0].mxu0 %v6256
      %v6375 = vpop.f32.mrb[0].mxu0
      %v6376 = vadd.f32 0.0, %v6375
      %v6377 = vpop.f32.mrb[0].mxu0
      %v6378 = vpop.f32.mrb[0].mxu0
      %v6379 = vadd.f32 0.0, %v6378
      %v6380 = vpop.f32.mrb[0].mxu0
      %6381 = vmatprep.mubr.bf16.mxu0 0
      %6382 = vmatmul.mubr.bf16.gmra.mrb[0].mxu0 %v6259
      %v6383 = vpop.f32.mrb[0].mxu0
      %v6384 = vadd.f32 0.0, %v6383
      %v6385 = vpop.f32.mrb[0].mxu0
      %v6386 = vpop.f32.mrb[0].mxu0
      %v6387 = vadd.f32 0.0, %v6386
      %v6388 = vpop.f32.mrb[0].mxu0
      %6389 = vmatprep.mubr.bf16.mxu0 0
      %6390 = vmatmul.mubr.bf16.gmra.mrb[0].mxu0 %v6262
      %v6391 = vpop.f32.mrb[0].mxu0
      %v6392 = vadd.f32 0.0, %v6391
      %v6393 = vpop.f32.mrb[0].mxu0
      %v6394 = vpop.f32.mrb[0].mxu0
      %v6395 = vadd.f32 0.0, %v6394
      %v6396 = vpop.f32.mrb[0].mxu0
      %6397 = vmatprep.mubr.bf16.mxu0 0
      %6398 = vmatmul.mubr.bf16.gmra.mrb[0].mxu0 %v6265
      %v6399 = vpop.f32.mrb[0].mxu0
      %v6400 = vadd.f32 0.0, %v6399
      %v6401 = vpop.f32.mrb[0].mxu0
      %v6402 = vpop.f32.mrb[0].mxu0
      %v6403 = vadd.f32 0.0, %v6402
      %v6404 = vpop.f32.mrb[0].mxu0
      %6405 = vmatprep.mubr.bf16.mxu0 0
      %6406 = vmatmul.mubr.bf16.gmra.mrb[0].mxu0 %v6268
      %v6407 = vpop.f32.mrb[0].mxu0
      %v6408 = vadd.f32 0.0, %v6407
      %v6409 = vpop.f32.mrb[0].mxu0
      %v6410 = vpop.f32.mrb[0].mxu0
      %v6411 = vadd.f32 0.0, %v6410
      %v6412 = vpop.f32.mrb[0].mxu0
      %6413 = vmatprep.mubr.bf16.mxu0 0
      %6414 = vmatmul.mubr.bf16.gmra.mrb[0].mxu0 %v6271
      %v6415 = vpop.f32.mrb[0].mxu0
      %v6416 = vadd.f32 0.0, %v6415
      %v6417 = vpop.f32.mrb[0].mxu0
      %v6418 = vpop.f32.mrb[0].mxu0
      %v6419 = vadd.f32 0.0, %v6418
      %v6420 = vpop.f32.mrb[0].mxu0
      %6421 = vmatprep.mubr.bf16.mxu0 0
      %6422 = vmatmul.mubr.bf16.gmra.mrb[0].mxu0 %v6274
      %v6423 = vpop.f32.mrb[0].mxu0
      %v6424 = vadd.f32 0.0, %v6423
      %v6425 = vpop.f32.mrb[0].mxu0
      %v6426 = vpop.f32.mrb[0].mxu0
      %v6427 = vadd.f32 0.0, %v6426
      %v6428 = vpop.f32.mrb[0].mxu0
      %6429 = vmatprep.mubr.bf16.mxu0 0
      %6430 = vmatmul.mubr.bf16.gmra.mrb[0].mxu0 %v6277
      %v6431 = vpop.f32.mrb[0].mxu0
      %v6432 = vadd.f32 0.0, %v6431
      %v6433 = vpop.f32.mrb[0].mxu0
      %v6434 = vpop.f32.mrb[0].mxu0
      %v6435 = vadd.f32 0.0, %v6434
      %v6436 = vpop.f32.mrb[0].mxu0
      %6437 = vmatprep.mubr.bf16.mxu0 0
      %6438 = vmatmul.mubr.bf16.gmra.mrb[0].mxu0 %v6280
      %v6439 = vpop.f32.mrb[0].mxu0
      %v6440 = vadd.f32 0.0, %v6439
      %v6441 = vpop.f32.mrb[0].mxu0
      %v6442 = vpop.f32.mrb[0].mxu0
      %v6443 = vadd.f32 0.0, %v6442
      %v6444 = vpop.f32.mrb[0].mxu0
      %6445 = vdwg.mxu0
      %v6446 = vadd.f32 %v6152, %v6320
      %v6447 = vadd.f32 %v6153, %v6323
      %v6448 = vadd.f32 %v6154, %v6328
      %v6449 = vadd.f32 %v6155, %v6331
      %v6450 = vadd.f32 %v6156, %v6336
      %v6451 = vadd.f32 %v6157, %v6339
      %v6452 = vadd.f32 %v6158, %v6344
      %v6453 = vadd.f32 %v6159, %v6347
      %v6454 = vadd.f32 %v6160, %v6352
      %v6455 = vadd.f32 %v6161, %v6355
      %v6456 = vadd.f32 %v6162, %v6360
      %v6457 = vadd.f32 %v6163, %v6363
      %v6458 = vadd.f32 %v6164, %v6368
      %v6459 = vadd.f32 %v6165, %v6371
      %v6460 = vadd.f32 %v6166, %v6376
      %v6461 = vadd.f32 %v6167, %v6379
      %v6462 = vadd.f32 %v6168, %v6384
      %v6463 = vadd.f32 %v6169, %v6387
      %v6464 = vadd.f32 %v6170, %v6392
      %v6465 = vadd.f32 %v6171, %v6395
      %v6466 = vadd.f32 %v6172, %v6400
      %v6467 = vadd.f32 %v6173, %v6403
      %v6468 = vadd.f32 %v6174, %v6408
      %v6469 = vadd.f32 %v6175, %v6411
      %v6470 = vadd.f32 %v6176, %v6416
      %v6471 = vadd.f32 %v6177, %v6419
      %v6472 = vadd.f32 %v6178, %v6424
      %v6473 = vadd.f32 %v6179, %v6427
      %v6474 = vadd.f32 %v6180, %v6432
      %v6475 = vadd.f32 %v6181, %v6435
      %v6476 = vadd.f32 %v6182, %v6440
      %v6477 = vadd.f32 %v6183, %v6443
      %s6478 = scalar_lea.vmem %s234, 24
      %v6479 = vld [vmem:[%s6478] sm:$0xf]
      %v6480 = vld [vmem:[%s6478 + $0x4] sm:$0xf]
      %v6481 = vld [vmem:[%s6478 + $0xc] sm:$0xf]
      %v6482 = vld [vmem:[%s6478 + $0x10] sm:$0xf]
      %v6483 = vld [vmem:[%s6478 + $0x18] sm:$0xf]
      %v6484 = vld [vmem:[%s6478 + $0x1c] sm:$0xf]
      %v6485 = vld [vmem:[%s6478 + $0x24] sm:$0xf]
      %v6486 = vld [vmem:[%s6478 + $0x28] sm:$0xf]
      %v6487 = vld [vmem:[%s6478 + $0x30] sm:$0xf]
      %v6488 = vld [vmem:[%s6478 + $0x34] sm:$0xf]
      %v6489 = vld [vmem:[%s6478 + $0x3c] sm:$0xf]
      %v6490 = vld [vmem:[%s6478 + $0x40] sm:$0xf]
      %v6491 = vld [vmem:[%s6478 + $0x48] sm:$0xf]
      %v6492 = vld [vmem:[%s6478 + $0x4c] sm:$0xf]
      %v6493 = vld [vmem:[%s6478 + $0x54] sm:$0xf]
      %v6494 = vld [vmem:[%s6478 + $0x58] sm:$0xf]
      %v6495 = vld [vmem:[%s6478 + $0x60] sm:$0xf]
      %v6496 = vld [vmem:[%s6478 + $0x64] sm:$0xf]
      %v6497 = vld [vmem:[%s6478 + $0x6c] sm:$0xf]
      %v6498 = vld [vmem:[%s6478 + $0x70] sm:$0xf]
      %v6499 = vld [vmem:[%s6478 + $0x78] sm:$0xf]
      %v6500 = vld [vmem:[%s6478 + $0x7c] sm:$0xf]
      %v6501 = vld [vmem:[%s6478 + $0x84] sm:$0xf]
      %v6502 = vld [vmem:[%s6478 + $0x88] sm:$0xf]
      %v6503 = vld [vmem:[%s6478 + $0x90] sm:$0xf]
      %v6504 = vld [vmem:[%s6478 + $0x94] sm:$0xf]
      %v6505 = vld [vmem:[%s6478 + $0x9c] sm:$0xf]
      %v6506 = vld [vmem:[%s6478 + $0xa0] sm:$0xf]
      %v6507 = vld [vmem:[%s6478 + $0xa8] sm:$0xf]
      %v6508 = vld [vmem:[%s6478 + $0xac] sm:$0xf]
      %v6509 = vld [vmem:[%s6478 + $0xb4] sm:$0xf]
      %v6510 = vld [vmem:[%s6478 + $0xb8] sm:$0xf]
      %s6511 = scalar_lea.vmem %s239, 24
      %v6512 = vld [vmem:[%s6511] sm:$0xf]
      %v6513 = vld [vmem:[%s6511 + $0x4] sm:$0xf]
      %v6514 = vld [vmem:[%s6511 + $0xc] sm:$0xf]
      %v6515 = vld [vmem:[%s6511 + $0x10] sm:$0xf]
      %v6516 = vld [vmem:[%s6511 + $0x18] sm:$0xf]
      %v6517 = vld [vmem:[%s6511 + $0x1c] sm:$0xf]
      %v6518 = vld [vmem:[%s6511 + $0x24] sm:$0xf]
      %v6519 = vld [vmem:[%s6511 + $0x28] sm:$0xf]
      %v6520 = vld [vmem:[%s6511 + $0x30] sm:$0xf]
      %v6521 = vld [vmem:[%s6511 + $0x34] sm:$0xf]
      %v6522 = vld [vmem:[%s6511 + $0x3c] sm:$0xf]
      %v6523 = vld [vmem:[%s6511 + $0x40] sm:$0xf]
      %v6524 = vld [vmem:[%s6511 + $0x48] sm:$0xf]
      %v6525 = vld [vmem:[%s6511 + $0x4c] sm:$0xf]
      %v6526 = vld [vmem:[%s6511 + $0x54] sm:$0xf]
      %v6527 = vld [vmem:[%s6511 + $0x58] sm:$0xf]
      %v6528 = vld [vmem:[%s6511 + $0x60] sm:$0xf]
      %v6529 = vld [vmem:[%s6511 + $0x64] sm:$0xf]
      %v6530 = vld [vmem:[%s6511 + $0x6c] sm:$0xf]
      %v6531 = vld [vmem:[%s6511 + $0x70] sm:$0xf]
      %v6532 = vld [vmem:[%s6511 + $0x78] sm:$0xf]
      %v6533 = vld [vmem:[%s6511 + $0x7c] sm:$0xf]
      %v6534 = vld [vmem:[%s6511 + $0x84] sm:$0xf]
      %v6535 = vld [vmem:[%s6511 + $0x88] sm:$0xf]
      %v6536 = vld [vmem:[%s6511 + $0x90] sm:$0xf]
      %v6537 = vld [vmem:[%s6511 + $0x94] sm:$0xf]
      %v6538 = vld [vmem:[%s6511 + $0x9c] sm:$0xf]
      %v6539 = vld [vmem:[%s6511 + $0xa0] sm:$0xf]
      %v6540 = vld [vmem:[%s6511 + $0xa8] sm:$0xf]
      %v6541 = vld [vmem:[%s6511 + $0xac] sm:$0xf]
      %v6542 = vld [vmem:[%s6511 + $0xb4] sm:$0xf]
      %v6543 = vld [vmem:[%s6511 + $0xb8] sm:$0xf]
      %s6544 = scalar_lea.vmem %s2, 12
      %v6545 = vld [vmem:[%s6544] sm:$0x3]
      %v6578 = vunpack.c.l.b16 %v6479
      %v6579 = vunpack.c.l.b16 %v6480
      %v6580 = vunpack.c.l.b16 %v6481
      %v6581 = vunpack.c.l.b16 %v6482
      %v6582 = vunpack.c.l.b16 %v6483
      %v6583 = vunpack.c.l.b16 %v6484
      %v6584 = vunpack.c.l.b16 %v6485
      %v6585 = vunpack.c.l.b16 %v6486
      %v6586 = vunpack.c.l.b16 %v6487
      %v6587 = vunpack.c.l.b16 %v6488
      %v6588 = vunpack.c.l.b16 %v6489
      %v6589 = vunpack.c.l.b16 %v6490
      %v6590 = vunpack.c.l.b16 %v6491
      %v6591 = vunpack.c.l.b16 %v6492
      %v6592 = vunpack.c.l.b16 %v6493
      %v6593 = vunpack.c.l.b16 %v6494
      %v6594 = vunpack.c.l.b16 %v6495
      %v6595 = vunpack.c.l.b16 %v6496
      %v6596 = vunpack.c.l.b16 %v6497
      %v6597 = vunpack.c.l.b16 %v6498
      %v6598 = vunpack.c.l.b16 %v6499
      %v6599 = vunpack.c.l.b16 %v6500
      %v6600 = vunpack.c.l.b16 %v6501
      %v6601 = vunpack.c.l.b16 %v6502
      %v6602 = vunpack.c.l.b16 %v6503
      %v6603 = vunpack.c.l.b16 %v6504
      %v6604 = vunpack.c.l.b16 %v6505
      %v6605 = vunpack.c.l.b16 %v6506
      %v6606 = vunpack.c.l.b16 %v6507
      %v6607 = vunpack.c.l.b16 %v6508
      %v6608 = vunpack.c.l.b16 %v6509
      %v6609 = vunpack.c.l.b16 %v6510
      %v6610 = vpack.c.b16 %v6579, %v6578
      %v6611 = vpack.c.b16 %v6581, %v6580
      %v6612 = vpack.c.b16 %v6583, %v6582
      %v6613 = vpack.c.b16 %v6585, %v6584
      %v6614 = vpack.c.b16 %v6587, %v6586
      %v6615 = vpack.c.b16 %v6589, %v6588
      %v6616 = vpack.c.b16 %v6591, %v6590
      %v6617 = vpack.c.b16 %v6593, %v6592
      %v6618 = vpack.c.b16 %v6595, %v6594
      %v6619 = vpack.c.b16 %v6597, %v6596
      %v6620 = vpack.c.b16 %v6599, %v6598
      %v6621 = vpack.c.b16 %v6601, %v6600
      %v6622 = vpack.c.b16 %v6603, %v6602
      %v6623 = vpack.c.b16 %v6605, %v6604
      %v6624 = vpack.c.b16 %v6607, %v6606
      %v6625 = vpack.c.b16 %v6609, %v6608
      %v6627 = vsel %vm399, %v6610, 0
      %v6630 = vsel %vm399, %v6611, 0
      %v6633 = vsel %vm399, %v6612, 0
      %v6636 = vsel %vm399, %v6613, 0
      %v6639 = vsel %vm399, %v6614, 0
      %v6642 = vsel %vm399, %v6615, 0
      %v6645 = vsel %vm399, %v6616, 0
      %v6648 = vsel %vm399, %v6617, 0
      %v6651 = vsel %vm399, %v6618, 0
      %v6654 = vsel %vm399, %v6619, 0
      %v6657 = vsel %vm399, %v6620, 0
      %v6660 = vsel %vm399, %v6621, 0
      %v6663 = vsel %vm399, %v6622, 0
      %v6666 = vsel %vm399, %v6623, 0
      %v6669 = vsel %vm399, %v6624, 0
      %v6672 = vsel %vm399, %v6625, 0
      %v6675 = vsel %vm448, %v6545, 0
      %6677 = vmatprep.subr.bf16.mxu0 0
      %6678 = vmatpush1.bf16.msra.mxu0 %v6675
      %6679 = vmatprep.subr.bf16.mxu0 0
      %6680 = vmatpush1.bf16.msra.mxu0 0
      %6681 = vmatprep.subr.bf16.mxu0 0
      %6682 = vmatpush1.bf16.msra.mxu0 0
      %6683 = vmatprep.subr.bf16.mxu0 0
      %6684 = vmatpush1.bf16.msra.mxu0 0
      %6685 = vmatprep.subr.bf16.mxu0 0
      %6686 = vmatpush1.bf16.msra.mxu0 0
      %6687 = vmatprep.subr.bf16.mxu0 0
      %6688 = vmatpush1.bf16.msra.mxu0 0
      %6689 = vmatprep.subr.bf16.mxu0 0
      %6690 = vmatpush1.bf16.msra.mxu0 0
      %6691 = vmatprep.subr.bf16.mxu0 0
      %6692 = vmatpush1.bf16.msra.mxu0 0
      %6693 = vmatprep.subr.bf16.mxu0 0
      %6694 = vmatpush1.bf16.msra.mxu0 0
      %6695 = vmatprep.subr.bf16.mxu0 0
      %6696 = vmatpush1.bf16.msra.mxu0 0
      %6697 = vmatprep.subr.bf16.mxu0 0
      %6698 = vmatpush1.bf16.msra.mxu0 0
      %6699 = vmatprep.subr.bf16.mxu0 0
      %6700 = vmatpush1.bf16.msra.mxu0 0
      %6701 = vmatprep.subr.bf16.mxu0 0
      %6702 = vmatpush1.bf16.msra.mxu0 0
      %6703 = vmatprep.subr.bf16.mxu0 0
      %6704 = vmatpush1.bf16.msra.mxu0 0
      %6705 = vmatprep.subr.bf16.mxu0 0
      %6706 = vmatpush1.bf16.msra.mxu0 0
      %6707 = vmatprep.subr.bf16.mxu0 0
      %6708 = vmatpush1.bf16.msra.mxu0 0
      %6709 = vmatprep.mubr.bf16.mxu0 0
      %6710 = vmatmul.mubr.bf16.gmra.mrb[0].mxu0 %v6627
      %v6711 = vpop.f32.mrb[0].mxu0
      %v6712 = vadd.f32 0.0, %v6711
      %v6713 = vpop.f32.mrb[0].mxu0
      %v6714 = vpop.f32.mrb[0].mxu0
      %v6715 = vadd.f32 0.0, %v6714
      %v6716 = vpop.f32.mrb[0].mxu0
      %6717 = vmatprep.mubr.bf16.mxu0 0
      %6718 = vmatmul.mubr.bf16.gmra.mrb[0].mxu0 %v6630
      %v6719 = vpop.f32.mrb[0].mxu0
      %v6720 = vadd.f32 0.0, %v6719
      %v6721 = vpop.f32.mrb[0].mxu0
      %v6722 = vpop.f32.mrb[0].mxu0
      %v6723 = vadd.f32 0.0, %v6722
      %v6724 = vpop.f32.mrb[0].mxu0
      %6725 = vmatprep.mubr.bf16.mxu0 0
      %6726 = vmatmul.mubr.bf16.gmra.mrb[0].mxu0 %v6633
      %v6727 = vpop.f32.mrb[0].mxu0
      %v6728 = vadd.f32 0.0, %v6727
      %v6729 = vpop.f32.mrb[0].mxu0
      %v6730 = vpop.f32.mrb[0].mxu0
      %v6731 = vadd.f32 0.0, %v6730
      %v6732 = vpop.f32.mrb[0].mxu0
      %6733 = vmatprep.mubr.bf16.mxu0 0
      %6734 = vmatmul.mubr.bf16.gmra.mrb[0].mxu0 %v6636
      %v6735 = vpop.f32.mrb[0].mxu0
      %v6736 = vadd.f32 0.0, %v6735
      %v6737 = vpop.f32.mrb[0].mxu0
      %v6738 = vpop.f32.mrb[0].mxu0
      %v6739 = vadd.f32 0.0, %v6738
      %v6740 = vpop.f32.mrb[0].mxu0
      %6741 = vmatprep.mubr.bf16.mxu0 0
      %6742 = vmatmul.mubr.bf16.gmra.mrb[0].mxu0 %v6639
      %v6743 = vpop.f32.mrb[0].mxu0
      %v6744 = vadd.f32 0.0, %v6743
      %v6745 = vpop.f32.mrb[0].mxu0
      %v6746 = vpop.f32.mrb[0].mxu0
      %v6747 = vadd.f32 0.0, %v6746
      %v6748 = vpop.f32.mrb[0].mxu0
      %6749 = vmatprep.mubr.bf16.mxu0 0
      %6750 = vmatmul.mubr.bf16.gmra.mrb[0].mxu0 %v6642
      %v6751 = vpop.f32.mrb[0].mxu0
      %v6752 = vadd.f32 0.0, %v6751
      %v6753 = vpop.f32.mrb[0].mxu0
      %v6754 = vpop.f32.mrb[0].mxu0
      %v6755 = vadd.f32 0.0, %v6754
      %v6756 = vpop.f32.mrb[0].mxu0
      %6757 = vmatprep.mubr.bf16.mxu0 0
      %6758 = vmatmul.mubr.bf16.gmra.mrb[0].mxu0 %v6645
      %v6759 = vpop.f32.mrb[0].mxu0
      %v6760 = vadd.f32 0.0, %v6759
      %v6761 = vpop.f32.mrb[0].mxu0
      %v6762 = vpop.f32.mrb[0].mxu0
      %v6763 = vadd.f32 0.0, %v6762
      %v6764 = vpop.f32.mrb[0].mxu0
      %6765 = vmatprep.mubr.bf16.mxu0 0
      %6766 = vmatmul.mubr.bf16.gmra.mrb[0].mxu0 %v6648
      %v6767 = vpop.f32.mrb[0].mxu0
      %v6768 = vadd.f32 0.0, %v6767
      %v6769 = vpop.f32.mrb[0].mxu0
      %v6770 = vpop.f32.mrb[0].mxu0
      %v6771 = vadd.f32 0.0, %v6770
      %v6772 = vpop.f32.mrb[0].mxu0
      %6773 = vmatprep.mubr.bf16.mxu0 0
      %6774 = vmatmul.mubr.bf16.gmra.mrb[0].mxu0 %v6651
      %v6775 = vpop.f32.mrb[0].mxu0
      %v6776 = vadd.f32 0.0, %v6775
      %v6777 = vpop.f32.mrb[0].mxu0
      %v6778 = vpop.f32.mrb[0].mxu0
      %v6779 = vadd.f32 0.0, %v6778
      %v6780 = vpop.f32.mrb[0].mxu0
      %6781 = vmatprep.mubr.bf16.mxu0 0
      %6782 = vmatmul.mubr.bf16.gmra.mrb[0].mxu0 %v6654
      %v6783 = vpop.f32.mrb[0].mxu0
      %v6784 = vadd.f32 0.0, %v6783
      %v6785 = vpop.f32.mrb[0].mxu0
      %v6786 = vpop.f32.mrb[0].mxu0
      %v6787 = vadd.f32 0.0, %v6786
      %v6788 = vpop.f32.mrb[0].mxu0
      %6789 = vmatprep.mubr.bf16.mxu0 0
      %6790 = vmatmul.mubr.bf16.gmra.mrb[0].mxu0 %v6657
      %v6791 = vpop.f32.mrb[0].mxu0
      %v6792 = vadd.f32 0.0, %v6791
      %v6793 = vpop.f32.mrb[0].mxu0
      %v6794 = vpop.f32.mrb[0].mxu0
      %v6795 = vadd.f32 0.0, %v6794
      %v6796 = vpop.f32.mrb[0].mxu0
      %6797 = vmatprep.mubr.bf16.mxu0 0
      %6798 = vmatmul.mubr.bf16.gmra.mrb[0].mxu0 %v6660
      %v6799 = vpop.f32.mrb[0].mxu0
      %v6800 = vadd.f32 0.0, %v6799
      %v6801 = vpop.f32.mrb[0].mxu0
      %v6802 = vpop.f32.mrb[0].mxu0
      %v6803 = vadd.f32 0.0, %v6802
      %v6804 = vpop.f32.mrb[0].mxu0
      %6805 = vmatprep.mubr.bf16.mxu0 0
      %6806 = vmatmul.mubr.bf16.gmra.mrb[0].mxu0 %v6663
      %v6807 = vpop.f32.mrb[0].mxu0
      %v6808 = vadd.f32 0.0, %v6807
      %v6809 = vpop.f32.mrb[0].mxu0
      %v6810 = vpop.f32.mrb[0].mxu0
      %v6811 = vadd.f32 0.0, %v6810
      %v6812 = vpop.f32.mrb[0].mxu0
      %6813 = vmatprep.mubr.bf16.mxu0 0
      %6814 = vmatmul.mubr.bf16.gmra.mrb[0].mxu0 %v6666
      %v6815 = vpop.f32.mrb[0].mxu0
      %v6816 = vadd.f32 0.0, %v6815
      %v6817 = vpop.f32.mrb[0].mxu0
      %v6818 = vpop.f32.mrb[0].mxu0
      %v6819 = vadd.f32 0.0, %v6818
      %v6820 = vpop.f32.mrb[0].mxu0
      %6821 = vmatprep.mubr.bf16.mxu0 0
      %6822 = vmatmul.mubr.bf16.gmra.mrb[0].mxu0 %v6669
      %v6823 = vpop.f32.mrb[0].mxu0
      %v6824 = vadd.f32 0.0, %v6823
      %v6825 = vpop.f32.mrb[0].mxu0
      %v6826 = vpop.f32.mrb[0].mxu0
      %v6827 = vadd.f32 0.0, %v6826
      %v6828 = vpop.f32.mrb[0].mxu0
      %6829 = vmatprep.mubr.bf16.mxu0 0
      %6830 = vmatmul.mubr.bf16.gmra.mrb[0].mxu0 %v6672
      %v6831 = vpop.f32.mrb[0].mxu0
      %v6832 = vadd.f32 0.0, %v6831
      %v6833 = vpop.f32.mrb[0].mxu0
      %v6834 = vpop.f32.mrb[0].mxu0
      %v6835 = vadd.f32 0.0, %v6834
      %v6836 = vpop.f32.mrb[0].mxu0
      %6837 = vdwg.mxu0
      %v6838 = vadd.f32 %v6446, %v6712
      %v6839 = vadd.f32 %v6447, %v6715
      %v6840 = vadd.f32 %v6448, %v6720
      %v6841 = vadd.f32 %v6449, %v6723
      %v6842 = vadd.f32 %v6450, %v6728
      %v6843 = vadd.f32 %v6451, %v6731
      %v6844 = vadd.f32 %v6452, %v6736
      %v6845 = vadd.f32 %v6453, %v6739
      %v6846 = vadd.f32 %v6454, %v6744
      %v6847 = vadd.f32 %v6455, %v6747
      %v6848 = vadd.f32 %v6456, %v6752
      %v6849 = vadd.f32 %v6457, %v6755
      %v6850 = vadd.f32 %v6458, %v6760
      %v6851 = vadd.f32 %v6459, %v6763
      %v6852 = vadd.f32 %v6460, %v6768
      %v6853 = vadd.f32 %v6461, %v6771
      %v6854 = vadd.f32 %v6462, %v6776
      %v6855 = vadd.f32 %v6463, %v6779
      %v6856 = vadd.f32 %v6464, %v6784
      %v6857 = vadd.f32 %v6465, %v6787
      %v6858 = vadd.f32 %v6466, %v6792
      %v6859 = vadd.f32 %v6467, %v6795
      %v6860 = vadd.f32 %v6468, %v6800
      %v6861 = vadd.f32 %v6469, %v6803
      %v6862 = vadd.f32 %v6470, %v6808
      %v6863 = vadd.f32 %v6471, %v6811
      %v6864 = vadd.f32 %v6472, %v6816
      %v6865 = vadd.f32 %v6473, %v6819
      %v6866 = vadd.f32 %v6474, %v6824
      %v6867 = vadd.f32 %v6475, %v6827
      %v6868 = vadd.f32 %v6476, %v6832
      %v6869 = vadd.f32 %v6477, %v6835
      %s6870 = scalar_lea.vmem %s3, 12
      %v6871 = vld [vmem:[%s6870] sm:$0x3]
      %v6904 = vunpack.c.l.b16 %v6512
      %v6905 = vunpack.c.l.b16 %v6513
      %v6906 = vunpack.c.l.b16 %v6514
      %v6907 = vunpack.c.l.b16 %v6515
      %v6908 = vunpack.c.l.b16 %v6516
      %v6909 = vunpack.c.l.b16 %v6517
      %v6910 = vunpack.c.l.b16 %v6518
      %v6911 = vunpack.c.l.b16 %v6519
      %v6912 = vunpack.c.l.b16 %v6520
      %v6913 = vunpack.c.l.b16 %v6521
      %v6914 = vunpack.c.l.b16 %v6522
      %v6915 = vunpack.c.l.b16 %v6523
      %v6916 = vunpack.c.l.b16 %v6524
      %v6917 = vunpack.c.l.b16 %v6525
      %v6918 = vunpack.c.l.b16 %v6526
      %v6919 = vunpack.c.l.b16 %v6527
      %v6920 = vunpack.c.l.b16 %v6528
      %v6921 = vunpack.c.l.b16 %v6529
      %v6922 = vunpack.c.l.b16 %v6530
      %v6923 = vunpack.c.l.b16 %v6531
      %v6924 = vunpack.c.l.b16 %v6532
      %v6925 = vunpack.c.l.b16 %v6533
      %v6926 = vunpack.c.l.b16 %v6534
      %v6927 = vunpack.c.l.b16 %v6535
      %v6928 = vunpack.c.l.b16 %v6536
      %v6929 = vunpack.c.l.b16 %v6537
      %v6930 = vunpack.c.l.b16 %v6538
      %v6931 = vunpack.c.l.b16 %v6539
      %v6932 = vunpack.c.l.b16 %v6540
      %v6933 = vunpack.c.l.b16 %v6541
      %v6934 = vunpack.c.l.b16 %v6542
      %v6935 = vunpack.c.l.b16 %v6543
      %v6936 = vpack.c.b16 %v6905, %v6904
      %v6937 = vpack.c.b16 %v6907, %v6906
      %v6938 = vpack.c.b16 %v6909, %v6908
      %v6939 = vpack.c.b16 %v6911, %v6910
      %v6940 = vpack.c.b16 %v6913, %v6912
      %v6941 = vpack.c.b16 %v6915, %v6914
      %v6942 = vpack.c.b16 %v6917, %v6916
      %v6943 = vpack.c.b16 %v6919, %v6918
      %v6944 = vpack.c.b16 %v6921, %v6920
      %v6945 = vpack.c.b16 %v6923, %v6922
      %v6946 = vpack.c.b16 %v6925, %v6924
      %v6947 = vpack.c.b16 %v6927, %v6926
      %v6948 = vpack.c.b16 %v6929, %v6928
      %v6949 = vpack.c.b16 %v6931, %v6930
      %v6950 = vpack.c.b16 %v6933, %v6932
      %v6951 = vpack.c.b16 %v6935, %v6934
      %v6953 = vsel %vm399, %v6936, 0
      %v6956 = vsel %vm399, %v6937, 0
      %v6959 = vsel %vm399, %v6938, 0
      %v6962 = vsel %vm399, %v6939, 0
      %v6965 = vsel %vm399, %v6940, 0
      %v6968 = vsel %vm399, %v6941, 0
      %v6971 = vsel %vm399, %v6942, 0
      %v6974 = vsel %vm399, %v6943, 0
      %v6977 = vsel %vm399, %v6944, 0
      %v6980 = vsel %vm399, %v6945, 0
      %v6983 = vsel %vm399, %v6946, 0
      %v6986 = vsel %vm399, %v6947, 0
      %v6989 = vsel %vm399, %v6948, 0
      %v6992 = vsel %vm399, %v6949, 0
      %v6995 = vsel %vm399, %v6950, 0
      %v6998 = vsel %vm399, %v6951, 0
      %v7001 = vsel %vm448, %v6871, 0
      %7003 = vmatprep.subr.bf16.mxu0 0
      %7004 = vmatpush1.bf16.msra.mxu0 %v7001
      %7005 = vmatprep.subr.bf16.mxu0 0
      %7006 = vmatpush1.bf16.msra.mxu0 0
      %7007 = vmatprep.subr.bf16.mxu0 0
      %7008 = vmatpush1.bf16.msra.mxu0 0
      %7009 = vmatprep.subr.bf16.mxu0 0
      %7010 = vmatpush1.bf16.msra.mxu0 0
      %7011 = vmatprep.subr.bf16.mxu0 0
      %7012 = vmatpush1.bf16.msra.mxu0 0
      %7013 = vmatprep.subr.bf16.mxu0 0
      %7014 = vmatpush1.bf16.msra.mxu0 0
      %7015 = vmatprep.subr.bf16.mxu0 0
      %7016 = vmatpush1.bf16.msra.mxu0 0
      %7017 = vmatprep.subr.bf16.mxu0 0
      %7018 = vmatpush1.bf16.msra.mxu0 0
      %7019 = vmatprep.subr.bf16.mxu0 0
      %7020 = vmatpush1.bf16.msra.mxu0 0
      %7021 = vmatprep.subr.bf16.mxu0 0
      %7022 = vmatpush1.bf16.msra.mxu0 0
      %7023 = vmatprep.subr.bf16.mxu0 0
      %7024 = vmatpush1.bf16.msra.mxu0 0
      %7025 = vmatprep.subr.bf16.mxu0 0
      %7026 = vmatpush1.bf16.msra.mxu0 0
      %7027 = vmatprep.subr.bf16.mxu0 0
      %7028 = vmatpush1.bf16.msra.mxu0 0
      %7029 = vmatprep.subr.bf16.mxu0 0
      %7030 = vmatpush1.bf16.msra.mxu0 0
      %7031 = vmatprep.subr.bf16.mxu0 0
      %7032 = vmatpush1.bf16.msra.mxu0 0
      %7033 = vmatprep.subr.bf16.mxu0 0
      %7034 = vmatpush1.bf16.msra.mxu0 0
      %7035 = vmatprep.mubr.bf16.mxu0 0
      %7036 = vmatmul.mubr.bf16.gmra.mrb[0].mxu0 %v6953
      %v7037 = vpop.f32.mrb[0].mxu0
      %v7038 = vadd.f32 0.0, %v7037
      %v7039 = vpop.f32.mrb[0].mxu0
      %v7040 = vpop.f32.mrb[0].mxu0
      %v7041 = vadd.f32 0.0, %v7040
      %v7042 = vpop.f32.mrb[0].mxu0
      %7043 = vmatprep.mubr.bf16.mxu0 0
      %7044 = vmatmul.mubr.bf16.gmra.mrb[0].mxu0 %v6956
      %v7045 = vpop.f32.mrb[0].mxu0
      %v7046 = vadd.f32 0.0, %v7045
      %v7047 = vpop.f32.mrb[0].mxu0
      %v7048 = vpop.f32.mrb[0].mxu0
      %v7049 = vadd.f32 0.0, %v7048
      %v7050 = vpop.f32.mrb[0].mxu0
      %7051 = vmatprep.mubr.bf16.mxu0 0
      %7052 = vmatmul.mubr.bf16.gmra.mrb[0].mxu0 %v6959
      %v7053 = vpop.f32.mrb[0].mxu0
      %v7054 = vadd.f32 0.0, %v7053
      %v7055 = vpop.f32.mrb[0].mxu0
      %v7056 = vpop.f32.mrb[0].mxu0
      %v7057 = vadd.f32 0.0, %v7056
      %v7058 = vpop.f32.mrb[0].mxu0
      %7059 = vmatprep.mubr.bf16.mxu0 0
      %7060 = vmatmul.mubr.bf16.gmra.mrb[0].mxu0 %v6962
      %v7061 = vpop.f32.mrb[0].mxu0
      %v7062 = vadd.f32 0.0, %v7061
      %v7063 = vpop.f32.mrb[0].mxu0
      %v7064 = vpop.f32.mrb[0].mxu0
      %v7065 = vadd.f32 0.0, %v7064
      %v7066 = vpop.f32.mrb[0].mxu0
      %7067 = vmatprep.mubr.bf16.mxu0 0
      %7068 = vmatmul.mubr.bf16.gmra.mrb[0].mxu0 %v6965
      %v7069 = vpop.f32.mrb[0].mxu0
      %v7070 = vadd.f32 0.0, %v7069
      %v7071 = vpop.f32.mrb[0].mxu0
      %v7072 = vpop.f32.mrb[0].mxu0
      %v7073 = vadd.f32 0.0, %v7072
      %v7074 = vpop.f32.mrb[0].mxu0
      %7075 = vmatprep.mubr.bf16.mxu0 0
      %7076 = vmatmul.mubr.bf16.gmra.mrb[0].mxu0 %v6968
      %v7077 = vpop.f32.mrb[0].mxu0
      %v7078 = vadd.f32 0.0, %v7077
      %v7079 = vpop.f32.mrb[0].mxu0
      %v7080 = vpop.f32.mrb[0].mxu0
      %v7081 = vadd.f32 0.0, %v7080
      %v7082 = vpop.f32.mrb[0].mxu0
      %7083 = vmatprep.mubr.bf16.mxu0 0
      %7084 = vmatmul.mubr.bf16.gmra.mrb[0].mxu0 %v6971
      %v7085 = vpop.f32.mrb[0].mxu0
      %v7086 = vadd.f32 0.0, %v7085
      %v7087 = vpop.f32.mrb[0].mxu0
      %v7088 = vpop.f32.mrb[0].mxu0
      %v7089 = vadd.f32 0.0, %v7088
      %v7090 = vpop.f32.mrb[0].mxu0
      %7091 = vmatprep.mubr.bf16.mxu0 0
      %7092 = vmatmul.mubr.bf16.gmra.mrb[0].mxu0 %v6974
      %v7093 = vpop.f32.mrb[0].mxu0
      %v7094 = vadd.f32 0.0, %v7093
      %v7095 = vpop.f32.mrb[0].mxu0
      %v7096 = vpop.f32.mrb[0].mxu0
      %v7097 = vadd.f32 0.0, %v7096
      %v7098 = vpop.f32.mrb[0].mxu0
      %7099 = vmatprep.mubr.bf16.mxu0 0
      %7100 = vmatmul.mubr.bf16.gmra.mrb[0].mxu0 %v6977
      %v7101 = vpop.f32.mrb[0].mxu0
      %v7102 = vadd.f32 0.0, %v7101
      %v7103 = vpop.f32.mrb[0].mxu0
      %v7104 = vpop.f32.mrb[0].mxu0
      %v7105 = vadd.f32 0.0, %v7104
      %v7106 = vpop.f32.mrb[0].mxu0
      %7107 = vmatprep.mubr.bf16.mxu0 0
      %7108 = vmatmul.mubr.bf16.gmra.mrb[0].mxu0 %v6980
      %v7109 = vpop.f32.mrb[0].mxu0
      %v7110 = vadd.f32 0.0, %v7109
      %v7111 = vpop.f32.mrb[0].mxu0
      %v7112 = vpop.f32.mrb[0].mxu0
      %v7113 = vadd.f32 0.0, %v7112
      %v7114 = vpop.f32.mrb[0].mxu0
      %7115 = vmatprep.mubr.bf16.mxu0 0
      %7116 = vmatmul.mubr.bf16.gmra.mrb[0].mxu0 %v6983
      %v7117 = vpop.f32.mrb[0].mxu0
      %v7118 = vadd.f32 0.0, %v7117
      %v7119 = vpop.f32.mrb[0].mxu0
      %v7120 = vpop.f32.mrb[0].mxu0
      %v7121 = vadd.f32 0.0, %v7120
      %v7122 = vpop.f32.mrb[0].mxu0
      %7123 = vmatprep.mubr.bf16.mxu0 0
      %7124 = vmatmul.mubr.bf16.gmra.mrb[0].mxu0 %v6986
      %v7125 = vpop.f32.mrb[0].mxu0
      %v7126 = vadd.f32 0.0, %v7125
      %v7127 = vpop.f32.mrb[0].mxu0
      %v7128 = vpop.f32.mrb[0].mxu0
      %v7129 = vadd.f32 0.0, %v7128
      %v7130 = vpop.f32.mrb[0].mxu0
      %7131 = vmatprep.mubr.bf16.mxu0 0
      %7132 = vmatmul.mubr.bf16.gmra.mrb[0].mxu0 %v6989
      %v7133 = vpop.f32.mrb[0].mxu0
      %v7134 = vadd.f32 0.0, %v7133
      %v7135 = vpop.f32.mrb[0].mxu0
      %v7136 = vpop.f32.mrb[0].mxu0
      %v7137 = vadd.f32 0.0, %v7136
      %v7138 = vpop.f32.mrb[0].mxu0
      %7139 = vmatprep.mubr.bf16.mxu0 0
      %7140 = vmatmul.mubr.bf16.gmra.mrb[0].mxu0 %v6992
      %v7141 = vpop.f32.mrb[0].mxu0
      %v7142 = vadd.f32 0.0, %v7141
      %v7143 = vpop.f32.mrb[0].mxu0
      %v7144 = vpop.f32.mrb[0].mxu0
      %v7145 = vadd.f32 0.0, %v7144
      %v7146 = vpop.f32.mrb[0].mxu0
      %7147 = vmatprep.mubr.bf16.mxu0 0
      %7148 = vmatmul.mubr.bf16.gmra.mrb[0].mxu0 %v6995
      %v7149 = vpop.f32.mrb[0].mxu0
      %v7150 = vadd.f32 0.0, %v7149
      %v7151 = vpop.f32.mrb[0].mxu0
      %v7152 = vpop.f32.mrb[0].mxu0
      %v7153 = vadd.f32 0.0, %v7152
      %v7154 = vpop.f32.mrb[0].mxu0
      %7155 = vmatprep.mubr.bf16.mxu0 0
      %7156 = vmatmul.mubr.bf16.gmra.mrb[0].mxu0 %v6998
      %v7157 = vpop.f32.mrb[0].mxu0
      %v7158 = vadd.f32 0.0, %v7157
      %v7159 = vpop.f32.mrb[0].mxu0
      %v7160 = vpop.f32.mrb[0].mxu0
      %v7161 = vadd.f32 0.0, %v7160
      %v7162 = vpop.f32.mrb[0].mxu0
      %7163 = vdwg.mxu0
      %v7164 = vadd.f32 %v6838, %v7038
      %v7165 = vadd.f32 %v6839, %v7041
      %v7166 = vadd.f32 %v6840, %v7046
      %v7167 = vadd.f32 %v6841, %v7049
      %v7168 = vadd.f32 %v6842, %v7054
      %v7169 = vadd.f32 %v6843, %v7057
      %v7170 = vadd.f32 %v6844, %v7062
      %v7171 = vadd.f32 %v6845, %v7065
      %v7172 = vadd.f32 %v6846, %v7070
      %v7173 = vadd.f32 %v6847, %v7073
      %v7174 = vadd.f32 %v6848, %v7078
      %v7175 = vadd.f32 %v6849, %v7081
      %v7176 = vadd.f32 %v6850, %v7086
      %v7177 = vadd.f32 %v6851, %v7089
      %v7178 = vadd.f32 %v6852, %v7094
      %v7179 = vadd.f32 %v6853, %v7097
      %v7180 = vadd.f32 %v6854, %v7102
      %v7181 = vadd.f32 %v6855, %v7105
      %v7182 = vadd.f32 %v6856, %v7110
      %v7183 = vadd.f32 %v6857, %v7113
      %v7184 = vadd.f32 %v6858, %v7118
      %v7185 = vadd.f32 %v6859, %v7121
      %v7186 = vadd.f32 %v6860, %v7126
      %v7187 = vadd.f32 %v6861, %v7129
      %v7188 = vadd.f32 %v6862, %v7134
      %v7189 = vadd.f32 %v6863, %v7137
      %v7190 = vadd.f32 %v6864, %v7142
      %v7191 = vadd.f32 %v6865, %v7145
      %v7192 = vadd.f32 %v6866, %v7150
      %v7193 = vadd.f32 %v6867, %v7153
      %v7194 = vadd.f32 %v6868, %v7158
      %v7195 = vadd.f32 %v6869, %v7161
      %v7196 = vld [vmem:[%s6478] sm:$0xf]
      %v7197 = vld [vmem:[%s6478 + $0x4] sm:$0xf]
      %v7198 = vld [vmem:[%s6478 + $0x8] sm:$0x1]
      %v7199 = vld [vmem:[%s6478 + $0xc] sm:$0xf]
      %v7200 = vld [vmem:[%s6478 + $0x10] sm:$0xf]
      %v7201 = vld [vmem:[%s6478 + $0x14] sm:$0x1]
      %v7202 = vld [vmem:[%s6478 + $0x18] sm:$0xf]
      %v7203 = vld [vmem:[%s6478 + $0x1c] sm:$0xf]
      %v7204 = vld [vmem:[%s6478 + $0x20] sm:$0x1]
      %v7205 = vld [vmem:[%s6478 + $0x24] sm:$0xf]
      %v7206 = vld [vmem:[%s6478 + $0x28] sm:$0xf]
      %v7207 = vld [vmem:[%s6478 + $0x2c] sm:$0x1]
      %v7208 = vld [vmem:[%s6478 + $0x30] sm:$0xf]
      %v7209 = vld [vmem:[%s6478 + $0x34] sm:$0xf]
      %v7210 = vld [vmem:[%s6478 + $0x38] sm:$0x1]
      %v7211 = vld [vmem:[%s6478 + $0x3c] sm:$0xf]
      %v7212 = vld [vmem:[%s6478 + $0x40] sm:$0xf]
      %v7213 = vld [vmem:[%s6478 + $0x44] sm:$0x1]
      %v7214 = vld [vmem:[%s6478 + $0x48] sm:$0xf]
      %v7215 = vld [vmem:[%s6478 + $0x4c] sm:$0xf]
      %v7216 = vld [vmem:[%s6478 + $0x50] sm:$0x1]
      %v7217 = vld [vmem:[%s6478 + $0x54] sm:$0xf]
      %v7218 = vld [vmem:[%s6478 + $0x58] sm:$0xf]
      %v7219 = vld [vmem:[%s6478 + $0x5c] sm:$0x1]
      %v7220 = vld [vmem:[%s6478 + $0x60] sm:$0xf]
      %v7221 = vld [vmem:[%s6478 + $0x64] sm:$0xf]
      %v7222 = vld [vmem:[%s6478 + $0x68] sm:$0x1]
      %v7223 = vld [vmem:[%s6478 + $0x6c] sm:$0xf]
      %v7224 = vld [vmem:[%s6478 + $0x70] sm:$0xf]
      %v7225 = vld [vmem:[%s6478 + $0x74] sm:$0x1]
      %v7226 = vld [vmem:[%s6478 + $0x78] sm:$0xf]
      %v7227 = vld [vmem:[%s6478 + $0x7c] sm:$0xf]
      %v7228 = vld [vmem:[%s6478 + $0x80] sm:$0x1]
      %v7229 = vld [vmem:[%s6478 + $0x84] sm:$0xf]
      %v7230 = vld [vmem:[%s6478 + $0x88] sm:$0xf]
      %v7231 = vld [vmem:[%s6478 + $0x8c] sm:$0x1]
      %v7232 = vld [vmem:[%s6478 + $0x90] sm:$0xf]
      %v7233 = vld [vmem:[%s6478 + $0x94] sm:$0xf]
      %v7234 = vld [vmem:[%s6478 + $0x98] sm:$0x1]
      %v7235 = vld [vmem:[%s6478 + $0x9c] sm:$0xf]
      %v7236 = vld [vmem:[%s6478 + $0xa0] sm:$0xf]
      %v7237 = vld [vmem:[%s6478 + $0xa4] sm:$0x1]
      %v7238 = vld [vmem:[%s6478 + $0xa8] sm:$0xf]
      %v7239 = vld [vmem:[%s6478 + $0xac] sm:$0xf]
      %v7240 = vld [vmem:[%s6478 + $0xb0] sm:$0x1]
      %v7241 = vld [vmem:[%s6478 + $0xb4] sm:$0xf]
      %v7242 = vld [vmem:[%s6478 + $0xb8] sm:$0xf]
      %v7243 = vld [vmem:[%s6478 + $0xbc] sm:$0x1]
      %v7245 = vshrl.u32 %v7196, 16
      %v7247 = vrot.slane %v7245, 4
      %v7248 = vshll.u32 %v7196, 16
      %v7250 = vrot.slane %v7248, 5
      %v7251 = vor.u32 %v7247, %v7250
      %v7252 = vrot.slane %v7251, 4
      %v7254 = vshll.u32 %v7197, 16
      %v7256 = vrot.slane %v7254, 5
      %v7257 = vsel %vm1020, %v7252, %v7256
      %v7258 = vshrl.u32 %v7197, 16
      %v7260 = vrot.slane %v7258, 4
      %v7261 = vor.u32 %v7260, %v7256
      %v7262 = vrot.slane %v7261, 4
      %v7264 = vshll.u32 %v7198, 16
      %v7266 = vrot.slane %v7264, 5
      %v7267 = vsel %vm1020, %v7262, %v7266
      %v7269 = vshrl.u32 %v7199, 16
      %v7271 = vrot.slane %v7269, 4
      %v7272 = vshll.u32 %v7199, 16
      %v7274 = vrot.slane %v7272, 5
      %v7275 = vor.u32 %v7271, %v7274
      %v7276 = vrot.slane %v7275, 4
      %v7278 = vshll.u32 %v7200, 16
      %v7280 = vrot.slane %v7278, 5
      %v7281 = vsel %vm1020, %v7276, %v7280
      %v7282 = vshrl.u32 %v7200, 16
      %v7284 = vrot.slane %v7282, 4
      %v7285 = vor.u32 %v7284, %v7280
      %v7286 = vrot.slane %v7285, 4
      %v7288 = vshll.u32 %v7201, 16
      %v7290 = vrot.slane %v7288, 5
      %v7291 = vsel %vm1020, %v7286, %v7290
      %v7293 = vshrl.u32 %v7202, 16
      %v7295 = vrot.slane %v7293, 4
      %v7296 = vshll.u32 %v7202, 16
      %v7298 = vrot.slane %v7296, 5
      %v7299 = vor.u32 %v7295, %v7298
      %v7300 = vrot.slane %v7299, 4
      %v7302 = vshll.u32 %v7203, 16
      %v7304 = vrot.slane %v7302, 5
      %v7305 = vsel %vm1020, %v7300, %v7304
      %v7306 = vshrl.u32 %v7203, 16
      %v7308 = vrot.slane %v7306, 4
      %v7309 = vor.u32 %v7308, %v7304
      %v7310 = vrot.slane %v7309, 4
      %v7312 = vshll.u32 %v7204, 16
      %v7314 = vrot.slane %v7312, 5
      %v7315 = vsel %vm1020, %v7310, %v7314
      %v7317 = vshrl.u32 %v7205, 16
      %v7319 = vrot.slane %v7317, 4
      %v7320 = vshll.u32 %v7205, 16
      %v7322 = vrot.slane %v7320, 5
      %v7323 = vor.u32 %v7319, %v7322
      %v7324 = vrot.slane %v7323, 4
      %v7326 = vshll.u32 %v7206, 16
      %v7328 = vrot.slane %v7326, 5
      %v7329 = vsel %vm1020, %v7324, %v7328
      %v7330 = vshrl.u32 %v7206, 16
      %v7332 = vrot.slane %v7330, 4
      %v7333 = vor.u32 %v7332, %v7328
      %v7334 = vrot.slane %v7333, 4
      %v7336 = vshll.u32 %v7207, 16
      %v7338 = vrot.slane %v7336, 5
      %v7339 = vsel %vm1020, %v7334, %v7338
      %v7341 = vshrl.u32 %v7208, 16
      %v7343 = vrot.slane %v7341, 4
      %v7344 = vshll.u32 %v7208, 16
      %v7346 = vrot.slane %v7344, 5
      %v7347 = vor.u32 %v7343, %v7346
      %v7348 = vrot.slane %v7347, 4
      %v7350 = vshll.u32 %v7209, 16
      %v7352 = vrot.slane %v7350, 5
      %v7353 = vsel %vm1020, %v7348, %v7352
      %v7354 = vshrl.u32 %v7209, 16
      %v7356 = vrot.slane %v7354, 4
      %v7357 = vor.u32 %v7356, %v7352
      %v7358 = vrot.slane %v7357, 4
      %v7360 = vshll.u32 %v7210, 16
      %v7362 = vrot.slane %v7360, 5
      %v7363 = vsel %vm1020, %v7358, %v7362
      %v7365 = vshrl.u32 %v7211, 16
      %v7367 = vrot.slane %v7365, 4
      %v7368 = vshll.u32 %v7211, 16
      %v7370 = vrot.slane %v7368, 5
      %v7371 = vor.u32 %v7367, %v7370
      %v7372 = vrot.slane %v7371, 4
      %v7374 = vshll.u32 %v7212, 16
      %v7376 = vrot.slane %v7374, 5
      %v7377 = vsel %vm1020, %v7372, %v7376
      %v7378 = vshrl.u32 %v7212, 16
      %v7380 = vrot.slane %v7378, 4
      %v7381 = vor.u32 %v7380, %v7376
      %v7382 = vrot.slane %v7381, 4
      %v7384 = vshll.u32 %v7213, 16
      %v7386 = vrot.slane %v7384, 5
      %v7387 = vsel %vm1020, %v7382, %v7386
      %v7389 = vshrl.u32 %v7214, 16
      %v7391 = vrot.slane %v7389, 4
      %v7392 = vshll.u32 %v7214, 16
      %v7394 = vrot.slane %v7392, 5
      %v7395 = vor.u32 %v7391, %v7394
      %v7396 = vrot.slane %v7395, 4
      %v7398 = vshll.u32 %v7215, 16
      %v7400 = vrot.slane %v7398, 5
      %v7401 = vsel %vm1020, %v7396, %v7400
      %v7402 = vshrl.u32 %v7215, 16
      %v7404 = vrot.slane %v7402, 4
      %v7405 = vor.u32 %v7404, %v7400
      %v7406 = vrot.slane %v7405, 4
      %v7408 = vshll.u32 %v7216, 16
      %v7410 = vrot.slane %v7408, 5
      %v7411 = vsel %vm1020, %v7406, %v7410
      %v7413 = vshrl.u32 %v7217, 16
      %v7415 = vrot.slane %v7413, 4
      %v7416 = vshll.u32 %v7217, 16
      %v7418 = vrot.slane %v7416, 5
      %v7419 = vor.u32 %v7415, %v7418
      %v7420 = vrot.slane %v7419, 4
      %v7422 = vshll.u32 %v7218, 16
      %v7424 = vrot.slane %v7422, 5
      %v7425 = vsel %vm1020, %v7420, %v7424
      %v7426 = vshrl.u32 %v7218, 16
      %v7428 = vrot.slane %v7426, 4
      %v7429 = vor.u32 %v7428, %v7424
      %v7430 = vrot.slane %v7429, 4
      %v7432 = vshll.u32 %v7219, 16
      %v7434 = vrot.slane %v7432, 5
      %v7435 = vsel %vm1020, %v7430, %v7434
      %v7437 = vshrl.u32 %v7220, 16
      %v7439 = vrot.slane %v7437, 4
      %v7440 = vshll.u32 %v7220, 16
      %v7442 = vrot.slane %v7440, 5
      %v7443 = vor.u32 %v7439, %v7442
      %v7444 = vrot.slane %v7443, 4
      %v7446 = vshll.u32 %v7221, 16
      %v7448 = vrot.slane %v7446, 5
      %v7449 = vsel %vm1020, %v7444, %v7448
      %v7450 = vshrl.u32 %v7221, 16
      %v7452 = vrot.slane %v7450, 4
      %v7453 = vor.u32 %v7452, %v7448
      %v7454 = vrot.slane %v7453, 4
      %v7456 = vshll.u32 %v7222, 16
      %v7458 = vrot.slane %v7456, 5
      %v7459 = vsel %vm1020, %v7454, %v7458
      %v7461 = vshrl.u32 %v7223, 16
      %v7463 = vrot.slane %v7461, 4
      %v7464 = vshll.u32 %v7223, 16
      %v7466 = vrot.slane %v7464, 5
      %v7467 = vor.u32 %v7463, %v7466
      %v7468 = vrot.slane %v7467, 4
      %v7470 = vshll.u32 %v7224, 16
      %v7472 = vrot.slane %v7470, 5
      %v7473 = vsel %vm1020, %v7468, %v7472
      %v7474 = vshrl.u32 %v7224, 16
      %v7476 = vrot.slane %v7474, 4
      %v7477 = vor.u32 %v7476, %v7472
      %v7478 = vrot.slane %v7477, 4
      %v7480 = vshll.u32 %v7225, 16
      %v7482 = vrot.slane %v7480, 5
      %v7483 = vsel %vm1020, %v7478, %v7482
      %v7485 = vshrl.u32 %v7226, 16
      %v7487 = vrot.slane %v7485, 4
      %v7488 = vshll.u32 %v7226, 16
      %v7490 = vrot.slane %v7488, 5
      %v7491 = vor.u32 %v7487, %v7490
      %v7492 = vrot.slane %v7491, 4
      %v7494 = vshll.u32 %v7227, 16
      %v7496 = vrot.slane %v7494, 5
      %v7497 = vsel %vm1020, %v7492, %v7496
      %v7498 = vshrl.u32 %v7227, 16
      %v7500 = vrot.slane %v7498, 4
      %v7501 = vor.u32 %v7500, %v7496
      %v7502 = vrot.slane %v7501, 4
      %v7504 = vshll.u32 %v7228, 16
      %v7506 = vrot.slane %v7504, 5
      %v7507 = vsel %vm1020, %v7502, %v7506
      %v7509 = vshrl.u32 %v7229, 16
      %v7511 = vrot.slane %v7509, 4
      %v7512 = vshll.u32 %v7229, 16
      %v7514 = vrot.slane %v7512, 5
      %v7515 = vor.u32 %v7511, %v7514
      %v7516 = vrot.slane %v7515, 4
      %v7518 = vshll.u32 %v7230, 16
      %v7520 = vrot.slane %v7518, 5
      %v7521 = vsel %vm1020, %v7516, %v7520
      %v7522 = vshrl.u32 %v7230, 16
      %v7524 = vrot.slane %v7522, 4
      %v7525 = vor.u32 %v7524, %v7520
      %v7526 = vrot.slane %v7525, 4
      %v7528 = vshll.u32 %v7231, 16
      %v7530 = vrot.slane %v7528, 5
      %v7531 = vsel %vm1020, %v7526, %v7530
      %v7533 = vshrl.u32 %v7232, 16
      %v7535 = vrot.slane %v7533, 4
      %v7536 = vshll.u32 %v7232, 16
      %v7538 = vrot.slane %v7536, 5
      %v7539 = vor.u32 %v7535, %v7538
      %v7540 = vrot.slane %v7539, 4
      %v7542 = vshll.u32 %v7233, 16
      %v7544 = vrot.slane %v7542, 5
      %v7545 = vsel %vm1020, %v7540, %v7544
      %v7546 = vshrl.u32 %v7233, 16
      %v7548 = vrot.slane %v7546, 4
      %v7549 = vor.u32 %v7548, %v7544
      %v7550 = vrot.slane %v7549, 4
      %v7552 = vshll.u32 %v7234, 16
      %v7554 = vrot.slane %v7552, 5
      %v7555 = vsel %vm1020, %v7550, %v7554
      %v7557 = vshrl.u32 %v7235, 16
      %v7559 = vrot.slane %v7557, 4
      %v7560 = vshll.u32 %v7235, 16
      %v7562 = vrot.slane %v7560, 5
      %v7563 = vor.u32 %v7559, %v7562
      %v7564 = vrot.slane %v7563, 4
      %v7566 = vshll.u32 %v7236, 16
      %v7568 = vrot.slane %v7566, 5
      %v7569 = vsel %vm1020, %v7564, %v7568
      %v7570 = vshrl.u32 %v7236, 16
      %v7572 = vrot.slane %v7570, 4
      %v7573 = vor.u32 %v7572, %v7568
      %v7574 = vrot.slane %v7573, 4
      %v7576 = vshll.u32 %v7237, 16
      %v7578 = vrot.slane %v7576, 5
      %v7579 = vsel %vm1020, %v7574, %v7578
      %v7581 = vshrl.u32 %v7238, 16
      %v7583 = vrot.slane %v7581, 4
      %v7584 = vshll.u32 %v7238, 16
      %v7586 = vrot.slane %v7584, 5
      %v7587 = vor.u32 %v7583, %v7586
      %v7588 = vrot.slane %v7587, 4
      %v7590 = vshll.u32 %v7239, 16
      %v7592 = vrot.slane %v7590, 5
      %v7593 = vsel %vm1020, %v7588, %v7592
      %v7594 = vshrl.u32 %v7239, 16
      %v7596 = vrot.slane %v7594, 4
      %v7597 = vor.u32 %v7596, %v7592
      %v7598 = vrot.slane %v7597, 4
      %v7600 = vshll.u32 %v7240, 16
      %v7602 = vrot.slane %v7600, 5
      %v7603 = vsel %vm1020, %v7598, %v7602
      %v7605 = vshrl.u32 %v7241, 16
      %v7607 = vrot.slane %v7605, 4
      %v7608 = vshll.u32 %v7241, 16
      %v7610 = vrot.slane %v7608, 5
      %v7611 = vor.u32 %v7607, %v7610
      %v7612 = vrot.slane %v7611, 4
      %v7614 = vshll.u32 %v7242, 16
      %v7616 = vrot.slane %v7614, 5
      %v7617 = vsel %vm1020, %v7612, %v7616
      %v7618 = vshrl.u32 %v7242, 16
      %v7620 = vrot.slane %v7618, 4
      %v7621 = vor.u32 %v7620, %v7616
      %v7622 = vrot.slane %v7621, 4
      %v7624 = vshll.u32 %v7243, 16
      %v7626 = vrot.slane %v7624, 5
      %v7627 = vsel %vm1020, %v7622, %v7626
      %v7628 = vld [vmem:[%s6511] sm:$0xf]
      %v7629 = vld [vmem:[%s6511 + $0x4] sm:$0xf]
      %v7630 = vld [vmem:[%s6511 + $0x8] sm:$0x1]
      %v7631 = vld [vmem:[%s6511 + $0xc] sm:$0xf]
      %v7632 = vld [vmem:[%s6511 + $0x10] sm:$0xf]
      %v7633 = vld [vmem:[%s6511 + $0x14] sm:$0x1]
      %v7634 = vld [vmem:[%s6511 + $0x18] sm:$0xf]
      %v7635 = vld [vmem:[%s6511 + $0x1c] sm:$0xf]
      %v7636 = vld [vmem:[%s6511 + $0x20] sm:$0x1]
      %v7637 = vld [vmem:[%s6511 + $0x24] sm:$0xf]
      %v7638 = vld [vmem:[%s6511 + $0x28] sm:$0xf]
      %v7639 = vld [vmem:[%s6511 + $0x2c] sm:$0x1]
      %v7640 = vld [vmem:[%s6511 + $0x30] sm:$0xf]
      %v7641 = vld [vmem:[%s6511 + $0x34] sm:$0xf]
      %v7642 = vld [vmem:[%s6511 + $0x38] sm:$0x1]
      %v7643 = vld [vmem:[%s6511 + $0x3c] sm:$0xf]
      %v7644 = vld [vmem:[%s6511 + $0x40] sm:$0xf]
      %v7645 = vld [vmem:[%s6511 + $0x44] sm:$0x1]
      %v7646 = vld [vmem:[%s6511 + $0x48] sm:$0xf]
      %v7647 = vld [vmem:[%s6511 + $0x4c] sm:$0xf]
      %v7648 = vld [vmem:[%s6511 + $0x50] sm:$0x1]
      %v7649 = vld [vmem:[%s6511 + $0x54] sm:$0xf]
      %v7650 = vld [vmem:[%s6511 + $0x58] sm:$0xf]
      %v7651 = vld [vmem:[%s6511 + $0x5c] sm:$0x1]
      %v7652 = vld [vmem:[%s6511 + $0x60] sm:$0xf]
      %v7653 = vld [vmem:[%s6511 + $0x64] sm:$0xf]
      %v7654 = vld [vmem:[%s6511 + $0x68] sm:$0x1]
      %v7655 = vld [vmem:[%s6511 + $0x6c] sm:$0xf]
      %v7656 = vld [vmem:[%s6511 + $0x70] sm:$0xf]
      %v7657 = vld [vmem:[%s6511 + $0x74] sm:$0x1]
      %v7658 = vld [vmem:[%s6511 + $0x78] sm:$0xf]
      %v7659 = vld [vmem:[%s6511 + $0x7c] sm:$0xf]
      %v7660 = vld [vmem:[%s6511 + $0x80] sm:$0x1]
      %v7661 = vld [vmem:[%s6511 + $0x84] sm:$0xf]
      %v7662 = vld [vmem:[%s6511 + $0x88] sm:$0xf]
      %v7663 = vld [vmem:[%s6511 + $0x8c] sm:$0x1]
      %v7664 = vld [vmem:[%s6511 + $0x90] sm:$0xf]
      %v7665 = vld [vmem:[%s6511 + $0x94] sm:$0xf]
      %v7666 = vld [vmem:[%s6511 + $0x98] sm:$0x1]
      %v7667 = vld [vmem:[%s6511 + $0x9c] sm:$0xf]
      %v7668 = vld [vmem:[%s6511 + $0xa0] sm:$0xf]
      %v7669 = vld [vmem:[%s6511 + $0xa4] sm:$0x1]
      %v7670 = vld [vmem:[%s6511 + $0xa8] sm:$0xf]
      %v7671 = vld [vmem:[%s6511 + $0xac] sm:$0xf]
      %v7672 = vld [vmem:[%s6511 + $0xb0] sm:$0x1]
      %v7673 = vld [vmem:[%s6511 + $0xb4] sm:$0xf]
      %v7674 = vld [vmem:[%s6511 + $0xb8] sm:$0xf]
      %v7675 = vld [vmem:[%s6511 + $0xbc] sm:$0x1]
      %v7677 = vshrl.u32 %v7628, 16
      %v7679 = vrot.slane %v7677, 4
      %v7680 = vshll.u32 %v7628, 16
      %v7682 = vrot.slane %v7680, 5
      %v7683 = vor.u32 %v7679, %v7682
      %v7684 = vrot.slane %v7683, 4
      %v7686 = vshll.u32 %v7629, 16
      %v7688 = vrot.slane %v7686, 5
      %v7689 = vsel %vm1020, %v7684, %v7688
      %v7690 = vshrl.u32 %v7629, 16
      %v7692 = vrot.slane %v7690, 4
      %v7693 = vor.u32 %v7692, %v7688
      %v7694 = vrot.slane %v7693, 4
      %v7696 = vshll.u32 %v7630, 16
      %v7698 = vrot.slane %v7696, 5
      %v7699 = vsel %vm1020, %v7694, %v7698
      %v7701 = vshrl.u32 %v7631, 16
      %v7703 = vrot.slane %v7701, 4
      %v7704 = vshll.u32 %v7631, 16
      %v7706 = vrot.slane %v7704, 5
      %v7707 = vor.u32 %v7703, %v7706
      %v7708 = vrot.slane %v7707, 4
      %v7710 = vshll.u32 %v7632, 16
      %v7712 = vrot.slane %v7710, 5
      %v7713 = vsel %vm1020, %v7708, %v7712
      %v7714 = vshrl.u32 %v7632, 16
      %v7716 = vrot.slane %v7714, 4
      %v7717 = vor.u32 %v7716, %v7712
      %v7718 = vrot.slane %v7717, 4
      %v7720 = vshll.u32 %v7633, 16
      %v7722 = vrot.slane %v7720, 5
      %v7723 = vsel %vm1020, %v7718, %v7722
      %v7725 = vshrl.u32 %v7634, 16
      %v7727 = vrot.slane %v7725, 4
      %v7728 = vshll.u32 %v7634, 16
      %v7730 = vrot.slane %v7728, 5
      %v7731 = vor.u32 %v7727, %v7730
      %v7732 = vrot.slane %v7731, 4
      %v7734 = vshll.u32 %v7635, 16
      %v7736 = vrot.slane %v7734, 5
      %v7737 = vsel %vm1020, %v7732, %v7736
      %v7738 = vshrl.u32 %v7635, 16
      %v7740 = vrot.slane %v7738, 4
      %v7741 = vor.u32 %v7740, %v7736
      %v7742 = vrot.slane %v7741, 4
      %v7744 = vshll.u32 %v7636, 16
      %v7746 = vrot.slane %v7744, 5
      %v7747 = vsel %vm1020, %v7742, %v7746
      %v7749 = vshrl.u32 %v7637, 16
      %v7751 = vrot.slane %v7749, 4
      %v7752 = vshll.u32 %v7637, 16
      %v7754 = vrot.slane %v7752, 5
      %v7755 = vor.u32 %v7751, %v7754
      %v7756 = vrot.slane %v7755, 4
      %v7758 = vshll.u32 %v7638, 16
      %v7760 = vrot.slane %v7758, 5
      %v7761 = vsel %vm1020, %v7756, %v7760
      %v7762 = vshrl.u32 %v7638, 16
      %v7764 = vrot.slane %v7762, 4
      %v7765 = vor.u32 %v7764, %v7760
      %v7766 = vrot.slane %v7765, 4
      %v7768 = vshll.u32 %v7639, 16
      %v7770 = vrot.slane %v7768, 5
      %v7771 = vsel %vm1020, %v7766, %v7770
      %v7773 = vshrl.u32 %v7640, 16
      %v7775 = vrot.slane %v7773, 4
      %v7776 = vshll.u32 %v7640, 16
      %v7778 = vrot.slane %v7776, 5
      %v7779 = vor.u32 %v7775, %v7778
      %v7780 = vrot.slane %v7779, 4
      %v7782 = vshll.u32 %v7641, 16
      %v7784 = vrot.slane %v7782, 5
      %v7785 = vsel %vm1020, %v7780, %v7784
      %v7786 = vshrl.u32 %v7641, 16
      %v7788 = vrot.slane %v7786, 4
      %v7789 = vor.u32 %v7788, %v7784
      %v7790 = vrot.slane %v7789, 4
      %v7792 = vshll.u32 %v7642, 16
      %v7794 = vrot.slane %v7792, 5
      %v7795 = vsel %vm1020, %v7790, %v7794
      %v7797 = vshrl.u32 %v7643, 16
      %v7799 = vrot.slane %v7797, 4
      %v7800 = vshll.u32 %v7643, 16
      %v7802 = vrot.slane %v7800, 5
      %v7803 = vor.u32 %v7799, %v7802
      %v7804 = vrot.slane %v7803, 4
      %v7806 = vshll.u32 %v7644, 16
      %v7808 = vrot.slane %v7806, 5
      %v7809 = vsel %vm1020, %v7804, %v7808
      %v7810 = vshrl.u32 %v7644, 16
      %v7812 = vrot.slane %v7810, 4
      %v7813 = vor.u32 %v7812, %v7808
      %v7814 = vrot.slane %v7813, 4
      %v7816 = vshll.u32 %v7645, 16
      %v7818 = vrot.slane %v7816, 5
      %v7819 = vsel %vm1020, %v7814, %v7818
      %v7821 = vshrl.u32 %v7646, 16
      %v7823 = vrot.slane %v7821, 4
      %v7824 = vshll.u32 %v7646, 16
      %v7826 = vrot.slane %v7824, 5
      %v7827 = vor.u32 %v7823, %v7826
      %v7828 = vrot.slane %v7827, 4
      %v7830 = vshll.u32 %v7647, 16
      %v7832 = vrot.slane %v7830, 5
      %v7833 = vsel %vm1020, %v7828, %v7832
      %v7834 = vshrl.u32 %v7647, 16
      %v7836 = vrot.slane %v7834, 4
      %v7837 = vor.u32 %v7836, %v7832
      %v7838 = vrot.slane %v7837, 4
      %v7840 = vshll.u32 %v7648, 16
      %v7842 = vrot.slane %v7840, 5
      %v7843 = vsel %vm1020, %v7838, %v7842
      %v7845 = vshrl.u32 %v7649, 16
      %v7847 = vrot.slane %v7845, 4
      %v7848 = vshll.u32 %v7649, 16
      %v7850 = vrot.slane %v7848, 5
      %v7851 = vor.u32 %v7847, %v7850
      %v7852 = vrot.slane %v7851, 4
      %v7854 = vshll.u32 %v7650, 16
      %v7856 = vrot.slane %v7854, 5
      %v7857 = vsel %vm1020, %v7852, %v7856
      %v7858 = vshrl.u32 %v7650, 16
      %v7860 = vrot.slane %v7858, 4
      %v7861 = vor.u32 %v7860, %v7856
      %v7862 = vrot.slane %v7861, 4
      %v7864 = vshll.u32 %v7651, 16
      %v7866 = vrot.slane %v7864, 5
      %v7867 = vsel %vm1020, %v7862, %v7866
      %v7869 = vshrl.u32 %v7652, 16
      %v7871 = vrot.slane %v7869, 4
      %v7872 = vshll.u32 %v7652, 16
      %v7874 = vrot.slane %v7872, 5
      %v7875 = vor.u32 %v7871, %v7874
      %v7876 = vrot.slane %v7875, 4
      %v7878 = vshll.u32 %v7653, 16
      %v7880 = vrot.slane %v7878, 5
      %v7881 = vsel %vm1020, %v7876, %v7880
      %v7882 = vshrl.u32 %v7653, 16
      %v7884 = vrot.slane %v7882, 4
      %v7885 = vor.u32 %v7884, %v7880
      %v7886 = vrot.slane %v7885, 4
      %v7888 = vshll.u32 %v7654, 16
      %v7890 = vrot.slane %v7888, 5
      %v7891 = vsel %vm1020, %v7886, %v7890
      %v7893 = vshrl.u32 %v7655, 16
      %v7895 = vrot.slane %v7893, 4
      %v7896 = vshll.u32 %v7655, 16
      %v7898 = vrot.slane %v7896, 5
      %v7899 = vor.u32 %v7895, %v7898
      %v7900 = vrot.slane %v7899, 4
      %v7902 = vshll.u32 %v7656, 16
      %v7904 = vrot.slane %v7902, 5
      %v7905 = vsel %vm1020, %v7900, %v7904
      %v7906 = vshrl.u32 %v7656, 16
      %v7908 = vrot.slane %v7906, 4
      %v7909 = vor.u32 %v7908, %v7904
      %v7910 = vrot.slane %v7909, 4
      %v7912 = vshll.u32 %v7657, 16
      %v7914 = vrot.slane %v7912, 5
      %v7915 = vsel %vm1020, %v7910, %v7914
      %v7917 = vshrl.u32 %v7658, 16
      %v7919 = vrot.slane %v7917, 4
      %v7920 = vshll.u32 %v7658, 16
      %v7922 = vrot.slane %v7920, 5
      %v7923 = vor.u32 %v7919, %v7922
      %v7924 = vrot.slane %v7923, 4
      %v7926 = vshll.u32 %v7659, 16
      %v7928 = vrot.slane %v7926, 5
      %v7929 = vsel %vm1020, %v7924, %v7928
      %v7930 = vshrl.u32 %v7659, 16
      %v7932 = vrot.slane %v7930, 4
      %v7933 = vor.u32 %v7932, %v7928
      %v7934 = vrot.slane %v7933, 4
      %v7936 = vshll.u32 %v7660, 16
      %v7938 = vrot.slane %v7936, 5
      %v7939 = vsel %vm1020, %v7934, %v7938
      %v7941 = vshrl.u32 %v7661, 16
      %v7943 = vrot.slane %v7941, 4
      %v7944 = vshll.u32 %v7661, 16
      %v7946 = vrot.slane %v7944, 5
      %v7947 = vor.u32 %v7943, %v7946
      %v7948 = vrot.slane %v7947, 4
      %v7950 = vshll.u32 %v7662, 16
      %v7952 = vrot.slane %v7950, 5
      %v7953 = vsel %vm1020, %v7948, %v7952
      %v7954 = vshrl.u32 %v7662, 16
      %v7956 = vrot.slane %v7954, 4
      %v7957 = vor.u32 %v7956, %v7952
      %v7958 = vrot.slane %v7957, 4
      %v7960 = vshll.u32 %v7663, 16
      %v7962 = vrot.slane %v7960, 5
      %v7963 = vsel %vm1020, %v7958, %v7962
      %v7965 = vshrl.u32 %v7664, 16
      %v7967 = vrot.slane %v7965, 4
      %v7968 = vshll.u32 %v7664, 16
      %v7970 = vrot.slane %v7968, 5
      %v7971 = vor.u32 %v7967, %v7970
      %v7972 = vrot.slane %v7971, 4
      %v7974 = vshll.u32 %v7665, 16
      %v7976 = vrot.slane %v7974, 5
      %v7977 = vsel %vm1020, %v7972, %v7976
      %v7978 = vshrl.u32 %v7665, 16
      %v7980 = vrot.slane %v7978, 4
      %v7981 = vor.u32 %v7980, %v7976
      %v7982 = vrot.slane %v7981, 4
      %v7984 = vshll.u32 %v7666, 16
      %v7986 = vrot.slane %v7984, 5
      %v7987 = vsel %vm1020, %v7982, %v7986
      %v7989 = vshrl.u32 %v7667, 16
      %v7991 = vrot.slane %v7989, 4
      %v7992 = vshll.u32 %v7667, 16
      %v7994 = vrot.slane %v7992, 5
      %v7995 = vor.u32 %v7991, %v7994
      %v7996 = vrot.slane %v7995, 4
      %v7998 = vshll.u32 %v7668, 16
      %v8000 = vrot.slane %v7998, 5
      %v8001 = vsel %vm1020, %v7996, %v8000
      %v8002 = vshrl.u32 %v7668, 16
      %v8004 = vrot.slane %v8002, 4
      %v8005 = vor.u32 %v8004, %v8000
      %v8006 = vrot.slane %v8005, 4
      %v8008 = vshll.u32 %v7669, 16
      %v8010 = vrot.slane %v8008, 5
      %v8011 = vsel %vm1020, %v8006, %v8010
      %v8013 = vshrl.u32 %v7670, 16
      %v8015 = vrot.slane %v8013, 4
      %v8016 = vshll.u32 %v7670, 16
      %v8018 = vrot.slane %v8016, 5
      %v8019 = vor.u32 %v8015, %v8018
      %v8020 = vrot.slane %v8019, 4
      %v8022 = vshll.u32 %v7671, 16
      %v8024 = vrot.slane %v8022, 5
      %v8025 = vsel %vm1020, %v8020, %v8024
      %v8026 = vshrl.u32 %v7671, 16
      %v8028 = vrot.slane %v8026, 4
      %v8029 = vor.u32 %v8028, %v8024
      %v8030 = vrot.slane %v8029, 4
      %v8032 = vshll.u32 %v7672, 16
      %v8034 = vrot.slane %v8032, 5
      %v8035 = vsel %vm1020, %v8030, %v8034
      %v8037 = vshrl.u32 %v7673, 16
      %v8039 = vrot.slane %v8037, 4
      %v8040 = vshll.u32 %v7673, 16
      %v8042 = vrot.slane %v8040, 5
      %v8043 = vor.u32 %v8039, %v8042
      %v8044 = vrot.slane %v8043, 4
      %v8046 = vshll.u32 %v7674, 16
      %v8048 = vrot.slane %v8046, 5
      %v8049 = vsel %vm1020, %v8044, %v8048
      %v8050 = vshrl.u32 %v7674, 16
      %v8052 = vrot.slane %v8050, 4
      %v8053 = vor.u32 %v8052, %v8048
      %v8054 = vrot.slane %v8053, 4
      %v8056 = vshll.u32 %v7675, 16
      %v8058 = vrot.slane %v8056, 5
      %v8059 = vsel %vm1020, %v8054, %v8058
      %s8060 = scalar_lea.vmem %s2, 14
      %v8061 = vld [vmem:[%s8060] sm:$0x3]
      %v8062 = vunpack.c.l.b16 %v7257
      %v8063 = vunpack.c.l.b16 %v7267
      %v8064 = vunpack.c.l.b16 %v7281
      %v8065 = vunpack.c.l.b16 %v7291
      %v8066 = vunpack.c.l.b16 %v7305
      %v8067 = vunpack.c.l.b16 %v7315
      %v8068 = vunpack.c.l.b16 %v7329
      %v8069 = vunpack.c.l.b16 %v7339
      %v8070 = vunpack.c.l.b16 %v7353
      %v8071 = vunpack.c.l.b16 %v7363
      %v8072 = vunpack.c.l.b16 %v7377
      %v8073 = vunpack.c.l.b16 %v7387
      %v8074 = vunpack.c.l.b16 %v7401
      %v8075 = vunpack.c.l.b16 %v7411
      %v8076 = vunpack.c.l.b16 %v7425
      %v8077 = vunpack.c.l.b16 %v7435
      %v8078 = vunpack.c.l.b16 %v7449
      %v8079 = vunpack.c.l.b16 %v7459
      %v8080 = vunpack.c.l.b16 %v7473
      %v8081 = vunpack.c.l.b16 %v7483
      %v8082 = vunpack.c.l.b16 %v7497
      %v8083 = vunpack.c.l.b16 %v7507
      %v8084 = vunpack.c.l.b16 %v7521
      %v8085 = vunpack.c.l.b16 %v7531
      %v8086 = vunpack.c.l.b16 %v7545
      %v8087 = vunpack.c.l.b16 %v7555
      %v8088 = vunpack.c.l.b16 %v7569
      %v8089 = vunpack.c.l.b16 %v7579
      %v8090 = vunpack.c.l.b16 %v7593
      %v8091 = vunpack.c.l.b16 %v7603
      %v8092 = vunpack.c.l.b16 %v7617
      %v8093 = vunpack.c.l.b16 %v7627
      %v8094 = vpack.c.b16 %v8063, %v8062
      %v8095 = vpack.c.b16 %v8065, %v8064
      %v8096 = vpack.c.b16 %v8067, %v8066
      %v8097 = vpack.c.b16 %v8069, %v8068
      %v8098 = vpack.c.b16 %v8071, %v8070
      %v8099 = vpack.c.b16 %v8073, %v8072
      %v8100 = vpack.c.b16 %v8075, %v8074
      %v8101 = vpack.c.b16 %v8077, %v8076
      %v8102 = vpack.c.b16 %v8079, %v8078
      %v8103 = vpack.c.b16 %v8081, %v8080
      %v8104 = vpack.c.b16 %v8083, %v8082
      %v8105 = vpack.c.b16 %v8085, %v8084
      %v8106 = vpack.c.b16 %v8087, %v8086
      %v8107 = vpack.c.b16 %v8089, %v8088
      %v8108 = vpack.c.b16 %v8091, %v8090
      %v8109 = vpack.c.b16 %v8093, %v8092
      %v8111 = vsel %vm399, %v8094, 0
      %v8114 = vsel %vm399, %v8095, 0
      %v8117 = vsel %vm399, %v8096, 0
      %v8120 = vsel %vm399, %v8097, 0
      %v8123 = vsel %vm399, %v8098, 0
      %v8126 = vsel %vm399, %v8099, 0
      %v8129 = vsel %vm399, %v8100, 0
      %v8132 = vsel %vm399, %v8101, 0
      %v8135 = vsel %vm399, %v8102, 0
      %v8138 = vsel %vm399, %v8103, 0
      %v8141 = vsel %vm399, %v8104, 0
      %v8144 = vsel %vm399, %v8105, 0
      %v8147 = vsel %vm399, %v8106, 0
      %v8150 = vsel %vm399, %v8107, 0
      %v8153 = vsel %vm399, %v8108, 0
      %v8156 = vsel %vm399, %v8109, 0
      %v8159 = vsel %vm448, %v8061, 0
      %8161 = vmatprep.subr.bf16.mxu0 0
      %8162 = vmatpush1.bf16.msra.mxu0 %v8159
      %8163 = vmatprep.subr.bf16.mxu0 0
      %8164 = vmatpush1.bf16.msra.mxu0 0
      %8165 = vmatprep.subr.bf16.mxu0 0
      %8166 = vmatpush1.bf16.msra.mxu0 0
      %8167 = vmatprep.subr.bf16.mxu0 0
      %8168 = vmatpush1.bf16.msra.mxu0 0
      %8169 = vmatprep.subr.bf16.mxu0 0
      %8170 = vmatpush1.bf16.msra.mxu0 0
      %8171 = vmatprep.subr.bf16.mxu0 0
      %8172 = vmatpush1.bf16.msra.mxu0 0
      %8173 = vmatprep.subr.bf16.mxu0 0
      %8174 = vmatpush1.bf16.msra.mxu0 0
      %8175 = vmatprep.subr.bf16.mxu0 0
      %8176 = vmatpush1.bf16.msra.mxu0 0
      %8177 = vmatprep.subr.bf16.mxu0 0
      %8178 = vmatpush1.bf16.msra.mxu0 0
      %8179 = vmatprep.subr.bf16.mxu0 0
      %8180 = vmatpush1.bf16.msra.mxu0 0
      %8181 = vmatprep.subr.bf16.mxu0 0
      %8182 = vmatpush1.bf16.msra.mxu0 0
      %8183 = vmatprep.subr.bf16.mxu0 0
      %8184 = vmatpush1.bf16.msra.mxu0 0
      %8185 = vmatprep.subr.bf16.mxu0 0
      %8186 = vmatpush1.bf16.msra.mxu0 0
      %8187 = vmatprep.subr.bf16.mxu0 0
      %8188 = vmatpush1.bf16.msra.mxu0 0
      %8189 = vmatprep.subr.bf16.mxu0 0
      %8190 = vmatpush1.bf16.msra.mxu0 0
      %8191 = vmatprep.subr.bf16.mxu0 0
      %8192 = vmatpush1.bf16.msra.mxu0 0
      %8193 = vmatprep.mubr.bf16.mxu0 0
      %8194 = vmatmul.mubr.bf16.gmra.mrb[0].mxu0 %v8111
      %v8195 = vpop.f32.mrb[0].mxu0
      %v8196 = vadd.f32 0.0, %v8195
      %v8197 = vpop.f32.mrb[0].mxu0
      %v8198 = vpop.f32.mrb[0].mxu0
      %v8199 = vadd.f32 0.0, %v8198
      %v8200 = vpop.f32.mrb[0].mxu0
      %8201 = vmatprep.mubr.bf16.mxu0 0
      %8202 = vmatmul.mubr.bf16.gmra.mrb[0].mxu0 %v8114
      %v8203 = vpop.f32.mrb[0].mxu0
      %v8204 = vadd.f32 0.0, %v8203
      %v8205 = vpop.f32.mrb[0].mxu0
      %v8206 = vpop.f32.mrb[0].mxu0
      %v8207 = vadd.f32 0.0, %v8206
      %v8208 = vpop.f32.mrb[0].mxu0
      %8209 = vmatprep.mubr.bf16.mxu0 0
      %8210 = vmatmul.mubr.bf16.gmra.mrb[0].mxu0 %v8117
      %v8211 = vpop.f32.mrb[0].mxu0
      %v8212 = vadd.f32 0.0, %v8211
      %v8213 = vpop.f32.mrb[0].mxu0
      %v8214 = vpop.f32.mrb[0].mxu0
      %v8215 = vadd.f32 0.0, %v8214
      %v8216 = vpop.f32.mrb[0].mxu0
      %8217 = vmatprep.mubr.bf16.mxu0 0
      %8218 = vmatmul.mubr.bf16.gmra.mrb[0].mxu0 %v8120
      %v8219 = vpop.f32.mrb[0].mxu0
      %v8220 = vadd.f32 0.0, %v8219
      %v8221 = vpop.f32.mrb[0].mxu0
      %v8222 = vpop.f32.mrb[0].mxu0
      %v8223 = vadd.f32 0.0, %v8222
      %v8224 = vpop.f32.mrb[0].mxu0
      %8225 = vmatprep.mubr.bf16.mxu0 0
      %8226 = vmatmul.mubr.bf16.gmra.mrb[0].mxu0 %v8123
      %v8227 = vpop.f32.mrb[0].mxu0
      %v8228 = vadd.f32 0.0, %v8227
      %v8229 = vpop.f32.mrb[0].mxu0
      %v8230 = vpop.f32.mrb[0].mxu0
      %v8231 = vadd.f32 0.0, %v8230
      %v8232 = vpop.f32.mrb[0].mxu0
      %8233 = vmatprep.mubr.bf16.mxu0 0
      %8234 = vmatmul.mubr.bf16.gmra.mrb[0].mxu0 %v8126
      %v8235 = vpop.f32.mrb[0].mxu0
      %v8236 = vadd.f32 0.0, %v8235
      %v8237 = vpop.f32.mrb[0].mxu0
      %v8238 = vpop.f32.mrb[0].mxu0
      %v8239 = vadd.f32 0.0, %v8238
      %v8240 = vpop.f32.mrb[0].mxu0
      %8241 = vmatprep.mubr.bf16.mxu0 0
      %8242 = vmatmul.mubr.bf16.gmra.mrb[0].mxu0 %v8129
      %v8243 = vpop.f32.mrb[0].mxu0
      %v8244 = vadd.f32 0.0, %v8243
      %v8245 = vpop.f32.mrb[0].mxu0
      %v8246 = vpop.f32.mrb[0].mxu0
      %v8247 = vadd.f32 0.0, %v8246
      %v8248 = vpop.f32.mrb[0].mxu0
      %8249 = vmatprep.mubr.bf16.mxu0 0
      %8250 = vmatmul.mubr.bf16.gmra.mrb[0].mxu0 %v8132
      %v8251 = vpop.f32.mrb[0].mxu0
      %v8252 = vadd.f32 0.0, %v8251
      %v8253 = vpop.f32.mrb[0].mxu0
      %v8254 = vpop.f32.mrb[0].mxu0
      %v8255 = vadd.f32 0.0, %v8254
      %v8256 = vpop.f32.mrb[0].mxu0
      %8257 = vmatprep.mubr.bf16.mxu0 0
      %8258 = vmatmul.mubr.bf16.gmra.mrb[0].mxu0 %v8135
      %v8259 = vpop.f32.mrb[0].mxu0
      %v8260 = vadd.f32 0.0, %v8259
      %v8261 = vpop.f32.mrb[0].mxu0
      %v8262 = vpop.f32.mrb[0].mxu0
      %v8263 = vadd.f32 0.0, %v8262
      %v8264 = vpop.f32.mrb[0].mxu0
      %8265 = vmatprep.mubr.bf16.mxu0 0
      %8266 = vmatmul.mubr.bf16.gmra.mrb[0].mxu0 %v8138
      %v8267 = vpop.f32.mrb[0].mxu0
      %v8268 = vadd.f32 0.0, %v8267
      %v8269 = vpop.f32.mrb[0].mxu0
      %v8270 = vpop.f32.mrb[0].mxu0
      %v8271 = vadd.f32 0.0, %v8270
      %v8272 = vpop.f32.mrb[0].mxu0
      %8273 = vmatprep.mubr.bf16.mxu0 0
      %8274 = vmatmul.mubr.bf16.gmra.mrb[0].mxu0 %v8141
      %v8275 = vpop.f32.mrb[0].mxu0
      %v8276 = vadd.f32 0.0, %v8275
      %v8277 = vpop.f32.mrb[0].mxu0
      %v8278 = vpop.f32.mrb[0].mxu0
      %v8279 = vadd.f32 0.0, %v8278
      %v8280 = vpop.f32.mrb[0].mxu0
      %8281 = vmatprep.mubr.bf16.mxu0 0
      %8282 = vmatmul.mubr.bf16.gmra.mrb[0].mxu0 %v8144
      %v8283 = vpop.f32.mrb[0].mxu0
      %v8284 = vadd.f32 0.0, %v8283
      %v8285 = vpop.f32.mrb[0].mxu0
      %v8286 = vpop.f32.mrb[0].mxu0
      %v8287 = vadd.f32 0.0, %v8286
      %v8288 = vpop.f32.mrb[0].mxu0
      %8289 = vmatprep.mubr.bf16.mxu0 0
      %8290 = vmatmul.mubr.bf16.gmra.mrb[0].mxu0 %v8147
      %v8291 = vpop.f32.mrb[0].mxu0
      %v8292 = vadd.f32 0.0, %v8291
      %v8293 = vpop.f32.mrb[0].mxu0
      %v8294 = vpop.f32.mrb[0].mxu0
      %v8295 = vadd.f32 0.0, %v8294
      %v8296 = vpop.f32.mrb[0].mxu0
      %8297 = vmatprep.mubr.bf16.mxu0 0
      %8298 = vmatmul.mubr.bf16.gmra.mrb[0].mxu0 %v8150
      %v8299 = vpop.f32.mrb[0].mxu0
      %v8300 = vadd.f32 0.0, %v8299
      %v8301 = vpop.f32.mrb[0].mxu0
      %v8302 = vpop.f32.mrb[0].mxu0
      %v8303 = vadd.f32 0.0, %v8302
      %v8304 = vpop.f32.mrb[0].mxu0
      %8305 = vmatprep.mubr.bf16.mxu0 0
      %8306 = vmatmul.mubr.bf16.gmra.mrb[0].mxu0 %v8153
      %v8307 = vpop.f32.mrb[0].mxu0
      %v8308 = vadd.f32 0.0, %v8307
      %v8309 = vpop.f32.mrb[0].mxu0
      %v8310 = vpop.f32.mrb[0].mxu0
      %v8311 = vadd.f32 0.0, %v8310
      %v8312 = vpop.f32.mrb[0].mxu0
      %8313 = vmatprep.mubr.bf16.mxu0 0
      %8314 = vmatmul.mubr.bf16.gmra.mrb[0].mxu0 %v8156
      %v8315 = vpop.f32.mrb[0].mxu0
      %v8316 = vadd.f32 0.0, %v8315
      %v8317 = vpop.f32.mrb[0].mxu0
      %v8318 = vpop.f32.mrb[0].mxu0
      %v8319 = vadd.f32 0.0, %v8318
      %v8320 = vpop.f32.mrb[0].mxu0
      %8321 = vdwg.mxu0
      %v8322 = vadd.f32 %v7164, %v8196
      %v8323 = vadd.f32 %v7165, %v8199
      %v8324 = vadd.f32 %v7166, %v8204
      %v8325 = vadd.f32 %v7167, %v8207
      %v8326 = vadd.f32 %v7168, %v8212
      %v8327 = vadd.f32 %v7169, %v8215
      %v8328 = vadd.f32 %v7170, %v8220
      %v8329 = vadd.f32 %v7171, %v8223
      %v8330 = vadd.f32 %v7172, %v8228
      %v8331 = vadd.f32 %v7173, %v8231
      %v8332 = vadd.f32 %v7174, %v8236
      %v8333 = vadd.f32 %v7175, %v8239
      %v8334 = vadd.f32 %v7176, %v8244
      %v8335 = vadd.f32 %v7177, %v8247
      %v8336 = vadd.f32 %v7178, %v8252
      %v8337 = vadd.f32 %v7179, %v8255
      %v8338 = vadd.f32 %v7180, %v8260
      %v8339 = vadd.f32 %v7181, %v8263
      %v8340 = vadd.f32 %v7182, %v8268
      %v8341 = vadd.f32 %v7183, %v8271
      %v8342 = vadd.f32 %v7184, %v8276
      %v8343 = vadd.f32 %v7185, %v8279
      %v8344 = vadd.f32 %v7186, %v8284
      %v8345 = vadd.f32 %v7187, %v8287
      %v8346 = vadd.f32 %v7188, %v8292
      %v8347 = vadd.f32 %v7189, %v8295
      %v8348 = vadd.f32 %v7190, %v8300
      %v8349 = vadd.f32 %v7191, %v8303
      %v8350 = vadd.f32 %v7192, %v8308
      %v8351 = vadd.f32 %v7193, %v8311
      %v8352 = vadd.f32 %v7194, %v8316
      %v8353 = vadd.f32 %v7195, %v8319
      %s8354 = scalar_lea.vmem %s3, 14
      %v8355 = vld [vmem:[%s8354] sm:$0x3]
      %v8356 = vunpack.c.l.b16 %v7689
      %v8357 = vunpack.c.l.b16 %v7699
      %v8358 = vunpack.c.l.b16 %v7713
      %v8359 = vunpack.c.l.b16 %v7723
      %v8360 = vunpack.c.l.b16 %v7737
      %v8361 = vunpack.c.l.b16 %v7747
      %v8362 = vunpack.c.l.b16 %v7761
      %v8363 = vunpack.c.l.b16 %v7771
      %v8364 = vunpack.c.l.b16 %v7785
      %v8365 = vunpack.c.l.b16 %v7795
      %v8366 = vunpack.c.l.b16 %v7809
      %v8367 = vunpack.c.l.b16 %v7819
      %v8368 = vunpack.c.l.b16 %v7833
      %v8369 = vunpack.c.l.b16 %v7843
      %v8370 = vunpack.c.l.b16 %v7857
      %v8371 = vunpack.c.l.b16 %v7867
      %v8372 = vunpack.c.l.b16 %v7881
      %v8373 = vunpack.c.l.b16 %v7891
      %v8374 = vunpack.c.l.b16 %v7905
      %v8375 = vunpack.c.l.b16 %v7915
      %v8376 = vunpack.c.l.b16 %v7929
      %v8377 = vunpack.c.l.b16 %v7939
      %v8378 = vunpack.c.l.b16 %v7953
      %v8379 = vunpack.c.l.b16 %v7963
      %v8380 = vunpack.c.l.b16 %v7977
      %v8381 = vunpack.c.l.b16 %v7987
      %v8382 = vunpack.c.l.b16 %v8001
      %v8383 = vunpack.c.l.b16 %v8011
      %v8384 = vunpack.c.l.b16 %v8025
      %v8385 = vunpack.c.l.b16 %v8035
      %v8386 = vunpack.c.l.b16 %v8049
      %v8387 = vunpack.c.l.b16 %v8059
      %v8388 = vpack.c.b16 %v8357, %v8356
      %v8389 = vpack.c.b16 %v8359, %v8358
      %v8390 = vpack.c.b16 %v8361, %v8360
      %v8391 = vpack.c.b16 %v8363, %v8362
      %v8392 = vpack.c.b16 %v8365, %v8364
      %v8393 = vpack.c.b16 %v8367, %v8366
      %v8394 = vpack.c.b16 %v8369, %v8368
      %v8395 = vpack.c.b16 %v8371, %v8370
      %v8396 = vpack.c.b16 %v8373, %v8372
      %v8397 = vpack.c.b16 %v8375, %v8374
      %v8398 = vpack.c.b16 %v8377, %v8376
      %v8399 = vpack.c.b16 %v8379, %v8378
      %v8400 = vpack.c.b16 %v8381, %v8380
      %v8401 = vpack.c.b16 %v8383, %v8382
      %v8402 = vpack.c.b16 %v8385, %v8384
      %v8403 = vpack.c.b16 %v8387, %v8386
      %v8405 = vsel %vm399, %v8388, 0
      %v8408 = vsel %vm399, %v8389, 0
      %v8411 = vsel %vm399, %v8390, 0
      %v8414 = vsel %vm399, %v8391, 0
      %v8417 = vsel %vm399, %v8392, 0
      %v8420 = vsel %vm399, %v8393, 0
      %v8423 = vsel %vm399, %v8394, 0
      %v8426 = vsel %vm399, %v8395, 0
      %v8429 = vsel %vm399, %v8396, 0
      %v8432 = vsel %vm399, %v8397, 0
      %v8435 = vsel %vm399, %v8398, 0
      %v8438 = vsel %vm399, %v8399, 0
      %v8441 = vsel %vm399, %v8400, 0
      %v8444 = vsel %vm399, %v8401, 0
      %v8447 = vsel %vm399, %v8402, 0
      %v8450 = vsel %vm399, %v8403, 0
      %v8453 = vsel %vm448, %v8355, 0
      %8455 = vmatprep.subr.bf16.mxu0 0
      %8456 = vmatpush1.bf16.msra.mxu0 %v8453
      %8457 = vmatprep.subr.bf16.mxu0 0
      %8458 = vmatpush1.bf16.msra.mxu0 0
      %8459 = vmatprep.subr.bf16.mxu0 0
      %8460 = vmatpush1.bf16.msra.mxu0 0
      %8461 = vmatprep.subr.bf16.mxu0 0
      %8462 = vmatpush1.bf16.msra.mxu0 0
      %8463 = vmatprep.subr.bf16.mxu0 0
      %8464 = vmatpush1.bf16.msra.mxu0 0
      %8465 = vmatprep.subr.bf16.mxu0 0
      %8466 = vmatpush1.bf16.msra.mxu0 0
      %8467 = vmatprep.subr.bf16.mxu0 0
      %8468 = vmatpush1.bf16.msra.mxu0 0
      %8469 = vmatprep.subr.bf16.mxu0 0
      %8470 = vmatpush1.bf16.msra.mxu0 0
      %8471 = vmatprep.subr.bf16.mxu0 0
      %8472 = vmatpush1.bf16.msra.mxu0 0
      %8473 = vmatprep.subr.bf16.mxu0 0
      %8474 = vmatpush1.bf16.msra.mxu0 0
      %8475 = vmatprep.subr.bf16.mxu0 0
      %8476 = vmatpush1.bf16.msra.mxu0 0
      %8477 = vmatprep.subr.bf16.mxu0 0
      %8478 = vmatpush1.bf16.msra.mxu0 0
      %8479 = vmatprep.subr.bf16.mxu0 0
      %8480 = vmatpush1.bf16.msra.mxu0 0
      %8481 = vmatprep.subr.bf16.mxu0 0
      %8482 = vmatpush1.bf16.msra.mxu0 0
      %8483 = vmatprep.subr.bf16.mxu0 0
      %8484 = vmatpush1.bf16.msra.mxu0 0
      %8485 = vmatprep.subr.bf16.mxu0 0
      %8486 = vmatpush1.bf16.msra.mxu0 0
      %8487 = vmatprep.mubr.bf16.mxu0 0
      %8488 = vmatmul.mubr.bf16.gmra.mrb[0].mxu0 %v8405
      %v8489 = vpop.f32.mrb[0].mxu0
      %v8490 = vadd.f32 0.0, %v8489
      %v8491 = vpop.f32.mrb[0].mxu0
      %v8492 = vpop.f32.mrb[0].mxu0
      %v8493 = vadd.f32 0.0, %v8492
      %v8494 = vpop.f32.mrb[0].mxu0
      %8495 = vmatprep.mubr.bf16.mxu0 0
      %8496 = vmatmul.mubr.bf16.gmra.mrb[0].mxu0 %v8408
      %v8497 = vpop.f32.mrb[0].mxu0
      %v8498 = vadd.f32 0.0, %v8497
      %v8499 = vpop.f32.mrb[0].mxu0
      %v8500 = vpop.f32.mrb[0].mxu0
      %v8501 = vadd.f32 0.0, %v8500
      %v8502 = vpop.f32.mrb[0].mxu0
      %8503 = vmatprep.mubr.bf16.mxu0 0
      %8504 = vmatmul.mubr.bf16.gmra.mrb[0].mxu0 %v8411
      %v8505 = vpop.f32.mrb[0].mxu0
      %v8506 = vadd.f32 0.0, %v8505
      %v8507 = vpop.f32.mrb[0].mxu0
      %v8508 = vpop.f32.mrb[0].mxu0
      %v8509 = vadd.f32 0.0, %v8508
      %v8510 = vpop.f32.mrb[0].mxu0
      %8511 = vmatprep.mubr.bf16.mxu0 0
      %8512 = vmatmul.mubr.bf16.gmra.mrb[0].mxu0 %v8414
      %v8513 = vpop.f32.mrb[0].mxu0
      %v8514 = vadd.f32 0.0, %v8513
      %v8515 = vpop.f32.mrb[0].mxu0
      %v8516 = vpop.f32.mrb[0].mxu0
      %v8517 = vadd.f32 0.0, %v8516
      %v8518 = vpop.f32.mrb[0].mxu0
      %8519 = vmatprep.mubr.bf16.mxu0 0
      %8520 = vmatmul.mubr.bf16.gmra.mrb[0].mxu0 %v8417
      %v8521 = vpop.f32.mrb[0].mxu0
      %v8522 = vadd.f32 0.0, %v8521
      %v8523 = vpop.f32.mrb[0].mxu0
      %v8524 = vpop.f32.mrb[0].mxu0
      %v8525 = vadd.f32 0.0, %v8524
      %v8526 = vpop.f32.mrb[0].mxu0
      %8527 = vmatprep.mubr.bf16.mxu0 0
      %8528 = vmatmul.mubr.bf16.gmra.mrb[0].mxu0 %v8420
      %v8529 = vpop.f32.mrb[0].mxu0
      %v8530 = vadd.f32 0.0, %v8529
      %v8531 = vpop.f32.mrb[0].mxu0
      %v8532 = vpop.f32.mrb[0].mxu0
      %v8533 = vadd.f32 0.0, %v8532
      %v8534 = vpop.f32.mrb[0].mxu0
      %8535 = vmatprep.mubr.bf16.mxu0 0
      %8536 = vmatmul.mubr.bf16.gmra.mrb[0].mxu0 %v8423
      %v8537 = vpop.f32.mrb[0].mxu0
      %v8538 = vadd.f32 0.0, %v8537
      %v8539 = vpop.f32.mrb[0].mxu0
      %v8540 = vpop.f32.mrb[0].mxu0
      %v8541 = vadd.f32 0.0, %v8540
      %v8542 = vpop.f32.mrb[0].mxu0
      %8543 = vmatprep.mubr.bf16.mxu0 0
      %8544 = vmatmul.mubr.bf16.gmra.mrb[0].mxu0 %v8426
      %v8545 = vpop.f32.mrb[0].mxu0
      %v8546 = vadd.f32 0.0, %v8545
      %v8547 = vpop.f32.mrb[0].mxu0
      %v8548 = vpop.f32.mrb[0].mxu0
      %v8549 = vadd.f32 0.0, %v8548
      %v8550 = vpop.f32.mrb[0].mxu0
      %8551 = vmatprep.mubr.bf16.mxu0 0
      %8552 = vmatmul.mubr.bf16.gmra.mrb[0].mxu0 %v8429
      %v8553 = vpop.f32.mrb[0].mxu0
      %v8554 = vadd.f32 0.0, %v8553
      %v8555 = vpop.f32.mrb[0].mxu0
      %v8556 = vpop.f32.mrb[0].mxu0
      %v8557 = vadd.f32 0.0, %v8556
      %v8558 = vpop.f32.mrb[0].mxu0
      %8559 = vmatprep.mubr.bf16.mxu0 0
      %8560 = vmatmul.mubr.bf16.gmra.mrb[0].mxu0 %v8432
      %v8561 = vpop.f32.mrb[0].mxu0
      %v8562 = vadd.f32 0.0, %v8561
      %v8563 = vpop.f32.mrb[0].mxu0
      %v8564 = vpop.f32.mrb[0].mxu0
      %v8565 = vadd.f32 0.0, %v8564
      %v8566 = vpop.f32.mrb[0].mxu0
      %8567 = vmatprep.mubr.bf16.mxu0 0
      %8568 = vmatmul.mubr.bf16.gmra.mrb[0].mxu0 %v8435
      %v8569 = vpop.f32.mrb[0].mxu0
      %v8570 = vadd.f32 0.0, %v8569
      %v8571 = vpop.f32.mrb[0].mxu0
      %v8572 = vpop.f32.mrb[0].mxu0
      %v8573 = vadd.f32 0.0, %v8572
      %v8574 = vpop.f32.mrb[0].mxu0
      %8575 = vmatprep.mubr.bf16.mxu0 0
      %8576 = vmatmul.mubr.bf16.gmra.mrb[0].mxu0 %v8438
      %v8577 = vpop.f32.mrb[0].mxu0
      %v8578 = vadd.f32 0.0, %v8577
      %v8579 = vpop.f32.mrb[0].mxu0
      %v8580 = vpop.f32.mrb[0].mxu0
      %v8581 = vadd.f32 0.0, %v8580
      %v8582 = vpop.f32.mrb[0].mxu0
      %8583 = vmatprep.mubr.bf16.mxu0 0
      %8584 = vmatmul.mubr.bf16.gmra.mrb[0].mxu0 %v8441
      %v8585 = vpop.f32.mrb[0].mxu0
      %v8586 = vadd.f32 0.0, %v8585
      %v8587 = vpop.f32.mrb[0].mxu0
      %v8588 = vpop.f32.mrb[0].mxu0
      %v8589 = vadd.f32 0.0, %v8588
      %v8590 = vpop.f32.mrb[0].mxu0
      %8591 = vmatprep.mubr.bf16.mxu0 0
      %8592 = vmatmul.mubr.bf16.gmra.mrb[0].mxu0 %v8444
      %v8593 = vpop.f32.mrb[0].mxu0
      %v8594 = vadd.f32 0.0, %v8593
      %v8595 = vpop.f32.mrb[0].mxu0
      %v8596 = vpop.f32.mrb[0].mxu0
      %v8597 = vadd.f32 0.0, %v8596
      %v8598 = vpop.f32.mrb[0].mxu0
      %8599 = vmatprep.mubr.bf16.mxu0 0
      %8600 = vmatmul.mubr.bf16.gmra.mrb[0].mxu0 %v8447
      %v8601 = vpop.f32.mrb[0].mxu0
      %v8602 = vadd.f32 0.0, %v8601
      %v8603 = vpop.f32.mrb[0].mxu0
      %v8604 = vpop.f32.mrb[0].mxu0
      %v8605 = vadd.f32 0.0, %v8604
      %v8606 = vpop.f32.mrb[0].mxu0
      %8607 = vmatprep.mubr.bf16.mxu0 0
      %8608 = vmatmul.mubr.bf16.gmra.mrb[0].mxu0 %v8450
      %v8609 = vpop.f32.mrb[0].mxu0
      %v8610 = vadd.f32 0.0, %v8609
      %v8611 = vpop.f32.mrb[0].mxu0
      %v8612 = vpop.f32.mrb[0].mxu0
      %v8613 = vadd.f32 0.0, %v8612
      %v8614 = vpop.f32.mrb[0].mxu0
      %8615 = vdwg.mxu0
      %v8616 = vadd.f32 %v8322, %v8490
      %v8617 = vadd.f32 %v8323, %v8493
      %v8618 = vadd.f32 %v8324, %v8498
      %v8619 = vadd.f32 %v8325, %v8501
      %v8620 = vadd.f32 %v8326, %v8506
      %v8621 = vadd.f32 %v8327, %v8509
      %v8622 = vadd.f32 %v8328, %v8514
      %v8623 = vadd.f32 %v8329, %v8517
      %v8624 = vadd.f32 %v8330, %v8522
      %v8625 = vadd.f32 %v8331, %v8525
      %v8626 = vadd.f32 %v8332, %v8530
      %v8627 = vadd.f32 %v8333, %v8533
      %v8628 = vadd.f32 %v8334, %v8538
      %v8629 = vadd.f32 %v8335, %v8541
      %v8630 = vadd.f32 %v8336, %v8546
      %v8631 = vadd.f32 %v8337, %v8549
      %v8632 = vadd.f32 %v8338, %v8554
      %v8633 = vadd.f32 %v8339, %v8557
      %v8634 = vadd.f32 %v8340, %v8562
      %v8635 = vadd.f32 %v8341, %v8565
      %v8636 = vadd.f32 %v8342, %v8570
      %v8637 = vadd.f32 %v8343, %v8573
      %v8638 = vadd.f32 %v8344, %v8578
      %v8639 = vadd.f32 %v8345, %v8581
      %v8640 = vadd.f32 %v8346, %v8586
      %v8641 = vadd.f32 %v8347, %v8589
      %v8642 = vadd.f32 %v8348, %v8594
      %v8643 = vadd.f32 %v8349, %v8597
      %v8644 = vadd.f32 %v8350, %v8602
      %v8645 = vadd.f32 %v8351, %v8605
      %v8646 = vadd.f32 %v8352, %v8610
      %v8647 = vadd.f32 %v8353, %v8613
      %v8648 = vld [vmem:[%s6478] sm:$0xe]
      %v8649 = vld [vmem:[%s6478 + $0xc] sm:$0xe]
      %v8650 = vld [vmem:[%s6478 + $0x18] sm:$0xe]
      %v8651 = vld [vmem:[%s6478 + $0x24] sm:$0xe]
      %v8652 = vld [vmem:[%s6478 + $0x30] sm:$0xe]
      %v8653 = vld [vmem:[%s6478 + $0x3c] sm:$0xe]
      %v8654 = vld [vmem:[%s6478 + $0x48] sm:$0xe]
      %v8655 = vld [vmem:[%s6478 + $0x54] sm:$0xe]
      %v8656 = vld [vmem:[%s6478 + $0x60] sm:$0xe]
      %v8657 = vld [vmem:[%s6478 + $0x6c] sm:$0xe]
      %v8658 = vld [vmem:[%s6478 + $0x78] sm:$0xe]
      %v8659 = vld [vmem:[%s6478 + $0x84] sm:$0xe]
      %v8660 = vld [vmem:[%s6478 + $0x90] sm:$0xe]
      %v8661 = vld [vmem:[%s6478 + $0x9c] sm:$0xe]
      %v8662 = vld [vmem:[%s6478 + $0xa8] sm:$0xe]
      %v8663 = vld [vmem:[%s6478 + $0xb4] sm:$0xe]
      %v8712 = vrot.slane %v8648, 5
      %v8713 = vrot.slane %v8712, 4
      %v8714 = vrot.slane %v7197, 5
      %v8715 = vsel %vm2491, %v8713, %v8714
      %v8716 = vrot.slane %v8714, 4
      %v8717 = vrot.slane %v7198, 5
      %v8718 = vsel %vm2491, %v8716, %v8717
      %v8719 = vrot.slane %v8649, 5
      %v8720 = vrot.slane %v8719, 4
      %v8721 = vrot.slane %v7200, 5
      %v8722 = vsel %vm2491, %v8720, %v8721
      %v8723 = vrot.slane %v8721, 4
      %v8724 = vrot.slane %v7201, 5
      %v8725 = vsel %vm2491, %v8723, %v8724
      %v8726 = vrot.slane %v8650, 5
      %v8727 = vrot.slane %v8726, 4
      %v8728 = vrot.slane %v7203, 5
      %v8729 = vsel %vm2491, %v8727, %v8728
      %v8730 = vrot.slane %v8728, 4
      %v8731 = vrot.slane %v7204, 5
      %v8732 = vsel %vm2491, %v8730, %v8731
      %v8733 = vrot.slane %v8651, 5
      %v8734 = vrot.slane %v8733, 4
      %v8735 = vrot.slane %v7206, 5
      %v8736 = vsel %vm2491, %v8734, %v8735
      %v8737 = vrot.slane %v8735, 4
      %v8738 = vrot.slane %v7207, 5
      %v8739 = vsel %vm2491, %v8737, %v8738
      %v8740 = vrot.slane %v8652, 5
      %v8741 = vrot.slane %v8740, 4
      %v8742 = vrot.slane %v7209, 5
      %v8743 = vsel %vm2491, %v8741, %v8742
      %v8744 = vrot.slane %v8742, 4
      %v8745 = vrot.slane %v7210, 5
      %v8746 = vsel %vm2491, %v8744, %v8745
      %v8747 = vrot.slane %v8653, 5
      %v8748 = vrot.slane %v8747, 4
      %v8749 = vrot.slane %v7212, 5
      %v8750 = vsel %vm2491, %v8748, %v8749
      %v8751 = vrot.slane %v8749, 4
      %v8752 = vrot.slane %v7213, 5
      %v8753 = vsel %vm2491, %v8751, %v8752
      %v8754 = vrot.slane %v8654, 5
      %v8755 = vrot.slane %v8754, 4
      %v8756 = vrot.slane %v7215, 5
      %v8757 = vsel %vm2491, %v8755, %v8756
      %v8758 = vrot.slane %v8756, 4
      %v8759 = vrot.slane %v7216, 5
      %v8760 = vsel %vm2491, %v8758, %v8759
      %v8761 = vrot.slane %v8655, 5
      %v8762 = vrot.slane %v8761, 4
      %v8763 = vrot.slane %v7218, 5
      %v8764 = vsel %vm2491, %v8762, %v8763
      %v8765 = vrot.slane %v8763, 4
      %v8766 = vrot.slane %v7219, 5
      %v8767 = vsel %vm2491, %v8765, %v8766
      %v8768 = vrot.slane %v8656, 5
      %v8769 = vrot.slane %v8768, 4
      %v8770 = vrot.slane %v7221, 5
      %v8771 = vsel %vm2491, %v8769, %v8770
      %v8772 = vrot.slane %v8770, 4
      %v8773 = vrot.slane %v7222, 5
      %v8774 = vsel %vm2491, %v8772, %v8773
      %v8775 = vrot.slane %v8657, 5
      %v8776 = vrot.slane %v8775, 4
      %v8777 = vrot.slane %v7224, 5
      %v8778 = vsel %vm2491, %v8776, %v8777
      %v8779 = vrot.slane %v8777, 4
      %v8780 = vrot.slane %v7225, 5
      %v8781 = vsel %vm2491, %v8779, %v8780
      %v8782 = vrot.slane %v8658, 5
      %v8783 = vrot.slane %v8782, 4
      %v8784 = vrot.slane %v7227, 5
      %v8785 = vsel %vm2491, %v8783, %v8784
      %v8786 = vrot.slane %v8784, 4
      %v8787 = vrot.slane %v7228, 5
      %v8788 = vsel %vm2491, %v8786, %v8787
      %v8789 = vrot.slane %v8659, 5
      %v8790 = vrot.slane %v8789, 4
      %v8791 = vrot.slane %v7230, 5
      %v8792 = vsel %vm2491, %v8790, %v8791
      %v8793 = vrot.slane %v8791, 4
      %v8794 = vrot.slane %v7231, 5
      %v8795 = vsel %vm2491, %v8793, %v8794
      %v8796 = vrot.slane %v8660, 5
      %v8797 = vrot.slane %v8796, 4
      %v8798 = vrot.slane %v7233, 5
      %v8799 = vsel %vm2491, %v8797, %v8798
      %v8800 = vrot.slane %v8798, 4
      %v8801 = vrot.slane %v7234, 5
      %v8802 = vsel %vm2491, %v8800, %v8801
      %v8803 = vrot.slane %v8661, 5
      %v8804 = vrot.slane %v8803, 4
      %v8805 = vrot.slane %v7236, 5
      %v8806 = vsel %vm2491, %v8804, %v8805
      %v8807 = vrot.slane %v8805, 4
      %v8808 = vrot.slane %v7237, 5
      %v8809 = vsel %vm2491, %v8807, %v8808
      %v8810 = vrot.slane %v8662, 5
      %v8811 = vrot.slane %v8810, 4
      %v8812 = vrot.slane %v7239, 5
      %v8813 = vsel %vm2491, %v8811, %v8812
      %v8814 = vrot.slane %v8812, 4
      %v8815 = vrot.slane %v7240, 5
      %v8816 = vsel %vm2491, %v8814, %v8815
      %v8817 = vrot.slane %v8663, 5
      %v8818 = vrot.slane %v8817, 4
      %v8819 = vrot.slane %v7242, 5
      %v8820 = vsel %vm2491, %v8818, %v8819
      %v8821 = vrot.slane %v8819, 4
      %v8822 = vrot.slane %v7243, 5
      %v8823 = vsel %vm2491, %v8821, %v8822
      %v8824 = vld [vmem:[%s6511] sm:$0xe]
      %v8825 = vld [vmem:[%s6511 + $0xc] sm:$0xe]
      %v8826 = vld [vmem:[%s6511 + $0x18] sm:$0xe]
      %v8827 = vld [vmem:[%s6511 + $0x24] sm:$0xe]
      %v8828 = vld [vmem:[%s6511 + $0x30] sm:$0xe]
      %v8829 = vld [vmem:[%s6511 + $0x3c] sm:$0xe]
      %v8830 = vld [vmem:[%s6511 + $0x48] sm:$0xe]
      %v8831 = vld [vmem:[%s6511 + $0x54] sm:$0xe]
      %v8832 = vld [vmem:[%s6511 + $0x60] sm:$0xe]
      %v8833 = vld [vmem:[%s6511 + $0x6c] sm:$0xe]
      %v8834 = vld [vmem:[%s6511 + $0x78] sm:$0xe]
      %v8835 = vld [vmem:[%s6511 + $0x84] sm:$0xe]
      %v8836 = vld [vmem:[%s6511 + $0x90] sm:$0xe]
      %v8837 = vld [vmem:[%s6511 + $0x9c] sm:$0xe]
      %v8838 = vld [vmem:[%s6511 + $0xa8] sm:$0xe]
      %v8839 = vld [vmem:[%s6511 + $0xb4] sm:$0xe]
      %v8888 = vrot.slane %v8824, 5
      %v8889 = vrot.slane %v8888, 4
      %v8890 = vrot.slane %v7629, 5
      %v8891 = vsel %vm2491, %v8889, %v8890
      %v8892 = vrot.slane %v8890, 4
      %v8893 = vrot.slane %v7630, 5
      %v8894 = vsel %vm2491, %v8892, %v8893
      %v8895 = vrot.slane %v8825, 5
      %v8896 = vrot.slane %v8895, 4
      %v8897 = vrot.slane %v7632, 5
      %v8898 = vsel %vm2491, %v8896, %v8897
      %v8899 = vrot.slane %v8897, 4
      %v8900 = vrot.slane %v7633, 5
      %v8901 = vsel %vm2491, %v8899, %v8900
      %v8902 = vrot.slane %v8826, 5
      %v8903 = vrot.slane %v8902, 4
      %v8904 = vrot.slane %v7635, 5
      %v8905 = vsel %vm2491, %v8903, %v8904
      %v8906 = vrot.slane %v8904, 4
      %v8907 = vrot.slane %v7636, 5
      %v8908 = vsel %vm2491, %v8906, %v8907
      %v8909 = vrot.slane %v8827, 5
      %v8910 = vrot.slane %v8909, 4
      %v8911 = vrot.slane %v7638, 5
      %v8912 = vsel %vm2491, %v8910, %v8911
      %v8913 = vrot.slane %v8911, 4
      %v8914 = vrot.slane %v7639, 5
      %v8915 = vsel %vm2491, %v8913, %v8914
      %v8916 = vrot.slane %v8828, 5
      %v8917 = vrot.slane %v8916, 4
      %v8918 = vrot.slane %v7641, 5
      %v8919 = vsel %vm2491, %v8917, %v8918
      %v8920 = vrot.slane %v8918, 4
      %v8921 = vrot.slane %v7642, 5
      %v8922 = vsel %vm2491, %v8920, %v8921
      %v8923 = vrot.slane %v8829, 5
      %v8924 = vrot.slane %v8923, 4
      %v8925 = vrot.slane %v7644, 5
      %v8926 = vsel %vm2491, %v8924, %v8925
      %v8927 = vrot.slane %v8925, 4
      %v8928 = vrot.slane %v7645, 5
      %v8929 = vsel %vm2491, %v8927, %v8928
      %v8930 = vrot.slane %v8830, 5
      %v8931 = vrot.slane %v8930, 4
      %v8932 = vrot.slane %v7647, 5
      %v8933 = vsel %vm2491, %v8931, %v8932
      %v8934 = vrot.slane %v8932, 4
      %v8935 = vrot.slane %v7648, 5
      %v8936 = vsel %vm2491, %v8934, %v8935
      %v8937 = vrot.slane %v8831, 5
      %v8938 = vrot.slane %v8937, 4
      %v8939 = vrot.slane %v7650, 5
      %v8940 = vsel %vm2491, %v8938, %v8939
      %v8941 = vrot.slane %v8939, 4
      %v8942 = vrot.slane %v7651, 5
      %v8943 = vsel %vm2491, %v8941, %v8942
      %v8944 = vrot.slane %v8832, 5
      %v8945 = vrot.slane %v8944, 4
      %v8946 = vrot.slane %v7653, 5
      %v8947 = vsel %vm2491, %v8945, %v8946
      %v8948 = vrot.slane %v8946, 4
      %v8949 = vrot.slane %v7654, 5
      %v8950 = vsel %vm2491, %v8948, %v8949
      %v8951 = vrot.slane %v8833, 5
      %v8952 = vrot.slane %v8951, 4
      %v8953 = vrot.slane %v7656, 5
      %v8954 = vsel %vm2491, %v8952, %v8953
      %v8955 = vrot.slane %v8953, 4
      %v8956 = vrot.slane %v7657, 5
      %v8957 = vsel %vm2491, %v8955, %v8956
      %v8958 = vrot.slane %v8834, 5
      %v8959 = vrot.slane %v8958, 4
      %v8960 = vrot.slane %v7659, 5
      %v8961 = vsel %vm2491, %v8959, %v8960
      %v8962 = vrot.slane %v8960, 4
      %v8963 = vrot.slane %v7660, 5
      %v8964 = vsel %vm2491, %v8962, %v8963
      %v8965 = vrot.slane %v8835, 5
      %v8966 = vrot.slane %v8965, 4
      %v8967 = vrot.slane %v7662, 5
      %v8968 = vsel %vm2491, %v8966, %v8967
      %v8969 = vrot.slane %v8967, 4
      %v8970 = vrot.slane %v7663, 5
      %v8971 = vsel %vm2491, %v8969, %v8970
      %v8972 = vrot.slane %v8836, 5
      %v8973 = vrot.slane %v8972, 4
      %v8974 = vrot.slane %v7665, 5
      %v8975 = vsel %vm2491, %v8973, %v8974
      %v8976 = vrot.slane %v8974, 4
      %v8977 = vrot.slane %v7666, 5
      %v8978 = vsel %vm2491, %v8976, %v8977
      %v8979 = vrot.slane %v8837, 5
      %v8980 = vrot.slane %v8979, 4
      %v8981 = vrot.slane %v7668, 5
      %v8982 = vsel %vm2491, %v8980, %v8981
      %v8983 = vrot.slane %v8981, 4
      %v8984 = vrot.slane %v7669, 5
      %v8985 = vsel %vm2491, %v8983, %v8984
      %v8986 = vrot.slane %v8838, 5
      %v8987 = vrot.slane %v8986, 4
      %v8988 = vrot.slane %v7671, 5
      %v8989 = vsel %vm2491, %v8987, %v8988
      %v8990 = vrot.slane %v8988, 4
      %v8991 = vrot.slane %v7672, 5
      %v8992 = vsel %vm2491, %v8990, %v8991
      %v8993 = vrot.slane %v8839, 5
      %v8994 = vrot.slane %v8993, 4
      %v8995 = vrot.slane %v7674, 5
      %v8996 = vsel %vm2491, %v8994, %v8995
      %v8997 = vrot.slane %v8995, 4
      %v8998 = vrot.slane %v7675, 5
      %v8999 = vsel %vm2491, %v8997, %v8998
      %s9000 = scalar_lea.vmem %s2, 16
      %v9001 = vld [vmem:[%s9000] sm:$0x3]
      %v9002 = vunpack.c.l.b16 %v8715
      %v9003 = vunpack.c.l.b16 %v8718
      %v9004 = vunpack.c.l.b16 %v8722
      %v9005 = vunpack.c.l.b16 %v8725
      %v9006 = vunpack.c.l.b16 %v8729
      %v9007 = vunpack.c.l.b16 %v8732
      %v9008 = vunpack.c.l.b16 %v8736
      %v9009 = vunpack.c.l.b16 %v8739
      %v9010 = vunpack.c.l.b16 %v8743
      %v9011 = vunpack.c.l.b16 %v8746
      %v9012 = vunpack.c.l.b16 %v8750
      %v9013 = vunpack.c.l.b16 %v8753
      %v9014 = vunpack.c.l.b16 %v8757
      %v9015 = vunpack.c.l.b16 %v8760
      %v9016 = vunpack.c.l.b16 %v8764
      %v9017 = vunpack.c.l.b16 %v8767
      %v9018 = vunpack.c.l.b16 %v8771
      %v9019 = vunpack.c.l.b16 %v8774
      %v9020 = vunpack.c.l.b16 %v8778
      %v9021 = vunpack.c.l.b16 %v8781
      %v9022 = vunpack.c.l.b16 %v8785
      %v9023 = vunpack.c.l.b16 %v8788
      %v9024 = vunpack.c.l.b16 %v8792
      %v9025 = vunpack.c.l.b16 %v8795
      %v9026 = vunpack.c.l.b16 %v8799
      %v9027 = vunpack.c.l.b16 %v8802
      %v9028 = vunpack.c.l.b16 %v8806
      %v9029 = vunpack.c.l.b16 %v8809
      %v9030 = vunpack.c.l.b16 %v8813
      %v9031 = vunpack.c.l.b16 %v8816
      %v9032 = vunpack.c.l.b16 %v8820
      %v9033 = vunpack.c.l.b16 %v8823
      %v9034 = vpack.c.b16 %v9003, %v9002
      %v9035 = vpack.c.b16 %v9005, %v9004
      %v9036 = vpack.c.b16 %v9007, %v9006
      %v9037 = vpack.c.b16 %v9009, %v9008
      %v9038 = vpack.c.b16 %v9011, %v9010
      %v9039 = vpack.c.b16 %v9013, %v9012
      %v9040 = vpack.c.b16 %v9015, %v9014
      %v9041 = vpack.c.b16 %v9017, %v9016
      %v9042 = vpack.c.b16 %v9019, %v9018
      %v9043 = vpack.c.b16 %v9021, %v9020
      %v9044 = vpack.c.b16 %v9023, %v9022
      %v9045 = vpack.c.b16 %v9025, %v9024
      %v9046 = vpack.c.b16 %v9027, %v9026
      %v9047 = vpack.c.b16 %v9029, %v9028
      %v9048 = vpack.c.b16 %v9031, %v9030
      %v9049 = vpack.c.b16 %v9033, %v9032
      %v9051 = vsel %vm399, %v9034, 0
      %v9054 = vsel %vm399, %v9035, 0
      %v9057 = vsel %vm399, %v9036, 0
      %v9060 = vsel %vm399, %v9037, 0
      %v9063 = vsel %vm399, %v9038, 0
      %v9066 = vsel %vm399, %v9039, 0
      %v9069 = vsel %vm399, %v9040, 0
      %v9072 = vsel %vm399, %v9041, 0
      %v9075 = vsel %vm399, %v9042, 0
      %v9078 = vsel %vm399, %v9043, 0
      %v9081 = vsel %vm399, %v9044, 0
      %v9084 = vsel %vm399, %v9045, 0
      %v9087 = vsel %vm399, %v9046, 0
      %v9090 = vsel %vm399, %v9047, 0
      %v9093 = vsel %vm399, %v9048, 0
      %v9096 = vsel %vm399, %v9049, 0
      %v9099 = vsel %vm448, %v9001, 0
      %9101 = vmatprep.subr.bf16.mxu0 0
      %9102 = vmatpush1.bf16.msra.mxu0 %v9099
      %9103 = vmatprep.subr.bf16.mxu0 0
      %9104 = vmatpush1.bf16.msra.mxu0 0
      %9105 = vmatprep.subr.bf16.mxu0 0
      %9106 = vmatpush1.bf16.msra.mxu0 0
      %9107 = vmatprep.subr.bf16.mxu0 0
      %9108 = vmatpush1.bf16.msra.mxu0 0
      %9109 = vmatprep.subr.bf16.mxu0 0
      %9110 = vmatpush1.bf16.msra.mxu0 0
      %9111 = vmatprep.subr.bf16.mxu0 0
      %9112 = vmatpush1.bf16.msra.mxu0 0
      %9113 = vmatprep.subr.bf16.mxu0 0
      %9114 = vmatpush1.bf16.msra.mxu0 0
      %9115 = vmatprep.subr.bf16.mxu0 0
      %9116 = vmatpush1.bf16.msra.mxu0 0
      %9117 = vmatprep.subr.bf16.mxu0 0
      %9118 = vmatpush1.bf16.msra.mxu0 0
      %9119 = vmatprep.subr.bf16.mxu0 0
      %9120 = vmatpush1.bf16.msra.mxu0 0
      %9121 = vmatprep.subr.bf16.mxu0 0
      %9122 = vmatpush1.bf16.msra.mxu0 0
      %9123 = vmatprep.subr.bf16.mxu0 0
      %9124 = vmatpush1.bf16.msra.mxu0 0
      %9125 = vmatprep.subr.bf16.mxu0 0
      %9126 = vmatpush1.bf16.msra.mxu0 0
      %9127 = vmatprep.subr.bf16.mxu0 0
      %9128 = vmatpush1.bf16.msra.mxu0 0
      %9129 = vmatprep.subr.bf16.mxu0 0
      %9130 = vmatpush1.bf16.msra.mxu0 0
      %9131 = vmatprep.subr.bf16.mxu0 0
      %9132 = vmatpush1.bf16.msra.mxu0 0
      %9133 = vmatprep.mubr.bf16.mxu0 0
      %9134 = vmatmul.mubr.bf16.gmra.mrb[0].mxu0 %v9051
      %v9135 = vpop.f32.mrb[0].mxu0
      %v9136 = vadd.f32 0.0, %v9135
      %v9137 = vpop.f32.mrb[0].mxu0
      %v9138 = vpop.f32.mrb[0].mxu0
      %v9139 = vadd.f32 0.0, %v9138
      %v9140 = vpop.f32.mrb[0].mxu0
      %9141 = vmatprep.mubr.bf16.mxu0 0
      %9142 = vmatmul.mubr.bf16.gmra.mrb[0].mxu0 %v9054
      %v9143 = vpop.f32.mrb[0].mxu0
      %v9144 = vadd.f32 0.0, %v9143
      %v9145 = vpop.f32.mrb[0].mxu0
      %v9146 = vpop.f32.mrb[0].mxu0
      %v9147 = vadd.f32 0.0, %v9146
      %v9148 = vpop.f32.mrb[0].mxu0
      %9149 = vmatprep.mubr.bf16.mxu0 0
      %9150 = vmatmul.mubr.bf16.gmra.mrb[0].mxu0 %v9057
      %v9151 = vpop.f32.mrb[0].mxu0
      %v9152 = vadd.f32 0.0, %v9151
      %v9153 = vpop.f32.mrb[0].mxu0
      %v9154 = vpop.f32.mrb[0].mxu0
      %v9155 = vadd.f32 0.0, %v9154
      %v9156 = vpop.f32.mrb[0].mxu0
      %9157 = vmatprep.mubr.bf16.mxu0 0
      %9158 = vmatmul.mubr.bf16.gmra.mrb[0].mxu0 %v9060
      %v9159 = vpop.f32.mrb[0].mxu0
      %v9160 = vadd.f32 0.0, %v9159
      %v9161 = vpop.f32.mrb[0].mxu0
      %v9162 = vpop.f32.mrb[0].mxu0
      %v9163 = vadd.f32 0.0, %v9162
      %v9164 = vpop.f32.mrb[0].mxu0
      %9165 = vmatprep.mubr.bf16.mxu0 0
      %9166 = vmatmul.mubr.bf16.gmra.mrb[0].mxu0 %v9063
      %v9167 = vpop.f32.mrb[0].mxu0
      %v9168 = vadd.f32 0.0, %v9167
      %v9169 = vpop.f32.mrb[0].mxu0
      %v9170 = vpop.f32.mrb[0].mxu0
      %v9171 = vadd.f32 0.0, %v9170
      %v9172 = vpop.f32.mrb[0].mxu0
      %9173 = vmatprep.mubr.bf16.mxu0 0
      %9174 = vmatmul.mubr.bf16.gmra.mrb[0].mxu0 %v9066
      %v9175 = vpop.f32.mrb[0].mxu0
      %v9176 = vadd.f32 0.0, %v9175
      %v9177 = vpop.f32.mrb[0].mxu0
      %v9178 = vpop.f32.mrb[0].mxu0
      %v9179 = vadd.f32 0.0, %v9178
      %v9180 = vpop.f32.mrb[0].mxu0
      %9181 = vmatprep.mubr.bf16.mxu0 0
      %9182 = vmatmul.mubr.bf16.gmra.mrb[0].mxu0 %v9069
      %v9183 = vpop.f32.mrb[0].mxu0
      %v9184 = vadd.f32 0.0, %v9183
      %v9185 = vpop.f32.mrb[0].mxu0
      %v9186 = vpop.f32.mrb[0].mxu0
      %v9187 = vadd.f32 0.0, %v9186
      %v9188 = vpop.f32.mrb[0].mxu0
      %9189 = vmatprep.mubr.bf16.mxu0 0
      %9190 = vmatmul.mubr.bf16.gmra.mrb[0].mxu0 %v9072
      %v9191 = vpop.f32.mrb[0].mxu0
      %v9192 = vadd.f32 0.0, %v9191
      %v9193 = vpop.f32.mrb[0].mxu0
      %v9194 = vpop.f32.mrb[0].mxu0
      %v9195 = vadd.f32 0.0, %v9194
      %v9196 = vpop.f32.mrb[0].mxu0
      %9197 = vmatprep.mubr.bf16.mxu0 0
      %9198 = vmatmul.mubr.bf16.gmra.mrb[0].mxu0 %v9075
      %v9199 = vpop.f32.mrb[0].mxu0
      %v9200 = vadd.f32 0.0, %v9199
      %v9201 = vpop.f32.mrb[0].mxu0
      %v9202 = vpop.f32.mrb[0].mxu0
      %v9203 = vadd.f32 0.0, %v9202
      %v9204 = vpop.f32.mrb[0].mxu0
      %9205 = vmatprep.mubr.bf16.mxu0 0
      %9206 = vmatmul.mubr.bf16.gmra.mrb[0].mxu0 %v9078
      %v9207 = vpop.f32.mrb[0].mxu0
      %v9208 = vadd.f32 0.0, %v9207
      %v9209 = vpop.f32.mrb[0].mxu0
      %v9210 = vpop.f32.mrb[0].mxu0
      %v9211 = vadd.f32 0.0, %v9210
      %v9212 = vpop.f32.mrb[0].mxu0
      %9213 = vmatprep.mubr.bf16.mxu0 0
      %9214 = vmatmul.mubr.bf16.gmra.mrb[0].mxu0 %v9081
      %v9215 = vpop.f32.mrb[0].mxu0
      %v9216 = vadd.f32 0.0, %v9215
      %v9217 = vpop.f32.mrb[0].mxu0
      %v9218 = vpop.f32.mrb[0].mxu0
      %v9219 = vadd.f32 0.0, %v9218
      %v9220 = vpop.f32.mrb[0].mxu0
      %9221 = vmatprep.mubr.bf16.mxu0 0
      %9222 = vmatmul.mubr.bf16.gmra.mrb[0].mxu0 %v9084
      %v9223 = vpop.f32.mrb[0].mxu0
      %v9224 = vadd.f32 0.0, %v9223
      %v9225 = vpop.f32.mrb[0].mxu0
      %v9226 = vpop.f32.mrb[0].mxu0
      %v9227 = vadd.f32 0.0, %v9226
      %v9228 = vpop.f32.mrb[0].mxu0
      %9229 = vmatprep.mubr.bf16.mxu0 0
      %9230 = vmatmul.mubr.bf16.gmra.mrb[0].mxu0 %v9087
      %v9231 = vpop.f32.mrb[0].mxu0
      %v9232 = vadd.f32 0.0, %v9231
      %v9233 = vpop.f32.mrb[0].mxu0
      %v9234 = vpop.f32.mrb[0].mxu0
      %v9235 = vadd.f32 0.0, %v9234
      %v9236 = vpop.f32.mrb[0].mxu0
      %9237 = vmatprep.mubr.bf16.mxu0 0
      %9238 = vmatmul.mubr.bf16.gmra.mrb[0].mxu0 %v9090
      %v9239 = vpop.f32.mrb[0].mxu0
      %v9240 = vadd.f32 0.0, %v9239
      %v9241 = vpop.f32.mrb[0].mxu0
      %v9242 = vpop.f32.mrb[0].mxu0
      %v9243 = vadd.f32 0.0, %v9242
      %v9244 = vpop.f32.mrb[0].mxu0
      %9245 = vmatprep.mubr.bf16.mxu0 0
      %9246 = vmatmul.mubr.bf16.gmra.mrb[0].mxu0 %v9093
      %v9247 = vpop.f32.mrb[0].mxu0
      %v9248 = vadd.f32 0.0, %v9247
      %v9249 = vpop.f32.mrb[0].mxu0
      %v9250 = vpop.f32.mrb[0].mxu0
      %v9251 = vadd.f32 0.0, %v9250
      %v9252 = vpop.f32.mrb[0].mxu0
      %9253 = vmatprep.mubr.bf16.mxu0 0
      %9254 = vmatmul.mubr.bf16.gmra.mrb[0].mxu0 %v9096
      %v9255 = vpop.f32.mrb[0].mxu0
      %v9256 = vadd.f32 0.0, %v9255
      %v9257 = vpop.f32.mrb[0].mxu0
      %v9258 = vpop.f32.mrb[0].mxu0
      %v9259 = vadd.f32 0.0, %v9258
      %v9260 = vpop.f32.mrb[0].mxu0
      %9261 = vdwg.mxu0
      %v9262 = vadd.f32 %v8616, %v9136
      %v9263 = vadd.f32 %v8617, %v9139
      %v9264 = vadd.f32 %v8618, %v9144
      %v9265 = vadd.f32 %v8619, %v9147
      %v9266 = vadd.f32 %v8620, %v9152
      %v9267 = vadd.f32 %v8621, %v9155
      %v9268 = vadd.f32 %v8622, %v9160
      %v9269 = vadd.f32 %v8623, %v9163
      %v9270 = vadd.f32 %v8624, %v9168
      %v9271 = vadd.f32 %v8625, %v9171
      %v9272 = vadd.f32 %v8626, %v9176
      %v9273 = vadd.f32 %v8627, %v9179
      %v9274 = vadd.f32 %v8628, %v9184
      %v9275 = vadd.f32 %v8629, %v9187
      %v9276 = vadd.f32 %v8630, %v9192
      %v9277 = vadd.f32 %v8631, %v9195
      %v9278 = vadd.f32 %v8632, %v9200
      %v9279 = vadd.f32 %v8633, %v9203
      %v9280 = vadd.f32 %v8634, %v9208
      %v9281 = vadd.f32 %v8635, %v9211
      %v9282 = vadd.f32 %v8636, %v9216
      %v9283 = vadd.f32 %v8637, %v9219
      %v9284 = vadd.f32 %v8638, %v9224
      %v9285 = vadd.f32 %v8639, %v9227
      %v9286 = vadd.f32 %v8640, %v9232
      %v9287 = vadd.f32 %v8641, %v9235
      %v9288 = vadd.f32 %v8642, %v9240
      %v9289 = vadd.f32 %v8643, %v9243
      %v9290 = vadd.f32 %v8644, %v9248
      %v9291 = vadd.f32 %v8645, %v9251
      %v9292 = vadd.f32 %v8646, %v9256
      %v9293 = vadd.f32 %v8647, %v9259
      %s9294 = scalar_lea.vmem %s3, 16
      %v9295 = vld [vmem:[%s9294] sm:$0x3]
      %v9296 = vunpack.c.l.b16 %v8891
      %v9297 = vunpack.c.l.b16 %v8894
      %v9298 = vunpack.c.l.b16 %v8898
      %v9299 = vunpack.c.l.b16 %v8901
      %v9300 = vunpack.c.l.b16 %v8905
      %v9301 = vunpack.c.l.b16 %v8908
      %v9302 = vunpack.c.l.b16 %v8912
      %v9303 = vunpack.c.l.b16 %v8915
      %v9304 = vunpack.c.l.b16 %v8919
      %v9305 = vunpack.c.l.b16 %v8922
      %v9306 = vunpack.c.l.b16 %v8926
      %v9307 = vunpack.c.l.b16 %v8929
      %v9308 = vunpack.c.l.b16 %v8933
      %v9309 = vunpack.c.l.b16 %v8936
      %v9310 = vunpack.c.l.b16 %v8940
      %v9311 = vunpack.c.l.b16 %v8943
      %v9312 = vunpack.c.l.b16 %v8947
      %v9313 = vunpack.c.l.b16 %v8950
      %v9314 = vunpack.c.l.b16 %v8954
      %v9315 = vunpack.c.l.b16 %v8957
      %v9316 = vunpack.c.l.b16 %v8961
      %v9317 = vunpack.c.l.b16 %v8964
      %v9318 = vunpack.c.l.b16 %v8968
      %v9319 = vunpack.c.l.b16 %v8971
      %v9320 = vunpack.c.l.b16 %v8975
      %v9321 = vunpack.c.l.b16 %v8978
      %v9322 = vunpack.c.l.b16 %v8982
      %v9323 = vunpack.c.l.b16 %v8985
      %v9324 = vunpack.c.l.b16 %v8989
      %v9325 = vunpack.c.l.b16 %v8992
      %v9326 = vunpack.c.l.b16 %v8996
      %v9327 = vunpack.c.l.b16 %v8999
      %v9328 = vpack.c.b16 %v9297, %v9296
      %v9329 = vpack.c.b16 %v9299, %v9298
      %v9330 = vpack.c.b16 %v9301, %v9300
      %v9331 = vpack.c.b16 %v9303, %v9302
      %v9332 = vpack.c.b16 %v9305, %v9304
      %v9333 = vpack.c.b16 %v9307, %v9306
      %v9334 = vpack.c.b16 %v9309, %v9308
      %v9335 = vpack.c.b16 %v9311, %v9310
      %v9336 = vpack.c.b16 %v9313, %v9312
      %v9337 = vpack.c.b16 %v9315, %v9314
      %v9338 = vpack.c.b16 %v9317, %v9316
      %v9339 = vpack.c.b16 %v9319, %v9318
      %v9340 = vpack.c.b16 %v9321, %v9320
      %v9341 = vpack.c.b16 %v9323, %v9322
      %v9342 = vpack.c.b16 %v9325, %v9324
      %v9343 = vpack.c.b16 %v9327, %v9326
      %v9345 = vsel %vm399, %v9328, 0
      %v9348 = vsel %vm399, %v9329, 0
      %v9351 = vsel %vm399, %v9330, 0
      %v9354 = vsel %vm399, %v9331, 0
      %v9357 = vsel %vm399, %v9332, 0
      %v9360 = vsel %vm399, %v9333, 0
      %v9363 = vsel %vm399, %v9334, 0
      %v9366 = vsel %vm399, %v9335, 0
      %v9369 = vsel %vm399, %v9336, 0
      %v9372 = vsel %vm399, %v9337, 0
      %v9375 = vsel %vm399, %v9338, 0
      %v9378 = vsel %vm399, %v9339, 0
      %v9381 = vsel %vm399, %v9340, 0
      %v9384 = vsel %vm399, %v9341, 0
      %v9387 = vsel %vm399, %v9342, 0
      %v9390 = vsel %vm399, %v9343, 0
      %v9393 = vsel %vm448, %v9295, 0
      %9395 = vmatprep.subr.bf16.mxu0 0
      %9396 = vmatpush1.bf16.msra.mxu0 %v9393
      %9397 = vmatprep.subr.bf16.mxu0 0
      %9398 = vmatpush1.bf16.msra.mxu0 0
      %9399 = vmatprep.subr.bf16.mxu0 0
      %9400 = vmatpush1.bf16.msra.mxu0 0
      %9401 = vmatprep.subr.bf16.mxu0 0
      %9402 = vmatpush1.bf16.msra.mxu0 0
      %9403 = vmatprep.subr.bf16.mxu0 0
      %9404 = vmatpush1.bf16.msra.mxu0 0
      %9405 = vmatprep.subr.bf16.mxu0 0
      %9406 = vmatpush1.bf16.msra.mxu0 0
      %9407 = vmatprep.subr.bf16.mxu0 0
      %9408 = vmatpush1.bf16.msra.mxu0 0
      %9409 = vmatprep.subr.bf16.mxu0 0
      %9410 = vmatpush1.bf16.msra.mxu0 0
      %9411 = vmatprep.subr.bf16.mxu0 0
      %9412 = vmatpush1.bf16.msra.mxu0 0
      %9413 = vmatprep.subr.bf16.mxu0 0
      %9414 = vmatpush1.bf16.msra.mxu0 0
      %9415 = vmatprep.subr.bf16.mxu0 0
      %9416 = vmatpush1.bf16.msra.mxu0 0
      %9417 = vmatprep.subr.bf16.mxu0 0
      %9418 = vmatpush1.bf16.msra.mxu0 0
      %9419 = vmatprep.subr.bf16.mxu0 0
      %9420 = vmatpush1.bf16.msra.mxu0 0
      %9421 = vmatprep.subr.bf16.mxu0 0
      %9422 = vmatpush1.bf16.msra.mxu0 0
      %9423 = vmatprep.subr.bf16.mxu0 0
      %9424 = vmatpush1.bf16.msra.mxu0 0
      %9425 = vmatprep.subr.bf16.mxu0 0
      %9426 = vmatpush1.bf16.msra.mxu0 0
      %9427 = vmatprep.mubr.bf16.mxu0 0
      %9428 = vmatmul.mubr.bf16.gmra.mrb[0].mxu0 %v9345
      %v9429 = vpop.f32.mrb[0].mxu0
      %v9430 = vadd.f32 0.0, %v9429
      %v9431 = vpop.f32.mrb[0].mxu0
      %v9432 = vpop.f32.mrb[0].mxu0
      %v9433 = vadd.f32 0.0, %v9432
      %v9434 = vpop.f32.mrb[0].mxu0
      %9435 = vmatprep.mubr.bf16.mxu0 0
      %9436 = vmatmul.mubr.bf16.gmra.mrb[0].mxu0 %v9348
      %v9437 = vpop.f32.mrb[0].mxu0
      %v9438 = vadd.f32 0.0, %v9437
      %v9439 = vpop.f32.mrb[0].mxu0
      %v9440 = vpop.f32.mrb[0].mxu0
      %v9441 = vadd.f32 0.0, %v9440
      %v9442 = vpop.f32.mrb[0].mxu0
      %9443 = vmatprep.mubr.bf16.mxu0 0
      %9444 = vmatmul.mubr.bf16.gmra.mrb[0].mxu0 %v9351
      %v9445 = vpop.f32.mrb[0].mxu0
      %v9446 = vadd.f32 0.0, %v9445
      %v9447 = vpop.f32.mrb[0].mxu0
      %v9448 = vpop.f32.mrb[0].mxu0
      %v9449 = vadd.f32 0.0, %v9448
      %v9450 = vpop.f32.mrb[0].mxu0
      %9451 = vmatprep.mubr.bf16.mxu0 0
      %9452 = vmatmul.mubr.bf16.gmra.mrb[0].mxu0 %v9354
      %v9453 = vpop.f32.mrb[0].mxu0
      %v9454 = vadd.f32 0.0, %v9453
      %v9455 = vpop.f32.mrb[0].mxu0
      %v9456 = vpop.f32.mrb[0].mxu0
      %v9457 = vadd.f32 0.0, %v9456
      %v9458 = vpop.f32.mrb[0].mxu0
      %9459 = vmatprep.mubr.bf16.mxu0 0
      %9460 = vmatmul.mubr.bf16.gmra.mrb[0].mxu0 %v9357
      %v9461 = vpop.f32.mrb[0].mxu0
      %v9462 = vadd.f32 0.0, %v9461
      %v9463 = vpop.f32.mrb[0].mxu0
      %v9464 = vpop.f32.mrb[0].mxu0
      %v9465 = vadd.f32 0.0, %v9464
      %v9466 = vpop.f32.mrb[0].mxu0
      %9467 = vmatprep.mubr.bf16.mxu0 0
      %9468 = vmatmul.mubr.bf16.gmra.mrb[0].mxu0 %v9360
      %v9469 = vpop.f32.mrb[0].mxu0
      %v9470 = vadd.f32 0.0, %v9469
      %v9471 = vpop.f32.mrb[0].mxu0
      %v9472 = vpop.f32.mrb[0].mxu0
      %v9473 = vadd.f32 0.0, %v9472
      %v9474 = vpop.f32.mrb[0].mxu0
      %9475 = vmatprep.mubr.bf16.mxu0 0
      %9476 = vmatmul.mubr.bf16.gmra.mrb[0].mxu0 %v9363
      %v9477 = vpop.f32.mrb[0].mxu0
      %v9478 = vadd.f32 0.0, %v9477
      %v9479 = vpop.f32.mrb[0].mxu0
      %v9480 = vpop.f32.mrb[0].mxu0
      %v9481 = vadd.f32 0.0, %v9480
      %v9482 = vpop.f32.mrb[0].mxu0
      %9483 = vmatprep.mubr.bf16.mxu0 0
      %9484 = vmatmul.mubr.bf16.gmra.mrb[0].mxu0 %v9366
      %v9485 = vpop.f32.mrb[0].mxu0
      %v9486 = vadd.f32 0.0, %v9485
      %v9487 = vpop.f32.mrb[0].mxu0
      %v9488 = vpop.f32.mrb[0].mxu0
      %v9489 = vadd.f32 0.0, %v9488
      %v9490 = vpop.f32.mrb[0].mxu0
      %9491 = vmatprep.mubr.bf16.mxu0 0
      %9492 = vmatmul.mubr.bf16.gmra.mrb[0].mxu0 %v9369
      %v9493 = vpop.f32.mrb[0].mxu0
      %v9494 = vadd.f32 0.0, %v9493
      %v9495 = vpop.f32.mrb[0].mxu0
      %v9496 = vpop.f32.mrb[0].mxu0
      %v9497 = vadd.f32 0.0, %v9496
      %v9498 = vpop.f32.mrb[0].mxu0
      %9499 = vmatprep.mubr.bf16.mxu0 0
      %9500 = vmatmul.mubr.bf16.gmra.mrb[0].mxu0 %v9372
      %v9501 = vpop.f32.mrb[0].mxu0
      %v9502 = vadd.f32 0.0, %v9501
      %v9503 = vpop.f32.mrb[0].mxu0
      %v9504 = vpop.f32.mrb[0].mxu0
      %v9505 = vadd.f32 0.0, %v9504
      %v9506 = vpop.f32.mrb[0].mxu0
      %9507 = vmatprep.mubr.bf16.mxu0 0
      %9508 = vmatmul.mubr.bf16.gmra.mrb[0].mxu0 %v9375
      %v9509 = vpop.f32.mrb[0].mxu0
      %v9510 = vadd.f32 0.0, %v9509
      %v9511 = vpop.f32.mrb[0].mxu0
      %v9512 = vpop.f32.mrb[0].mxu0
      %v9513 = vadd.f32 0.0, %v9512
      %v9514 = vpop.f32.mrb[0].mxu0
      %9515 = vmatprep.mubr.bf16.mxu0 0
      %9516 = vmatmul.mubr.bf16.gmra.mrb[0].mxu0 %v9378
      %v9517 = vpop.f32.mrb[0].mxu0
      %v9518 = vadd.f32 0.0, %v9517
      %v9519 = vpop.f32.mrb[0].mxu0
      %v9520 = vpop.f32.mrb[0].mxu0
      %v9521 = vadd.f32 0.0, %v9520
      %v9522 = vpop.f32.mrb[0].mxu0
      %9523 = vmatprep.mubr.bf16.mxu0 0
      %9524 = vmatmul.mubr.bf16.gmra.mrb[0].mxu0 %v9381
      %v9525 = vpop.f32.mrb[0].mxu0
      %v9526 = vadd.f32 0.0, %v9525
      %v9527 = vpop.f32.mrb[0].mxu0
      %v9528 = vpop.f32.mrb[0].mxu0
      %v9529 = vadd.f32 0.0, %v9528
      %v9530 = vpop.f32.mrb[0].mxu0
      %9531 = vmatprep.mubr.bf16.mxu0 0
      %9532 = vmatmul.mubr.bf16.gmra.mrb[0].mxu0 %v9384
      %v9533 = vpop.f32.mrb[0].mxu0
      %v9534 = vadd.f32 0.0, %v9533
      %v9535 = vpop.f32.mrb[0].mxu0
      %v9536 = vpop.f32.mrb[0].mxu0
      %v9537 = vadd.f32 0.0, %v9536
      %v9538 = vpop.f32.mrb[0].mxu0
      %9539 = vmatprep.mubr.bf16.mxu0 0
      %9540 = vmatmul.mubr.bf16.gmra.mrb[0].mxu0 %v9387
      %v9541 = vpop.f32.mrb[0].mxu0
      %v9542 = vadd.f32 0.0, %v9541
      %v9543 = vpop.f32.mrb[0].mxu0
      %v9544 = vpop.f32.mrb[0].mxu0
      %v9545 = vadd.f32 0.0, %v9544
      %v9546 = vpop.f32.mrb[0].mxu0
      %9547 = vmatprep.mubr.bf16.mxu0 0
      %9548 = vmatmul.mubr.bf16.gmra.mrb[0].mxu0 %v9390
      %v9549 = vpop.f32.mrb[0].mxu0
      %v9550 = vadd.f32 0.0, %v9549
      %v9551 = vpop.f32.mrb[0].mxu0
      %v9552 = vpop.f32.mrb[0].mxu0
      %v9553 = vadd.f32 0.0, %v9552
      %v9554 = vpop.f32.mrb[0].mxu0
      %9555 = vdwg.mxu0
      %v9556 = vadd.f32 %v9262, %v9430
      %v9557 = vadd.f32 %v9263, %v9433
      %v9558 = vadd.f32 %v9264, %v9438
      %v9559 = vadd.f32 %v9265, %v9441
      %v9560 = vadd.f32 %v9266, %v9446
      %v9561 = vadd.f32 %v9267, %v9449
      %v9562 = vadd.f32 %v9268, %v9454
      %v9563 = vadd.f32 %v9269, %v9457
      %v9564 = vadd.f32 %v9270, %v9462
      %v9565 = vadd.f32 %v9271, %v9465
      %v9566 = vadd.f32 %v9272, %v9470
      %v9567 = vadd.f32 %v9273, %v9473
      %v9568 = vadd.f32 %v9274, %v9478
      %v9569 = vadd.f32 %v9275, %v9481
      %v9570 = vadd.f32 %v9276, %v9486
      %v9571 = vadd.f32 %v9277, %v9489
      %v9572 = vadd.f32 %v9278, %v9494
      %v9573 = vadd.f32 %v9279, %v9497
      %v9574 = vadd.f32 %v9280, %v9502
      %v9575 = vadd.f32 %v9281, %v9505
      %v9576 = vadd.f32 %v9282, %v9510
      %v9577 = vadd.f32 %v9283, %v9513
      %v9578 = vadd.f32 %v9284, %v9518
      %v9579 = vadd.f32 %v9285, %v9521
      %v9580 = vadd.f32 %v9286, %v9526
      %v9581 = vadd.f32 %v9287, %v9529
      %v9582 = vadd.f32 %v9288, %v9534
      %v9583 = vadd.f32 %v9289, %v9537
      %v9584 = vadd.f32 %v9290, %v9542
      %v9585 = vadd.f32 %v9291, %v9545
      %v9586 = vadd.f32 %v9292, %v9550
      %v9587 = vadd.f32 %v9293, %v9553
      %vm9588 = vcmp.ge.f32.partialorder %v9556, 0.0
      %vm9589 = vcmp.ge.f32.partialorder %v9557, 0.0
      %vm9590 = vcmp.ge.f32.partialorder %v9558, 0.0
      %vm9591 = vcmp.ge.f32.partialorder %v9559, 0.0
      %vm9592 = vcmp.ge.f32.partialorder %v9560, 0.0
      %vm9593 = vcmp.ge.f32.partialorder %v9561, 0.0
      %vm9594 = vcmp.ge.f32.partialorder %v9562, 0.0
      %vm9595 = vcmp.ge.f32.partialorder %v9563, 0.0
      %vm9596 = vcmp.ge.f32.partialorder %v9564, 0.0
      %vm9597 = vcmp.ge.f32.partialorder %v9565, 0.0
      %vm9598 = vcmp.ge.f32.partialorder %v9566, 0.0
      %vm9599 = vcmp.ge.f32.partialorder %v9567, 0.0
      %vm9600 = vcmp.ge.f32.partialorder %v9568, 0.0
      %vm9601 = vcmp.ge.f32.partialorder %v9569, 0.0
      %vm9602 = vcmp.ge.f32.partialorder %v9570, 0.0
      %vm9603 = vcmp.ge.f32.partialorder %v9571, 0.0
      %vm9604 = vcmp.ge.f32.partialorder %v9572, 0.0
      %vm9605 = vcmp.ge.f32.partialorder %v9573, 0.0
      %vm9606 = vcmp.ge.f32.partialorder %v9574, 0.0
      %vm9607 = vcmp.ge.f32.partialorder %v9575, 0.0
      %vm9608 = vcmp.ge.f32.partialorder %v9576, 0.0
      %vm9609 = vcmp.ge.f32.partialorder %v9577, 0.0
      %vm9610 = vcmp.ge.f32.partialorder %v9578, 0.0
      %vm9611 = vcmp.ge.f32.partialorder %v9579, 0.0
      %vm9612 = vcmp.ge.f32.partialorder %v9580, 0.0
      %vm9613 = vcmp.ge.f32.partialorder %v9581, 0.0
      %vm9614 = vcmp.ge.f32.partialorder %v9582, 0.0
      %vm9615 = vcmp.ge.f32.partialorder %v9583, 0.0
      %vm9616 = vcmp.ge.f32.partialorder %v9584, 0.0
      %vm9617 = vcmp.ge.f32.partialorder %v9585, 0.0
      %vm9618 = vcmp.ge.f32.partialorder %v9586, 0.0
      %vm9619 = vcmp.ge.f32.partialorder %v9587, 0.0
      %v9620 = vmul.f32 %v9556, 0.01
      %v9621 = vmul.f32 %v9557, 0.01
      %v9622 = vmul.f32 %v9558, 0.01
      %v9623 = vmul.f32 %v9559, 0.01
      %v9624 = vmul.f32 %v9560, 0.01
      %v9625 = vmul.f32 %v9561, 0.01
      %v9626 = vmul.f32 %v9562, 0.01
      %v9627 = vmul.f32 %v9563, 0.01
      %v9628 = vmul.f32 %v9564, 0.01
      %v9629 = vmul.f32 %v9565, 0.01
      %v9630 = vmul.f32 %v9566, 0.01
      %v9631 = vmul.f32 %v9567, 0.01
      %v9632 = vmul.f32 %v9568, 0.01
      %v9633 = vmul.f32 %v9569, 0.01
      %v9634 = vmul.f32 %v9570, 0.01
      %v9635 = vmul.f32 %v9571, 0.01
      %v9636 = vmul.f32 %v9572, 0.01
      %v9637 = vmul.f32 %v9573, 0.01
      %v9638 = vmul.f32 %v9574, 0.01
      %v9639 = vmul.f32 %v9575, 0.01
      %v9640 = vmul.f32 %v9576, 0.01
      %v9641 = vmul.f32 %v9577, 0.01
      %v9642 = vmul.f32 %v9578, 0.01
      %v9643 = vmul.f32 %v9579, 0.01
      %v9644 = vmul.f32 %v9580, 0.01
      %v9645 = vmul.f32 %v9581, 0.01
      %v9646 = vmul.f32 %v9582, 0.01
      %v9647 = vmul.f32 %v9583, 0.01
      %v9648 = vmul.f32 %v9584, 0.01
      %v9649 = vmul.f32 %v9585, 0.01
      %v9650 = vmul.f32 %v9586, 0.01
      %v9651 = vmul.f32 %v9587, 0.01
      %v9652 = vsel %vm9588, %v9556, %v9620
      %v9653 = vsel %vm9589, %v9557, %v9621
      %v9654 = vsel %vm9590, %v9558, %v9622
      %v9655 = vsel %vm9591, %v9559, %v9623
      %v9656 = vsel %vm9592, %v9560, %v9624
      %v9657 = vsel %vm9593, %v9561, %v9625
      %v9658 = vsel %vm9594, %v9562, %v9626
      %v9659 = vsel %vm9595, %v9563, %v9627
      %v9660 = vsel %vm9596, %v9564, %v9628
      %v9661 = vsel %vm9597, %v9565, %v9629
      %v9662 = vsel %vm9598, %v9566, %v9630
      %v9663 = vsel %vm9599, %v9567, %v9631
      %v9664 = vsel %vm9600, %v9568, %v9632
      %v9665 = vsel %vm9601, %v9569, %v9633
      %v9666 = vsel %vm9602, %v9570, %v9634
      %v9667 = vsel %vm9603, %v9571, %v9635
      %v9668 = vsel %vm9604, %v9572, %v9636
      %v9669 = vsel %vm9605, %v9573, %v9637
      %v9670 = vsel %vm9606, %v9574, %v9638
      %v9671 = vsel %vm9607, %v9575, %v9639
      %v9672 = vsel %vm9608, %v9576, %v9640
      %v9673 = vsel %vm9609, %v9577, %v9641
      %v9674 = vsel %vm9610, %v9578, %v9642
      %v9675 = vsel %vm9611, %v9579, %v9643
      %v9676 = vsel %vm9612, %v9580, %v9644
      %v9677 = vsel %vm9613, %v9581, %v9645
      %v9678 = vsel %vm9614, %v9582, %v9646
      %v9679 = vsel %vm9615, %v9583, %v9647
      %v9680 = vsel %vm9616, %v9584, %v9648
      %v9681 = vsel %vm9617, %v9585, %v9649
      %v9682 = vsel %vm9618, %v9586, %v9650
      %v9683 = vsel %vm9619, %v9587, %v9651
      %9684 = vst.msk [vmem:[%s244] sm:$0xff] %vm399, %v9652
      %9685 = vst.msk [vmem:[%s244 + $0x8] sm:$0xff] %vm399, %v9653
      %9686 = vst.msk [vmem:[%s244 + $0x10] sm:$0xff] %vm399, %v9654
      %9687 = vst.msk [vmem:[%s244 + $0x18] sm:$0xff] %vm399, %v9655
      %9688 = vst.msk [vmem:[%s244 + $0x20] sm:$0xff] %vm399, %v9656
      %9689 = vst.msk [vmem:[%s244 + $0x28] sm:$0xff] %vm399, %v9657
      %9690 = vst.msk [vmem:[%s244 + $0x30] sm:$0xff] %vm399, %v9658
      %9691 = vst.msk [vmem:[%s244 + $0x38] sm:$0xff] %vm399, %v9659
      %9692 = vst.msk [vmem:[%s244 + $0x40] sm:$0xff] %vm399, %v9660
      %9693 = vst.msk [vmem:[%s244 + $0x48] sm:$0xff] %vm399, %v9661
      %9694 = vst.msk [vmem:[%s244 + $0x50] sm:$0xff] %vm399, %v9662
      %9695 = vst.msk [vmem:[%s244 + $0x58] sm:$0xff] %vm399, %v9663
      %9696 = vst.msk [vmem:[%s244 + $0x60] sm:$0xff] %vm399, %v9664
      %9697 = vst.msk [vmem:[%s244 + $0x68] sm:$0xff] %vm399, %v9665
      %9698 = vst.msk [vmem:[%s244 + $0x70] sm:$0xff] %vm399, %v9666
      %9699 = vst.msk [vmem:[%s244 + $0x78] sm:$0xff] %vm399, %v9667
      %9700 = vst.msk [vmem:[%s244 + $0x80] sm:$0xff] %vm399, %v9668
      %9701 = vst.msk [vmem:[%s244 + $0x88] sm:$0xff] %vm399, %v9669
      %9702 = vst.msk [vmem:[%s244 + $0x90] sm:$0xff] %vm399, %v9670
      %9703 = vst.msk [vmem:[%s244 + $0x98] sm:$0xff] %vm399, %v9671
      %9704 = vst.msk [vmem:[%s244 + $0xa0] sm:$0xff] %vm399, %v9672
      %9705 = vst.msk [vmem:[%s244 + $0xa8] sm:$0xff] %vm399, %v9673
      %9706 = vst.msk [vmem:[%s244 + $0xb0] sm:$0xff] %vm399, %v9674
      %9707 = vst.msk [vmem:[%s244 + $0xb8] sm:$0xff] %vm399, %v9675
      %9708 = vst.msk [vmem:[%s244 + $0xc0] sm:$0xff] %vm399, %v9676
      %9709 = vst.msk [vmem:[%s244 + $0xc8] sm:$0xff] %vm399, %v9677
      %9710 = vst.msk [vmem:[%s244 + $0xd0] sm:$0xff] %vm399, %v9678
      %9711 = vst.msk [vmem:[%s244 + $0xd8] sm:$0xff] %vm399, %v9679
      %9712 = vst.msk [vmem:[%s244 + $0xe0] sm:$0xff] %vm399, %v9680
      %9713 = vst.msk [vmem:[%s244 + $0xe8] sm:$0xff] %vm399, %v9681
      %9714 = vst.msk [vmem:[%s244 + $0xf0] sm:$0xff] %vm399, %v9682
      %9715 = vst.msk [vmem:[%s244 + $0xf8] sm:$0xff] %vm399, %v9683
      %p9716 = scmp.lt.s32.totalorder %s16, 1
      %s9717 = scalar_select %p9716, %s16, 1
      %s9718 = smul.addr %s9717, 32
      %s9719 = smul.addr %s9718, 8
      %s9720 = scalar_lea.vmem %s5, %s9719
      // Predicated region
      $region41: #{decoder_forward.3} parent=39 // pred_check
        %p9721 = pneg %p149
      $region42: #{decoder_forward.3} parent=39 // pred_check_branch
        %9723 = sbr.rel (%p9721) target = $region44
      $region43: #{decoder_forward.3} parent=39 // pred_region
        _
      $region44: #{decoder_forward.3} parent=39 // pred_fallthru
        _
    $region40: #{decoder_forward.3} parent=5 // pred_fallthru
      _
    %p9724 = scmp.le.s32.totalorder 2, %s11
    // Predicated region
    $region45: #{decoder_forward.3} parent=5 // pred_check
      %p9725 = pneg %p9724
    $region46: #{decoder_forward.3} parent=5 // pred_check_branch
      %9727 = sbr.rel (%p9725) target = $region48
    $region47: #{decoder_forward.3} parent=5 // pred_region
      %s9728 = ssub.s32 %s11, 2
      // Predicated region
      $region49: #{decoder_forward.3} parent=47 // pred_check
        %p9729 = pneg %p155
      $region50: #{decoder_forward.3} parent=47 // pred_check_branch
        %9731 = sbr.rel (%p9729) target = $region52
      $region51: #{decoder_forward.3} parent=47 // pred_region
        %p9732 = scmp.lt.s32.totalorder %s17, 1
        %s9733 = scalar_select %p9732, %s17, 1
        %s9734 = smul.addr %s9733, 32
        %s9735 = smul.addr %s9734, 8
        %s9736 = scalar_lea.vmem %s5, %s9735
      $region52: #{decoder_forward.3} parent=47 // pred_fallthru
        _
    $region48: #{decoder_forward.3} parent=5 // pred_fallthru
      _
  $region6: #{decoder_forward.3} parent=0 // loop_footer
    %s15 = sadd.s32 1, %s11
  $region7: #{decoder_forward.3} parent=0 // loop_footer_branch
    %10 = sbr.rel target = $region3
  $region8: #{decoder_forward.3} parent=0 // loop_exit
    _

</llo_original>
